<compile_context>
chip_gen: v5e
topology: v5e:2x2
jax: 0.10.0
libtpu: 0.0.40
codegen_flags: <defaults>
</compile_context>

<pallas_src>
import math
import functools

import jax
import jax.numpy as jnp
from jax import lax
from jax.experimental import pallas as pl
from jax.experimental.pallas import tpu as pltpu


def _mha_kernel(x_ref, wq_ref, wk_ref, wv_ref,
                bq_ref, bk_ref, bv_ref,
                wo_ref, bo_ref,
                o_ref,
                k_sc, v_sc, ctx_sc,
                *, num_heads, head_dim, q_tile,
                use_bf16_matmul, approx_recip):
    H, Dh, Tq = num_heads, head_dim, q_tile
    qi = pl.program_id(1)

    mxu_dtype = jnp.bfloat16 if use_bf16_matmul else jnp.float32

    def mm(a, b, dn=None):
        a = a.astype(mxu_dtype)
        b = b.astype(mxu_dtype)
        if dn is None:
            return jnp.dot(a, b, preferred_element_type=jnp.float32)
        return lax.dot_general(a, b, dimension_numbers=dn,
                               preferred_element_type=jnp.float32)

    # nn.Linear stores W as [out, in]; contract x's feature dim against W dim 1
    # directly (y = x @ W.T) -- no transpose materialized on host or in-kernel.
    wt_dn = (((1,), (1,)), ((), ()))
    qk_dn = (((1,), (1,)), ((), ()))

    # ---- K / V projections: once per batch element, kept in VMEM scratch ----
    @pl.when(qi == 0)
    def _():
        xf = x_ref[0]                                           # [Sp, E]
        k_sc[...] = (mm(xf, wk_ref[...], wt_dn) + bk_ref[...]).astype(k_sc.dtype)
        v_sc[...] = (mm(xf, wv_ref[...], wt_dn) + bv_ref[...]).astype(v_sc.dtype)

    # ---- Q projection for this q-tile ----
    q_start = pl.multiple_of(qi * Tq, Tq)
    xq = x_ref[0, pl.ds(q_start, Tq), :]                        # [Tq, E]
    q = mm(xq, wq_ref[...], wt_dn) + bq_ref[...]                # [Tq, E], f32
    # Fold the 1/sqrt(Dh) score scale into q once (one [Tq,E] mul, not H [Tq,Tk]).
    q = q * jnp.float32(1.0 / math.sqrt(Dh))

    # Within-block causal bias for the DIAGONAL k-tile only (Tk == Tq, so the
    # local pattern is identical for every q-tile).  Off-diagonal (kt < qi)
    # k-tiles are fully visible and need no mask work.
    row = lax.broadcasted_iota(jnp.int32, (Tq, Tq), 0)
    col = lax.broadcasted_iota(jnp.int32, (Tq, Tq), 1)
    diag_bias = jnp.where(col > row, jnp.float32(-1e30), jnp.float32(0.0))

    for h in range(H):                                          # static unroll, H small
        qh = q[:, h * Dh:(h + 1) * Dh]                          # [Tq, Dh]

        def kt_body(kt, carry, qh=qh, h=h):
            m_i, l_i, acc = carry
            k_start = pl.multiple_of(kt * Tq, Tq)
            kh = k_sc[pl.ds(k_start, Tq), pl.ds(h * Dh, Dh)]    # [Tk, Dh]
            vh = v_sc[pl.ds(k_start, Tq), pl.ds(h * Dh, Dh)]    # [Tk, Dh]
            s = mm(qh, kh, qk_dn)                               # [Tq, Tk] f32
            # Mask only the diagonal block (kt == qi).
            s = s + diag_bias * (kt == qi).astype(jnp.float32)
            m_new = jnp.maximum(m_i, jnp.max(s, axis=-1, keepdims=True))
            alpha = jnp.exp(m_i - m_new)
            p = jnp.exp(s - m_new)
            l_new = alpha * l_i + jnp.sum(p, axis=-1, keepdims=True)
            acc_new = alpha * acc + mm(p, vh)                   # [Tq, Dh]
            return m_new, l_new, acc_new

        m0 = jnp.full((Tq, 1), -jnp.inf, dtype=jnp.float32)
        l0 = jnp.zeros((Tq, 1), dtype=jnp.float32)
        a0 = jnp.zeros((Tq, Dh), dtype=jnp.float32)
        # Causal block skipping: only k-tiles 0..qi contribute for this q-tile.
        _, l_f, acc_f = lax.fori_loop(0, qi + 1, kt_body, (m0, l0, a0))

        # Normalize AFTER the PV matmul ([Tq,Dh] mul, not [Tq,Tk]); write the
        # head's columns into the lane-dense scratch (no concat, bounded liveness).
        inv_l = pl.reciprocal(l_f, approx=approx_recip)
        ctx_sc[:, pl.ds(h * Dh, Dh)] = acc_f * inv_l

    # ---- output projection from the lane-dense [Tq, E] scratch ----
    out = mm(ctx_sc[...], wo_ref[...], wt_dn) + bo_ref[...]
    o_ref[0] = out.astype(o_ref.dtype)


def masked_mha_pallas(x, params, num_heads, *, q_tile=128,
                      use_bf16_matmul=False, approx_recip=False):
    """x: [B, S, E] float32. params: PyTorch-layout Linear weights ([out,in]) / biases."""
    B, S, E = x.shape
    assert E % num_heads == 0
    Dh = E // num_heads

    # Choose/clamp the q-tile and pad S so it divides evenly.  Zero-padded key
    # rows are hidden by the causal mask; padded query rows are sliced off.
    if S <= q_tile:
        q_tile = max(8, ((S + 7) // 8) * 8)
    Sp = ((S + q_tile - 1) // q_tile) * q_tile
    if Sp != S:
        x = jnp.pad(x, ((0, 0), (0, Sp - S), (0, 0)))
    NQ = Sp // q_tile

    bq = params["bq"].reshape(1, E)
    bk = params["bk"].reshape(1, E)
    bv = params["bv"].reshape(1, E)
    bo = params["bo"].reshape(1, E)

    kv_dtype = jnp.bfloat16 if use_bf16_matmul else jnp.float32

    kernel = functools.partial(
        _mha_kernel, num_heads=num_heads, head_dim=Dh, q_tile=q_tile,
        use_bf16_matmul=use_bf16_matmul, approx_recip=approx_recip)

    weight_spec = pl.BlockSpec((E, E), lambda b, qi: (0, 0))
    bias_spec = pl.BlockSpec((1, E), lambda b, qi: (0, 0))

    out = pl.pallas_call(
        kernel,
        out_shape=jax.ShapeDtypeStruct((B, Sp, E), x.dtype),
        grid_spec=pltpu.PrefetchScalarGridSpec(
            num_scalar_prefetch=0,
            grid=(B, NQ),
            in_specs=[
                pl.BlockSpec((1, Sp, E), lambda b, qi: (b, 0, 0)),   # x (full seq)
                weight_spec, weight_spec, weight_spec,               # wq, wk, wv
                bias_spec, bias_spec, bias_spec,                     # bq, bk, bv
                weight_spec,                                         # wo
                bias_spec,                                           # bo
            ],
            out_specs=pl.BlockSpec((1, q_tile, E), lambda b, qi: (b, qi, 0)),
            scratch_shapes=[
                pltpu.VMEM((Sp, E), kv_dtype),         # K, all positions of this batch
                pltpu.VMEM((Sp, E), kv_dtype),         # V
                pltpu.VMEM((q_tile, E), jnp.float32),  # per-q-tile head outputs
            ],
        ),
        compiler_params=pltpu.CompilerParams(
            # Batch axis is megacore-parallel; q-tile axis is sequential because
            # the K/V scratch is filled at qi == 0 and reused by later q-tiles.
            dimension_semantics=("parallel", "arbitrary")),
    )(x, params["wq"], params["wk"], params["wv"], bq, bk, bv,
      params["wo"], bo)

    return out[:, :S, :] if Sp != S else out


def masked_mha_ref(x, params, num_heads):
    """Plain-JAX reference matching the PyTorch forward."""
    B, S, E = x.shape
    Dh = E // num_heads
    q = x @ params["wq"].T + params["bq"]
    k = x @ params["wk"].T + params["bk"]
    v = x @ params["wv"].T + params["bv"]
    q = q.reshape(B, S, num_heads, Dh).transpose(0, 2, 1, 3)
    k = k.reshape(B, S, num_heads, Dh).transpose(0, 2, 1, 3)
    v = v.reshape(B, S, num_heads, Dh).transpose(0, 2, 1, 3)
    scores = jnp.einsum("bhqd,bhkd->bhqk", q, k) / math.sqrt(Dh)
    mask = jnp.triu(jnp.ones((S, S), dtype=bool), k=1)
    scores = jnp.where(mask[None, None], -jnp.inf, scores)
    attn = jax.nn.softmax(scores, axis=-1)
    out = jnp.einsum("bhqk,bhkd->bhqd", attn, v)
    out = out.transpose(0, 2, 1, 3).reshape(B, S, E)
    return out @ params["wo"].T + params["bo"]


if __name__ == "__main__":
    # Small shapes consistent with the module (embed % heads == 0).
    batch = 2
    seq = 256
    embed = 256
    heads = 8

    key = jax.random.PRNGKey(0)
    keys = jax.random.split(key, 9)
    scale = 0.02
    params = {
        "wq": jax.random.normal(keys[0], (embed, embed), jnp.float32) * scale,
        "bq": jax.random.normal(keys[1], (embed,), jnp.float32) * scale,
        "wk": jax.random.normal(keys[2], (embed, embed), jnp.float32) * scale,
        "bk": jax.random.normal(keys[3], (embed,), jnp.float32) * scale,
        "wv": jax.random.normal(keys[4], (embed, embed), jnp.float32) * scale,
        "bv": jax.random.normal(keys[5], (embed,), jnp.float32) * scale,
        "wo": jax.random.normal(keys[6], (embed, embed), jnp.float32) * scale,
        "bo": jax.random.normal(keys[7], (embed,), jnp.float32) * scale,
    }
    x = jax.random.normal(keys[8], (batch, seq, embed), jnp.float32)

    ref = masked_mha_ref(x, params, heads)

    # 1) exact f32 path, multi-q-tile causal flash (strict tolerance).
    out = jax.block_until_ready(masked_mha_pallas(x, params, heads, q_tile=128))
    assert out.shape == (batch, seq, embed)
    err = jnp.max(jnp.abs(out - ref))
    assert jnp.allclose(out, ref, atol=1e-4, rtol=1e-4), f"f32 max abs err {err}"

    # 2) ragged sequence length (exercises the wrapper padding + causal masking).
    seq2 = 200
    x2 = x[:, :seq2, :]
    ref2 = masked_mha_ref(x2, params, heads)
    out2 = jax.block_until_ready(masked_mha_pallas(x2, params, heads, q_tile=128))
    assert out2.shape == (batch, seq2, embed)
    err2 = jnp.max(jnp.abs(out2 - ref2))
    assert jnp.allclose(out2, ref2, atol=1e-4, rtol=1e-4), f"padded max abs err {err2}"

    # 3) production path: bf16 MXU operands + EUP approx reciprocal (loose check).
    out_bf16 = jax.block_until_ready(
        masked_mha_pallas(x, params, heads, q_tile=128,
                          use_bf16_matmul=True, approx_recip=True))
    err_bf16 = jnp.max(jnp.abs(out_bf16 - ref))
    assert err_bf16 < 5e-2, f"bf16 max abs err {err_bf16}"

    print("KERNEL_OK")
</pallas_src>

<mosaic_0001>
module attributes {stable_mosaic.version = 11 : i64} {
  func.func @_mha_kernel(%arg0: i32, %arg1: i32, %arg2: memref<1x256x256xf32, #tpu.memory_space<vmem>>, %arg3: memref<256x256xf32, #tpu.memory_space<vmem>>, %arg4: memref<256x256xf32, #tpu.memory_space<vmem>>, %arg5: memref<256x256xf32, #tpu.memory_space<vmem>>, %arg6: memref<1x256xf32, #tpu.memory_space<vmem>>, %arg7: memref<1x256xf32, #tpu.memory_space<vmem>>, %arg8: memref<1x256xf32, #tpu.memory_space<vmem>>, %arg9: memref<256x256xf32, #tpu.memory_space<vmem>>, %arg10: memref<1x256xf32, #tpu.memory_space<vmem>>, %arg11: memref<1x128x256xf32, #tpu.memory_space<vmem>>, %arg12: memref<256x256xf32, #tpu.memory_space<vmem>>, %arg13: memref<256x256xf32, #tpu.memory_space<vmem>>, %arg14: memref<128x256xf32, #tpu.memory_space<vmem>>) attributes {dimension_semantics = [#tpu.dimension_semantics<parallel>, #tpu.dimension_semantics<arbitrary>], iteration_bounds = array<i64: 2, 2>, scalar_prefetch = 0 : i64, scratch_operands = 3 : i64, tpu.core_type = #tpu.core_type<tc>, window_params = [{transform_indices = @transform_0, window_bounds = array<i64: 1, 256, 256>}, {pipeline_mode = #tpu.pipeline_mode<synchronous>, transform_indices = @transform_1, window_bounds = array<i64: 256, 256>}, {pipeline_mode = #tpu.pipeline_mode<synchronous>, transform_indices = @transform_2, window_bounds = array<i64: 256, 256>}, {pipeline_mode = #tpu.pipeline_mode<synchronous>, transform_indices = @transform_3, window_bounds = array<i64: 256, 256>}, {pipeline_mode = #tpu.pipeline_mode<synchronous>, transform_indices = @transform_4, window_bounds = array<i64: 1, 256>}, {pipeline_mode = #tpu.pipeline_mode<synchronous>, transform_indices = @transform_5, window_bounds = array<i64: 1, 256>}, {pipeline_mode = #tpu.pipeline_mode<synchronous>, transform_indices = @transform_6, window_bounds = array<i64: 1, 256>}, {pipeline_mode = #tpu.pipeline_mode<synchronous>, transform_indices = @transform_7, window_bounds = array<i64: 256, 256>}, {pipeline_mode = #tpu.pipeline_mode<synchronous>, transform_indices = @transform_8, window_bounds = array<i64: 1, 256>}, {transform_indices = @transform_9, window_bounds = array<i64: 1, 128, 256>}]} {
    %c0_i32 = arith.constant 0 : i32
    %0 = arith.cmpi eq, %arg1, %c0_i32 : i32
    %1 = arith.extui %0 : i1 to i32
    %c0_i32_0 = arith.constant 0 : i32
    %2 = arith.cmpi ne, %1, %c0_i32_0 : i32
    scf.if %2 {
      %c0_75 = arith.constant 0 : index
      %c0_76 = arith.constant 0 : index
      %c0_77 = arith.constant 0 : index
      %126 = vector.load %arg2[%c0_75, %c0_76, %c0_77] : memref<1x256x256xf32, #tpu.memory_space<vmem>>, vector<1x256x256xf32>
      %127 = vector.shape_cast %126 : vector<1x256x256xf32> to vector<256x256xf32>
      %c0_78 = arith.constant 0 : index
      %c0_79 = arith.constant 0 : index
      %128 = vector.load %arg4[%c0_78, %c0_79] : memref<256x256xf32, #tpu.memory_space<vmem>>, vector<256x256xf32>
      %cst_80 = arith.constant dense<0.000000e+00> : vector<256x256xf32>
      %129 = tpu.matmul %127, %128, %cst_80 {dimension_numbers = #tpu.dot_dimension_numbers<[1], [1], [0], [0], [0, 0, 1, 0], [], []>} : vector<256x256xf32>, vector<256x256xf32>, vector<256x256xf32> -> vector<256x256xf32>
      %c0_81 = arith.constant 0 : index
      %c0_82 = arith.constant 0 : index
      %130 = vector.load %arg7[%c0_81, %c0_82] : memref<1x256xf32, #tpu.memory_space<vmem>>, vector<1x256xf32>
      %131 = vector.broadcast %130 : vector<1x256xf32> to vector<256x256xf32>
      %132 = arith.addf %129, %131 : vector<256x256xf32>
      %c0_83 = arith.constant 0 : index
      %c0_84 = arith.constant 0 : index
      %133 = vector.load %arg12[%c0_83, %c0_84] : memref<256x256xf32, #tpu.memory_space<vmem>>, vector<256x256xf32>
      tpu.vector_store %arg12[%c0_83, %c0_84], %132 {strides = array<i32>} : memref<256x256xf32, #tpu.memory_space<vmem>>, vector<256x256xf32>,
      %c0_85 = arith.constant 0 : index
      %c0_86 = arith.constant 0 : index
      %134 = vector.load %arg5[%c0_85, %c0_86] : memref<256x256xf32, #tpu.memory_space<vmem>>, vector<256x256xf32>
      %cst_87 = arith.constant dense<0.000000e+00> : vector<256x256xf32>
      %135 = tpu.matmul %127, %134, %cst_87 {dimension_numbers = #tpu.dot_dimension_numbers<[1], [1], [0], [0], [0, 0, 1, 0], [], []>} : vector<256x256xf32>, vector<256x256xf32>, vector<256x256xf32> -> vector<256x256xf32>
      %c0_88 = arith.constant 0 : index
      %c0_89 = arith.constant 0 : index
      %136 = vector.load %arg8[%c0_88, %c0_89] : memref<1x256xf32, #tpu.memory_space<vmem>>, vector<1x256xf32>
      %137 = vector.broadcast %136 : vector<1x256xf32> to vector<256x256xf32>
      %138 = arith.addf %135, %137 : vector<256x256xf32>
      %c0_90 = arith.constant 0 : index
      %c0_91 = arith.constant 0 : index
      %139 = vector.load %arg13[%c0_90, %c0_91] : memref<256x256xf32, #tpu.memory_space<vmem>>, vector<256x256xf32>
      tpu.vector_store %arg13[%c0_90, %c0_91], %138 {strides = array<i32>} : memref<256x256xf32, #tpu.memory_space<vmem>>, vector<256x256xf32>,
    } else {
    }
    %c128_i32 = arith.constant 128 : i32
    %3 = arith.muli %arg1, %c128_i32 : i32
    %4 = tpu.assume_multiple %3, 128 : i32
    %c0 = arith.constant 0 : index
    %5 = arith.index_cast %4 : i32 to index
    %c0_1 = arith.constant 0 : index
    %6 = vector.load %arg2[%c0, %5, %c0_1] : memref<1x256x256xf32, #tpu.memory_space<vmem>>, vector<1x128x256xf32>
    %7 = vector.shape_cast %6 : vector<1x128x256xf32> to vector<128x256xf32>
    %c0_2 = arith.constant 0 : index
    %c0_3 = arith.constant 0 : index
    %8 = vector.load %arg3[%c0_2, %c0_3] : memref<256x256xf32, #tpu.memory_space<vmem>>, vector<256x256xf32>
    %cst = arith.constant dense<0.000000e+00> : vector<128x256xf32>
    %9 = tpu.matmul %7, %8, %cst {dimension_numbers = #tpu.dot_dimension_numbers<[1], [1], [0], [0], [0, 0, 1, 0], [], []>} : vector<128x256xf32>, vector<256x256xf32>, vector<128x256xf32> -> vector<128x256xf32>
    %c0_4 = arith.constant 0 : index
    %c0_5 = arith.constant 0 : index
    %10 = vector.load %arg6[%c0_4, %c0_5] : memref<1x256xf32, #tpu.memory_space<vmem>>, vector<1x256xf32>
    %11 = vector.broadcast %10 : vector<1x256xf32> to vector<128x256xf32>
    %12 = arith.addf %9, %11 : vector<128x256xf32>
    %cst_6 = arith.constant 0.176776692 : f32
    %13 = vector.broadcast %cst_6 : f32 to vector<128x256xf32>
    %14 = arith.mulf %12, %13 : vector<128x256xf32>
    %15 = tpu.iota {dimensions = array<i32: 0>} : vector<128x128xi32>
    %16 = tpu.iota {dimensions = array<i32: 1>} : vector<128x128xi32>
    %17 = arith.cmpi sgt, %16, %15 : vector<128x128xi32>
    %cst_7 = arith.constant -1.000000e+30 : f32
    %cst_8 = arith.constant 0.000000e+00 : f32
    %18 = vector.broadcast %cst_7 : f32 to vector<128x128xf32>
    %19 = vector.broadcast %cst_8 : f32 to vector<128x128xf32>
    %20 = arith.select %17, %18, %19 : vector<128x128xi1>, vector<128x128xf32>
    %21 = vector.extract_strided_slice %14 {offsets = [0, 0], sizes = [128, 32], strides = [1, 1]} : vector<128x256xf32> to vector<128x32xf32>
    %cst_9 = arith.constant 0xFF800000 : f32
    %22 = vector.broadcast %cst_9 : f32 to vector<128x1xf32>
    %cst_10 = arith.constant 0.000000e+00 : f32
    %23 = vector.broadcast %cst_10 : f32 to vector<128x1xf32>
    %cst_11 = arith.constant 0.000000e+00 : f32
    %24 = vector.broadcast %cst_11 : f32 to vector<128x32xf32>
    %c1_i32 = arith.constant 1 : i32
    %25 = arith.addi %arg1, %c1_i32 : i32
    %c0_i32_12 = arith.constant 0 : i32
    %26 = arith.subi %25, %c0_i32_12 : i32
    %27 = arith.addi %c0_i32_12, %26 : i32
    %c1_i32_13 = arith.constant 1 : i32
    %28:3 = scf.for %arg15 = %c0_i32_12 to %27 step %c1_i32_13 iter_args(%arg16 = %22, %arg17 = %23, %arg18 = %24) -> (vector<128x1xf32>, vector<128x1xf32>, vector<128x32xf32>)  : i32 {
      %c128_i32_75 = arith.constant 128 : i32
      %126 = arith.muli %arg15, %c128_i32_75 : i32
      %127 = tpu.assume_multiple %126, 128 : i32
      %128 = arith.index_cast %127 : i32 to index
      %c0_76 = arith.constant 0 : index
      %129 = vector.load %arg12[%128, %c0_76] : memref<256x256xf32, #tpu.memory_space<vmem>>, vector<128x32xf32>
      %130 = arith.index_cast %127 : i32 to index
      %c0_77 = arith.constant 0 : index
      %131 = vector.load %arg13[%130, %c0_77] : memref<256x256xf32, #tpu.memory_space<vmem>>, vector<128x32xf32>
      %cst_78 = arith.constant dense<0.000000e+00> : vector<128x128xf32>
      %132 = tpu.matmul %21, %129, %cst_78 {dimension_numbers = #tpu.dot_dimension_numbers<[1], [1], [0], [0], [0, 0, 1, 0], [], []>} : vector<128x32xf32>, vector<128x32xf32>, vector<128x128xf32> -> vector<128x128xf32>
      %133 = arith.cmpi eq, %arg15, %arg1 : i32
      %134 = arith.extui %133 : i1 to i32
      %135 = arith.sitofp %134 : i32 to f32
      %136 = vector.broadcast %135 : f32 to vector<128x128xf32>
      %137 = arith.mulf %20, %136 : vector<128x128xf32>
      %138 = arith.addf %132, %137 : vector<128x128xf32>
      %cst_79 = arith.constant dense<0xFF800000> : vector<128xf32>
      %139 = vector.multi_reduction <maximumf>, %138, %cst_79 [1] : vector<128x128xf32> to vector<128xf32>
      %140 = vector.shape_cast %139 : vector<128xf32> to vector<128x1xf32>
      %141 = arith.maximumf %arg16, %140 : vector<128x1xf32>
      %142 = arith.subf %arg16, %141 : vector<128x1xf32>
      %143 = math.exp %142 : vector<128x1xf32>
      %144 = vector.broadcast %141 : vector<128x1xf32> to vector<128x128xf32>
      %145 = arith.subf %138, %144 : vector<128x128xf32>
      %146 = math.exp %145 : vector<128x128xf32>
      %147 = arith.mulf %143, %arg17 : vector<128x1xf32>
      %cst_80 = arith.constant dense<0.000000e+00> : vector<128xf32>
      %148 = vector.multi_reduction <add>, %146, %cst_80 [1] : vector<128x128xf32> to vector<128xf32>
      %149 = vector.shape_cast %148 : vector<128xf32> to vector<128x1xf32>
      %150 = arith.addf %147, %149 : vector<128x1xf32>
      %151 = vector.broadcast %143 : vector<128x1xf32> to vector<128x32xf32>
      %152 = arith.mulf %151, %arg18 : vector<128x32xf32>
      %cst_81 = arith.constant dense<0.000000e+00> : vector<128x32xf32>
      %153 = tpu.matmul %146, %131, %cst_81 {dimension_numbers = #tpu.dot_dimension_numbers<[1], [0], [0], [1], [0, 0, 1, 1], [], []>} : vector<128x128xf32>, vector<128x32xf32>, vector<128x32xf32> -> vector<128x32xf32>
      %154 = arith.addf %152, %153 : vector<128x32xf32>
      scf.yield %141, %150, %154 : vector<128x1xf32>, vector<128x1xf32>, vector<128x32xf32>
    }
    %29 = tpu.reciprocal %28#1 : vector<128x1xf32> -> vector<128x1xf32>
    %30 = vector.broadcast %29 : vector<128x1xf32> to vector<128x32xf32>
    %31 = arith.mulf %28#2, %30 : vector<128x32xf32>
    %c0_14 = arith.constant 0 : index
    %c0_15 = arith.constant 0 : index
    %32 = vector.load %arg14[%c0_14, %c0_15] : memref<128x256xf32, #tpu.memory_space<vmem>>, vector<128x32xf32>
    tpu.vector_store %arg14[%c0_14, %c0_15], %31 {strides = array<i32>} : memref<128x256xf32, #tpu.memory_space<vmem>>, vector<128x32xf32>,
    %33 = vector.extract_strided_slice %14 {offsets = [0, 32], sizes = [128, 32], strides = [1, 1]} : vector<128x256xf32> to vector<128x32xf32>
    %cst_16 = arith.constant 0xFF800000 : f32
    %34 = vector.broadcast %cst_16 : f32 to vector<128x1xf32>
    %cst_17 = arith.constant 0.000000e+00 : f32
    %35 = vector.broadcast %cst_17 : f32 to vector<128x1xf32>
    %cst_18 = arith.constant 0.000000e+00 : f32
    %36 = vector.broadcast %cst_18 : f32 to vector<128x32xf32>
    %c1_i32_19 = arith.constant 1 : i32
    %37 = arith.addi %arg1, %c1_i32_19 : i32
    %c0_i32_20 = arith.constant 0 : i32
    %38 = arith.subi %37, %c0_i32_20 : i32
    %39 = arith.addi %c0_i32_20, %38 : i32
    %c1_i32_21 = arith.constant 1 : i32
    %40:3 = scf.for %arg15 = %c0_i32_20 to %39 step %c1_i32_21 iter_args(%arg16 = %34, %arg17 = %35, %arg18 = %36) -> (vector<128x1xf32>, vector<128x1xf32>, vector<128x32xf32>)  : i32 {
      %c128_i32_75 = arith.constant 128 : i32
      %126 = arith.muli %arg15, %c128_i32_75 : i32
      %127 = tpu.assume_multiple %126, 128 : i32
      %128 = arith.index_cast %127 : i32 to index
      %c32_76 = arith.constant 32 : index
      %129 = vector.load %arg12[%128, %c32_76] : memref<256x256xf32, #tpu.memory_space<vmem>>, vector<128x32xf32>
      %130 = arith.index_cast %127 : i32 to index
      %c32_77 = arith.constant 32 : index
      %131 = vector.load %arg13[%130, %c32_77] : memref<256x256xf32, #tpu.memory_space<vmem>>, vector<128x32xf32>
      %cst_78 = arith.constant dense<0.000000e+00> : vector<128x128xf32>
      %132 = tpu.matmul %33, %129, %cst_78 {dimension_numbers = #tpu.dot_dimension_numbers<[1], [1], [0], [0], [0, 0, 1, 0], [], []>} : vector<128x32xf32>, vector<128x32xf32>, vector<128x128xf32> -> vector<128x128xf32>
      %133 = arith.cmpi eq, %arg15, %arg1 : i32
      %134 = arith.extui %133 : i1 to i32
      %135 = arith.sitofp %134 : i32 to f32
      %136 = vector.broadcast %135 : f32 to vector<128x128xf32>
      %137 = arith.mulf %20, %136 : vector<128x128xf32>
      %138 = arith.addf %132, %137 : vector<128x128xf32>
      %cst_79 = arith.constant dense<0xFF800000> : vector<128xf32>
      %139 = vector.multi_reduction <maximumf>, %138, %cst_79 [1] : vector<128x128xf32> to vector<128xf32>
      %140 = vector.shape_cast %139 : vector<128xf32> to vector<128x1xf32>
      %141 = arith.maximumf %arg16, %140 : vector<128x1xf32>
      %142 = arith.subf %arg16, %141 : vector<128x1xf32>
      %143 = math.exp %142 : vector<128x1xf32>
      %144 = vector.broadcast %141 : vector<128x1xf32> to vector<128x128xf32>
      %145 = arith.subf %138, %144 : vector<128x128xf32>
      %146 = math.exp %145 : vector<128x128xf32>
      %147 = arith.mulf %143, %arg17 : vector<128x1xf32>
      %cst_80 = arith.constant dense<0.000000e+00> : vector<128xf32>
      %148 = vector.multi_reduction <add>, %146, %cst_80 [1] : vector<128x128xf32> to vector<128xf32>
      %149 = vector.shape_cast %148 : vector<128xf32> to vector<128x1xf32>
      %150 = arith.addf %147, %149 : vector<128x1xf32>
      %151 = vector.broadcast %143 : vector<128x1xf32> to vector<128x32xf32>
      %152 = arith.mulf %151, %arg18 : vector<128x32xf32>
      %cst_81 = arith.constant dense<0.000000e+00> : vector<128x32xf32>
      %153 = tpu.matmul %146, %131, %cst_81 {dimension_numbers = #tpu.dot_dimension_numbers<[1], [0], [0], [1], [0, 0, 1, 1], [], []>} : vector<128x128xf32>, vector<128x32xf32>, vector<128x32xf32> -> vector<128x32xf32>
      %154 = arith.addf %152, %153 : vector<128x32xf32>
      scf.yield %141, %150, %154 : vector<128x1xf32>, vector<128x1xf32>, vector<128x32xf32>
    }
    %41 = tpu.reciprocal %40#1 : vector<128x1xf32> -> vector<128x1xf32>
    %42 = vector.broadcast %41 : vector<128x1xf32> to vector<128x32xf32>
    %43 = arith.mulf %40#2, %42 : vector<128x32xf32>
    %c0_22 = arith.constant 0 : index
    %c32 = arith.constant 32 : index
    %44 = vector.load %arg14[%c0_22, %c32] : memref<128x256xf32, #tpu.memory_space<vmem>>, vector<128x32xf32>
    tpu.vector_store %arg14[%c0_22, %c32], %43 {strides = array<i32>} : memref<128x256xf32, #tpu.memory_space<vmem>>, vector<128x32xf32>,
    %45 = vector.extract_strided_slice %14 {offsets = [0, 64], sizes = [128, 32], strides = [1, 1]} : vector<128x256xf32> to vector<128x32xf32>
    %cst_23 = arith.constant 0xFF800000 : f32
    %46 = vector.broadcast %cst_23 : f32 to vector<128x1xf32>
    %cst_24 = arith.constant 0.000000e+00 : f32
    %47 = vector.broadcast %cst_24 : f32 to vector<128x1xf32>
    %cst_25 = arith.constant 0.000000e+00 : f32
    %48 = vector.broadcast %cst_25 : f32 to vector<128x32xf32>
    %c1_i32_26 = arith.constant 1 : i32
    %49 = arith.addi %arg1, %c1_i32_26 : i32
    %c0_i32_27 = arith.constant 0 : i32
    %50 = arith.subi %49, %c0_i32_27 : i32
    %51 = arith.addi %c0_i32_27, %50 : i32
    %c1_i32_28 = arith.constant 1 : i32
    %52:3 = scf.for %arg15 = %c0_i32_27 to %51 step %c1_i32_28 iter_args(%arg16 = %46, %arg17 = %47, %arg18 = %48) -> (vector<128x1xf32>, vector<128x1xf32>, vector<128x32xf32>)  : i32 {
      %c128_i32_75 = arith.constant 128 : i32
      %126 = arith.muli %arg15, %c128_i32_75 : i32
      %127 = tpu.assume_multiple %126, 128 : i32
      %128 = arith.index_cast %127 : i32 to index
      %c64_76 = arith.constant 64 : index
      %129 = vector.load %arg12[%128, %c64_76] : memref<256x256xf32, #tpu.memory_space<vmem>>, vector<128x32xf32>
      %130 = arith.index_cast %127 : i32 to index
      %c64_77 = arith.constant 64 : index
      %131 = vector.load %arg13[%130, %c64_77] : memref<256x256xf32, #tpu.memory_space<vmem>>, vector<128x32xf32>
      %cst_78 = arith.constant dense<0.000000e+00> : vector<128x128xf32>
      %132 = tpu.matmul %45, %129, %cst_78 {dimension_numbers = #tpu.dot_dimension_numbers<[1], [1], [0], [0], [0, 0, 1, 0], [], []>} : vector<128x32xf32>, vector<128x32xf32>, vector<128x128xf32> -> vector<128x128xf32>
      %133 = arith.cmpi eq, %arg15, %arg1 : i32
      %134 = arith.extui %133 : i1 to i32
      %135 = arith.sitofp %134 : i32 to f32
      %136 = vector.broadcast %135 : f32 to vector<128x128xf32>
      %137 = arith.mulf %20, %136 : vector<128x128xf32>
      %138 = arith.addf %132, %137 : vector<128x128xf32>
      %cst_79 = arith.constant dense<0xFF800000> : vector<128xf32>
      %139 = vector.multi_reduction <maximumf>, %138, %cst_79 [1] : vector<128x128xf32> to vector<128xf32>
      %140 = vector.shape_cast %139 : vector<128xf32> to vector<128x1xf32>
      %141 = arith.maximumf %arg16, %140 : vector<128x1xf32>
      %142 = arith.subf %arg16, %141 : vector<128x1xf32>
      %143 = math.exp %142 : vector<128x1xf32>
      %144 = vector.broadcast %141 : vector<128x1xf32> to vector<128x128xf32>
      %145 = arith.subf %138, %144 : vector<128x128xf32>
      %146 = math.exp %145 : vector<128x128xf32>
      %147 = arith.mulf %143, %arg17 : vector<128x1xf32>
      %cst_80 = arith.constant dense<0.000000e+00> : vector<128xf32>
      %148 = vector.multi_reduction <add>, %146, %cst_80 [1] : vector<128x128xf32> to vector<128xf32>
      %149 = vector.shape_cast %148 : vector<128xf32> to vector<128x1xf32>
      %150 = arith.addf %147, %149 : vector<128x1xf32>
      %151 = vector.broadcast %143 : vector<128x1xf32> to vector<128x32xf32>
      %152 = arith.mulf %151, %arg18 : vector<128x32xf32>
      %cst_81 = arith.constant dense<0.000000e+00> : vector<128x32xf32>
      %153 = tpu.matmul %146, %131, %cst_81 {dimension_numbers = #tpu.dot_dimension_numbers<[1], [0], [0], [1], [0, 0, 1, 1], [], []>} : vector<128x128xf32>, vector<128x32xf32>, vector<128x32xf32> -> vector<128x32xf32>
      %154 = arith.addf %152, %153 : vector<128x32xf32>
      scf.yield %141, %150, %154 : vector<128x1xf32>, vector<128x1xf32>, vector<128x32xf32>
    }
    %53 = tpu.reciprocal %52#1 : vector<128x1xf32> -> vector<128x1xf32>
    %54 = vector.broadcast %53 : vector<128x1xf32> to vector<128x32xf32>
    %55 = arith.mulf %52#2, %54 : vector<128x32xf32>
    %c0_29 = arith.constant 0 : index
    %c64 = arith.constant 64 : index
    %56 = vector.load %arg14[%c0_29, %c64] : memref<128x256xf32, #tpu.memory_space<vmem>>, vector<128x32xf32>
    tpu.vector_store %arg14[%c0_29, %c64], %55 {strides = array<i32>} : memref<128x256xf32, #tpu.memory_space<vmem>>, vector<128x32xf32>,
    %57 = vector.extract_strided_slice %14 {offsets = [0, 96], sizes = [128, 32], strides = [1, 1]} : vector<128x256xf32> to vector<128x32xf32>
    %cst_30 = arith.constant 0xFF800000 : f32
    %58 = vector.broadcast %cst_30 : f32 to vector<128x1xf32>
    %cst_31 = arith.constant 0.000000e+00 : f32
    %59 = vector.broadcast %cst_31 : f32 to vector<128x1xf32>
    %cst_32 = arith.constant 0.000000e+00 : f32
    %60 = vector.broadcast %cst_32 : f32 to vector<128x32xf32>
    %c1_i32_33 = arith.constant 1 : i32
    %61 = arith.addi %arg1, %c1_i32_33 : i32
    %c0_i32_34 = arith.constant 0 : i32
    %62 = arith.subi %61, %c0_i32_34 : i32
    %63 = arith.addi %c0_i32_34, %62 : i32
    %c1_i32_35 = arith.constant 1 : i32
    %64:3 = scf.for %arg15 = %c0_i32_34 to %63 step %c1_i32_35 iter_args(%arg16 = %58, %arg17 = %59, %arg18 = %60) -> (vector<128x1xf32>, vector<128x1xf32>, vector<128x32xf32>)  : i32 {
      %c128_i32_75 = arith.constant 128 : i32
      %126 = arith.muli %arg15, %c128_i32_75 : i32
      %127 = tpu.assume_multiple %126, 128 : i32
      %128 = arith.index_cast %127 : i32 to index
      %c96_76 = arith.constant 96 : index
      %129 = vector.load %arg12[%128, %c96_76] : memref<256x256xf32, #tpu.memory_space<vmem>>, vector<128x32xf32>
      %130 = arith.index_cast %127 : i32 to index
      %c96_77 = arith.constant 96 : index
      %131 = vector.load %arg13[%130, %c96_77] : memref<256x256xf32, #tpu.memory_space<vmem>>, vector<128x32xf32>
      %cst_78 = arith.constant dense<0.000000e+00> : vector<128x128xf32>
      %132 = tpu.matmul %57, %129, %cst_78 {dimension_numbers = #tpu.dot_dimension_numbers<[1], [1], [0], [0], [0, 0, 1, 0], [], []>} : vector<128x32xf32>, vector<128x32xf32>, vector<128x128xf32> -> vector<128x128xf32>
      %133 = arith.cmpi eq, %arg15, %arg1 : i32
      %134 = arith.extui %133 : i1 to i32
      %135 = arith.sitofp %134 : i32 to f32
      %136 = vector.broadcast %135 : f32 to vector<128x128xf32>
      %137 = arith.mulf %20, %136 : vector<128x128xf32>
      %138 = arith.addf %132, %137 : vector<128x128xf32>
      %cst_79 = arith.constant dense<0xFF800000> : vector<128xf32>
      %139 = vector.multi_reduction <maximumf>, %138, %cst_79 [1] : vector<128x128xf32> to vector<128xf32>
      %140 = vector.shape_cast %139 : vector<128xf32> to vector<128x1xf32>
      %141 = arith.maximumf %arg16, %140 : vector<128x1xf32>
      %142 = arith.subf %arg16, %141 : vector<128x1xf32>
      %143 = math.exp %142 : vector<128x1xf32>
      %144 = vector.broadcast %141 : vector<128x1xf32> to vector<128x128xf32>
      %145 = arith.subf %138, %144 : vector<128x128xf32>
      %146 = math.exp %145 : vector<128x128xf32>
      %147 = arith.mulf %143, %arg17 : vector<128x1xf32>
      %cst_80 = arith.constant dense<0.000000e+00> : vector<128xf32>
      %148 = vector.multi_reduction <add>, %146, %cst_80 [1] : vector<128x128xf32> to vector<128xf32>
      %149 = vector.shape_cast %148 : vector<128xf32> to vector<128x1xf32>
      %150 = arith.addf %147, %149 : vector<128x1xf32>
      %151 = vector.broadcast %143 : vector<128x1xf32> to vector<128x32xf32>
      %152 = arith.mulf %151, %arg18 : vector<128x32xf32>
      %cst_81 = arith.constant dense<0.000000e+00> : vector<128x32xf32>
      %153 = tpu.matmul %146, %131, %cst_81 {dimension_numbers = #tpu.dot_dimension_numbers<[1], [0], [0], [1], [0, 0, 1, 1], [], []>} : vector<128x128xf32>, vector<128x32xf32>, vector<128x32xf32> -> vector<128x32xf32>
      %154 = arith.addf %152, %153 : vector<128x32xf32>
      scf.yield %141, %150, %154 : vector<128x1xf32>, vector<128x1xf32>, vector<128x32xf32>
    }
    %65 = tpu.reciprocal %64#1 : vector<128x1xf32> -> vector<128x1xf32>
    %66 = vector.broadcast %65 : vector<128x1xf32> to vector<128x32xf32>
    %67 = arith.mulf %64#2, %66 : vector<128x32xf32>
    %c0_36 = arith.constant 0 : index
    %c96 = arith.constant 96 : index
    %68 = vector.load %arg14[%c0_36, %c96] : memref<128x256xf32, #tpu.memory_space<vmem>>, vector<128x32xf32>
    tpu.vector_store %arg14[%c0_36, %c96], %67 {strides = array<i32>} : memref<128x256xf32, #tpu.memory_space<vmem>>, vector<128x32xf32>,
    %69 = vector.extract_strided_slice %14 {offsets = [0, 128], sizes = [128, 32], strides = [1, 1]} : vector<128x256xf32> to vector<128x32xf32>
    %cst_37 = arith.constant 0xFF800000 : f32
    %70 = vector.broadcast %cst_37 : f32 to vector<128x1xf32>
    %cst_38 = arith.constant 0.000000e+00 : f32
    %71 = vector.broadcast %cst_38 : f32 to vector<128x1xf32>
    %cst_39 = arith.constant 0.000000e+00 : f32
    %72 = vector.broadcast %cst_39 : f32 to vector<128x32xf32>
    %c1_i32_40 = arith.constant 1 : i32
    %73 = arith.addi %arg1, %c1_i32_40 : i32
    %c0_i32_41 = arith.constant 0 : i32
    %74 = arith.subi %73, %c0_i32_41 : i32
    %75 = arith.addi %c0_i32_41, %74 : i32
    %c1_i32_42 = arith.constant 1 : i32
    %76:3 = scf.for %arg15 = %c0_i32_41 to %75 step %c1_i32_42 iter_args(%arg16 = %70, %arg17 = %71, %arg18 = %72) -> (vector<128x1xf32>, vector<128x1xf32>, vector<128x32xf32>)  : i32 {
      %c128_i32_75 = arith.constant 128 : i32
      %126 = arith.muli %arg15, %c128_i32_75 : i32
      %127 = tpu.assume_multiple %126, 128 : i32
      %128 = arith.index_cast %127 : i32 to index
      %c128_76 = arith.constant 128 : index
      %129 = vector.load %arg12[%128, %c128_76] : memref<256x256xf32, #tpu.memory_space<vmem>>, vector<128x32xf32>
      %130 = arith.index_cast %127 : i32 to index
      %c128_77 = arith.constant 128 : index
      %131 = vector.load %arg13[%130, %c128_77] : memref<256x256xf32, #tpu.memory_space<vmem>>, vector<128x32xf32>
      %cst_78 = arith.constant dense<0.000000e+00> : vector<128x128xf32>
      %132 = tpu.matmul %69, %129, %cst_78 {dimension_numbers = #tpu.dot_dimension_numbers<[1], [1], [0], [0], [0, 0, 1, 0], [], []>} : vector<128x32xf32>, vector<128x32xf32>, vector<128x128xf32> -> vector<128x128xf32>
      %133 = arith.cmpi eq, %arg15, %arg1 : i32
      %134 = arith.extui %133 : i1 to i32
      %135 = arith.sitofp %134 : i32 to f32
      %136 = vector.broadcast %135 : f32 to vector<128x128xf32>
      %137 = arith.mulf %20, %136 : vector<128x128xf32>
      %138 = arith.addf %132, %137 : vector<128x128xf32>
      %cst_79 = arith.constant dense<0xFF800000> : vector<128xf32>
      %139 = vector.multi_reduction <maximumf>, %138, %cst_79 [1] : vector<128x128xf32> to vector<128xf32>
      %140 = vector.shape_cast %139 : vector<128xf32> to vector<128x1xf32>
      %141 = arith.maximumf %arg16, %140 : vector<128x1xf32>
      %142 = arith.subf %arg16, %141 : vector<128x1xf32>
      %143 = math.exp %142 : vector<128x1xf32>
      %144 = vector.broadcast %141 : vector<128x1xf32> to vector<128x128xf32>
      %145 = arith.subf %138, %144 : vector<128x128xf32>
      %146 = math.exp %145 : vector<128x128xf32>
      %147 = arith.mulf %143, %arg17 : vector<128x1xf32>
      %cst_80 = arith.constant dense<0.000000e+00> : vector<128xf32>
      %148 = vector.multi_reduction <add>, %146, %cst_80 [1] : vector<128x128xf32> to vector<128xf32>
      %149 = vector.shape_cast %148 : vector<128xf32> to vector<128x1xf32>
      %150 = arith.addf %147, %149 : vector<128x1xf32>
      %151 = vector.broadcast %143 : vector<128x1xf32> to vector<128x32xf32>
      %152 = arith.mulf %151, %arg18 : vector<128x32xf32>
      %cst_81 = arith.constant dense<0.000000e+00> : vector<128x32xf32>
      %153 = tpu.matmul %146, %131, %cst_81 {dimension_numbers = #tpu.dot_dimension_numbers<[1], [0], [0], [1], [0, 0, 1, 1], [], []>} : vector<128x128xf32>, vector<128x32xf32>, vector<128x32xf32> -> vector<128x32xf32>
      %154 = arith.addf %152, %153 : vector<128x32xf32>
      scf.yield %141, %150, %154 : vector<128x1xf32>, vector<128x1xf32>, vector<128x32xf32>
    }
    %77 = tpu.reciprocal %76#1 : vector<128x1xf32> -> vector<128x1xf32>
    %78 = vector.broadcast %77 : vector<128x1xf32> to vector<128x32xf32>
    %79 = arith.mulf %76#2, %78 : vector<128x32xf32>
    %c0_43 = arith.constant 0 : index
    %c128 = arith.constant 128 : index
    %80 = vector.load %arg14[%c0_43, %c128] : memref<128x256xf32, #tpu.memory_space<vmem>>, vector<128x32xf32>
    tpu.vector_store %arg14[%c0_43, %c128], %79 {strides = array<i32>} : memref<128x256xf32, #tpu.memory_space<vmem>>, vector<128x32xf32>,
    %81 = vector.extract_strided_slice %14 {offsets = [0, 160], sizes = [128, 32], strides = [1, 1]} : vector<128x256xf32> to vector<128x32xf32>
    %cst_44 = arith.constant 0xFF800000 : f32
    %82 = vector.broadcast %cst_44 : f32 to vector<128x1xf32>
    %cst_45 = arith.constant 0.000000e+00 : f32
    %83 = vector.broadcast %cst_45 : f32 to vector<128x1xf32>
    %cst_46 = arith.constant 0.000000e+00 : f32
    %84 = vector.broadcast %cst_46 : f32 to vector<128x32xf32>
    %c1_i32_47 = arith.constant 1 : i32
    %85 = arith.addi %arg1, %c1_i32_47 : i32
    %c0_i32_48 = arith.constant 0 : i32
    %86 = arith.subi %85, %c0_i32_48 : i32
    %87 = arith.addi %c0_i32_48, %86 : i32
    %c1_i32_49 = arith.constant 1 : i32
    %88:3 = scf.for %arg15 = %c0_i32_48 to %87 step %c1_i32_49 iter_args(%arg16 = %82, %arg17 = %83, %arg18 = %84) -> (vector<128x1xf32>, vector<128x1xf32>, vector<128x32xf32>)  : i32 {
      %c128_i32_75 = arith.constant 128 : i32
      %126 = arith.muli %arg15, %c128_i32_75 : i32
      %127 = tpu.assume_multiple %126, 128 : i32
      %128 = arith.index_cast %127 : i32 to index
      %c160_76 = arith.constant 160 : index
      %129 = vector.load %arg12[%128, %c160_76] : memref<256x256xf32, #tpu.memory_space<vmem>>, vector<128x32xf32>
      %130 = arith.index_cast %127 : i32 to index
      %c160_77 = arith.constant 160 : index
      %131 = vector.load %arg13[%130, %c160_77] : memref<256x256xf32, #tpu.memory_space<vmem>>, vector<128x32xf32>
      %cst_78 = arith.constant dense<0.000000e+00> : vector<128x128xf32>
      %132 = tpu.matmul %81, %129, %cst_78 {dimension_numbers = #tpu.dot_dimension_numbers<[1], [1], [0], [0], [0, 0, 1, 0], [], []>} : vector<128x32xf32>, vector<128x32xf32>, vector<128x128xf32> -> vector<128x128xf32>
      %133 = arith.cmpi eq, %arg15, %arg1 : i32
      %134 = arith.extui %133 : i1 to i32
      %135 = arith.sitofp %134 : i32 to f32
      %136 = vector.broadcast %135 : f32 to vector<128x128xf32>
      %137 = arith.mulf %20, %136 : vector<128x128xf32>
      %138 = arith.addf %132, %137 : vector<128x128xf32>
      %cst_79 = arith.constant dense<0xFF800000> : vector<128xf32>
      %139 = vector.multi_reduction <maximumf>, %138, %cst_79 [1] : vector<128x128xf32> to vector<128xf32>
      %140 = vector.shape_cast %139 : vector<128xf32> to vector<128x1xf32>
      %141 = arith.maximumf %arg16, %140 : vector<128x1xf32>
      %142 = arith.subf %arg16, %141 : vector<128x1xf32>
      %143 = math.exp %142 : vector<128x1xf32>
      %144 = vector.broadcast %141 : vector<128x1xf32> to vector<128x128xf32>
      %145 = arith.subf %138, %144 : vector<128x128xf32>
      %146 = math.exp %145 : vector<128x128xf32>
      %147 = arith.mulf %143, %arg17 : vector<128x1xf32>
      %cst_80 = arith.constant dense<0.000000e+00> : vector<128xf32>
      %148 = vector.multi_reduction <add>, %146, %cst_80 [1] : vector<128x128xf32> to vector<128xf32>
      %149 = vector.shape_cast %148 : vector<128xf32> to vector<128x1xf32>
      %150 = arith.addf %147, %149 : vector<128x1xf32>
      %151 = vector.broadcast %143 : vector<128x1xf32> to vector<128x32xf32>
      %152 = arith.mulf %151, %arg18 : vector<128x32xf32>
      %cst_81 = arith.constant dense<0.000000e+00> : vector<128x32xf32>
      %153 = tpu.matmul %146, %131, %cst_81 {dimension_numbers = #tpu.dot_dimension_numbers<[1], [0], [0], [1], [0, 0, 1, 1], [], []>} : vector<128x128xf32>, vector<128x32xf32>, vector<128x32xf32> -> vector<128x32xf32>
      %154 = arith.addf %152, %153 : vector<128x32xf32>
      scf.yield %141, %150, %154 : vector<128x1xf32>, vector<128x1xf32>, vector<128x32xf32>
    }
    %89 = tpu.reciprocal %88#1 : vector<128x1xf32> -> vector<128x1xf32>
    %90 = vector.broadcast %89 : vector<128x1xf32> to vector<128x32xf32>
    %91 = arith.mulf %88#2, %90 : vector<128x32xf32>
    %c0_50 = arith.constant 0 : index
    %c160 = arith.constant 160 : index
    %92 = vector.load %arg14[%c0_50, %c160] : memref<128x256xf32, #tpu.memory_space<vmem>>, vector<128x32xf32>
    tpu.vector_store %arg14[%c0_50, %c160], %91 {strides = array<i32>} : memref<128x256xf32, #tpu.memory_space<vmem>>, vector<128x32xf32>,
    %93 = vector.extract_strided_slice %14 {offsets = [0, 192], sizes = [128, 32], strides = [1, 1]} : vector<128x256xf32> to vector<128x32xf32>
    %cst_51 = arith.constant 0xFF800000 : f32
    %94 = vector.broadcast %cst_51 : f32 to vector<128x1xf32>
    %cst_52 = arith.constant 0.000000e+00 : f32
    %95 = vector.broadcast %cst_52 : f32 to vector<128x1xf32>
    %cst_53 = arith.constant 0.000000e+00 : f32
    %96 = vector.broadcast %cst_53 : f32 to vector<128x32xf32>
    %c1_i32_54 = arith.constant 1 : i32
    %97 = arith.addi %arg1, %c1_i32_54 : i32
    %c0_i32_55 = arith.constant 0 : i32
    %98 = arith.subi %97, %c0_i32_55 : i32
    %99 = arith.addi %c0_i32_55, %98 : i32
    %c1_i32_56 = arith.constant 1 : i32
    %100:3 = scf.for %arg15 = %c0_i32_55 to %99 step %c1_i32_56 iter_args(%arg16 = %94, %arg17 = %95, %arg18 = %96) -> (vector<128x1xf32>, vector<128x1xf32>, vector<128x32xf32>)  : i32 {
      %c128_i32_75 = arith.constant 128 : i32
      %126 = arith.muli %arg15, %c128_i32_75 : i32
      %127 = tpu.assume_multiple %126, 128 : i32
      %128 = arith.index_cast %127 : i32 to index
      %c192_76 = arith.constant 192 : index
      %129 = vector.load %arg12[%128, %c192_76] : memref<256x256xf32, #tpu.memory_space<vmem>>, vector<128x32xf32>
      %130 = arith.index_cast %127 : i32 to index
      %c192_77 = arith.constant 192 : index
      %131 = vector.load %arg13[%130, %c192_77] : memref<256x256xf32, #tpu.memory_space<vmem>>, vector<128x32xf32>
      %cst_78 = arith.constant dense<0.000000e+00> : vector<128x128xf32>
      %132 = tpu.matmul %93, %129, %cst_78 {dimension_numbers = #tpu.dot_dimension_numbers<[1], [1], [0], [0], [0, 0, 1, 0], [], []>} : vector<128x32xf32>, vector<128x32xf32>, vector<128x128xf32> -> vector<128x128xf32>
      %133 = arith.cmpi eq, %arg15, %arg1 : i32
      %134 = arith.extui %133 : i1 to i32
      %135 = arith.sitofp %134 : i32 to f32
      %136 = vector.broadcast %135 : f32 to vector<128x128xf32>
      %137 = arith.mulf %20, %136 : vector<128x128xf32>
      %138 = arith.addf %132, %137 : vector<128x128xf32>
      %cst_79 = arith.constant dense<0xFF800000> : vector<128xf32>
      %139 = vector.multi_reduction <maximumf>, %138, %cst_79 [1] : vector<128x128xf32> to vector<128xf32>
      %140 = vector.shape_cast %139 : vector<128xf32> to vector<128x1xf32>
      %141 = arith.maximumf %arg16, %140 : vector<128x1xf32>
      %142 = arith.subf %arg16, %141 : vector<128x1xf32>
      %143 = math.exp %142 : vector<128x1xf32>
      %144 = vector.broadcast %141 : vector<128x1xf32> to vector<128x128xf32>
      %145 = arith.subf %138, %144 : vector<128x128xf32>
      %146 = math.exp %145 : vector<128x128xf32>
      %147 = arith.mulf %143, %arg17 : vector<128x1xf32>
      %cst_80 = arith.constant dense<0.000000e+00> : vector<128xf32>
      %148 = vector.multi_reduction <add>, %146, %cst_80 [1] : vector<128x128xf32> to vector<128xf32>
      %149 = vector.shape_cast %148 : vector<128xf32> to vector<128x1xf32>
      %150 = arith.addf %147, %149 : vector<128x1xf32>
      %151 = vector.broadcast %143 : vector<128x1xf32> to vector<128x32xf32>
      %152 = arith.mulf %151, %arg18 : vector<128x32xf32>
      %cst_81 = arith.constant dense<0.000000e+00> : vector<128x32xf32>
      %153 = tpu.matmul %146, %131, %cst_81 {dimension_numbers = #tpu.dot_dimension_numbers<[1], [0], [0], [1], [0, 0, 1, 1], [], []>} : vector<128x128xf32>, vector<128x32xf32>, vector<128x32xf32> -> vector<128x32xf32>
      %154 = arith.addf %152, %153 : vector<128x32xf32>
      scf.yield %141, %150, %154 : vector<128x1xf32>, vector<128x1xf32>, vector<128x32xf32>
    }
    %101 = tpu.reciprocal %100#1 : vector<128x1xf32> -> vector<128x1xf32>
    %102 = vector.broadcast %101 : vector<128x1xf32> to vector<128x32xf32>
    %103 = arith.mulf %100#2, %102 : vector<128x32xf32>
    %c0_57 = arith.constant 0 : index
    %c192 = arith.constant 192 : index
    %104 = vector.load %arg14[%c0_57, %c192] : memref<128x256xf32, #tpu.memory_space<vmem>>, vector<128x32xf32>
    tpu.vector_store %arg14[%c0_57, %c192], %103 {strides = array<i32>} : memref<128x256xf32, #tpu.memory_space<vmem>>, vector<128x32xf32>,
    %105 = vector.extract_strided_slice %14 {offsets = [0, 224], sizes = [128, 32], strides = [1, 1]} : vector<128x256xf32> to vector<128x32xf32>
    %cst_58 = arith.constant 0xFF800000 : f32
    %106 = vector.broadcast %cst_58 : f32 to vector<128x1xf32>
    %cst_59 = arith.constant 0.000000e+00 : f32
    %107 = vector.broadcast %cst_59 : f32 to vector<128x1xf32>
    %cst_60 = arith.constant 0.000000e+00 : f32
    %108 = vector.broadcast %cst_60 : f32 to vector<128x32xf32>
    %c1_i32_61 = arith.constant 1 : i32
    %109 = arith.addi %arg1, %c1_i32_61 : i32
    %c0_i32_62 = arith.constant 0 : i32
    %110 = arith.subi %109, %c0_i32_62 : i32
    %111 = arith.addi %c0_i32_62, %110 : i32
    %c1_i32_63 = arith.constant 1 : i32
    %112:3 = scf.for %arg15 = %c0_i32_62 to %111 step %c1_i32_63 iter_args(%arg16 = %106, %arg17 = %107, %arg18 = %108) -> (vector<128x1xf32>, vector<128x1xf32>, vector<128x32xf32>)  : i32 {
      %c128_i32_75 = arith.constant 128 : i32
      %126 = arith.muli %arg15, %c128_i32_75 : i32
      %127 = tpu.assume_multiple %126, 128 : i32
      %128 = arith.index_cast %127 : i32 to index
      %c224_76 = arith.constant 224 : index
      %129 = vector.load %arg12[%128, %c224_76] : memref<256x256xf32, #tpu.memory_space<vmem>>, vector<128x32xf32>
      %130 = arith.index_cast %127 : i32 to index
      %c224_77 = arith.constant 224 : index
      %131 = vector.load %arg13[%130, %c224_77] : memref<256x256xf32, #tpu.memory_space<vmem>>, vector<128x32xf32>
      %cst_78 = arith.constant dense<0.000000e+00> : vector<128x128xf32>
      %132 = tpu.matmul %105, %129, %cst_78 {dimension_numbers = #tpu.dot_dimension_numbers<[1], [1], [0], [0], [0, 0, 1, 0], [], []>} : vector<128x32xf32>, vector<128x32xf32>, vector<128x128xf32> -> vector<128x128xf32>
      %133 = arith.cmpi eq, %arg15, %arg1 : i32
      %134 = arith.extui %133 : i1 to i32
      %135 = arith.sitofp %134 : i32 to f32
      %136 = vector.broadcast %135 : f32 to vector<128x128xf32>
      %137 = arith.mulf %20, %136 : vector<128x128xf32>
      %138 = arith.addf %132, %137 : vector<128x128xf32>
      %cst_79 = arith.constant dense<0xFF800000> : vector<128xf32>
      %139 = vector.multi_reduction <maximumf>, %138, %cst_79 [1] : vector<128x128xf32> to vector<128xf32>
      %140 = vector.shape_cast %139 : vector<128xf32> to vector<128x1xf32>
      %141 = arith.maximumf %arg16, %140 : vector<128x1xf32>
      %142 = arith.subf %arg16, %141 : vector<128x1xf32>
      %143 = math.exp %142 : vector<128x1xf32>
      %144 = vector.broadcast %141 : vector<128x1xf32> to vector<128x128xf32>
      %145 = arith.subf %138, %144 : vector<128x128xf32>
      %146 = math.exp %145 : vector<128x128xf32>
      %147 = arith.mulf %143, %arg17 : vector<128x1xf32>
      %cst_80 = arith.constant dense<0.000000e+00> : vector<128xf32>
      %148 = vector.multi_reduction <add>, %146, %cst_80 [1] : vector<128x128xf32> to vector<128xf32>
      %149 = vector.shape_cast %148 : vector<128xf32> to vector<128x1xf32>
      %150 = arith.addf %147, %149 : vector<128x1xf32>
      %151 = vector.broadcast %143 : vector<128x1xf32> to vector<128x32xf32>
      %152 = arith.mulf %151, %arg18 : vector<128x32xf32>
      %cst_81 = arith.constant dense<0.000000e+00> : vector<128x32xf32>
      %153 = tpu.matmul %146, %131, %cst_81 {dimension_numbers = #tpu.dot_dimension_numbers<[1], [0], [0], [1], [0, 0, 1, 1], [], []>} : vector<128x128xf32>, vector<128x32xf32>, vector<128x32xf32> -> vector<128x32xf32>
      %154 = arith.addf %152, %153 : vector<128x32xf32>
      scf.yield %141, %150, %154 : vector<128x1xf32>, vector<128x1xf32>, vector<128x32xf32>
    }
    %113 = tpu.reciprocal %112#1 : vector<128x1xf32> -> vector<128x1xf32>
    %114 = vector.broadcast %113 : vector<128x1xf32> to vector<128x32xf32>
    %115 = arith.mulf %112#2, %114 : vector<128x32xf32>
    %c0_64 = arith.constant 0 : index
    %c224 = arith.constant 224 : index
    %116 = vector.load %arg14[%c0_64, %c224] : memref<128x256xf32, #tpu.memory_space<vmem>>, vector<128x32xf32>
    tpu.vector_store %arg14[%c0_64, %c224], %115 {strides = array<i32>} : memref<128x256xf32, #tpu.memory_space<vmem>>, vector<128x32xf32>,
    %c0_65 = arith.constant 0 : index
    %c0_66 = arith.constant 0 : index
    %117 = vector.load %arg14[%c0_65, %c0_66] : memref<128x256xf32, #tpu.memory_space<vmem>>, vector<128x256xf32>
    %c0_67 = arith.constant 0 : index
    %c0_68 = arith.constant 0 : index
    %118 = vector.load %arg9[%c0_67, %c0_68] : memref<256x256xf32, #tpu.memory_space<vmem>>, vector<256x256xf32>
    %cst_69 = arith.constant dense<0.000000e+00> : vector<128x256xf32>
    %119 = tpu.matmul %117, %118, %cst_69 {dimension_numbers = #tpu.dot_dimension_numbers<[1], [1], [0], [0], [0, 0, 1, 0], [], []>} : vector<128x256xf32>, vector<256x256xf32>, vector<128x256xf32> -> vector<128x256xf32>
    %c0_70 = arith.constant 0 : index
    %c0_71 = arith.constant 0 : index
    %120 = vector.load %arg10[%c0_70, %c0_71] : memref<1x256xf32, #tpu.memory_space<vmem>>, vector<1x256xf32>
    %121 = vector.broadcast %120 : vector<1x256xf32> to vector<128x256xf32>
    %122 = arith.addf %119, %121 : vector<128x256xf32>
    %c0_72 = arith.constant 0 : index
    %c0_73 = arith.constant 0 : index
    %c0_74 = arith.constant 0 : index
    %123 = vector.load %arg11[%c0_72, %c0_73, %c0_74] : memref<1x128x256xf32, #tpu.memory_space<vmem>>, vector<1x128x256xf32>
    %124 = vector.shape_cast %123 : vector<1x128x256xf32> to vector<128x256xf32>
    %125 = vector.shape_cast %122 : vector<128x256xf32> to vector<1x128x256xf32>
    tpu.vector_store %arg11[%c0_72, %c0_73, %c0_74], %125 {strides = array<i32>} : memref<1x128x256xf32, #tpu.memory_space<vmem>>, vector<1x128x256xf32>,
    return
  }
  func.func @transform_0(%arg0: i32, %arg1: i32) -> (i32, i32, i32) {
    %c0_i32 = arith.constant 0 : i32
    %c0_i32_0 = arith.constant 0 : i32
    %c0_i32_1 = arith.constant 0 : i32
    return %arg0, %c0_i32, %c0_i32_0 : i32, i32, i32
  }
  func.func @transform_1(%arg0: i32, %arg1: i32) -> (i32, i32) {
    %c0_i32 = arith.constant 0 : i32
    %c0_i32_0 = arith.constant 0 : i32
    %c0_i32_1 = arith.constant 0 : i32
    return %c0_i32, %c0_i32_0 : i32, i32
  }
  func.func @transform_2(%arg0: i32, %arg1: i32) -> (i32, i32) {
    %c0_i32 = arith.constant 0 : i32
    %c0_i32_0 = arith.constant 0 : i32
    %c0_i32_1 = arith.constant 0 : i32
    return %c0_i32, %c0_i32_0 : i32, i32
  }
  func.func @transform_3(%arg0: i32, %arg1: i32) -> (i32, i32) {
    %c0_i32 = arith.constant 0 : i32
    %c0_i32_0 = arith.constant 0 : i32
    %c0_i32_1 = arith.constant 0 : i32
    return %c0_i32, %c0_i32_0 : i32, i32
  }
  func.func @transform_4(%arg0: i32, %arg1: i32) -> (i32, i32) {
    %c0_i32 = arith.constant 0 : i32
    %c0_i32_0 = arith.constant 0 : i32
    %c0_i32_1 = arith.constant 0 : i32
    return %c0_i32, %c0_i32_0 : i32, i32
  }
  func.func @transform_5(%arg0: i32, %arg1: i32) -> (i32, i32) {
    %c0_i32 = arith.constant 0 : i32
    %c0_i32_0 = arith.constant 0 : i32
    %c0_i32_1 = arith.constant 0 : i32
    return %c0_i32, %c0_i32_0 : i32, i32
  }
  func.func @transform_6(%arg0: i32, %arg1: i32) -> (i32, i32) {
    %c0_i32 = arith.constant 0 : i32
    %c0_i32_0 = arith.constant 0 : i32
    %c0_i32_1 = arith.constant 0 : i32
    return %c0_i32, %c0_i32_0 : i32, i32
  }
  func.func @transform_7(%arg0: i32, %arg1: i32) -> (i32, i32) {
    %c0_i32 = arith.constant 0 : i32
    %c0_i32_0 = arith.constant 0 : i32
    %c0_i32_1 = arith.constant 0 : i32
    return %c0_i32, %c0_i32_0 : i32, i32
  }
  func.func @transform_8(%arg0: i32, %arg1: i32) -> (i32, i32) {
    %c0_i32 = arith.constant 0 : i32
    %c0_i32_0 = arith.constant 0 : i32
    %c0_i32_1 = arith.constant 0 : i32
    return %c0_i32, %c0_i32_0 : i32, i32
  }
  func.func @transform_9(%arg0: i32, %arg1: i32) -> (i32, i32, i32) {
    %c0_i32 = arith.constant 0 : i32
    %c0_i32_0 = arith.constant 0 : i32
    return %arg0, %arg1, %c0_i32 : i32, i32, i32
  }
}

</mosaic_0001>

<llo_original>
// kernel: tpu_custom_call.1
$region0: #{tpu_custom_call.1}
  #allocation0 [shape = 'u32[]', space=smem, size = 0x4, offset = 0x4, fixed_abs, tag = 'smem constant byte address 0x4 - core index']
  #allocation1 [shape = 'u32[72,128]{1,0:T(1,128)}', space=vmem, size = 0x9000, scoped, tag = 'internal scratch']
  #allocation2 [shape = 'f32[256,256]{1,0:T(8,128)}', space=vmem, size = 0x40000, scoped, tag = 'scratch operand']
  #allocation3 [shape = 'f32[256,256]{1,0:T(8,128)}', space=vmem, size = 0x40000, scoped, tag = 'scratch operand']
  #allocation4 [shape = 'f32[128,256]{1,0:T(8,128)}', space=vmem, size = 0x20000, scoped, tag = 'scratch operand']
  %s0 = inlined_call_operand.hbm [shape: f32[2,256,256], index: 0, kind: input, shape index: {}]
  %s1 = inlined_call_operand.hbm [shape: f32[256,256], index: 1, kind: input, shape index: {}]
  %s2 = inlined_call_operand.hbm [shape: f32[256,256], index: 2, kind: input, shape index: {}]
  %s3 = inlined_call_operand.hbm [shape: f32[256,256], index: 3, kind: input, shape index: {}]
  %s4 = inlined_call_operand.vmem [shape: f32[1,256], index: 4, kind: input, shape index: {}]
  %s5 = inlined_call_operand.vmem [shape: f32[1,256], index: 5, kind: input, shape index: {}]
  %s6 = inlined_call_operand.hbm [shape: f32[1,256], index: 6, kind: input, shape index: {}]
  %s7 = inlined_call_operand.hbm [shape: f32[256,256], index: 7, kind: input, shape index: {}]
  %s8 = inlined_call_operand.vmem [shape: f32[1,256], index: 8, kind: input, shape index: {}]
  %s9 = inlined_call_operand.hbm [shape: f32[2,256,256], index: 9, kind: output, shape index: {}]
  %s10 = sld [smem:[#allocation0]]
  $region153: #{tpu_custom_call.1} parent=0
    _
  %s12 = ssub.s32 1, %s10
  %s13 = scalar_select 0, %s12, %s10
  $region1: #{tpu_custom_call.1} parent=0
    #allocation5 [shape = 'u8[524288]{0}', space=vmem, size = 0x80000, scoped, tag = 'input window, operand 0']
    #allocation6 [shape = 's32[2]{0}', space=sflag, size = 0x8, scoped, tag = 'scoped memory for tpu_custom_call.1']
    #allocation7 [shape = 's32[2]{0}', space=sflag, size = 0x8, scoped, tag = 'scoped memory for tpu_custom_call.1']
    #allocation8 [shape = 'u8[262144]{0}', space=vmem, size = 0x40000, scoped, tag = 'input window, operand 1, single buffered']
    #allocation9 [shape = 's32[1]{0}', space=sflag, size = 0x4, scoped, tag = 'scoped memory for tpu_custom_call.1']
    #allocation10 [shape = 'u8[262144]{0}', space=vmem, size = 0x40000, scoped, tag = 'input window, operand 2, single buffered']
    #allocation11 [shape = 'u8[262144]{0}', space=vmem, size = 0x40000, scoped, tag = 'input window, operand 3, single buffered']
    #allocation12 [shape = 's32[1]{0}', space=sflag, size = 0x4, scoped, tag = 'scoped memory for tpu_custom_call.1']
    #allocation13 [shape = 'u8[1024]{0}', space=vmem, size = 0x400, scoped, tag = 'input window, operand 6, single buffered']
    #allocation14 [shape = 'u8[262144]{0}', space=vmem, size = 0x40000, scoped, tag = 'input window, operand 7, single buffered']
    #allocation15 [shape = 's32[1]{0}', space=sflag, size = 0x4, scoped, tag = 'scoped memory for tpu_custom_call.1']
    #allocation16 [shape = 'u8[262144]{0}', space=vmem, size = 0x40000, scoped, tag = 'output window, operand 0']
    %14 = vsyncpa [#allocation6], 0
    %s15 = scalar_lea.sflag [#allocation6], 1
    %16 = vsyncpa %s15, 0
    %17 = vsyncpa [#allocation9], 0
    %18 = vsyncpa [#allocation12], 0
    %19 = vsyncpa [#allocation15], 0
    %20 = vsyncpa [#allocation7], 0
    %s21 = scalar_lea.sflag [#allocation7], 1
    %22 = vsyncpa %s21, 0
    loop: start=0, step=1, limit=6
    $region2: #{tpu_custom_call.1} parent=1 // loop_pre_header
      _
    $region3: #{tpu_custom_call.1} parent=1 // loop_header
      %s24 = sphi 0, %s28
      %p25 = scmp.ge.s32.totalorder %s24, 6
      %s31 = sphi 0, %s43
      %s32 = sphi 0, %s39
      %s33 = sphi 0, %s31
      %s34 = sphi 0, %s32
      %s35 = sphi 0, %s33
      %s36 = sphi 0, %s34
      %s46 = sphi 0, %s48
      %s49 = sphi 0, %s46
      %s50 = sphi 0, %s49
      %s66 = sphi 0, %s50
      %s70 = sphi 0, %s70
      %s72 = sphi 0, %s70
      %s73 = sphi 0, %s72
      %s87 = sphi 0, %s73
      %s91 = sphi 0, %s91
      %s93 = sphi 0, %s91
      %s94 = sphi 0, %s93
      %s108 = sphi 0, %s94
      %s112 = sphi 0, %s112
      %s114 = sphi 0, %s112
      %s115 = sphi 0, %s114
      %s129 = sphi 0, %s115
      %s133 = sphi 0, %s133
      %s135 = sphi 0, %s133
      %s136 = sphi 0, %s135
      %s150 = sphi 0, %s136
      %s154 = sphi 0, %s154
      %s156 = sphi 0, %s154
      %s157 = sphi 0, %s156
      %s171 = sphi 0, %s157
      %s175 = sphi 0, %s175
      %s177 = sphi 0, %s175
      %s178 = sphi 0, %s177
      %s192 = sphi 0, %s178
      %s196 = sphi 0, %s196
      %s198 = sphi 0, %s196
      %s199 = sphi 0, %s198
      %s213 = sphi 0, %s199
      %s217 = sphi 0, %s217
      %s219 = sphi 0, %s217
      %s220 = sphi 0, %s219
      %s234 = sphi 0, %s220
      %s242 = sphi 0, %s244
      %s245 = sphi 0, %s242
      %s246 = sphi 0, %s245
      %s262 = sphi 0, %s246
    $region4: #{tpu_custom_call.1} parent=1 // loop_header_branch
      %27 = sbr.rel (%p25) target = $region8
    $region5: #{tpu_custom_call.1} parent=1 // loop_body
      %s29 = ssub.s32 %s24, 1
      %s30 = ssub.s32 %s24, 2
      %s37 = sadd.s32 1, %s32
      %p38 = scmp.ge.s32.totalorder %s37, 2
      %s39 = scalar_select %p38, 0, %s37
      %s40 = sadd.s32 1, %s31
      %s41 = scalar_select %p38, %s40, %s31
      %p42 = scmp.ge.s32.totalorder %s41, 2
      %s43 = scalar_select %p42, 0, %s41
      %s44 = ssub.s32 %s31, %s43
      %p45 = scmp.eq.s32.totalorder %s44, 0
      %s47 = sadd.s32 %s46, 1
      %s48 = scalar_select %p45, %s46, %s47
      %p51 = pneg %p45
      %p52 = scmp.eq.s32.totalorder %s24, 3
      %p53 = por %p51, %p52
      %p54 = scmp.ne.s32.totalorder %s46, %s49
      %p55 = scmp.eq.s32.totalorder %s24, 0
      %p56 = por %p54, %p55
      %p57 = scmp.ne.s32.totalorder %s46, %s49
      %p58 = scmp.eq.s32.totalorder %s29, 3
      %p59 = por %p57, %p58
      %p60 = scmp.ne.s32.totalorder %s49, %s50
      %p61 = scmp.eq.s32.totalorder %s29, 0
      %p62 = por %p60, %p61
      %p63 = scmp.ne.s32.totalorder %s49, %s50
      %p64 = scmp.eq.s32.totalorder %s30, 3
      %p65 = por %p63, %p64
      %p67 = scmp.ne.s32.totalorder %s50, %s66
      %p68 = scmp.eq.s32.totalorder %s30, 0
      %p69 = por %p67, %p68
      %s71 = sadd.s32 %s70, 1
      %p74 = scmp.eq.s32.totalorder %s24, 3
      %p75 = scmp.ne.s32.totalorder %s70, %s72
      %p76 = scmp.eq.s32.totalorder %s24, 0
      %p77 = por %p75, %p76
      %p78 = scmp.ne.s32.totalorder %s70, %s72
      %p79 = scmp.eq.s32.totalorder %s29, 3
      %p80 = por %p78, %p79
      %p81 = scmp.ne.s32.totalorder %s72, %s73
      %p82 = scmp.eq.s32.totalorder %s29, 0
      %p83 = por %p81, %p82
      %p84 = scmp.ne.s32.totalorder %s72, %s73
      %p85 = scmp.eq.s32.totalorder %s30, 3
      %p86 = por %p84, %p85
      %p88 = scmp.ne.s32.totalorder %s73, %s87
      %p89 = scmp.eq.s32.totalorder %s30, 0
      %p90 = por %p88, %p89
      %s92 = sadd.s32 %s91, 1
      %p95 = scmp.eq.s32.totalorder %s24, 3
      %p96 = scmp.ne.s32.totalorder %s91, %s93
      %p97 = scmp.eq.s32.totalorder %s24, 0
      %p98 = por %p96, %p97
      %p99 = scmp.ne.s32.totalorder %s91, %s93
      %p100 = scmp.eq.s32.totalorder %s29, 3
      %p101 = por %p99, %p100
      %p102 = scmp.ne.s32.totalorder %s93, %s94
      %p103 = scmp.eq.s32.totalorder %s29, 0
      %p104 = por %p102, %p103
      %p105 = scmp.ne.s32.totalorder %s93, %s94
      %p106 = scmp.eq.s32.totalorder %s30, 3
      %p107 = por %p105, %p106
      %p109 = scmp.ne.s32.totalorder %s94, %s108
      %p110 = scmp.eq.s32.totalorder %s30, 0
      %p111 = por %p109, %p110
      %s113 = sadd.s32 %s112, 1
      %p116 = scmp.eq.s32.totalorder %s24, 3
      %p117 = scmp.ne.s32.totalorder %s112, %s114
      %p118 = scmp.eq.s32.totalorder %s24, 0
      %p119 = por %p117, %p118
      %p120 = scmp.ne.s32.totalorder %s112, %s114
      %p121 = scmp.eq.s32.totalorder %s29, 3
      %p122 = por %p120, %p121
      %p123 = scmp.ne.s32.totalorder %s114, %s115
      %p124 = scmp.eq.s32.totalorder %s29, 0
      %p125 = por %p123, %p124
      %p126 = scmp.ne.s32.totalorder %s114, %s115
      %p127 = scmp.eq.s32.totalorder %s30, 3
      %p128 = por %p126, %p127
      %p130 = scmp.ne.s32.totalorder %s115, %s129
      %p131 = scmp.eq.s32.totalorder %s30, 0
      %p132 = por %p130, %p131
      %s134 = sadd.s32 %s133, 1
      %p137 = scmp.eq.s32.totalorder %s24, 3
      %p138 = scmp.ne.s32.totalorder %s133, %s135
      %p139 = scmp.eq.s32.totalorder %s24, 0
      %p140 = por %p138, %p139
      %p141 = scmp.ne.s32.totalorder %s133, %s135
      %p142 = scmp.eq.s32.totalorder %s29, 3
      %p143 = por %p141, %p142
      %p144 = scmp.ne.s32.totalorder %s135, %s136
      %p145 = scmp.eq.s32.totalorder %s29, 0
      %p146 = por %p144, %p145
      %p147 = scmp.ne.s32.totalorder %s135, %s136
      %p148 = scmp.eq.s32.totalorder %s30, 3
      %p149 = por %p147, %p148
      %p151 = scmp.ne.s32.totalorder %s136, %s150
      %p152 = scmp.eq.s32.totalorder %s30, 0
      %p153 = por %p151, %p152
      %s155 = sadd.s32 %s154, 1
      %p158 = scmp.eq.s32.totalorder %s24, 3
      %p159 = scmp.ne.s32.totalorder %s154, %s156
      %p160 = scmp.eq.s32.totalorder %s24, 0
      %p161 = por %p159, %p160
      %p162 = scmp.ne.s32.totalorder %s154, %s156
      %p163 = scmp.eq.s32.totalorder %s29, 3
      %p164 = por %p162, %p163
      %p165 = scmp.ne.s32.totalorder %s156, %s157
      %p166 = scmp.eq.s32.totalorder %s29, 0
      %p167 = por %p165, %p166
      %p168 = scmp.ne.s32.totalorder %s156, %s157
      %p169 = scmp.eq.s32.totalorder %s30, 3
      %p170 = por %p168, %p169
      %p172 = scmp.ne.s32.totalorder %s157, %s171
      %p173 = scmp.eq.s32.totalorder %s30, 0
      %p174 = por %p172, %p173
      %s176 = sadd.s32 %s175, 1
      %p179 = scmp.eq.s32.totalorder %s24, 3
      %p180 = scmp.ne.s32.totalorder %s175, %s177
      %p181 = scmp.eq.s32.totalorder %s24, 0
      %p182 = por %p180, %p181
      %p183 = scmp.ne.s32.totalorder %s175, %s177
      %p184 = scmp.eq.s32.totalorder %s29, 3
      %p185 = por %p183, %p184
      %p186 = scmp.ne.s32.totalorder %s177, %s178
      %p187 = scmp.eq.s32.totalorder %s29, 0
      %p188 = por %p186, %p187
      %p189 = scmp.ne.s32.totalorder %s177, %s178
      %p190 = scmp.eq.s32.totalorder %s30, 3
      %p191 = por %p189, %p190
      %p193 = scmp.ne.s32.totalorder %s178, %s192
      %p194 = scmp.eq.s32.totalorder %s30, 0
      %p195 = por %p193, %p194
      %s197 = sadd.s32 %s196, 1
      %p200 = scmp.eq.s32.totalorder %s24, 3
      %p201 = scmp.ne.s32.totalorder %s196, %s198
      %p202 = scmp.eq.s32.totalorder %s24, 0
      %p203 = por %p201, %p202
      %p204 = scmp.ne.s32.totalorder %s196, %s198
      %p205 = scmp.eq.s32.totalorder %s29, 3
      %p206 = por %p204, %p205
      %p207 = scmp.ne.s32.totalorder %s198, %s199
      %p208 = scmp.eq.s32.totalorder %s29, 0
      %p209 = por %p207, %p208
      %p210 = scmp.ne.s32.totalorder %s198, %s199
      %p211 = scmp.eq.s32.totalorder %s30, 3
      %p212 = por %p210, %p211
      %p214 = scmp.ne.s32.totalorder %s199, %s213
      %p215 = scmp.eq.s32.totalorder %s30, 0
      %p216 = por %p214, %p215
      %s218 = sadd.s32 %s217, 1
      %p221 = scmp.eq.s32.totalorder %s24, 3
      %p222 = scmp.ne.s32.totalorder %s217, %s219
      %p223 = scmp.eq.s32.totalorder %s24, 0
      %p224 = por %p222, %p223
      %p225 = scmp.ne.s32.totalorder %s217, %s219
      %p226 = scmp.eq.s32.totalorder %s29, 3
      %p227 = por %p225, %p226
      %p228 = scmp.ne.s32.totalorder %s219, %s220
      %p229 = scmp.eq.s32.totalorder %s29, 0
      %p230 = por %p228, %p229
      %p231 = scmp.ne.s32.totalorder %s219, %s220
      %p232 = scmp.eq.s32.totalorder %s30, 3
      %p233 = por %p231, %p232
      %p235 = scmp.ne.s32.totalorder %s220, %s234
      %p236 = scmp.eq.s32.totalorder %s30, 0
      %p237 = por %p235, %p236
      %s238 = ssub.s32 %s31, %s43
      %s239 = ssub.s32 %s32, %s39
      %s240 = sor.u32 %s238, %s239
      %p241 = scmp.eq.s32.totalorder %s240, 0
      %s243 = sadd.s32 %s242, 1
      %s244 = scalar_select %p241, %s242, %s243
      %p247 = pneg %p241
      %p248 = scmp.eq.s32.totalorder %s24, 3
      %p249 = por %p247, %p248
      %p250 = scmp.ne.s32.totalorder %s242, %s245
      %p251 = scmp.eq.s32.totalorder %s24, 0
      %p252 = por %p250, %p251
      %p253 = scmp.ne.s32.totalorder %s242, %s245
      %p254 = scmp.eq.s32.totalorder %s29, 3
      %p255 = por %p253, %p254
      %p256 = scmp.ne.s32.totalorder %s245, %s246
      %p257 = scmp.eq.s32.totalorder %s29, 0
      %p258 = por %p256, %p257
      %p259 = scmp.ne.s32.totalorder %s245, %s246
      %p260 = scmp.eq.s32.totalorder %s30, 3
      %p261 = por %p259, %p260
      %p263 = scmp.ne.s32.totalorder %s246, %s262
      %p264 = scmp.eq.s32.totalorder %s30, 0
      %p265 = por %p263, %p264
      %p266 = scmp.le.s32.totalorder 1, %s24
      %p267 = scmp.lt.s32.totalorder %s24, 5
      %p268 = pnand %p266, %p267
      %p269 = pneg %p268
      // Predicated region
      $region9: #{tpu_custom_call.1} parent=5 // pred_check
        _
      $region10: #{tpu_custom_call.1} parent=5 // pred_check_branch
        %271 = sbr.rel (%p268) target = $region12
      $region11: #{tpu_custom_call.1} parent=5 // pred_region
        %s272 = ssub.s32 %s24, 1
        // Predicated region
        $region13: #{tpu_custom_call.1} parent=11 // pred_check
          %p273 = pneg %p83
        $region14: #{tpu_custom_call.1} parent=11 // pred_check_branch
          %275 = sbr.rel (%p273) target = $region16
        $region15: #{tpu_custom_call.1} parent=11 // pred_region
          %277 = vsyncadd [#allocation9], 0
          %s278 = sshll.u32 %s1, 4
          %s279 = int_to_ptr.hbm [resolvable:$true] %s278
          %s280 = sshll.u32 [#allocation8], 4
          %s281 = int_to_ptr.vmem [resolvable:$true] %s280
          %286 = dma.hbm_to_vmem [thread:$0]  %s279, 8192, %s281, [#allocation9], 256, 256, 16
        $region16: #{tpu_custom_call.1} parent=11 // pred_fallthru
          _
        // Predicated region
        $region17: #{tpu_custom_call.1} parent=11 // pred_check
          %p287 = pneg %p104
        $region18: #{tpu_custom_call.1} parent=11 // pred_check_branch
          %289 = sbr.rel (%p287) target = $region20
        $region19: #{tpu_custom_call.1} parent=11 // pred_region
          %291 = vsyncadd [#allocation9], 0
          %s292 = sshll.u32 %s2, 4
          %s293 = int_to_ptr.hbm [resolvable:$true] %s292
          %s294 = sshll.u32 [#allocation10], 4
          %s295 = int_to_ptr.vmem [resolvable:$true] %s294
          %300 = dma.hbm_to_vmem [thread:$0]  %s293, 8192, %s295, [#allocation9], 256, 256, 16
        $region20: #{tpu_custom_call.1} parent=11 // pred_fallthru
          _
        // Predicated region
        $region21: #{tpu_custom_call.1} parent=11 // pred_check
          %p301 = pneg %p125
        $region22: #{tpu_custom_call.1} parent=11 // pred_check_branch
          %303 = sbr.rel (%p301) target = $region24
        $region23: #{tpu_custom_call.1} parent=11 // pred_region
          %305 = vsyncadd [#allocation12], 0
          %s306 = sshll.u32 %s3, 4
          %s307 = int_to_ptr.hbm [resolvable:$true] %s306
          %s308 = sshll.u32 [#allocation11], 4
          %s309 = int_to_ptr.vmem [resolvable:$true] %s308
          %314 = dma.hbm_to_vmem [thread:$0]  %s307, 8192, %s309, [#allocation12], 256, 256, 16
        $region24: #{tpu_custom_call.1} parent=11 // pred_fallthru
          _
        // Predicated region
        $region25: #{tpu_custom_call.1} parent=11 // pred_check
          %p315 = pneg %p146
        $region26: #{tpu_custom_call.1} parent=11 // pred_check_branch
          %317 = sbr.rel (%p315) target = $region28
        $region27: #{tpu_custom_call.1} parent=11 // pred_region
          _
        $region28: #{tpu_custom_call.1} parent=11 // pred_fallthru
          _
        // Predicated region
        $region29: #{tpu_custom_call.1} parent=11 // pred_check
          %p318 = pneg %p167
        $region30: #{tpu_custom_call.1} parent=11 // pred_check_branch
          %320 = sbr.rel (%p318) target = $region32
        $region31: #{tpu_custom_call.1} parent=11 // pred_region
          _
        $region32: #{tpu_custom_call.1} parent=11 // pred_fallthru
          _
        // Predicated region
        $region33: #{tpu_custom_call.1} parent=11 // pred_check
          %p321 = pneg %p188
        $region34: #{tpu_custom_call.1} parent=11 // pred_check_branch
          %323 = sbr.rel (%p321) target = $region36
        $region35: #{tpu_custom_call.1} parent=11 // pred_region
          %325 = vsyncadd [#allocation12], 0
          %s327 = sshll.u32 %s6, 4
          %s328 = int_to_ptr.hbm [resolvable:$true] %s327
          %s329 = sshll.u32 [#allocation13], 4
          %s330 = int_to_ptr.vmem [resolvable:$true] %s329
          %332 = dma.hbm_to_vmem [thread:$0]  %s328, 32, %s330, [#allocation12]
        $region36: #{tpu_custom_call.1} parent=11 // pred_fallthru
          _
        // Predicated region
        $region37: #{tpu_custom_call.1} parent=11 // pred_check
          %p333 = pneg %p209
        $region38: #{tpu_custom_call.1} parent=11 // pred_check_branch
          %335 = sbr.rel (%p333) target = $region40
        $region39: #{tpu_custom_call.1} parent=11 // pred_region
          %337 = vsyncadd [#allocation15], 0
          %s338 = sshll.u32 %s7, 4
          %s339 = int_to_ptr.hbm [resolvable:$true] %s338
          %s340 = sshll.u32 [#allocation14], 4
          %s341 = int_to_ptr.vmem [resolvable:$true] %s340
          %346 = dma.hbm_to_vmem [thread:$0]  %s339, 8192, %s341, [#allocation15], 256, 256, 16
        $region40: #{tpu_custom_call.1} parent=11 // pred_fallthru
          _
        // Predicated region
        $region41: #{tpu_custom_call.1} parent=11 // pred_check
          %p347 = pneg %p230
        $region42: #{tpu_custom_call.1} parent=11 // pred_check_branch
          %349 = sbr.rel (%p347) target = $region44
        $region43: #{tpu_custom_call.1} parent=11 // pred_region
          _
        $region44: #{tpu_custom_call.1} parent=11 // pred_fallthru
          _
      $region12: #{tpu_custom_call.1} parent=5 // pred_fallthru
        _
      %p350 = scmp.lt.s32.totalorder %s24, 4
      // Predicated region
      $region45: #{tpu_custom_call.1} parent=5 // pred_check
        %p351 = pneg %p350
      $region46: #{tpu_custom_call.1} parent=5 // pred_check_branch
        %353 = sbr.rel (%p351) target = $region48
      $region47: #{tpu_custom_call.1} parent=5 // pred_region
        // Predicated region
        $region49: #{tpu_custom_call.1} parent=47 // pred_check
          %p354 = pneg %p56
        $region50: #{tpu_custom_call.1} parent=47 // pred_check_branch
          %356 = sbr.rel (%p354) target = $region52
        $region51: #{tpu_custom_call.1} parent=47 // pred_region
          %s357 = sand.u32 %s46, 1
          %s358 = scalar_lea.sflag [#allocation6], %s357
          %s359 = sand.u32 %s46, 1
          %s360 = smul.addr %s359, 512
          %s361 = scalar_lea.vmem [#allocation5], %s360
          %363 = vsyncadd %s358, 0
          %s364 = smul.addr %s31, 64
          %s365 = smul.addr %s364, 8
          %s366 = scalar_lea.hbm %s0, %s365
          %s367 = sshll.u32 %s366, 4
          %s368 = int_to_ptr.hbm [resolvable:$true] %s367
          %s369 = sshll.u32 %s361, 4
          %s370 = int_to_ptr.vmem [resolvable:$true] %s369
          %375 = dma.hbm_to_vmem [thread:$0]  %s368, 8192, %s370, %s358, 256, 256, 16
        $region52: #{tpu_custom_call.1} parent=47 // pred_fallthru
          _
      $region48: #{tpu_custom_call.1} parent=5 // pred_fallthru
        _
      %p376 = scmp.le.s32.totalorder 1, %s24
      %p377 = scmp.lt.s32.totalorder %s24, 5
      %p378 = pnand %p376, %p377
      %p379 = pneg %p378
      // Predicated region
      $region53: #{tpu_custom_call.1} parent=5 // pred_check
        _
      $region54: #{tpu_custom_call.1} parent=5 // pred_check_branch
        %381 = sbr.rel (%p378) target = $region56
      $region55: #{tpu_custom_call.1} parent=5 // pred_region
        %s382 = ssub.s32 %s24, 1
        %s383 = sand.u32 %s49, 1
        %s384 = scalar_lea.sflag [#allocation6], %s383
        %s385 = sand.u32 %s49, 1
        %s386 = smul.addr %s385, 512
        %s387 = scalar_lea.vmem [#allocation5], %s386
        // Predicated region
        $region57: #{tpu_custom_call.1} parent=55 // pred_check
          %p388 = pneg %p62
        $region58: #{tpu_custom_call.1} parent=55 // pred_check_branch
          %390 = sbr.rel (%p388) target = $region60
        $region59: #{tpu_custom_call.1} parent=55 // pred_region
          %392 = dma.done %s384, 8192
        $region60: #{tpu_custom_call.1} parent=55 // pred_fallthru
          _
        // Predicated region
        $region61: #{tpu_custom_call.1} parent=55 // pred_check
          %p393 = pneg %p83
        $region62: #{tpu_custom_call.1} parent=55 // pred_check_branch
          %395 = sbr.rel (%p393) target = $region64
        $region63: #{tpu_custom_call.1} parent=55 // pred_region
          %397 = dma.done [#allocation9], 8192
        $region64: #{tpu_custom_call.1} parent=55 // pred_fallthru
          _
        // Predicated region
        $region65: #{tpu_custom_call.1} parent=55 // pred_check
          %p398 = pneg %p104
        $region66: #{tpu_custom_call.1} parent=55 // pred_check_branch
          %400 = sbr.rel (%p398) target = $region68
        $region67: #{tpu_custom_call.1} parent=55 // pred_region
          %402 = dma.done [#allocation9], 8192
        $region68: #{tpu_custom_call.1} parent=55 // pred_fallthru
          _
        // Predicated region
        $region69: #{tpu_custom_call.1} parent=55 // pred_check
          %p403 = pneg %p125
        $region70: #{tpu_custom_call.1} parent=55 // pred_check_branch
          %405 = sbr.rel (%p403) target = $region72
        $region71: #{tpu_custom_call.1} parent=55 // pred_region
          %407 = dma.done [#allocation12], 8192
        $region72: #{tpu_custom_call.1} parent=55 // pred_fallthru
          _
        // Predicated region
        $region73: #{tpu_custom_call.1} parent=55 // pred_check
          %p408 = pneg %p188
        $region74: #{tpu_custom_call.1} parent=55 // pred_check_branch
          %410 = sbr.rel (%p408) target = $region76
        $region75: #{tpu_custom_call.1} parent=55 // pred_region
          %412 = dma.done [#allocation12], 32
        $region76: #{tpu_custom_call.1} parent=55 // pred_fallthru
          _
        // Predicated region
        $region77: #{tpu_custom_call.1} parent=55 // pred_check
          %p413 = pneg %p209
        $region78: #{tpu_custom_call.1} parent=55 // pred_check_branch
          %415 = sbr.rel (%p413) target = $region80
        $region79: #{tpu_custom_call.1} parent=55 // pred_region
          %417 = dma.done [#allocation15], 8192
        $region80: #{tpu_custom_call.1} parent=55 // pred_fallthru
          _
        %s418 = sand.u32 %s49, 1
        %s419 = scalar_lea.sflag [#allocation6], %s418
        %s420 = sand.u32 %s49, 1
        %s421 = smul.addr %s420, 512
        %s422 = scalar_lea.vmem [#allocation5], %s421
        %p423 = pneg %p62
        %p424 = pneg %p59
        %p425 = pneg %p83
        %p426 = pneg %p80
        %p427 = pneg %p104
        %p428 = pneg %p101
        %p429 = pneg %p125
        %p430 = pneg %p122
        %p431 = pneg %p146
        %p432 = pneg %p143
        %p433 = pneg %p167
        %p434 = pneg %p164
        %p435 = pneg %p188
        %p436 = pneg %p185
        %p437 = pneg %p209
        %p438 = pneg %p206
        %p439 = pneg %p230
        %p440 = pneg %p227
        %p441 = pneg %p258
        %p442 = pneg %p255
        %s443 = sand.u32 %s245, 1
        %s444 = scalar_lea.sflag [#allocation7], %s443
        %s445 = sand.u32 %s245, 1
        %s446 = smul.addr %s445, 256
        %s447 = scalar_lea.vmem [#allocation16], %s446
        %s448 = smul.u32 16, %s34
        %p449 = scmp.eq.s32.totalorder %s34, 0
        // Predicated region
        $region81: #{tpu_custom_call.1} parent=55 // pred_check
          %p450 = pneg %p449
        $region82: #{tpu_custom_call.1} parent=55 // pred_check_branch
          %452 = sbr.rel (%p450) target = $region84
        $region83: #{tpu_custom_call.1} parent=55 // pred_region
          %v453 = vld [vmem:[%s387] sm:$0xff]
          %v454 = vld [vmem:[%s387 + $0x8] sm:$0xff]
          %v455 = vld [vmem:[%s387 + $0x10] sm:$0xff]
          %v456 = vld [vmem:[%s387 + $0x18] sm:$0xff]
          %v457 = vld [vmem:[%s387 + $0x20] sm:$0xff]
          %v458 = vld [vmem:[%s387 + $0x28] sm:$0xff]
          %v459 = vld [vmem:[%s387 + $0x30] sm:$0xff]
          %v460 = vld [vmem:[%s387 + $0x38] sm:$0xff]
          %v461 = vld [vmem:[%s387 + $0x40] sm:$0xff]
          %v462 = vld [vmem:[%s387 + $0x48] sm:$0xff]
          %v463 = vld [vmem:[%s387 + $0x50] sm:$0xff]
          %v464 = vld [vmem:[%s387 + $0x58] sm:$0xff]
          %v465 = vld [vmem:[%s387 + $0x60] sm:$0xff]
          %v466 = vld [vmem:[%s387 + $0x68] sm:$0xff]
          %v467 = vld [vmem:[%s387 + $0x70] sm:$0xff]
          %v468 = vld [vmem:[%s387 + $0x78] sm:$0xff]
          %v469 = vld [vmem:[%s387 + $0x80] sm:$0xff]
          %v470 = vld [vmem:[%s387 + $0x88] sm:$0xff]
          %v471 = vld [vmem:[%s387 + $0x90] sm:$0xff]
          %v472 = vld [vmem:[%s387 + $0x98] sm:$0xff]
          %v473 = vld [vmem:[%s387 + $0xa0] sm:$0xff]
          %v474 = vld [vmem:[%s387 + $0xa8] sm:$0xff]
          %v475 = vld [vmem:[%s387 + $0xb0] sm:$0xff]
          %v476 = vld [vmem:[%s387 + $0xb8] sm:$0xff]
          %v477 = vld [vmem:[%s387 + $0xc0] sm:$0xff]
          %v478 = vld [vmem:[%s387 + $0xc8] sm:$0xff]
          %v479 = vld [vmem:[%s387 + $0xd0] sm:$0xff]
          %v480 = vld [vmem:[%s387 + $0xd8] sm:$0xff]
          %v481 = vld [vmem:[%s387 + $0xe0] sm:$0xff]
          %v482 = vld [vmem:[%s387 + $0xe8] sm:$0xff]
          %v483 = vld [vmem:[%s387 + $0xf0] sm:$0xff]
          %v484 = vld [vmem:[%s387 + $0xf8] sm:$0xff]
          %v485 = vld [vmem:[%s387 + $0x100] sm:$0xff]
          %v486 = vld [vmem:[%s387 + $0x108] sm:$0xff]
          %v487 = vld [vmem:[%s387 + $0x110] sm:$0xff]
          %v488 = vld [vmem:[%s387 + $0x118] sm:$0xff]
          %v489 = vld [vmem:[%s387 + $0x120] sm:$0xff]
          %v490 = vld [vmem:[%s387 + $0x128] sm:$0xff]
          %v491 = vld [vmem:[%s387 + $0x130] sm:$0xff]
          %v492 = vld [vmem:[%s387 + $0x138] sm:$0xff]
          %v493 = vld [vmem:[%s387 + $0x140] sm:$0xff]
          %v494 = vld [vmem:[%s387 + $0x148] sm:$0xff]
          %v495 = vld [vmem:[%s387 + $0x150] sm:$0xff]
          %v496 = vld [vmem:[%s387 + $0x158] sm:$0xff]
          %v497 = vld [vmem:[%s387 + $0x160] sm:$0xff]
          %v498 = vld [vmem:[%s387 + $0x168] sm:$0xff]
          %v499 = vld [vmem:[%s387 + $0x170] sm:$0xff]
          %v500 = vld [vmem:[%s387 + $0x178] sm:$0xff]
          %v501 = vld [vmem:[%s387 + $0x180] sm:$0xff]
          %v502 = vld [vmem:[%s387 + $0x188] sm:$0xff]
          %v503 = vld [vmem:[%s387 + $0x190] sm:$0xff]
          %v504 = vld [vmem:[%s387 + $0x198] sm:$0xff]
          %v505 = vld [vmem:[%s387 + $0x1a0] sm:$0xff]
          %v506 = vld [vmem:[%s387 + $0x1a8] sm:$0xff]
          %v507 = vld [vmem:[%s387 + $0x1b0] sm:$0xff]
          %v508 = vld [vmem:[%s387 + $0x1b8] sm:$0xff]
          %v509 = vld [vmem:[%s387 + $0x1c0] sm:$0xff]
          %v510 = vld [vmem:[%s387 + $0x1c8] sm:$0xff]
          %v511 = vld [vmem:[%s387 + $0x1d0] sm:$0xff]
          %v512 = vld [vmem:[%s387 + $0x1d8] sm:$0xff]
          %v513 = vld [vmem:[%s387 + $0x1e0] sm:$0xff]
          %v514 = vld [vmem:[%s387 + $0x1e8] sm:$0xff]
          %v515 = vld [vmem:[%s387 + $0x1f0] sm:$0xff]
          %v516 = vld [vmem:[%s387 + $0x1f8] sm:$0xff]
          %v517 = vld [vmem:[#allocation10] sm:$0xff]
          %v518 = vld [vmem:[#allocation10 + $0x8] sm:$0xff]
          %v519 = vld [vmem:[#allocation10 + $0x10] sm:$0xff]
          %v520 = vld [vmem:[#allocation10 + $0x18] sm:$0xff]
          %v521 = vld [vmem:[#allocation10 + $0x20] sm:$0xff]
          %v522 = vld [vmem:[#allocation10 + $0x28] sm:$0xff]
          %v523 = vld [vmem:[#allocation10 + $0x30] sm:$0xff]
          %v524 = vld [vmem:[#allocation10 + $0x38] sm:$0xff]
          %v525 = vld [vmem:[#allocation10 + $0x40] sm:$0xff]
          %v526 = vld [vmem:[#allocation10 + $0x48] sm:$0xff]
          %v527 = vld [vmem:[#allocation10 + $0x50] sm:$0xff]
          %v528 = vld [vmem:[#allocation10 + $0x58] sm:$0xff]
          %v529 = vld [vmem:[#allocation10 + $0x60] sm:$0xff]
          %v530 = vld [vmem:[#allocation10 + $0x68] sm:$0xff]
          %v531 = vld [vmem:[#allocation10 + $0x70] sm:$0xff]
          %v532 = vld [vmem:[#allocation10 + $0x78] sm:$0xff]
          %v533 = vld [vmem:[#allocation10 + $0x80] sm:$0xff]
          %v534 = vld [vmem:[#allocation10 + $0x88] sm:$0xff]
          %v535 = vld [vmem:[#allocation10 + $0x90] sm:$0xff]
          %v536 = vld [vmem:[#allocation10 + $0x98] sm:$0xff]
          %v537 = vld [vmem:[#allocation10 + $0xa0] sm:$0xff]
          %v538 = vld [vmem:[#allocation10 + $0xa8] sm:$0xff]
          %v539 = vld [vmem:[#allocation10 + $0xb0] sm:$0xff]
          %v540 = vld [vmem:[#allocation10 + $0xb8] sm:$0xff]
          %v541 = vld [vmem:[#allocation10 + $0xc0] sm:$0xff]
          %v542 = vld [vmem:[#allocation10 + $0xc8] sm:$0xff]
          %v543 = vld [vmem:[#allocation10 + $0xd0] sm:$0xff]
          %v544 = vld [vmem:[#allocation10 + $0xd8] sm:$0xff]
          %v545 = vld [vmem:[#allocation10 + $0xe0] sm:$0xff]
          %v546 = vld [vmem:[#allocation10 + $0xe8] sm:$0xff]
          %v547 = vld [vmem:[#allocation10 + $0xf0] sm:$0xff]
          %v548 = vld [vmem:[#allocation10 + $0xf8] sm:$0xff]
          %v549 = vld [vmem:[#allocation10 + $0x100] sm:$0xff]
          %v550 = vld [vmem:[#allocation10 + $0x108] sm:$0xff]
          %v551 = vld [vmem:[#allocation10 + $0x110] sm:$0xff]
          %v552 = vld [vmem:[#allocation10 + $0x118] sm:$0xff]
          %v553 = vld [vmem:[#allocation10 + $0x120] sm:$0xff]
          %v554 = vld [vmem:[#allocation10 + $0x128] sm:$0xff]
          %v555 = vld [vmem:[#allocation10 + $0x130] sm:$0xff]
          %v556 = vld [vmem:[#allocation10 + $0x138] sm:$0xff]
          %v557 = vld [vmem:[#allocation10 + $0x140] sm:$0xff]
          %v558 = vld [vmem:[#allocation10 + $0x148] sm:$0xff]
          %v559 = vld [vmem:[#allocation10 + $0x150] sm:$0xff]
          %v560 = vld [vmem:[#allocation10 + $0x158] sm:$0xff]
          %v561 = vld [vmem:[#allocation10 + $0x160] sm:$0xff]
          %v562 = vld [vmem:[#allocation10 + $0x168] sm:$0xff]
          %v563 = vld [vmem:[#allocation10 + $0x170] sm:$0xff]
          %v564 = vld [vmem:[#allocation10 + $0x178] sm:$0xff]
          %v565 = vld [vmem:[#allocation10 + $0x180] sm:$0xff]
          %v566 = vld [vmem:[#allocation10 + $0x188] sm:$0xff]
          %v567 = vld [vmem:[#allocation10 + $0x190] sm:$0xff]
          %v568 = vld [vmem:[#allocation10 + $0x198] sm:$0xff]
          %v569 = vld [vmem:[#allocation10 + $0x1a0] sm:$0xff]
          %v570 = vld [vmem:[#allocation10 + $0x1a8] sm:$0xff]
          %v571 = vld [vmem:[#allocation10 + $0x1b0] sm:$0xff]
          %v572 = vld [vmem:[#allocation10 + $0x1b8] sm:$0xff]
          %v573 = vld [vmem:[#allocation10 + $0x1c0] sm:$0xff]
          %v574 = vld [vmem:[#allocation10 + $0x1c8] sm:$0xff]
          %v575 = vld [vmem:[#allocation10 + $0x1d0] sm:$0xff]
          %v576 = vld [vmem:[#allocation10 + $0x1d8] sm:$0xff]
          %v577 = vld [vmem:[#allocation10 + $0x1e0] sm:$0xff]
          %v578 = vld [vmem:[#allocation10 + $0x1e8] sm:$0xff]
          %v579 = vld [vmem:[#allocation10 + $0x1f0] sm:$0xff]
          %v580 = vld [vmem:[#allocation10 + $0x1f8] sm:$0xff]
          %v581 = vld [vmem:[%s5] sm:$0x3]
          %v583 = vperm.slane %v581, 0
          %v584 = vperm.slane %v581, 1
          %587 = vmatpush.xpose.msra.mxu0 %v547
          %588 = vmatpush.xpose.msra.mxu0 %v545
          %589 = vmatpush.xpose.msra.mxu0 %v543
          %590 = vmatpush.xpose.msra.mxu0 %v541
          %591 = vmatpush.xpose.msra.mxu0 %v539
          %592 = vmatpush.xpose.msra.mxu0 %v537
          %593 = vmatpush.xpose.msra.mxu0 %v535
          %594 = vmatpush.xpose.msra.mxu0 %v533
          %595 = vmatpush.xpose.msra.mxu0 %v531
          %596 = vmatpush.xpose.msra.mxu0 %v529
          %597 = vmatpush.xpose.msra.mxu0 %v527
          %598 = vmatpush.xpose.msra.mxu0 %v525
          %599 = vmatpush.xpose.msra.mxu0 %v523
          %600 = vmatpush.xpose.msra.mxu0 %v521
          %601 = vmatpush.xpose.msra.mxu0 %v519
          %602 = vmatpush.xpose.msra.mxu0 %v517
          %603 = vmatmul.f32.gmra.mxu0 %v453
          %v604 = vpop.f32.mrf.mxu0
          %v605 = vadd.f32 %v583, %v604
          %606 = vmatmul.f32.gmra.mxu0 %v455
          %v607 = vpop.f32.mrf.mxu0
          %v608 = vadd.f32 %v583, %v607
          %609 = vmatmul.f32.gmra.mxu0 %v457
          %v610 = vpop.f32.mrf.mxu0
          %v611 = vadd.f32 %v583, %v610
          %612 = vmatmul.f32.gmra.mxu0 %v459
          %v613 = vpop.f32.mrf.mxu0
          %v614 = vadd.f32 %v583, %v613
          %615 = vmatmul.f32.gmra.mxu0 %v461
          %v616 = vpop.f32.mrf.mxu0
          %v617 = vadd.f32 %v583, %v616
          %618 = vmatmul.f32.gmra.mxu0 %v463
          %v619 = vpop.f32.mrf.mxu0
          %v620 = vadd.f32 %v583, %v619
          %621 = vmatmul.f32.gmra.mxu0 %v465
          %v622 = vpop.f32.mrf.mxu0
          %v623 = vadd.f32 %v583, %v622
          %624 = vmatmul.f32.gmra.mxu0 %v467
          %v625 = vpop.f32.mrf.mxu0
          %v626 = vadd.f32 %v583, %v625
          %627 = vmatmul.f32.gmra.mxu0 %v469
          %v628 = vpop.f32.mrf.mxu0
          %v629 = vadd.f32 %v583, %v628
          %630 = vmatmul.f32.gmra.mxu0 %v471
          %v631 = vpop.f32.mrf.mxu0
          %v632 = vadd.f32 %v583, %v631
          %633 = vmatmul.f32.gmra.mxu0 %v473
          %v634 = vpop.f32.mrf.mxu0
          %v635 = vadd.f32 %v583, %v634
          %636 = vmatmul.f32.gmra.mxu0 %v475
          %v637 = vpop.f32.mrf.mxu0
          %v638 = vadd.f32 %v583, %v637
          %639 = vmatmul.f32.gmra.mxu0 %v477
          %v640 = vpop.f32.mrf.mxu0
          %v641 = vadd.f32 %v583, %v640
          %642 = vmatmul.f32.gmra.mxu0 %v479
          %v643 = vpop.f32.mrf.mxu0
          %v644 = vadd.f32 %v583, %v643
          %645 = vmatmul.f32.gmra.mxu0 %v481
          %v646 = vpop.f32.mrf.mxu0
          %v647 = vadd.f32 %v583, %v646
          %648 = vmatmul.f32.gmra.mxu0 %v483
          %v649 = vpop.f32.mrf.mxu0
          %v650 = vadd.f32 %v583, %v649
          %651 = vmatmul.f32.gmra.mxu0 %v485
          %v652 = vpop.f32.mrf.mxu0
          %v653 = vadd.f32 %v583, %v652
          %654 = vmatmul.f32.gmra.mxu0 %v487
          %v655 = vpop.f32.mrf.mxu0
          %v656 = vadd.f32 %v583, %v655
          %657 = vmatmul.f32.gmra.mxu0 %v489
          %v658 = vpop.f32.mrf.mxu0
          %v659 = vadd.f32 %v583, %v658
          %660 = vmatmul.f32.gmra.mxu0 %v491
          %v661 = vpop.f32.mrf.mxu0
          %v662 = vadd.f32 %v583, %v661
          %663 = vmatmul.f32.gmra.mxu0 %v493
          %v664 = vpop.f32.mrf.mxu0
          %v665 = vadd.f32 %v583, %v664
          %666 = vmatmul.f32.gmra.mxu0 %v495
          %v667 = vpop.f32.mrf.mxu0
          %v668 = vadd.f32 %v583, %v667
          %669 = vmatmul.f32.gmra.mxu0 %v497
          %v670 = vpop.f32.mrf.mxu0
          %v671 = vadd.f32 %v583, %v670
          %672 = vmatmul.f32.gmra.mxu0 %v499
          %v673 = vpop.f32.mrf.mxu0
          %v674 = vadd.f32 %v583, %v673
          %675 = vmatmul.f32.gmra.mxu0 %v501
          %v676 = vpop.f32.mrf.mxu0
          %v677 = vadd.f32 %v583, %v676
          %678 = vmatmul.f32.gmra.mxu0 %v503
          %v679 = vpop.f32.mrf.mxu0
          %v680 = vadd.f32 %v583, %v679
          %681 = vmatmul.f32.gmra.mxu0 %v505
          %v682 = vpop.f32.mrf.mxu0
          %v683 = vadd.f32 %v583, %v682
          %684 = vmatmul.f32.gmra.mxu0 %v507
          %v685 = vpop.f32.mrf.mxu0
          %v686 = vadd.f32 %v583, %v685
          %687 = vmatmul.f32.gmra.mxu0 %v509
          %v688 = vpop.f32.mrf.mxu0
          %v689 = vadd.f32 %v583, %v688
          %690 = vmatmul.f32.gmra.mxu0 %v511
          %v691 = vpop.f32.mrf.mxu0
          %v692 = vadd.f32 %v583, %v691
          %693 = vmatmul.f32.gmra.mxu0 %v513
          %v694 = vpop.f32.mrf.mxu0
          %v695 = vadd.f32 %v583, %v694
          %696 = vmatmul.f32.gmra.mxu0 %v515
          %v697 = vpop.f32.mrf.mxu0
          %v698 = vadd.f32 %v583, %v697
          %699 = vdwg.mxu0
          %700 = vmatpush.xpose.msra.mxu0 %v548
          %701 = vmatpush.xpose.msra.mxu0 %v546
          %702 = vmatpush.xpose.msra.mxu0 %v544
          %703 = vmatpush.xpose.msra.mxu0 %v542
          %704 = vmatpush.xpose.msra.mxu0 %v540
          %705 = vmatpush.xpose.msra.mxu0 %v538
          %706 = vmatpush.xpose.msra.mxu0 %v536
          %707 = vmatpush.xpose.msra.mxu0 %v534
          %708 = vmatpush.xpose.msra.mxu0 %v532
          %709 = vmatpush.xpose.msra.mxu0 %v530
          %710 = vmatpush.xpose.msra.mxu0 %v528
          %711 = vmatpush.xpose.msra.mxu0 %v526
          %712 = vmatpush.xpose.msra.mxu0 %v524
          %713 = vmatpush.xpose.msra.mxu0 %v522
          %714 = vmatpush.xpose.msra.mxu0 %v520
          %715 = vmatpush.xpose.msra.mxu0 %v518
          %716 = vmatmul.f32.gmra.mxu0 %v454
          %v717 = vpop.f32.mrf.mxu0
          %v718 = vadd.f32 %v605, %v717
          %719 = vmatmul.f32.gmra.mxu0 %v456
          %v720 = vpop.f32.mrf.mxu0
          %v721 = vadd.f32 %v608, %v720
          %722 = vmatmul.f32.gmra.mxu0 %v458
          %v723 = vpop.f32.mrf.mxu0
          %v724 = vadd.f32 %v611, %v723
          %725 = vmatmul.f32.gmra.mxu0 %v460
          %v726 = vpop.f32.mrf.mxu0
          %v727 = vadd.f32 %v614, %v726
          %728 = vmatmul.f32.gmra.mxu0 %v462
          %v729 = vpop.f32.mrf.mxu0
          %v730 = vadd.f32 %v617, %v729
          %731 = vmatmul.f32.gmra.mxu0 %v464
          %v732 = vpop.f32.mrf.mxu0
          %v733 = vadd.f32 %v620, %v732
          %734 = vmatmul.f32.gmra.mxu0 %v466
          %v735 = vpop.f32.mrf.mxu0
          %v736 = vadd.f32 %v623, %v735
          %737 = vmatmul.f32.gmra.mxu0 %v468
          %v738 = vpop.f32.mrf.mxu0
          %v739 = vadd.f32 %v626, %v738
          %740 = vmatmul.f32.gmra.mxu0 %v470
          %v741 = vpop.f32.mrf.mxu0
          %v742 = vadd.f32 %v629, %v741
          %743 = vmatmul.f32.gmra.mxu0 %v472
          %v744 = vpop.f32.mrf.mxu0
          %v745 = vadd.f32 %v632, %v744
          %746 = vmatmul.f32.gmra.mxu0 %v474
          %v747 = vpop.f32.mrf.mxu0
          %v748 = vadd.f32 %v635, %v747
          %749 = vmatmul.f32.gmra.mxu0 %v476
          %v750 = vpop.f32.mrf.mxu0
          %v751 = vadd.f32 %v638, %v750
          %752 = vmatmul.f32.gmra.mxu0 %v478
          %v753 = vpop.f32.mrf.mxu0
          %v754 = vadd.f32 %v641, %v753
          %755 = vmatmul.f32.gmra.mxu0 %v480
          %v756 = vpop.f32.mrf.mxu0
          %v757 = vadd.f32 %v644, %v756
          %758 = vmatmul.f32.gmra.mxu0 %v482
          %v759 = vpop.f32.mrf.mxu0
          %v760 = vadd.f32 %v647, %v759
          %761 = vmatmul.f32.gmra.mxu0 %v484
          %v762 = vpop.f32.mrf.mxu0
          %v763 = vadd.f32 %v650, %v762
          %764 = vmatmul.f32.gmra.mxu0 %v486
          %v765 = vpop.f32.mrf.mxu0
          %v766 = vadd.f32 %v653, %v765
          %767 = vmatmul.f32.gmra.mxu0 %v488
          %v768 = vpop.f32.mrf.mxu0
          %v769 = vadd.f32 %v656, %v768
          %770 = vmatmul.f32.gmra.mxu0 %v490
          %v771 = vpop.f32.mrf.mxu0
          %v772 = vadd.f32 %v659, %v771
          %773 = vmatmul.f32.gmra.mxu0 %v492
          %v774 = vpop.f32.mrf.mxu0
          %v775 = vadd.f32 %v662, %v774
          %776 = vmatmul.f32.gmra.mxu0 %v494
          %v777 = vpop.f32.mrf.mxu0
          %v778 = vadd.f32 %v665, %v777
          %779 = vmatmul.f32.gmra.mxu0 %v496
          %v780 = vpop.f32.mrf.mxu0
          %v781 = vadd.f32 %v668, %v780
          %782 = vmatmul.f32.gmra.mxu0 %v498
          %v783 = vpop.f32.mrf.mxu0
          %v784 = vadd.f32 %v671, %v783
          %785 = vmatmul.f32.gmra.mxu0 %v500
          %v786 = vpop.f32.mrf.mxu0
          %v787 = vadd.f32 %v674, %v786
          %788 = vmatmul.f32.gmra.mxu0 %v502
          %v789 = vpop.f32.mrf.mxu0
          %v790 = vadd.f32 %v677, %v789
          %791 = vmatmul.f32.gmra.mxu0 %v504
          %v792 = vpop.f32.mrf.mxu0
          %v793 = vadd.f32 %v680, %v792
          %794 = vmatmul.f32.gmra.mxu0 %v506
          %v795 = vpop.f32.mrf.mxu0
          %v796 = vadd.f32 %v683, %v795
          %797 = vmatmul.f32.gmra.mxu0 %v508
          %v798 = vpop.f32.mrf.mxu0
          %v799 = vadd.f32 %v686, %v798
          %800 = vmatmul.f32.gmra.mxu0 %v510
          %v801 = vpop.f32.mrf.mxu0
          %v802 = vadd.f32 %v689, %v801
          %803 = vmatmul.f32.gmra.mxu0 %v512
          %v804 = vpop.f32.mrf.mxu0
          %v805 = vadd.f32 %v692, %v804
          %806 = vmatmul.f32.gmra.mxu0 %v514
          %v807 = vpop.f32.mrf.mxu0
          %v808 = vadd.f32 %v695, %v807
          %809 = vmatmul.f32.gmra.mxu0 %v516
          %v810 = vpop.f32.mrf.mxu0
          %v811 = vadd.f32 %v698, %v810
          %812 = vdwg.mxu0
          %813 = vmatpush.xpose.msra.mxu0 %v579
          %814 = vmatpush.xpose.msra.mxu0 %v577
          %815 = vmatpush.xpose.msra.mxu0 %v575
          %816 = vmatpush.xpose.msra.mxu0 %v573
          %817 = vmatpush.xpose.msra.mxu0 %v571
          %818 = vmatpush.xpose.msra.mxu0 %v569
          %819 = vmatpush.xpose.msra.mxu0 %v567
          %820 = vmatpush.xpose.msra.mxu0 %v565
          %821 = vmatpush.xpose.msra.mxu0 %v563
          %822 = vmatpush.xpose.msra.mxu0 %v561
          %823 = vmatpush.xpose.msra.mxu0 %v559
          %824 = vmatpush.xpose.msra.mxu0 %v557
          %825 = vmatpush.xpose.msra.mxu0 %v555
          %826 = vmatpush.xpose.msra.mxu0 %v553
          %827 = vmatpush.xpose.msra.mxu0 %v551
          %828 = vmatpush.xpose.msra.mxu0 %v549
          %829 = vmatmul.f32.gmra.mxu0 %v453
          %v830 = vpop.f32.mrf.mxu0
          %v831 = vadd.f32 %v584, %v830
          %832 = vmatmul.f32.gmra.mxu0 %v455
          %v833 = vpop.f32.mrf.mxu0
          %v834 = vadd.f32 %v584, %v833
          %835 = vmatmul.f32.gmra.mxu0 %v457
          %v836 = vpop.f32.mrf.mxu0
          %v837 = vadd.f32 %v584, %v836
          %838 = vmatmul.f32.gmra.mxu0 %v459
          %v839 = vpop.f32.mrf.mxu0
          %v840 = vadd.f32 %v584, %v839
          %841 = vmatmul.f32.gmra.mxu0 %v461
          %v842 = vpop.f32.mrf.mxu0
          %v843 = vadd.f32 %v584, %v842
          %844 = vmatmul.f32.gmra.mxu0 %v463
          %v845 = vpop.f32.mrf.mxu0
          %v846 = vadd.f32 %v584, %v845
          %847 = vmatmul.f32.gmra.mxu0 %v465
          %v848 = vpop.f32.mrf.mxu0
          %v849 = vadd.f32 %v584, %v848
          %850 = vmatmul.f32.gmra.mxu0 %v467
          %v851 = vpop.f32.mrf.mxu0
          %v852 = vadd.f32 %v584, %v851
          %853 = vmatmul.f32.gmra.mxu0 %v469
          %v854 = vpop.f32.mrf.mxu0
          %v855 = vadd.f32 %v584, %v854
          %856 = vmatmul.f32.gmra.mxu0 %v471
          %v857 = vpop.f32.mrf.mxu0
          %v858 = vadd.f32 %v584, %v857
          %859 = vmatmul.f32.gmra.mxu0 %v473
          %v860 = vpop.f32.mrf.mxu0
          %v861 = vadd.f32 %v584, %v860
          %862 = vmatmul.f32.gmra.mxu0 %v475
          %v863 = vpop.f32.mrf.mxu0
          %v864 = vadd.f32 %v584, %v863
          %865 = vmatmul.f32.gmra.mxu0 %v477
          %v866 = vpop.f32.mrf.mxu0
          %v867 = vadd.f32 %v584, %v866
          %868 = vmatmul.f32.gmra.mxu0 %v479
          %v869 = vpop.f32.mrf.mxu0
          %v870 = vadd.f32 %v584, %v869
          %871 = vmatmul.f32.gmra.mxu0 %v481
          %v872 = vpop.f32.mrf.mxu0
          %v873 = vadd.f32 %v584, %v872
          %874 = vmatmul.f32.gmra.mxu0 %v483
          %v875 = vpop.f32.mrf.mxu0
          %v876 = vadd.f32 %v584, %v875
          %877 = vmatmul.f32.gmra.mxu0 %v485
          %v878 = vpop.f32.mrf.mxu0
          %v879 = vadd.f32 %v584, %v878
          %880 = vmatmul.f32.gmra.mxu0 %v487
          %v881 = vpop.f32.mrf.mxu0
          %v882 = vadd.f32 %v584, %v881
          %883 = vmatmul.f32.gmra.mxu0 %v489
          %v884 = vpop.f32.mrf.mxu0
          %v885 = vadd.f32 %v584, %v884
          %886 = vmatmul.f32.gmra.mxu0 %v491
          %v887 = vpop.f32.mrf.mxu0
          %v888 = vadd.f32 %v584, %v887
          %889 = vmatmul.f32.gmra.mxu0 %v493
          %v890 = vpop.f32.mrf.mxu0
          %v891 = vadd.f32 %v584, %v890
          %892 = vmatmul.f32.gmra.mxu0 %v495
          %v893 = vpop.f32.mrf.mxu0
          %v894 = vadd.f32 %v584, %v893
          %895 = vmatmul.f32.gmra.mxu0 %v497
          %v896 = vpop.f32.mrf.mxu0
          %v897 = vadd.f32 %v584, %v896
          %898 = vmatmul.f32.gmra.mxu0 %v499
          %v899 = vpop.f32.mrf.mxu0
          %v900 = vadd.f32 %v584, %v899
          %901 = vmatmul.f32.gmra.mxu0 %v501
          %v902 = vpop.f32.mrf.mxu0
          %v903 = vadd.f32 %v584, %v902
          %904 = vmatmul.f32.gmra.mxu0 %v503
          %v905 = vpop.f32.mrf.mxu0
          %v906 = vadd.f32 %v584, %v905
          %907 = vmatmul.f32.gmra.mxu0 %v505
          %v908 = vpop.f32.mrf.mxu0
          %v909 = vadd.f32 %v584, %v908
          %910 = vmatmul.f32.gmra.mxu0 %v507
          %v911 = vpop.f32.mrf.mxu0
          %v912 = vadd.f32 %v584, %v911
          %913 = vmatmul.f32.gmra.mxu0 %v509
          %v914 = vpop.f32.mrf.mxu0
          %v915 = vadd.f32 %v584, %v914
          %916 = vmatmul.f32.gmra.mxu0 %v511
          %v917 = vpop.f32.mrf.mxu0
          %v918 = vadd.f32 %v584, %v917
          %919 = vmatmul.f32.gmra.mxu0 %v513
          %v920 = vpop.f32.mrf.mxu0
          %v921 = vadd.f32 %v584, %v920
          %922 = vmatmul.f32.gmra.mxu0 %v515
          %v923 = vpop.f32.mrf.mxu0
          %v924 = vadd.f32 %v584, %v923
          %925 = vdwg.mxu0
          %926 = vmatpush.xpose.msra.mxu0 %v580
          %927 = vmatpush.xpose.msra.mxu0 %v578
          %928 = vmatpush.xpose.msra.mxu0 %v576
          %929 = vmatpush.xpose.msra.mxu0 %v574
          %930 = vmatpush.xpose.msra.mxu0 %v572
          %931 = vmatpush.xpose.msra.mxu0 %v570
          %932 = vmatpush.xpose.msra.mxu0 %v568
          %933 = vmatpush.xpose.msra.mxu0 %v566
          %934 = vmatpush.xpose.msra.mxu0 %v564
          %935 = vmatpush.xpose.msra.mxu0 %v562
          %936 = vmatpush.xpose.msra.mxu0 %v560
          %937 = vmatpush.xpose.msra.mxu0 %v558
          %938 = vmatpush.xpose.msra.mxu0 %v556
          %939 = vmatpush.xpose.msra.mxu0 %v554
          %940 = vmatpush.xpose.msra.mxu0 %v552
          %941 = vmatpush.xpose.msra.mxu0 %v550
          %942 = vmatmul.f32.gmra.mxu0 %v454
          %v943 = vpop.f32.mrf.mxu0
          %v944 = vadd.f32 %v831, %v943
          %945 = vmatmul.f32.gmra.mxu0 %v456
          %v946 = vpop.f32.mrf.mxu0
          %v947 = vadd.f32 %v834, %v946
          %948 = vmatmul.f32.gmra.mxu0 %v458
          %v949 = vpop.f32.mrf.mxu0
          %v950 = vadd.f32 %v837, %v949
          %951 = vmatmul.f32.gmra.mxu0 %v460
          %v952 = vpop.f32.mrf.mxu0
          %v953 = vadd.f32 %v840, %v952
          %954 = vmatmul.f32.gmra.mxu0 %v462
          %v955 = vpop.f32.mrf.mxu0
          %v956 = vadd.f32 %v843, %v955
          %957 = vmatmul.f32.gmra.mxu0 %v464
          %v958 = vpop.f32.mrf.mxu0
          %v959 = vadd.f32 %v846, %v958
          %960 = vmatmul.f32.gmra.mxu0 %v466
          %v961 = vpop.f32.mrf.mxu0
          %v962 = vadd.f32 %v849, %v961
          %963 = vmatmul.f32.gmra.mxu0 %v468
          %v964 = vpop.f32.mrf.mxu0
          %v965 = vadd.f32 %v852, %v964
          %966 = vmatmul.f32.gmra.mxu0 %v470
          %v967 = vpop.f32.mrf.mxu0
          %v968 = vadd.f32 %v855, %v967
          %969 = vmatmul.f32.gmra.mxu0 %v472
          %v970 = vpop.f32.mrf.mxu0
          %v971 = vadd.f32 %v858, %v970
          %972 = vmatmul.f32.gmra.mxu0 %v474
          %v973 = vpop.f32.mrf.mxu0
          %v974 = vadd.f32 %v861, %v973
          %975 = vmatmul.f32.gmra.mxu0 %v476
          %v976 = vpop.f32.mrf.mxu0
          %v977 = vadd.f32 %v864, %v976
          %978 = vmatmul.f32.gmra.mxu0 %v478
          %v979 = vpop.f32.mrf.mxu0
          %v980 = vadd.f32 %v867, %v979
          %981 = vmatmul.f32.gmra.mxu0 %v480
          %v982 = vpop.f32.mrf.mxu0
          %v983 = vadd.f32 %v870, %v982
          %984 = vmatmul.f32.gmra.mxu0 %v482
          %v985 = vpop.f32.mrf.mxu0
          %v986 = vadd.f32 %v873, %v985
          %987 = vmatmul.f32.gmra.mxu0 %v484
          %v988 = vpop.f32.mrf.mxu0
          %v989 = vadd.f32 %v876, %v988
          %990 = vmatmul.f32.gmra.mxu0 %v486
          %v991 = vpop.f32.mrf.mxu0
          %v992 = vadd.f32 %v879, %v991
          %993 = vmatmul.f32.gmra.mxu0 %v488
          %v994 = vpop.f32.mrf.mxu0
          %v995 = vadd.f32 %v882, %v994
          %996 = vmatmul.f32.gmra.mxu0 %v490
          %v997 = vpop.f32.mrf.mxu0
          %v998 = vadd.f32 %v885, %v997
          %999 = vmatmul.f32.gmra.mxu0 %v492
          %v1000 = vpop.f32.mrf.mxu0
          %v1001 = vadd.f32 %v888, %v1000
          %1002 = vmatmul.f32.gmra.mxu0 %v494
          %v1003 = vpop.f32.mrf.mxu0
          %v1004 = vadd.f32 %v891, %v1003
          %1005 = vmatmul.f32.gmra.mxu0 %v496
          %v1006 = vpop.f32.mrf.mxu0
          %v1007 = vadd.f32 %v894, %v1006
          %1008 = vmatmul.f32.gmra.mxu0 %v498
          %v1009 = vpop.f32.mrf.mxu0
          %v1010 = vadd.f32 %v897, %v1009
          %1011 = vmatmul.f32.gmra.mxu0 %v500
          %v1012 = vpop.f32.mrf.mxu0
          %v1013 = vadd.f32 %v900, %v1012
          %1014 = vmatmul.f32.gmra.mxu0 %v502
          %v1015 = vpop.f32.mrf.mxu0
          %v1016 = vadd.f32 %v903, %v1015
          %1017 = vmatmul.f32.gmra.mxu0 %v504
          %v1018 = vpop.f32.mrf.mxu0
          %v1019 = vadd.f32 %v906, %v1018
          %1020 = vmatmul.f32.gmra.mxu0 %v506
          %v1021 = vpop.f32.mrf.mxu0
          %v1022 = vadd.f32 %v909, %v1021
          %1023 = vmatmul.f32.gmra.mxu0 %v508
          %v1024 = vpop.f32.mrf.mxu0
          %v1025 = vadd.f32 %v912, %v1024
          %1026 = vmatmul.f32.gmra.mxu0 %v510
          %v1027 = vpop.f32.mrf.mxu0
          %v1028 = vadd.f32 %v915, %v1027
          %1029 = vmatmul.f32.gmra.mxu0 %v512
          %v1030 = vpop.f32.mrf.mxu0
          %v1031 = vadd.f32 %v918, %v1030
          %1032 = vmatmul.f32.gmra.mxu0 %v514
          %v1033 = vpop.f32.mrf.mxu0
          %v1034 = vadd.f32 %v921, %v1033
          %1035 = vmatmul.f32.gmra.mxu0 %v516
          %v1036 = vpop.f32.mrf.mxu0
          %v1037 = vadd.f32 %v924, %v1036
          %1038 = vdwg.mxu0
          %1039 = vst [vmem:[#allocation2] sm:$0xff] %v718
          %1040 = vst [vmem:[#allocation2 + $0x8] sm:$0xff] %v944
          %1041 = vst [vmem:[#allocation2 + $0x10] sm:$0xff] %v721
          %1042 = vst [vmem:[#allocation2 + $0x18] sm:$0xff] %v947
          %1043 = vst [vmem:[#allocation2 + $0x20] sm:$0xff] %v724
          %1044 = vst [vmem:[#allocation2 + $0x28] sm:$0xff] %v950
          %1045 = vst [vmem:[#allocation2 + $0x30] sm:$0xff] %v727
          %1046 = vst [vmem:[#allocation2 + $0x38] sm:$0xff] %v953
          %1047 = vst [vmem:[#allocation2 + $0x40] sm:$0xff] %v730
          %1048 = vst [vmem:[#allocation2 + $0x48] sm:$0xff] %v956
          %1049 = vst [vmem:[#allocation2 + $0x50] sm:$0xff] %v733
          %1050 = vst [vmem:[#allocation2 + $0x58] sm:$0xff] %v959
          %1051 = vst [vmem:[#allocation2 + $0x60] sm:$0xff] %v736
          %1052 = vst [vmem:[#allocation2 + $0x68] sm:$0xff] %v962
          %1053 = vst [vmem:[#allocation2 + $0x70] sm:$0xff] %v739
          %1054 = vst [vmem:[#allocation2 + $0x78] sm:$0xff] %v965
          %1055 = vst [vmem:[#allocation2 + $0x80] sm:$0xff] %v742
          %1056 = vst [vmem:[#allocation2 + $0x88] sm:$0xff] %v968
          %1057 = vst [vmem:[#allocation2 + $0x90] sm:$0xff] %v745
          %1058 = vst [vmem:[#allocation2 + $0x98] sm:$0xff] %v971
          %1059 = vst [vmem:[#allocation2 + $0xa0] sm:$0xff] %v748
          %1060 = vst [vmem:[#allocation2 + $0xa8] sm:$0xff] %v974
          %1061 = vst [vmem:[#allocation2 + $0xb0] sm:$0xff] %v751
          %1062 = vst [vmem:[#allocation2 + $0xb8] sm:$0xff] %v977
          %1063 = vst [vmem:[#allocation2 + $0xc0] sm:$0xff] %v754
          %1064 = vst [vmem:[#allocation2 + $0xc8] sm:$0xff] %v980
          %1065 = vst [vmem:[#allocation2 + $0xd0] sm:$0xff] %v757
          %1066 = vst [vmem:[#allocation2 + $0xd8] sm:$0xff] %v983
          %1067 = vst [vmem:[#allocation2 + $0xe0] sm:$0xff] %v760
          %1068 = vst [vmem:[#allocation2 + $0xe8] sm:$0xff] %v986
          %1069 = vst [vmem:[#allocation2 + $0xf0] sm:$0xff] %v763
          %1070 = vst [vmem:[#allocation2 + $0xf8] sm:$0xff] %v989
          %1071 = vst [vmem:[#allocation2 + $0x100] sm:$0xff] %v766
          %1072 = vst [vmem:[#allocation2 + $0x108] sm:$0xff] %v992
          %1073 = vst [vmem:[#allocation2 + $0x110] sm:$0xff] %v769
          %1074 = vst [vmem:[#allocation2 + $0x118] sm:$0xff] %v995
          %1075 = vst [vmem:[#allocation2 + $0x120] sm:$0xff] %v772
          %1076 = vst [vmem:[#allocation2 + $0x128] sm:$0xff] %v998
          %1077 = vst [vmem:[#allocation2 + $0x130] sm:$0xff] %v775
          %1078 = vst [vmem:[#allocation2 + $0x138] sm:$0xff] %v1001
          %1079 = vst [vmem:[#allocation2 + $0x140] sm:$0xff] %v778
          %1080 = vst [vmem:[#allocation2 + $0x148] sm:$0xff] %v1004
          %1081 = vst [vmem:[#allocation2 + $0x150] sm:$0xff] %v781
          %1082 = vst [vmem:[#allocation2 + $0x158] sm:$0xff] %v1007
          %1083 = vst [vmem:[#allocation2 + $0x160] sm:$0xff] %v784
          %1084 = vst [vmem:[#allocation2 + $0x168] sm:$0xff] %v1010
          %1085 = vst [vmem:[#allocation2 + $0x170] sm:$0xff] %v787
          %1086 = vst [vmem:[#allocation2 + $0x178] sm:$0xff] %v1013
          %1087 = vst [vmem:[#allocation2 + $0x180] sm:$0xff] %v790
          %1088 = vst [vmem:[#allocation2 + $0x188] sm:$0xff] %v1016
          %1089 = vst [vmem:[#allocation2 + $0x190] sm:$0xff] %v793
          %1090 = vst [vmem:[#allocation2 + $0x198] sm:$0xff] %v1019
          %1091 = vst [vmem:[#allocation2 + $0x1a0] sm:$0xff] %v796
          %1092 = vst [vmem:[#allocation2 + $0x1a8] sm:$0xff] %v1022
          %1093 = vst [vmem:[#allocation2 + $0x1b0] sm:$0xff] %v799
          %1094 = vst [vmem:[#allocation2 + $0x1b8] sm:$0xff] %v1025
          %1095 = vst [vmem:[#allocation2 + $0x1c0] sm:$0xff] %v802
          %1096 = vst [vmem:[#allocation2 + $0x1c8] sm:$0xff] %v1028
          %1097 = vst [vmem:[#allocation2 + $0x1d0] sm:$0xff] %v805
          %1098 = vst [vmem:[#allocation2 + $0x1d8] sm:$0xff] %v1031
          %1099 = vst [vmem:[#allocation2 + $0x1e0] sm:$0xff] %v808
          %1100 = vst [vmem:[#allocation2 + $0x1e8] sm:$0xff] %v1034
          %1101 = vst [vmem:[#allocation2 + $0x1f0] sm:$0xff] %v811
          %1102 = vst [vmem:[#allocation2 + $0x1f8] sm:$0xff] %v1037
          %v1103 = vld [vmem:[#allocation11] sm:$0xff]
          %v1104 = vld [vmem:[#allocation11 + $0x8] sm:$0xff]
          %v1105 = vld [vmem:[#allocation11 + $0x10] sm:$0xff]
          %v1106 = vld [vmem:[#allocation11 + $0x18] sm:$0xff]
          %v1107 = vld [vmem:[#allocation11 + $0x20] sm:$0xff]
          %v1108 = vld [vmem:[#allocation11 + $0x28] sm:$0xff]
          %v1109 = vld [vmem:[#allocation11 + $0x30] sm:$0xff]
          %v1110 = vld [vmem:[#allocation11 + $0x38] sm:$0xff]
          %v1111 = vld [vmem:[#allocation11 + $0x40] sm:$0xff]
          %v1112 = vld [vmem:[#allocation11 + $0x48] sm:$0xff]
          %v1113 = vld [vmem:[#allocation11 + $0x50] sm:$0xff]
          %v1114 = vld [vmem:[#allocation11 + $0x58] sm:$0xff]
          %v1115 = vld [vmem:[#allocation11 + $0x60] sm:$0xff]
          %v1116 = vld [vmem:[#allocation11 + $0x68] sm:$0xff]
          %v1117 = vld [vmem:[#allocation11 + $0x70] sm:$0xff]
          %v1118 = vld [vmem:[#allocation11 + $0x78] sm:$0xff]
          %v1119 = vld [vmem:[#allocation11 + $0x80] sm:$0xff]
          %v1120 = vld [vmem:[#allocation11 + $0x88] sm:$0xff]
          %v1121 = vld [vmem:[#allocation11 + $0x90] sm:$0xff]
          %v1122 = vld [vmem:[#allocation11 + $0x98] sm:$0xff]
          %v1123 = vld [vmem:[#allocation11 + $0xa0] sm:$0xff]
          %v1124 = vld [vmem:[#allocation11 + $0xa8] sm:$0xff]
          %v1125 = vld [vmem:[#allocation11 + $0xb0] sm:$0xff]
          %v1126 = vld [vmem:[#allocation11 + $0xb8] sm:$0xff]
          %v1127 = vld [vmem:[#allocation11 + $0xc0] sm:$0xff]
          %v1128 = vld [vmem:[#allocation11 + $0xc8] sm:$0xff]
          %v1129 = vld [vmem:[#allocation11 + $0xd0] sm:$0xff]
          %v1130 = vld [vmem:[#allocation11 + $0xd8] sm:$0xff]
          %v1131 = vld [vmem:[#allocation11 + $0xe0] sm:$0xff]
          %v1132 = vld [vmem:[#allocation11 + $0xe8] sm:$0xff]
          %v1133 = vld [vmem:[#allocation11 + $0xf0] sm:$0xff]
          %v1134 = vld [vmem:[#allocation11 + $0xf8] sm:$0xff]
          %v1135 = vld [vmem:[#allocation11 + $0x100] sm:$0xff]
          %v1136 = vld [vmem:[#allocation11 + $0x108] sm:$0xff]
          %v1137 = vld [vmem:[#allocation11 + $0x110] sm:$0xff]
          %v1138 = vld [vmem:[#allocation11 + $0x118] sm:$0xff]
          %v1139 = vld [vmem:[#allocation11 + $0x120] sm:$0xff]
          %v1140 = vld [vmem:[#allocation11 + $0x128] sm:$0xff]
          %v1141 = vld [vmem:[#allocation11 + $0x130] sm:$0xff]
          %v1142 = vld [vmem:[#allocation11 + $0x138] sm:$0xff]
          %v1143 = vld [vmem:[#allocation11 + $0x140] sm:$0xff]
          %v1144 = vld [vmem:[#allocation11 + $0x148] sm:$0xff]
          %v1145 = vld [vmem:[#allocation11 + $0x150] sm:$0xff]
          %v1146 = vld [vmem:[#allocation11 + $0x158] sm:$0xff]
          %v1147 = vld [vmem:[#allocation11 + $0x160] sm:$0xff]
          %v1148 = vld [vmem:[#allocation11 + $0x168] sm:$0xff]
          %v1149 = vld [vmem:[#allocation11 + $0x170] sm:$0xff]
          %v1150 = vld [vmem:[#allocation11 + $0x178] sm:$0xff]
          %v1151 = vld [vmem:[#allocation11 + $0x180] sm:$0xff]
          %v1152 = vld [vmem:[#allocation11 + $0x188] sm:$0xff]
          %v1153 = vld [vmem:[#allocation11 + $0x190] sm:$0xff]
          %v1154 = vld [vmem:[#allocation11 + $0x198] sm:$0xff]
          %v1155 = vld [vmem:[#allocation11 + $0x1a0] sm:$0xff]
          %v1156 = vld [vmem:[#allocation11 + $0x1a8] sm:$0xff]
          %v1157 = vld [vmem:[#allocation11 + $0x1b0] sm:$0xff]
          %v1158 = vld [vmem:[#allocation11 + $0x1b8] sm:$0xff]
          %v1159 = vld [vmem:[#allocation11 + $0x1c0] sm:$0xff]
          %v1160 = vld [vmem:[#allocation11 + $0x1c8] sm:$0xff]
          %v1161 = vld [vmem:[#allocation11 + $0x1d0] sm:$0xff]
          %v1162 = vld [vmem:[#allocation11 + $0x1d8] sm:$0xff]
          %v1163 = vld [vmem:[#allocation11 + $0x1e0] sm:$0xff]
          %v1164 = vld [vmem:[#allocation11 + $0x1e8] sm:$0xff]
          %v1165 = vld [vmem:[#allocation11 + $0x1f0] sm:$0xff]
          %v1166 = vld [vmem:[#allocation11 + $0x1f8] sm:$0xff]
          %v1167 = vld [vmem:[#allocation13] sm:$0x3]
          %v1169 = vperm.slane %v1167, 0
          %v1170 = vperm.slane %v1167, 1
          %1173 = vmatpush.xpose.msra.mxu0 %v1133
          %1174 = vmatpush.xpose.msra.mxu0 %v1131
          %1175 = vmatpush.xpose.msra.mxu0 %v1129
          %1176 = vmatpush.xpose.msra.mxu0 %v1127
          %1177 = vmatpush.xpose.msra.mxu0 %v1125
          %1178 = vmatpush.xpose.msra.mxu0 %v1123
          %1179 = vmatpush.xpose.msra.mxu0 %v1121
          %1180 = vmatpush.xpose.msra.mxu0 %v1119
          %1181 = vmatpush.xpose.msra.mxu0 %v1117
          %1182 = vmatpush.xpose.msra.mxu0 %v1115
          %1183 = vmatpush.xpose.msra.mxu0 %v1113
          %1184 = vmatpush.xpose.msra.mxu0 %v1111
          %1185 = vmatpush.xpose.msra.mxu0 %v1109
          %1186 = vmatpush.xpose.msra.mxu0 %v1107
          %1187 = vmatpush.xpose.msra.mxu0 %v1105
          %1188 = vmatpush.xpose.msra.mxu0 %v1103
          %1189 = vmatmul.f32.gmra.mxu0 %v453
          %v1190 = vpop.f32.mrf.mxu0
          %v1191 = vadd.f32 %v1169, %v1190
          %1192 = vmatmul.f32.gmra.mxu0 %v455
          %v1193 = vpop.f32.mrf.mxu0
          %v1194 = vadd.f32 %v1169, %v1193
          %1195 = vmatmul.f32.gmra.mxu0 %v457
          %v1196 = vpop.f32.mrf.mxu0
          %v1197 = vadd.f32 %v1169, %v1196
          %1198 = vmatmul.f32.gmra.mxu0 %v459
          %v1199 = vpop.f32.mrf.mxu0
          %v1200 = vadd.f32 %v1169, %v1199
          %1201 = vmatmul.f32.gmra.mxu0 %v461
          %v1202 = vpop.f32.mrf.mxu0
          %v1203 = vadd.f32 %v1169, %v1202
          %1204 = vmatmul.f32.gmra.mxu0 %v463
          %v1205 = vpop.f32.mrf.mxu0
          %v1206 = vadd.f32 %v1169, %v1205
          %1207 = vmatmul.f32.gmra.mxu0 %v465
          %v1208 = vpop.f32.mrf.mxu0
          %v1209 = vadd.f32 %v1169, %v1208
          %1210 = vmatmul.f32.gmra.mxu0 %v467
          %v1211 = vpop.f32.mrf.mxu0
          %v1212 = vadd.f32 %v1169, %v1211
          %1213 = vmatmul.f32.gmra.mxu0 %v469
          %v1214 = vpop.f32.mrf.mxu0
          %v1215 = vadd.f32 %v1169, %v1214
          %1216 = vmatmul.f32.gmra.mxu0 %v471
          %v1217 = vpop.f32.mrf.mxu0
          %v1218 = vadd.f32 %v1169, %v1217
          %1219 = vmatmul.f32.gmra.mxu0 %v473
          %v1220 = vpop.f32.mrf.mxu0
          %v1221 = vadd.f32 %v1169, %v1220
          %1222 = vmatmul.f32.gmra.mxu0 %v475
          %v1223 = vpop.f32.mrf.mxu0
          %v1224 = vadd.f32 %v1169, %v1223
          %1225 = vmatmul.f32.gmra.mxu0 %v477
          %v1226 = vpop.f32.mrf.mxu0
          %v1227 = vadd.f32 %v1169, %v1226
          %1228 = vmatmul.f32.gmra.mxu0 %v479
          %v1229 = vpop.f32.mrf.mxu0
          %v1230 = vadd.f32 %v1169, %v1229
          %1231 = vmatmul.f32.gmra.mxu0 %v481
          %v1232 = vpop.f32.mrf.mxu0
          %v1233 = vadd.f32 %v1169, %v1232
          %1234 = vmatmul.f32.gmra.mxu0 %v483
          %v1235 = vpop.f32.mrf.mxu0
          %v1236 = vadd.f32 %v1169, %v1235
          %1237 = vmatmul.f32.gmra.mxu0 %v485
          %v1238 = vpop.f32.mrf.mxu0
          %v1239 = vadd.f32 %v1169, %v1238
          %1240 = vmatmul.f32.gmra.mxu0 %v487
          %v1241 = vpop.f32.mrf.mxu0
          %v1242 = vadd.f32 %v1169, %v1241
          %1243 = vmatmul.f32.gmra.mxu0 %v489
          %v1244 = vpop.f32.mrf.mxu0
          %v1245 = vadd.f32 %v1169, %v1244
          %1246 = vmatmul.f32.gmra.mxu0 %v491
          %v1247 = vpop.f32.mrf.mxu0
          %v1248 = vadd.f32 %v1169, %v1247
          %1249 = vmatmul.f32.gmra.mxu0 %v493
          %v1250 = vpop.f32.mrf.mxu0
          %v1251 = vadd.f32 %v1169, %v1250
          %1252 = vmatmul.f32.gmra.mxu0 %v495
          %v1253 = vpop.f32.mrf.mxu0
          %v1254 = vadd.f32 %v1169, %v1253
          %1255 = vmatmul.f32.gmra.mxu0 %v497
          %v1256 = vpop.f32.mrf.mxu0
          %v1257 = vadd.f32 %v1169, %v1256
          %1258 = vmatmul.f32.gmra.mxu0 %v499
          %v1259 = vpop.f32.mrf.mxu0
          %v1260 = vadd.f32 %v1169, %v1259
          %1261 = vmatmul.f32.gmra.mxu0 %v501
          %v1262 = vpop.f32.mrf.mxu0
          %v1263 = vadd.f32 %v1169, %v1262
          %1264 = vmatmul.f32.gmra.mxu0 %v503
          %v1265 = vpop.f32.mrf.mxu0
          %v1266 = vadd.f32 %v1169, %v1265
          %1267 = vmatmul.f32.gmra.mxu0 %v505
          %v1268 = vpop.f32.mrf.mxu0
          %v1269 = vadd.f32 %v1169, %v1268
          %1270 = vmatmul.f32.gmra.mxu0 %v507
          %v1271 = vpop.f32.mrf.mxu0
          %v1272 = vadd.f32 %v1169, %v1271
          %1273 = vmatmul.f32.gmra.mxu0 %v509
          %v1274 = vpop.f32.mrf.mxu0
          %v1275 = vadd.f32 %v1169, %v1274
          %1276 = vmatmul.f32.gmra.mxu0 %v511
          %v1277 = vpop.f32.mrf.mxu0
          %v1278 = vadd.f32 %v1169, %v1277
          %1279 = vmatmul.f32.gmra.mxu0 %v513
          %v1280 = vpop.f32.mrf.mxu0
          %v1281 = vadd.f32 %v1169, %v1280
          %1282 = vmatmul.f32.gmra.mxu0 %v515
          %v1283 = vpop.f32.mrf.mxu0
          %v1284 = vadd.f32 %v1169, %v1283
          %1285 = vdwg.mxu0
          %1286 = vmatpush.xpose.msra.mxu0 %v1134
          %1287 = vmatpush.xpose.msra.mxu0 %v1132
          %1288 = vmatpush.xpose.msra.mxu0 %v1130
          %1289 = vmatpush.xpose.msra.mxu0 %v1128
          %1290 = vmatpush.xpose.msra.mxu0 %v1126
          %1291 = vmatpush.xpose.msra.mxu0 %v1124
          %1292 = vmatpush.xpose.msra.mxu0 %v1122
          %1293 = vmatpush.xpose.msra.mxu0 %v1120
          %1294 = vmatpush.xpose.msra.mxu0 %v1118
          %1295 = vmatpush.xpose.msra.mxu0 %v1116
          %1296 = vmatpush.xpose.msra.mxu0 %v1114
          %1297 = vmatpush.xpose.msra.mxu0 %v1112
          %1298 = vmatpush.xpose.msra.mxu0 %v1110
          %1299 = vmatpush.xpose.msra.mxu0 %v1108
          %1300 = vmatpush.xpose.msra.mxu0 %v1106
          %1301 = vmatpush.xpose.msra.mxu0 %v1104
          %1302 = vmatmul.f32.gmra.mxu0 %v454
          %v1303 = vpop.f32.mrf.mxu0
          %v1304 = vadd.f32 %v1191, %v1303
          %1305 = vmatmul.f32.gmra.mxu0 %v456
          %v1306 = vpop.f32.mrf.mxu0
          %v1307 = vadd.f32 %v1194, %v1306
          %1308 = vmatmul.f32.gmra.mxu0 %v458
          %v1309 = vpop.f32.mrf.mxu0
          %v1310 = vadd.f32 %v1197, %v1309
          %1311 = vmatmul.f32.gmra.mxu0 %v460
          %v1312 = vpop.f32.mrf.mxu0
          %v1313 = vadd.f32 %v1200, %v1312
          %1314 = vmatmul.f32.gmra.mxu0 %v462
          %v1315 = vpop.f32.mrf.mxu0
          %v1316 = vadd.f32 %v1203, %v1315
          %1317 = vmatmul.f32.gmra.mxu0 %v464
          %v1318 = vpop.f32.mrf.mxu0
          %v1319 = vadd.f32 %v1206, %v1318
          %1320 = vmatmul.f32.gmra.mxu0 %v466
          %v1321 = vpop.f32.mrf.mxu0
          %v1322 = vadd.f32 %v1209, %v1321
          %1323 = vmatmul.f32.gmra.mxu0 %v468
          %v1324 = vpop.f32.mrf.mxu0
          %v1325 = vadd.f32 %v1212, %v1324
          %1326 = vmatmul.f32.gmra.mxu0 %v470
          %v1327 = vpop.f32.mrf.mxu0
          %v1328 = vadd.f32 %v1215, %v1327
          %1329 = vmatmul.f32.gmra.mxu0 %v472
          %v1330 = vpop.f32.mrf.mxu0
          %v1331 = vadd.f32 %v1218, %v1330
          %1332 = vmatmul.f32.gmra.mxu0 %v474
          %v1333 = vpop.f32.mrf.mxu0
          %v1334 = vadd.f32 %v1221, %v1333
          %1335 = vmatmul.f32.gmra.mxu0 %v476
          %v1336 = vpop.f32.mrf.mxu0
          %v1337 = vadd.f32 %v1224, %v1336
          %1338 = vmatmul.f32.gmra.mxu0 %v478
          %v1339 = vpop.f32.mrf.mxu0
          %v1340 = vadd.f32 %v1227, %v1339
          %1341 = vmatmul.f32.gmra.mxu0 %v480
          %v1342 = vpop.f32.mrf.mxu0
          %v1343 = vadd.f32 %v1230, %v1342
          %1344 = vmatmul.f32.gmra.mxu0 %v482
          %v1345 = vpop.f32.mrf.mxu0
          %v1346 = vadd.f32 %v1233, %v1345
          %1347 = vmatmul.f32.gmra.mxu0 %v484
          %v1348 = vpop.f32.mrf.mxu0
          %v1349 = vadd.f32 %v1236, %v1348
          %1350 = vmatmul.f32.gmra.mxu0 %v486
          %v1351 = vpop.f32.mrf.mxu0
          %v1352 = vadd.f32 %v1239, %v1351
          %1353 = vmatmul.f32.gmra.mxu0 %v488
          %v1354 = vpop.f32.mrf.mxu0
          %v1355 = vadd.f32 %v1242, %v1354
          %1356 = vmatmul.f32.gmra.mxu0 %v490
          %v1357 = vpop.f32.mrf.mxu0
          %v1358 = vadd.f32 %v1245, %v1357
          %1359 = vmatmul.f32.gmra.mxu0 %v492
          %v1360 = vpop.f32.mrf.mxu0
          %v1361 = vadd.f32 %v1248, %v1360
          %1362 = vmatmul.f32.gmra.mxu0 %v494
          %v1363 = vpop.f32.mrf.mxu0
          %v1364 = vadd.f32 %v1251, %v1363
          %1365 = vmatmul.f32.gmra.mxu0 %v496
          %v1366 = vpop.f32.mrf.mxu0
          %v1367 = vadd.f32 %v1254, %v1366
          %1368 = vmatmul.f32.gmra.mxu0 %v498
          %v1369 = vpop.f32.mrf.mxu0
          %v1370 = vadd.f32 %v1257, %v1369
          %1371 = vmatmul.f32.gmra.mxu0 %v500
          %v1372 = vpop.f32.mrf.mxu0
          %v1373 = vadd.f32 %v1260, %v1372
          %1374 = vmatmul.f32.gmra.mxu0 %v502
          %v1375 = vpop.f32.mrf.mxu0
          %v1376 = vadd.f32 %v1263, %v1375
          %1377 = vmatmul.f32.gmra.mxu0 %v504
          %v1378 = vpop.f32.mrf.mxu0
          %v1379 = vadd.f32 %v1266, %v1378
          %1380 = vmatmul.f32.gmra.mxu0 %v506
          %v1381 = vpop.f32.mrf.mxu0
          %v1382 = vadd.f32 %v1269, %v1381
          %1383 = vmatmul.f32.gmra.mxu0 %v508
          %v1384 = vpop.f32.mrf.mxu0
          %v1385 = vadd.f32 %v1272, %v1384
          %1386 = vmatmul.f32.gmra.mxu0 %v510
          %v1387 = vpop.f32.mrf.mxu0
          %v1388 = vadd.f32 %v1275, %v1387
          %1389 = vmatmul.f32.gmra.mxu0 %v512
          %v1390 = vpop.f32.mrf.mxu0
          %v1391 = vadd.f32 %v1278, %v1390
          %1392 = vmatmul.f32.gmra.mxu0 %v514
          %v1393 = vpop.f32.mrf.mxu0
          %v1394 = vadd.f32 %v1281, %v1393
          %1395 = vmatmul.f32.gmra.mxu0 %v516
          %v1396 = vpop.f32.mrf.mxu0
          %v1397 = vadd.f32 %v1284, %v1396
          %1398 = vdwg.mxu0
          %1399 = vmatpush.xpose.msra.mxu0 %v1165
          %1400 = vmatpush.xpose.msra.mxu0 %v1163
          %1401 = vmatpush.xpose.msra.mxu0 %v1161
          %1402 = vmatpush.xpose.msra.mxu0 %v1159
          %1403 = vmatpush.xpose.msra.mxu0 %v1157
          %1404 = vmatpush.xpose.msra.mxu0 %v1155
          %1405 = vmatpush.xpose.msra.mxu0 %v1153
          %1406 = vmatpush.xpose.msra.mxu0 %v1151
          %1407 = vmatpush.xpose.msra.mxu0 %v1149
          %1408 = vmatpush.xpose.msra.mxu0 %v1147
          %1409 = vmatpush.xpose.msra.mxu0 %v1145
          %1410 = vmatpush.xpose.msra.mxu0 %v1143
          %1411 = vmatpush.xpose.msra.mxu0 %v1141
          %1412 = vmatpush.xpose.msra.mxu0 %v1139
          %1413 = vmatpush.xpose.msra.mxu0 %v1137
          %1414 = vmatpush.xpose.msra.mxu0 %v1135
          %1415 = vmatmul.f32.gmra.mxu0 %v453
          %v1416 = vpop.f32.mrf.mxu0
          %v1417 = vadd.f32 %v1170, %v1416
          %1418 = vmatmul.f32.gmra.mxu0 %v455
          %v1419 = vpop.f32.mrf.mxu0
          %v1420 = vadd.f32 %v1170, %v1419
          %1421 = vmatmul.f32.gmra.mxu0 %v457
          %v1422 = vpop.f32.mrf.mxu0
          %v1423 = vadd.f32 %v1170, %v1422
          %1424 = vmatmul.f32.gmra.mxu0 %v459
          %v1425 = vpop.f32.mrf.mxu0
          %v1426 = vadd.f32 %v1170, %v1425
          %1427 = vmatmul.f32.gmra.mxu0 %v461
          %v1428 = vpop.f32.mrf.mxu0
          %v1429 = vadd.f32 %v1170, %v1428
          %1430 = vmatmul.f32.gmra.mxu0 %v463
          %v1431 = vpop.f32.mrf.mxu0
          %v1432 = vadd.f32 %v1170, %v1431
          %1433 = vmatmul.f32.gmra.mxu0 %v465
          %v1434 = vpop.f32.mrf.mxu0
          %v1435 = vadd.f32 %v1170, %v1434
          %1436 = vmatmul.f32.gmra.mxu0 %v467
          %v1437 = vpop.f32.mrf.mxu0
          %v1438 = vadd.f32 %v1170, %v1437
          %1439 = vmatmul.f32.gmra.mxu0 %v469
          %v1440 = vpop.f32.mrf.mxu0
          %v1441 = vadd.f32 %v1170, %v1440
          %1442 = vmatmul.f32.gmra.mxu0 %v471
          %v1443 = vpop.f32.mrf.mxu0
          %v1444 = vadd.f32 %v1170, %v1443
          %1445 = vmatmul.f32.gmra.mxu0 %v473
          %v1446 = vpop.f32.mrf.mxu0
          %v1447 = vadd.f32 %v1170, %v1446
          %1448 = vmatmul.f32.gmra.mxu0 %v475
          %v1449 = vpop.f32.mrf.mxu0
          %v1450 = vadd.f32 %v1170, %v1449
          %1451 = vmatmul.f32.gmra.mxu0 %v477
          %v1452 = vpop.f32.mrf.mxu0
          %v1453 = vadd.f32 %v1170, %v1452
          %1454 = vmatmul.f32.gmra.mxu0 %v479
          %v1455 = vpop.f32.mrf.mxu0
          %v1456 = vadd.f32 %v1170, %v1455
          %1457 = vmatmul.f32.gmra.mxu0 %v481
          %v1458 = vpop.f32.mrf.mxu0
          %v1459 = vadd.f32 %v1170, %v1458
          %1460 = vmatmul.f32.gmra.mxu0 %v483
          %v1461 = vpop.f32.mrf.mxu0
          %v1462 = vadd.f32 %v1170, %v1461
          %1463 = vmatmul.f32.gmra.mxu0 %v485
          %v1464 = vpop.f32.mrf.mxu0
          %v1465 = vadd.f32 %v1170, %v1464
          %1466 = vmatmul.f32.gmra.mxu0 %v487
          %v1467 = vpop.f32.mrf.mxu0
          %v1468 = vadd.f32 %v1170, %v1467
          %1469 = vmatmul.f32.gmra.mxu0 %v489
          %v1470 = vpop.f32.mrf.mxu0
          %v1471 = vadd.f32 %v1170, %v1470
          %1472 = vmatmul.f32.gmra.mxu0 %v491
          %v1473 = vpop.f32.mrf.mxu0
          %v1474 = vadd.f32 %v1170, %v1473
          %1475 = vmatmul.f32.gmra.mxu0 %v493
          %v1476 = vpop.f32.mrf.mxu0
          %v1477 = vadd.f32 %v1170, %v1476
          %1478 = vmatmul.f32.gmra.mxu0 %v495
          %v1479 = vpop.f32.mrf.mxu0
          %v1480 = vadd.f32 %v1170, %v1479
          %1481 = vmatmul.f32.gmra.mxu0 %v497
          %v1482 = vpop.f32.mrf.mxu0
          %v1483 = vadd.f32 %v1170, %v1482
          %1484 = vmatmul.f32.gmra.mxu0 %v499
          %v1485 = vpop.f32.mrf.mxu0
          %v1486 = vadd.f32 %v1170, %v1485
          %1487 = vmatmul.f32.gmra.mxu0 %v501
          %v1488 = vpop.f32.mrf.mxu0
          %v1489 = vadd.f32 %v1170, %v1488
          %1490 = vmatmul.f32.gmra.mxu0 %v503
          %v1491 = vpop.f32.mrf.mxu0
          %v1492 = vadd.f32 %v1170, %v1491
          %1493 = vmatmul.f32.gmra.mxu0 %v505
          %v1494 = vpop.f32.mrf.mxu0
          %v1495 = vadd.f32 %v1170, %v1494
          %1496 = vmatmul.f32.gmra.mxu0 %v507
          %v1497 = vpop.f32.mrf.mxu0
          %v1498 = vadd.f32 %v1170, %v1497
          %1499 = vmatmul.f32.gmra.mxu0 %v509
          %v1500 = vpop.f32.mrf.mxu0
          %v1501 = vadd.f32 %v1170, %v1500
          %1502 = vmatmul.f32.gmra.mxu0 %v511
          %v1503 = vpop.f32.mrf.mxu0
          %v1504 = vadd.f32 %v1170, %v1503
          %1505 = vmatmul.f32.gmra.mxu0 %v513
          %v1506 = vpop.f32.mrf.mxu0
          %v1507 = vadd.f32 %v1170, %v1506
          %1508 = vmatmul.f32.gmra.mxu0 %v515
          %v1509 = vpop.f32.mrf.mxu0
          %v1510 = vadd.f32 %v1170, %v1509
          %1511 = vdwg.mxu0
          %1512 = vmatpush.xpose.msra.mxu0 %v1166
          %1513 = vmatpush.xpose.msra.mxu0 %v1164
          %1514 = vmatpush.xpose.msra.mxu0 %v1162
          %1515 = vmatpush.xpose.msra.mxu0 %v1160
          %1516 = vmatpush.xpose.msra.mxu0 %v1158
          %1517 = vmatpush.xpose.msra.mxu0 %v1156
          %1518 = vmatpush.xpose.msra.mxu0 %v1154
          %1519 = vmatpush.xpose.msra.mxu0 %v1152
          %1520 = vmatpush.xpose.msra.mxu0 %v1150
          %1521 = vmatpush.xpose.msra.mxu0 %v1148
          %1522 = vmatpush.xpose.msra.mxu0 %v1146
          %1523 = vmatpush.xpose.msra.mxu0 %v1144
          %1524 = vmatpush.xpose.msra.mxu0 %v1142
          %1525 = vmatpush.xpose.msra.mxu0 %v1140
          %1526 = vmatpush.xpose.msra.mxu0 %v1138
          %1527 = vmatpush.xpose.msra.mxu0 %v1136
          %1528 = vmatmul.f32.gmra.mxu0 %v454
          %v1529 = vpop.f32.mrf.mxu0
          %v1530 = vadd.f32 %v1417, %v1529
          %1531 = vmatmul.f32.gmra.mxu0 %v456
          %v1532 = vpop.f32.mrf.mxu0
          %v1533 = vadd.f32 %v1420, %v1532
          %1534 = vmatmul.f32.gmra.mxu0 %v458
          %v1535 = vpop.f32.mrf.mxu0
          %v1536 = vadd.f32 %v1423, %v1535
          %1537 = vmatmul.f32.gmra.mxu0 %v460
          %v1538 = vpop.f32.mrf.mxu0
          %v1539 = vadd.f32 %v1426, %v1538
          %1540 = vmatmul.f32.gmra.mxu0 %v462
          %v1541 = vpop.f32.mrf.mxu0
          %v1542 = vadd.f32 %v1429, %v1541
          %1543 = vmatmul.f32.gmra.mxu0 %v464
          %v1544 = vpop.f32.mrf.mxu0
          %v1545 = vadd.f32 %v1432, %v1544
          %1546 = vmatmul.f32.gmra.mxu0 %v466
          %v1547 = vpop.f32.mrf.mxu0
          %v1548 = vadd.f32 %v1435, %v1547
          %1549 = vmatmul.f32.gmra.mxu0 %v468
          %v1550 = vpop.f32.mrf.mxu0
          %v1551 = vadd.f32 %v1438, %v1550
          %1552 = vmatmul.f32.gmra.mxu0 %v470
          %v1553 = vpop.f32.mrf.mxu0
          %v1554 = vadd.f32 %v1441, %v1553
          %1555 = vmatmul.f32.gmra.mxu0 %v472
          %v1556 = vpop.f32.mrf.mxu0
          %v1557 = vadd.f32 %v1444, %v1556
          %1558 = vmatmul.f32.gmra.mxu0 %v474
          %v1559 = vpop.f32.mrf.mxu0
          %v1560 = vadd.f32 %v1447, %v1559
          %1561 = vmatmul.f32.gmra.mxu0 %v476
          %v1562 = vpop.f32.mrf.mxu0
          %v1563 = vadd.f32 %v1450, %v1562
          %1564 = vmatmul.f32.gmra.mxu0 %v478
          %v1565 = vpop.f32.mrf.mxu0
          %v1566 = vadd.f32 %v1453, %v1565
          %1567 = vmatmul.f32.gmra.mxu0 %v480
          %v1568 = vpop.f32.mrf.mxu0
          %v1569 = vadd.f32 %v1456, %v1568
          %1570 = vmatmul.f32.gmra.mxu0 %v482
          %v1571 = vpop.f32.mrf.mxu0
          %v1572 = vadd.f32 %v1459, %v1571
          %1573 = vmatmul.f32.gmra.mxu0 %v484
          %v1574 = vpop.f32.mrf.mxu0
          %v1575 = vadd.f32 %v1462, %v1574
          %1576 = vmatmul.f32.gmra.mxu0 %v486
          %v1577 = vpop.f32.mrf.mxu0
          %v1578 = vadd.f32 %v1465, %v1577
          %1579 = vmatmul.f32.gmra.mxu0 %v488
          %v1580 = vpop.f32.mrf.mxu0
          %v1581 = vadd.f32 %v1468, %v1580
          %1582 = vmatmul.f32.gmra.mxu0 %v490
          %v1583 = vpop.f32.mrf.mxu0
          %v1584 = vadd.f32 %v1471, %v1583
          %1585 = vmatmul.f32.gmra.mxu0 %v492
          %v1586 = vpop.f32.mrf.mxu0
          %v1587 = vadd.f32 %v1474, %v1586
          %1588 = vmatmul.f32.gmra.mxu0 %v494
          %v1589 = vpop.f32.mrf.mxu0
          %v1590 = vadd.f32 %v1477, %v1589
          %1591 = vmatmul.f32.gmra.mxu0 %v496
          %v1592 = vpop.f32.mrf.mxu0
          %v1593 = vadd.f32 %v1480, %v1592
          %1594 = vmatmul.f32.gmra.mxu0 %v498
          %v1595 = vpop.f32.mrf.mxu0
          %v1596 = vadd.f32 %v1483, %v1595
          %1597 = vmatmul.f32.gmra.mxu0 %v500
          %v1598 = vpop.f32.mrf.mxu0
          %v1599 = vadd.f32 %v1486, %v1598
          %1600 = vmatmul.f32.gmra.mxu0 %v502
          %v1601 = vpop.f32.mrf.mxu0
          %v1602 = vadd.f32 %v1489, %v1601
          %1603 = vmatmul.f32.gmra.mxu0 %v504
          %v1604 = vpop.f32.mrf.mxu0
          %v1605 = vadd.f32 %v1492, %v1604
          %1606 = vmatmul.f32.gmra.mxu0 %v506
          %v1607 = vpop.f32.mrf.mxu0
          %v1608 = vadd.f32 %v1495, %v1607
          %1609 = vmatmul.f32.gmra.mxu0 %v508
          %v1610 = vpop.f32.mrf.mxu0
          %v1611 = vadd.f32 %v1498, %v1610
          %1612 = vmatmul.f32.gmra.mxu0 %v510
          %v1613 = vpop.f32.mrf.mxu0
          %v1614 = vadd.f32 %v1501, %v1613
          %1615 = vmatmul.f32.gmra.mxu0 %v512
          %v1616 = vpop.f32.mrf.mxu0
          %v1617 = vadd.f32 %v1504, %v1616
          %1618 = vmatmul.f32.gmra.mxu0 %v514
          %v1619 = vpop.f32.mrf.mxu0
          %v1620 = vadd.f32 %v1507, %v1619
          %1621 = vmatmul.f32.gmra.mxu0 %v516
          %v1622 = vpop.f32.mrf.mxu0
          %v1623 = vadd.f32 %v1510, %v1622
          %1624 = vdwg.mxu0
          %1625 = vst [vmem:[#allocation3] sm:$0xff] %v1304
          %1626 = vst [vmem:[#allocation3 + $0x8] sm:$0xff] %v1530
          %1627 = vst [vmem:[#allocation3 + $0x10] sm:$0xff] %v1307
          %1628 = vst [vmem:[#allocation3 + $0x18] sm:$0xff] %v1533
          %1629 = vst [vmem:[#allocation3 + $0x20] sm:$0xff] %v1310
          %1630 = vst [vmem:[#allocation3 + $0x28] sm:$0xff] %v1536
          %1631 = vst [vmem:[#allocation3 + $0x30] sm:$0xff] %v1313
          %1632 = vst [vmem:[#allocation3 + $0x38] sm:$0xff] %v1539
          %1633 = vst [vmem:[#allocation3 + $0x40] sm:$0xff] %v1316
          %1634 = vst [vmem:[#allocation3 + $0x48] sm:$0xff] %v1542
          %1635 = vst [vmem:[#allocation3 + $0x50] sm:$0xff] %v1319
          %1636 = vst [vmem:[#allocation3 + $0x58] sm:$0xff] %v1545
          %1637 = vst [vmem:[#allocation3 + $0x60] sm:$0xff] %v1322
          %1638 = vst [vmem:[#allocation3 + $0x68] sm:$0xff] %v1548
          %1639 = vst [vmem:[#allocation3 + $0x70] sm:$0xff] %v1325
          %1640 = vst [vmem:[#allocation3 + $0x78] sm:$0xff] %v1551
          %1641 = vst [vmem:[#allocation3 + $0x80] sm:$0xff] %v1328
          %1642 = vst [vmem:[#allocation3 + $0x88] sm:$0xff] %v1554
          %1643 = vst [vmem:[#allocation3 + $0x90] sm:$0xff] %v1331
          %1644 = vst [vmem:[#allocation3 + $0x98] sm:$0xff] %v1557
          %1645 = vst [vmem:[#allocation3 + $0xa0] sm:$0xff] %v1334
          %1646 = vst [vmem:[#allocation3 + $0xa8] sm:$0xff] %v1560
          %1647 = vst [vmem:[#allocation3 + $0xb0] sm:$0xff] %v1337
          %1648 = vst [vmem:[#allocation3 + $0xb8] sm:$0xff] %v1563
          %1649 = vst [vmem:[#allocation3 + $0xc0] sm:$0xff] %v1340
          %1650 = vst [vmem:[#allocation3 + $0xc8] sm:$0xff] %v1566
          %1651 = vst [vmem:[#allocation3 + $0xd0] sm:$0xff] %v1343
          %1652 = vst [vmem:[#allocation3 + $0xd8] sm:$0xff] %v1569
          %1653 = vst [vmem:[#allocation3 + $0xe0] sm:$0xff] %v1346
          %1654 = vst [vmem:[#allocation3 + $0xe8] sm:$0xff] %v1572
          %1655 = vst [vmem:[#allocation3 + $0xf0] sm:$0xff] %v1349
          %1656 = vst [vmem:[#allocation3 + $0xf8] sm:$0xff] %v1575
          %1657 = vst [vmem:[#allocation3 + $0x100] sm:$0xff] %v1352
          %1658 = vst [vmem:[#allocation3 + $0x108] sm:$0xff] %v1578
          %1659 = vst [vmem:[#allocation3 + $0x110] sm:$0xff] %v1355
          %1660 = vst [vmem:[#allocation3 + $0x118] sm:$0xff] %v1581
          %1661 = vst [vmem:[#allocation3 + $0x120] sm:$0xff] %v1358
          %1662 = vst [vmem:[#allocation3 + $0x128] sm:$0xff] %v1584
          %1663 = vst [vmem:[#allocation3 + $0x130] sm:$0xff] %v1361
          %1664 = vst [vmem:[#allocation3 + $0x138] sm:$0xff] %v1587
          %1665 = vst [vmem:[#allocation3 + $0x140] sm:$0xff] %v1364
          %1666 = vst [vmem:[#allocation3 + $0x148] sm:$0xff] %v1590
          %1667 = vst [vmem:[#allocation3 + $0x150] sm:$0xff] %v1367
          %1668 = vst [vmem:[#allocation3 + $0x158] sm:$0xff] %v1593
          %1669 = vst [vmem:[#allocation3 + $0x160] sm:$0xff] %v1370
          %1670 = vst [vmem:[#allocation3 + $0x168] sm:$0xff] %v1596
          %1671 = vst [vmem:[#allocation3 + $0x170] sm:$0xff] %v1373
          %1672 = vst [vmem:[#allocation3 + $0x178] sm:$0xff] %v1599
          %1673 = vst [vmem:[#allocation3 + $0x180] sm:$0xff] %v1376
          %1674 = vst [vmem:[#allocation3 + $0x188] sm:$0xff] %v1602
          %1675 = vst [vmem:[#allocation3 + $0x190] sm:$0xff] %v1379
          %1676 = vst [vmem:[#allocation3 + $0x198] sm:$0xff] %v1605
          %1677 = vst [vmem:[#allocation3 + $0x1a0] sm:$0xff] %v1382
          %1678 = vst [vmem:[#allocation3 + $0x1a8] sm:$0xff] %v1608
          %1679 = vst [vmem:[#allocation3 + $0x1b0] sm:$0xff] %v1385
          %1680 = vst [vmem:[#allocation3 + $0x1b8] sm:$0xff] %v1611
          %1681 = vst [vmem:[#allocation3 + $0x1c0] sm:$0xff] %v1388
          %1682 = vst [vmem:[#allocation3 + $0x1c8] sm:$0xff] %v1614
          %1683 = vst [vmem:[#allocation3 + $0x1d0] sm:$0xff] %v1391
          %1684 = vst [vmem:[#allocation3 + $0x1d8] sm:$0xff] %v1617
          %1685 = vst [vmem:[#allocation3 + $0x1e0] sm:$0xff] %v1394
          %1686 = vst [vmem:[#allocation3 + $0x1e8] sm:$0xff] %v1620
          %1687 = vst [vmem:[#allocation3 + $0x1f0] sm:$0xff] %v1397
          %1688 = vst [vmem:[#allocation3 + $0x1f8] sm:$0xff] %v1623
        $region84: #{tpu_custom_call.1} parent=55 // pred_fallthru
          _
        %s1689 = smul.u32 %s34, 128
        %s1690 = sshra.s32 %s1689, 3
        %s1691 = sand.u32 %s1689, 7
        %s1692 = smul.u32 %s1690, 2
        %s1693 = smul.addr %s1692, 8
        %s1694 = scalar_lea.vmem %s387, %s1693 [#allocation5]
        %v1695 = vld [vmem:[%s1694] sm:$0xff]
        %v1696 = vld [vmem:[%s1694 + $0x8] sm:$0xff]
        %v1697 = vld [vmem:[%s1694 + $0x10] sm:$0xff]
        %v1698 = vld [vmem:[%s1694 + $0x18] sm:$0xff]
        %v1699 = vld [vmem:[%s1694 + $0x20] sm:$0xff]
        %v1700 = vld [vmem:[%s1694 + $0x28] sm:$0xff]
        %v1701 = vld [vmem:[%s1694 + $0x30] sm:$0xff]
        %v1702 = vld [vmem:[%s1694 + $0x38] sm:$0xff]
        %v1703 = vld [vmem:[%s1694 + $0x40] sm:$0xff]
        %v1704 = vld [vmem:[%s1694 + $0x48] sm:$0xff]
        %v1705 = vld [vmem:[%s1694 + $0x50] sm:$0xff]
        %v1706 = vld [vmem:[%s1694 + $0x58] sm:$0xff]
        %v1707 = vld [vmem:[%s1694 + $0x60] sm:$0xff]
        %v1708 = vld [vmem:[%s1694 + $0x68] sm:$0xff]
        %v1709 = vld [vmem:[%s1694 + $0x70] sm:$0xff]
        %v1710 = vld [vmem:[%s1694 + $0x78] sm:$0xff]
        %v1711 = vld [vmem:[%s1694 + $0x80] sm:$0xff]
        %v1712 = vld [vmem:[%s1694 + $0x88] sm:$0xff]
        %v1713 = vld [vmem:[%s1694 + $0x90] sm:$0xff]
        %v1714 = vld [vmem:[%s1694 + $0x98] sm:$0xff]
        %v1715 = vld [vmem:[%s1694 + $0xa0] sm:$0xff]
        %v1716 = vld [vmem:[%s1694 + $0xa8] sm:$0xff]
        %v1717 = vld [vmem:[%s1694 + $0xb0] sm:$0xff]
        %v1718 = vld [vmem:[%s1694 + $0xb8] sm:$0xff]
        %v1719 = vld [vmem:[%s1694 + $0xc0] sm:$0xff]
        %v1720 = vld [vmem:[%s1694 + $0xc8] sm:$0xff]
        %v1721 = vld [vmem:[%s1694 + $0xd0] sm:$0xff]
        %v1722 = vld [vmem:[%s1694 + $0xd8] sm:$0xff]
        %v1723 = vld [vmem:[%s1694 + $0xe0] sm:$0xff]
        %v1724 = vld [vmem:[%s1694 + $0xe8] sm:$0xff]
        %v1725 = vld [vmem:[%s1694 + $0xf0] sm:$0xff]
        %v1726 = vld [vmem:[%s1694 + $0xf8] sm:$0xff]
        %v1727 = vld [vmem:[#allocation8] sm:$0xff]
        %v1728 = vld [vmem:[#allocation8 + $0x8] sm:$0xff]
        %v1729 = vld [vmem:[#allocation8 + $0x10] sm:$0xff]
        %v1730 = vld [vmem:[#allocation8 + $0x18] sm:$0xff]
        %v1731 = vld [vmem:[#allocation8 + $0x20] sm:$0xff]
        %v1732 = vld [vmem:[#allocation8 + $0x28] sm:$0xff]
        %v1733 = vld [vmem:[#allocation8 + $0x30] sm:$0xff]
        %v1734 = vld [vmem:[#allocation8 + $0x38] sm:$0xff]
        %v1735 = vld [vmem:[#allocation8 + $0x40] sm:$0xff]
        %v1736 = vld [vmem:[#allocation8 + $0x48] sm:$0xff]
        %v1737 = vld [vmem:[#allocation8 + $0x50] sm:$0xff]
        %v1738 = vld [vmem:[#allocation8 + $0x58] sm:$0xff]
        %v1739 = vld [vmem:[#allocation8 + $0x60] sm:$0xff]
        %v1740 = vld [vmem:[#allocation8 + $0x68] sm:$0xff]
        %v1741 = vld [vmem:[#allocation8 + $0x70] sm:$0xff]
        %v1742 = vld [vmem:[#allocation8 + $0x78] sm:$0xff]
        %v1743 = vld [vmem:[#allocation8 + $0x80] sm:$0xff]
        %v1744 = vld [vmem:[#allocation8 + $0x88] sm:$0xff]
        %v1745 = vld [vmem:[#allocation8 + $0x90] sm:$0xff]
        %v1746 = vld [vmem:[#allocation8 + $0x98] sm:$0xff]
        %v1747 = vld [vmem:[#allocation8 + $0xa0] sm:$0xff]
        %v1748 = vld [vmem:[#allocation8 + $0xa8] sm:$0xff]
        %v1749 = vld [vmem:[#allocation8 + $0xb0] sm:$0xff]
        %v1750 = vld [vmem:[#allocation8 + $0xb8] sm:$0xff]
        %v1751 = vld [vmem:[#allocation8 + $0xc0] sm:$0xff]
        %v1752 = vld [vmem:[#allocation8 + $0xc8] sm:$0xff]
        %v1753 = vld [vmem:[#allocation8 + $0xd0] sm:$0xff]
        %v1754 = vld [vmem:[#allocation8 + $0xd8] sm:$0xff]
        %v1755 = vld [vmem:[#allocation8 + $0xe0] sm:$0xff]
        %v1756 = vld [vmem:[#allocation8 + $0xe8] sm:$0xff]
        %v1757 = vld [vmem:[#allocation8 + $0xf0] sm:$0xff]
        %v1758 = vld [vmem:[#allocation8 + $0xf8] sm:$0xff]
        %v1759 = vld [vmem:[#allocation8 + $0x100] sm:$0xff]
        %v1760 = vld [vmem:[#allocation8 + $0x108] sm:$0xff]
        %v1761 = vld [vmem:[#allocation8 + $0x110] sm:$0xff]
        %v1762 = vld [vmem:[#allocation8 + $0x118] sm:$0xff]
        %v1763 = vld [vmem:[#allocation8 + $0x120] sm:$0xff]
        %v1764 = vld [vmem:[#allocation8 + $0x128] sm:$0xff]
        %v1765 = vld [vmem:[#allocation8 + $0x130] sm:$0xff]
        %v1766 = vld [vmem:[#allocation8 + $0x138] sm:$0xff]
        %v1767 = vld [vmem:[#allocation8 + $0x140] sm:$0xff]
        %v1768 = vld [vmem:[#allocation8 + $0x148] sm:$0xff]
        %v1769 = vld [vmem:[#allocation8 + $0x150] sm:$0xff]
        %v1770 = vld [vmem:[#allocation8 + $0x158] sm:$0xff]
        %v1771 = vld [vmem:[#allocation8 + $0x160] sm:$0xff]
        %v1772 = vld [vmem:[#allocation8 + $0x168] sm:$0xff]
        %v1773 = vld [vmem:[#allocation8 + $0x170] sm:$0xff]
        %v1774 = vld [vmem:[#allocation8 + $0x178] sm:$0xff]
        %v1775 = vld [vmem:[#allocation8 + $0x180] sm:$0xff]
        %v1776 = vld [vmem:[#allocation8 + $0x188] sm:$0xff]
        %v1777 = vld [vmem:[#allocation8 + $0x190] sm:$0xff]
        %v1778 = vld [vmem:[#allocation8 + $0x198] sm:$0xff]
        %v1779 = vld [vmem:[#allocation8 + $0x1a0] sm:$0xff]
        %v1780 = vld [vmem:[#allocation8 + $0x1a8] sm:$0xff]
        %v1781 = vld [vmem:[#allocation8 + $0x1b0] sm:$0xff]
        %v1782 = vld [vmem:[#allocation8 + $0x1b8] sm:$0xff]
        %v1783 = vld [vmem:[#allocation8 + $0x1c0] sm:$0xff]
        %v1784 = vld [vmem:[#allocation8 + $0x1c8] sm:$0xff]
        %v1785 = vld [vmem:[#allocation8 + $0x1d0] sm:$0xff]
        %v1786 = vld [vmem:[#allocation8 + $0x1d8] sm:$0xff]
        %v1787 = vld [vmem:[#allocation8 + $0x1e0] sm:$0xff]
        %v1788 = vld [vmem:[#allocation8 + $0x1e8] sm:$0xff]
        %v1789 = vld [vmem:[#allocation8 + $0x1f0] sm:$0xff]
        %v1790 = vld [vmem:[#allocation8 + $0x1f8] sm:$0xff]
        %v1791 = vld [vmem:[%s4] sm:$0x3]
        %v1793 = vperm.slane %v1791, 0
        %v1794 = vperm.slane %v1791, 1
        %1797 = vmatpush.xpose.msra.mxu0 %v1757
        %1798 = vmatpush.xpose.msra.mxu0 %v1755
        %1799 = vmatpush.xpose.msra.mxu0 %v1753
        %1800 = vmatpush.xpose.msra.mxu0 %v1751
        %1801 = vmatpush.xpose.msra.mxu0 %v1749
        %1802 = vmatpush.xpose.msra.mxu0 %v1747
        %1803 = vmatpush.xpose.msra.mxu0 %v1745
        %1804 = vmatpush.xpose.msra.mxu0 %v1743
        %1805 = vmatpush.xpose.msra.mxu0 %v1741
        %1806 = vmatpush.xpose.msra.mxu0 %v1739
        %1807 = vmatpush.xpose.msra.mxu0 %v1737
        %1808 = vmatpush.xpose.msra.mxu0 %v1735
        %1809 = vmatpush.xpose.msra.mxu0 %v1733
        %1810 = vmatpush.xpose.msra.mxu0 %v1731
        %1811 = vmatpush.xpose.msra.mxu0 %v1729
        %1812 = vmatpush.xpose.msra.mxu0 %v1727
        %1813 = vmatmul.f32.gmra.mxu0 %v1695
        %v1814 = vpop.f32.mrf.mxu0
        %v1815 = vadd.f32 %v1793, %v1814
        %1816 = vmatmul.f32.gmra.mxu0 %v1697
        %v1817 = vpop.f32.mrf.mxu0
        %v1818 = vadd.f32 %v1793, %v1817
        %1819 = vmatmul.f32.gmra.mxu0 %v1699
        %v1820 = vpop.f32.mrf.mxu0
        %v1821 = vadd.f32 %v1793, %v1820
        %1822 = vmatmul.f32.gmra.mxu0 %v1701
        %v1823 = vpop.f32.mrf.mxu0
        %v1824 = vadd.f32 %v1793, %v1823
        %1825 = vmatmul.f32.gmra.mxu0 %v1703
        %v1826 = vpop.f32.mrf.mxu0
        %v1827 = vadd.f32 %v1793, %v1826
        %1828 = vmatmul.f32.gmra.mxu0 %v1705
        %v1829 = vpop.f32.mrf.mxu0
        %v1830 = vadd.f32 %v1793, %v1829
        %1831 = vmatmul.f32.gmra.mxu0 %v1707
        %v1832 = vpop.f32.mrf.mxu0
        %v1833 = vadd.f32 %v1793, %v1832
        %1834 = vmatmul.f32.gmra.mxu0 %v1709
        %v1835 = vpop.f32.mrf.mxu0
        %v1836 = vadd.f32 %v1793, %v1835
        %1837 = vmatmul.f32.gmra.mxu0 %v1711
        %v1838 = vpop.f32.mrf.mxu0
        %v1839 = vadd.f32 %v1793, %v1838
        %1840 = vmatmul.f32.gmra.mxu0 %v1713
        %v1841 = vpop.f32.mrf.mxu0
        %v1842 = vadd.f32 %v1793, %v1841
        %1843 = vmatmul.f32.gmra.mxu0 %v1715
        %v1844 = vpop.f32.mrf.mxu0
        %v1845 = vadd.f32 %v1793, %v1844
        %1846 = vmatmul.f32.gmra.mxu0 %v1717
        %v1847 = vpop.f32.mrf.mxu0
        %v1848 = vadd.f32 %v1793, %v1847
        %1849 = vmatmul.f32.gmra.mxu0 %v1719
        %v1850 = vpop.f32.mrf.mxu0
        %v1851 = vadd.f32 %v1793, %v1850
        %1852 = vmatmul.f32.gmra.mxu0 %v1721
        %v1853 = vpop.f32.mrf.mxu0
        %v1854 = vadd.f32 %v1793, %v1853
        %1855 = vmatmul.f32.gmra.mxu0 %v1723
        %v1856 = vpop.f32.mrf.mxu0
        %v1857 = vadd.f32 %v1793, %v1856
        %1858 = vmatmul.f32.gmra.mxu0 %v1725
        %v1859 = vpop.f32.mrf.mxu0
        %v1860 = vadd.f32 %v1793, %v1859
        %1861 = vdwg.mxu0
        %1862 = vmatpush.xpose.msra.mxu0 %v1758
        %1863 = vmatpush.xpose.msra.mxu0 %v1756
        %1864 = vmatpush.xpose.msra.mxu0 %v1754
        %1865 = vmatpush.xpose.msra.mxu0 %v1752
        %1866 = vmatpush.xpose.msra.mxu0 %v1750
        %1867 = vmatpush.xpose.msra.mxu0 %v1748
        %1868 = vmatpush.xpose.msra.mxu0 %v1746
        %1869 = vmatpush.xpose.msra.mxu0 %v1744
        %1870 = vmatpush.xpose.msra.mxu0 %v1742
        %1871 = vmatpush.xpose.msra.mxu0 %v1740
        %1872 = vmatpush.xpose.msra.mxu0 %v1738
        %1873 = vmatpush.xpose.msra.mxu0 %v1736
        %1874 = vmatpush.xpose.msra.mxu0 %v1734
        %1875 = vmatpush.xpose.msra.mxu0 %v1732
        %1876 = vmatpush.xpose.msra.mxu0 %v1730
        %1877 = vmatpush.xpose.msra.mxu0 %v1728
        %1878 = vmatmul.f32.gmra.mxu0 %v1696
        %v1879 = vpop.f32.mrf.mxu0
        %v1880 = vadd.f32 %v1815, %v1879
        %1881 = vmatmul.f32.gmra.mxu0 %v1698
        %v1882 = vpop.f32.mrf.mxu0
        %v1883 = vadd.f32 %v1818, %v1882
        %1884 = vmatmul.f32.gmra.mxu0 %v1700
        %v1885 = vpop.f32.mrf.mxu0
        %v1886 = vadd.f32 %v1821, %v1885
        %1887 = vmatmul.f32.gmra.mxu0 %v1702
        %v1888 = vpop.f32.mrf.mxu0
        %v1889 = vadd.f32 %v1824, %v1888
        %1890 = vmatmul.f32.gmra.mxu0 %v1704
        %v1891 = vpop.f32.mrf.mxu0
        %v1892 = vadd.f32 %v1827, %v1891
        %1893 = vmatmul.f32.gmra.mxu0 %v1706
        %v1894 = vpop.f32.mrf.mxu0
        %v1895 = vadd.f32 %v1830, %v1894
        %1896 = vmatmul.f32.gmra.mxu0 %v1708
        %v1897 = vpop.f32.mrf.mxu0
        %v1898 = vadd.f32 %v1833, %v1897
        %1899 = vmatmul.f32.gmra.mxu0 %v1710
        %v1900 = vpop.f32.mrf.mxu0
        %v1901 = vadd.f32 %v1836, %v1900
        %1902 = vmatmul.f32.gmra.mxu0 %v1712
        %v1903 = vpop.f32.mrf.mxu0
        %v1904 = vadd.f32 %v1839, %v1903
        %1905 = vmatmul.f32.gmra.mxu0 %v1714
        %v1906 = vpop.f32.mrf.mxu0
        %v1907 = vadd.f32 %v1842, %v1906
        %1908 = vmatmul.f32.gmra.mxu0 %v1716
        %v1909 = vpop.f32.mrf.mxu0
        %v1910 = vadd.f32 %v1845, %v1909
        %1911 = vmatmul.f32.gmra.mxu0 %v1718
        %v1912 = vpop.f32.mrf.mxu0
        %v1913 = vadd.f32 %v1848, %v1912
        %1914 = vmatmul.f32.gmra.mxu0 %v1720
        %v1915 = vpop.f32.mrf.mxu0
        %v1916 = vadd.f32 %v1851, %v1915
        %1917 = vmatmul.f32.gmra.mxu0 %v1722
        %v1918 = vpop.f32.mrf.mxu0
        %v1919 = vadd.f32 %v1854, %v1918
        %1920 = vmatmul.f32.gmra.mxu0 %v1724
        %v1921 = vpop.f32.mrf.mxu0
        %v1922 = vadd.f32 %v1857, %v1921
        %1923 = vmatmul.f32.gmra.mxu0 %v1726
        %v1924 = vpop.f32.mrf.mxu0
        %v1925 = vadd.f32 %v1860, %v1924
        %1926 = vdwg.mxu0
        %1927 = vmatpush.xpose.msra.mxu0 %v1789
        %1928 = vmatpush.xpose.msra.mxu0 %v1787
        %1929 = vmatpush.xpose.msra.mxu0 %v1785
        %1930 = vmatpush.xpose.msra.mxu0 %v1783
        %1931 = vmatpush.xpose.msra.mxu0 %v1781
        %1932 = vmatpush.xpose.msra.mxu0 %v1779
        %1933 = vmatpush.xpose.msra.mxu0 %v1777
        %1934 = vmatpush.xpose.msra.mxu0 %v1775
        %1935 = vmatpush.xpose.msra.mxu0 %v1773
        %1936 = vmatpush.xpose.msra.mxu0 %v1771
        %1937 = vmatpush.xpose.msra.mxu0 %v1769
        %1938 = vmatpush.xpose.msra.mxu0 %v1767
        %1939 = vmatpush.xpose.msra.mxu0 %v1765
        %1940 = vmatpush.xpose.msra.mxu0 %v1763
        %1941 = vmatpush.xpose.msra.mxu0 %v1761
        %1942 = vmatpush.xpose.msra.mxu0 %v1759
        %1943 = vmatmul.f32.gmra.mxu0 %v1695
        %v1944 = vpop.f32.mrf.mxu0
        %v1945 = vadd.f32 %v1794, %v1944
        %1946 = vmatmul.f32.gmra.mxu0 %v1697
        %v1947 = vpop.f32.mrf.mxu0
        %v1948 = vadd.f32 %v1794, %v1947
        %1949 = vmatmul.f32.gmra.mxu0 %v1699
        %v1950 = vpop.f32.mrf.mxu0
        %v1951 = vadd.f32 %v1794, %v1950
        %1952 = vmatmul.f32.gmra.mxu0 %v1701
        %v1953 = vpop.f32.mrf.mxu0
        %v1954 = vadd.f32 %v1794, %v1953
        %1955 = vmatmul.f32.gmra.mxu0 %v1703
        %v1956 = vpop.f32.mrf.mxu0
        %v1957 = vadd.f32 %v1794, %v1956
        %1958 = vmatmul.f32.gmra.mxu0 %v1705
        %v1959 = vpop.f32.mrf.mxu0
        %v1960 = vadd.f32 %v1794, %v1959
        %1961 = vmatmul.f32.gmra.mxu0 %v1707
        %v1962 = vpop.f32.mrf.mxu0
        %v1963 = vadd.f32 %v1794, %v1962
        %1964 = vmatmul.f32.gmra.mxu0 %v1709
        %v1965 = vpop.f32.mrf.mxu0
        %v1966 = vadd.f32 %v1794, %v1965
        %1967 = vmatmul.f32.gmra.mxu0 %v1711
        %v1968 = vpop.f32.mrf.mxu0
        %v1969 = vadd.f32 %v1794, %v1968
        %1970 = vmatmul.f32.gmra.mxu0 %v1713
        %v1971 = vpop.f32.mrf.mxu0
        %v1972 = vadd.f32 %v1794, %v1971
        %1973 = vmatmul.f32.gmra.mxu0 %v1715
        %v1974 = vpop.f32.mrf.mxu0
        %v1975 = vadd.f32 %v1794, %v1974
        %1976 = vmatmul.f32.gmra.mxu0 %v1717
        %v1977 = vpop.f32.mrf.mxu0
        %v1978 = vadd.f32 %v1794, %v1977
        %1979 = vmatmul.f32.gmra.mxu0 %v1719
        %v1980 = vpop.f32.mrf.mxu0
        %v1981 = vadd.f32 %v1794, %v1980
        %1982 = vmatmul.f32.gmra.mxu0 %v1721
        %v1983 = vpop.f32.mrf.mxu0
        %v1984 = vadd.f32 %v1794, %v1983
        %1985 = vmatmul.f32.gmra.mxu0 %v1723
        %v1986 = vpop.f32.mrf.mxu0
        %v1987 = vadd.f32 %v1794, %v1986
        %1988 = vmatmul.f32.gmra.mxu0 %v1725
        %v1989 = vpop.f32.mrf.mxu0
        %v1990 = vadd.f32 %v1794, %v1989
        %1991 = vdwg.mxu0
        %1992 = vmatpush.xpose.msra.mxu0 %v1790
        %1993 = vmatpush.xpose.msra.mxu0 %v1788
        %1994 = vmatpush.xpose.msra.mxu0 %v1786
        %1995 = vmatpush.xpose.msra.mxu0 %v1784
        %1996 = vmatpush.xpose.msra.mxu0 %v1782
        %1997 = vmatpush.xpose.msra.mxu0 %v1780
        %1998 = vmatpush.xpose.msra.mxu0 %v1778
        %1999 = vmatpush.xpose.msra.mxu0 %v1776
        %2000 = vmatpush.xpose.msra.mxu0 %v1774
        %2001 = vmatpush.xpose.msra.mxu0 %v1772
        %2002 = vmatpush.xpose.msra.mxu0 %v1770
        %2003 = vmatpush.xpose.msra.mxu0 %v1768
        %2004 = vmatpush.xpose.msra.mxu0 %v1766
        %2005 = vmatpush.xpose.msra.mxu0 %v1764
        %2006 = vmatpush.xpose.msra.mxu0 %v1762
        %2007 = vmatpush.xpose.msra.mxu0 %v1760
        %2008 = vmatmul.f32.gmra.mxu0 %v1696
        %v2009 = vpop.f32.mrf.mxu0
        %v2010 = vadd.f32 %v1945, %v2009
        %2011 = vmatmul.f32.gmra.mxu0 %v1698
        %v2012 = vpop.f32.mrf.mxu0
        %v2013 = vadd.f32 %v1948, %v2012
        %2014 = vmatmul.f32.gmra.mxu0 %v1700
        %v2015 = vpop.f32.mrf.mxu0
        %v2016 = vadd.f32 %v1951, %v2015
        %2017 = vmatmul.f32.gmra.mxu0 %v1702
        %v2018 = vpop.f32.mrf.mxu0
        %v2019 = vadd.f32 %v1954, %v2018
        %2020 = vmatmul.f32.gmra.mxu0 %v1704
        %v2021 = vpop.f32.mrf.mxu0
        %v2022 = vadd.f32 %v1957, %v2021
        %2023 = vmatmul.f32.gmra.mxu0 %v1706
        %v2024 = vpop.f32.mrf.mxu0
        %v2025 = vadd.f32 %v1960, %v2024
        %2026 = vmatmul.f32.gmra.mxu0 %v1708
        %v2027 = vpop.f32.mrf.mxu0
        %v2028 = vadd.f32 %v1963, %v2027
        %2029 = vmatmul.f32.gmra.mxu0 %v1710
        %v2030 = vpop.f32.mrf.mxu0
        %v2031 = vadd.f32 %v1966, %v2030
        %2032 = vmatmul.f32.gmra.mxu0 %v1712
        %v2033 = vpop.f32.mrf.mxu0
        %v2034 = vadd.f32 %v1969, %v2033
        %2035 = vmatmul.f32.gmra.mxu0 %v1714
        %v2036 = vpop.f32.mrf.mxu0
        %v2037 = vadd.f32 %v1972, %v2036
        %2038 = vmatmul.f32.gmra.mxu0 %v1716
        %v2039 = vpop.f32.mrf.mxu0
        %v2040 = vadd.f32 %v1975, %v2039
        %2041 = vmatmul.f32.gmra.mxu0 %v1718
        %v2042 = vpop.f32.mrf.mxu0
        %v2043 = vadd.f32 %v1978, %v2042
        %2044 = vmatmul.f32.gmra.mxu0 %v1720
        %v2045 = vpop.f32.mrf.mxu0
        %v2046 = vadd.f32 %v1981, %v2045
        %2047 = vmatmul.f32.gmra.mxu0 %v1722
        %v2048 = vpop.f32.mrf.mxu0
        %v2049 = vadd.f32 %v1984, %v2048
        %2050 = vmatmul.f32.gmra.mxu0 %v1724
        %v2051 = vpop.f32.mrf.mxu0
        %v2052 = vadd.f32 %v1987, %v2051
        %2053 = vmatmul.f32.gmra.mxu0 %v1726
        %v2054 = vpop.f32.mrf.mxu0
        %v2055 = vadd.f32 %v1990, %v2054
        %2056 = vdwg.mxu0
        %v2057 = vmul.f32 %v1880, 0.17677669
        %v2058 = vmul.f32 %v2010, 0.17677669
        %v2059 = vmul.f32 %v1883, 0.17677669
        %v2060 = vmul.f32 %v2013, 0.17677669
        %v2061 = vmul.f32 %v1886, 0.17677669
        %v2062 = vmul.f32 %v2016, 0.17677669
        %v2063 = vmul.f32 %v1889, 0.17677669
        %v2064 = vmul.f32 %v2019, 0.17677669
        %v2065 = vmul.f32 %v1892, 0.17677669
        %v2066 = vmul.f32 %v2022, 0.17677669
        %v2067 = vmul.f32 %v1895, 0.17677669
        %v2068 = vmul.f32 %v2025, 0.17677669
        %v2069 = vmul.f32 %v1898, 0.17677669
        %v2070 = vmul.f32 %v2028, 0.17677669
        %v2071 = vmul.f32 %v1901, 0.17677669
        %v2072 = vmul.f32 %v2031, 0.17677669
        %v2073 = vmul.f32 %v1904, 0.17677669
        %v2074 = vmul.f32 %v2034, 0.17677669
        %v2075 = vmul.f32 %v1907, 0.17677669
        %v2076 = vmul.f32 %v2037, 0.17677669
        %v2077 = vmul.f32 %v1910, 0.17677669
        %v2078 = vmul.f32 %v2040, 0.17677669
        %v2079 = vmul.f32 %v1913, 0.17677669
        %v2080 = vmul.f32 %v2043, 0.17677669
        %v2081 = vmul.f32 %v1916, 0.17677669
        %v2082 = vmul.f32 %v2046, 0.17677669
        %v2083 = vmul.f32 %v1919, 0.17677669
        %v2084 = vmul.f32 %v2049, 0.17677669
        %v2085 = vmul.f32 %v1922, 0.17677669
        %v2086 = vmul.f32 %v2052, 0.17677669
        %v2087 = vmul.f32 %v1925, 0.17677669
        %v2088 = vmul.f32 %v2055, 0.17677669
        %v2089 = vlaneseq
        %v2090 = vshrl.u32 %v2089, 7
        %v2091 = vadd.s32 %v2090, 8
        %v2092 = vadd.s32 %v2090, 16
        %v2093 = vadd.s32 %v2090, 24
        %v2094 = vadd.s32 %v2090, 32
        %v2095 = vadd.s32 %v2090, 40
        %v2096 = vadd.s32 %v2090, 48
        %v2097 = vadd.s32 %v2090, 56
        %v2098 = vadd.s32 %v2090, 64
        %v2099 = vadd.s32 %v2090, 72
        %v2100 = vadd.s32 %v2090, 80
        %v2101 = vadd.s32 %v2090, 88
        %v2102 = vadd.s32 %v2090, 96
        %v2103 = vadd.s32 %v2090, 104
        %v2104 = vadd.s32 %v2090, 112
        %v2105 = vadd.s32 %v2090, 120
        %v2106 = vlaneseq
        %v2107 = vand.u32 %v2106, 127
        %vm2108 = vcmp.gt.s32.totalorder %v2107, %v2090
        %vm2109 = vcmp.gt.s32.totalorder %v2107, %v2091
        %vm2110 = vcmp.gt.s32.totalorder %v2107, %v2092
        %vm2111 = vcmp.gt.s32.totalorder %v2107, %v2093
        %vm2112 = vcmp.gt.s32.totalorder %v2107, %v2094
        %vm2113 = vcmp.gt.s32.totalorder %v2107, %v2095
        %vm2114 = vcmp.gt.s32.totalorder %v2107, %v2096
        %vm2115 = vcmp.gt.s32.totalorder %v2107, %v2097
        %vm2116 = vcmp.gt.s32.totalorder %v2107, %v2098
        %vm2117 = vcmp.gt.s32.totalorder %v2107, %v2099
        %vm2118 = vcmp.gt.s32.totalorder %v2107, %v2100
        %vm2119 = vcmp.gt.s32.totalorder %v2107, %v2101
        %vm2120 = vcmp.gt.s32.totalorder %v2107, %v2102
        %vm2121 = vcmp.gt.s32.totalorder %v2107, %v2103
        %vm2122 = vcmp.gt.s32.totalorder %v2107, %v2104
        %vm2123 = vcmp.gt.s32.totalorder %v2107, %v2105
        %v2124 = vsel %vm2108, -1e+30, 0.0
        %v2125 = vsel %vm2109, -1e+30, 0.0
        %v2126 = vsel %vm2110, -1e+30, 0.0
        %v2127 = vsel %vm2111, -1e+30, 0.0
        %v2128 = vsel %vm2112, -1e+30, 0.0
        %v2129 = vsel %vm2113, -1e+30, 0.0
        %v2130 = vsel %vm2114, -1e+30, 0.0
        %v2131 = vsel %vm2115, -1e+30, 0.0
        %v2132 = vsel %vm2116, -1e+30, 0.0
        %v2133 = vsel %vm2117, -1e+30, 0.0
        %v2134 = vsel %vm2118, -1e+30, 0.0
        %v2135 = vsel %vm2119, -1e+30, 0.0
        %v2136 = vsel %vm2120, -1e+30, 0.0
        %v2137 = vsel %vm2121, -1e+30, 0.0
        %v2138 = vsel %vm2122, -1e+30, 0.0
        %v2139 = vsel %vm2123, -1e+30, 0.0
        %s2140 = sadd.s32 %s34, 1
        // While loop
        $region85: #{tpu_custom_call.1} parent=55 // loop_pre_header
          _
        $region86: #{tpu_custom_call.1} parent=55 // loop_header
          %s2142 = sphi 0, %s2144
          %p2143 = scmp.ge.s32.totalorder %s2142, %s2140
          %v2147 = vphi -inf, %v2449
          %v2148 = vphi -inf, %v2450
          %v2149 = vphi -inf, %v2451
          %v2150 = vphi -inf, %v2452
          %v2151 = vphi -inf, %v2453
          %v2152 = vphi -inf, %v2454
          %v2153 = vphi -inf, %v2455
          %v2154 = vphi -inf, %v2456
          %v2155 = vphi -inf, %v2457
          %v2156 = vphi -inf, %v2458
          %v2157 = vphi -inf, %v2459
          %v2158 = vphi -inf, %v2460
          %v2159 = vphi -inf, %v2461
          %v2160 = vphi -inf, %v2462
          %v2161 = vphi -inf, %v2463
          %v2162 = vphi -inf, %v2464
          %v2163 = vphi 0.0, %v2609
          %v2164 = vphi 0.0, %v2610
          %v2165 = vphi 0.0, %v2611
          %v2166 = vphi 0.0, %v2612
          %v2167 = vphi 0.0, %v2613
          %v2168 = vphi 0.0, %v2614
          %v2169 = vphi 0.0, %v2615
          %v2170 = vphi 0.0, %v2616
          %v2171 = vphi 0.0, %v2617
          %v2172 = vphi 0.0, %v2618
          %v2173 = vphi 0.0, %v2619
          %v2174 = vphi 0.0, %v2620
          %v2175 = vphi 0.0, %v2621
          %v2176 = vphi 0.0, %v2622
          %v2177 = vphi 0.0, %v2623
          %v2178 = vphi 0.0, %v2624
          %v2179 = vphi 0.0, %v2706
          %v2180 = vphi 0.0, %v2707
          %v2181 = vphi 0.0, %v2708
          %v2182 = vphi 0.0, %v2709
          %v2183 = vphi 0.0, %v2710
          %v2184 = vphi 0.0, %v2711
          %v2185 = vphi 0.0, %v2712
          %v2186 = vphi 0.0, %v2713
          %v2187 = vphi 0.0, %v2714
          %v2188 = vphi 0.0, %v2715
          %v2189 = vphi 0.0, %v2716
          %v2190 = vphi 0.0, %v2717
          %v2191 = vphi 0.0, %v2718
          %v2192 = vphi 0.0, %v2719
          %v2193 = vphi 0.0, %v2720
          %v2194 = vphi 0.0, %v2721
        $region87: #{tpu_custom_call.1} parent=55 // loop_header_branch
          %2146 = sbr.rel (%p2143) target = $region91
        $region88: #{tpu_custom_call.1} parent=55 // loop_body
          %s2195 = smul.u32 %s2142, 128
          %s2196 = sshra.s32 %s2195, 3
          %s2197 = sand.u32 %s2195, 7
          %s2198 = smul.u32 %s2196, 2
          %s2199 = smul.addr %s2198, 8
          %s2200 = scalar_lea.vmem [#allocation2], %s2199
          %v2201 = vld [vmem:[%s2200] sm:$0xff]
          %v2202 = vld [vmem:[%s2200 + $0x10] sm:$0xff]
          %v2203 = vld [vmem:[%s2200 + $0x20] sm:$0xff]
          %v2204 = vld [vmem:[%s2200 + $0x30] sm:$0xff]
          %v2205 = vld [vmem:[%s2200 + $0x40] sm:$0xff]
          %v2206 = vld [vmem:[%s2200 + $0x50] sm:$0xff]
          %v2207 = vld [vmem:[%s2200 + $0x60] sm:$0xff]
          %v2208 = vld [vmem:[%s2200 + $0x70] sm:$0xff]
          %v2209 = vld [vmem:[%s2200 + $0x80] sm:$0xff]
          %v2210 = vld [vmem:[%s2200 + $0x90] sm:$0xff]
          %v2211 = vld [vmem:[%s2200 + $0xa0] sm:$0xff]
          %v2212 = vld [vmem:[%s2200 + $0xb0] sm:$0xff]
          %v2213 = vld [vmem:[%s2200 + $0xc0] sm:$0xff]
          %v2214 = vld [vmem:[%s2200 + $0xd0] sm:$0xff]
          %v2215 = vld [vmem:[%s2200 + $0xe0] sm:$0xff]
          %v2216 = vld [vmem:[%s2200 + $0xf0] sm:$0xff]
          %s2217 = smul.addr %s2198, 8
          %s2218 = scalar_lea.vmem [#allocation3], %s2217
          %v2219 = vld [vmem:[%s2218] sm:$0xff]
          %v2220 = vld [vmem:[%s2218 + $0x10] sm:$0xff]
          %v2221 = vld [vmem:[%s2218 + $0x20] sm:$0xff]
          %v2222 = vld [vmem:[%s2218 + $0x30] sm:$0xff]
          %v2223 = vld [vmem:[%s2218 + $0x40] sm:$0xff]
          %v2224 = vld [vmem:[%s2218 + $0x50] sm:$0xff]
          %v2225 = vld [vmem:[%s2218 + $0x60] sm:$0xff]
          %v2226 = vld [vmem:[%s2218 + $0x70] sm:$0xff]
          %v2227 = vld [vmem:[%s2218 + $0x80] sm:$0xff]
          %v2228 = vld [vmem:[%s2218 + $0x90] sm:$0xff]
          %v2229 = vld [vmem:[%s2218 + $0xa0] sm:$0xff]
          %v2230 = vld [vmem:[%s2218 + $0xb0] sm:$0xff]
          %v2231 = vld [vmem:[%s2218 + $0xc0] sm:$0xff]
          %v2232 = vld [vmem:[%s2218 + $0xd0] sm:$0xff]
          %v2233 = vld [vmem:[%s2218 + $0xe0] sm:$0xff]
          %v2234 = vld [vmem:[%s2218 + $0xf0] sm:$0xff]
          %p2235 = scmp.eq.s32.totalorder %s2142, %s34
          %s2236 = scalar_select %p2235, 1, 0
          %s2237 = scvt.s32.f32 %s2236
          %v2238 = vstv %s2237
          %v2239 = vmul.f32 %v2124, %v2238
          %v2240 = vmul.f32 %v2125, %v2238
          %v2241 = vmul.f32 %v2126, %v2238
          %v2242 = vmul.f32 %v2127, %v2238
          %v2243 = vmul.f32 %v2128, %v2238
          %v2244 = vmul.f32 %v2129, %v2238
          %v2245 = vmul.f32 %v2130, %v2238
          %v2246 = vmul.f32 %v2131, %v2238
          %v2247 = vmul.f32 %v2132, %v2238
          %v2248 = vmul.f32 %v2133, %v2238
          %v2249 = vmul.f32 %v2134, %v2238
          %v2250 = vmul.f32 %v2135, %v2238
          %v2251 = vmul.f32 %v2136, %v2238
          %v2252 = vmul.f32 %v2137, %v2238
          %v2253 = vmul.f32 %v2138, %v2238
          %v2254 = vmul.f32 %v2139, %v2238
          %vm2255 = vcmask 261120
          %v2257 = vsel %vm2255, %v2057, 0
          %v2260 = vsel %vm2255, %v2059, 0
          %v2263 = vsel %vm2255, %v2061, 0
          %v2266 = vsel %vm2255, %v2063, 0
          %v2269 = vsel %vm2255, %v2065, 0
          %v2272 = vsel %vm2255, %v2067, 0
          %v2275 = vsel %vm2255, %v2069, 0
          %v2278 = vsel %vm2255, %v2071, 0
          %v2281 = vsel %vm2255, %v2073, 0
          %v2284 = vsel %vm2255, %v2075, 0
          %v2287 = vsel %vm2255, %v2077, 0
          %v2290 = vsel %vm2255, %v2079, 0
          %v2293 = vsel %vm2255, %v2081, 0
          %v2296 = vsel %vm2255, %v2083, 0
          %v2299 = vsel %vm2255, %v2085, 0
          %v2302 = vsel %vm2255, %v2087, 0
          %v2305 = vsel %vm2255, %v2201, 0
          %v2308 = vsel %vm2255, %v2202, 0
          %v2311 = vsel %vm2255, %v2203, 0
          %v2314 = vsel %vm2255, %v2204, 0
          %v2317 = vsel %vm2255, %v2205, 0
          %v2320 = vsel %vm2255, %v2206, 0
          %v2323 = vsel %vm2255, %v2207, 0
          %v2326 = vsel %vm2255, %v2208, 0
          %v2329 = vsel %vm2255, %v2209, 0
          %v2332 = vsel %vm2255, %v2210, 0
          %v2335 = vsel %vm2255, %v2211, 0
          %v2338 = vsel %vm2255, %v2212, 0
          %v2341 = vsel %vm2255, %v2213, 0
          %v2344 = vsel %vm2255, %v2214, 0
          %v2347 = vsel %vm2255, %v2215, 0
          %v2350 = vsel %vm2255, %v2216, 0
          %2352 = vmatpush.xpose.msra.mxu0 %v2350
          %2353 = vmatpush.xpose.msra.mxu0 %v2347
          %2354 = vmatpush.xpose.msra.mxu0 %v2344
          %2355 = vmatpush.xpose.msra.mxu0 %v2341
          %2356 = vmatpush.xpose.msra.mxu0 %v2338
          %2357 = vmatpush.xpose.msra.mxu0 %v2335
          %2358 = vmatpush.xpose.msra.mxu0 %v2332
          %2359 = vmatpush.xpose.msra.mxu0 %v2329
          %2360 = vmatpush.xpose.msra.mxu0 %v2326
          %2361 = vmatpush.xpose.msra.mxu0 %v2323
          %2362 = vmatpush.xpose.msra.mxu0 %v2320
          %2363 = vmatpush.xpose.msra.mxu0 %v2317
          %2364 = vmatpush.xpose.msra.mxu0 %v2314
          %2365 = vmatpush.xpose.msra.mxu0 %v2311
          %2366 = vmatpush.xpose.msra.mxu0 %v2308
          %2367 = vmatpush.xpose.msra.mxu0 %v2305
          %2368 = vmatmul.f32.gmra.mxu0 %v2257
          %v2369 = vpop.f32.mrf.mxu0
          %v2370 = vadd.f32 %v2239, %v2369
          %2371 = vmatmul.f32.gmra.mxu0 %v2260
          %v2372 = vpop.f32.mrf.mxu0
          %v2373 = vadd.f32 %v2240, %v2372
          %2374 = vmatmul.f32.gmra.mxu0 %v2263
          %v2375 = vpop.f32.mrf.mxu0
          %v2376 = vadd.f32 %v2241, %v2375
          %2377 = vmatmul.f32.gmra.mxu0 %v2266
          %v2378 = vpop.f32.mrf.mxu0
          %v2379 = vadd.f32 %v2242, %v2378
          %2380 = vmatmul.f32.gmra.mxu0 %v2269
          %v2381 = vpop.f32.mrf.mxu0
          %v2382 = vadd.f32 %v2243, %v2381
          %2383 = vmatmul.f32.gmra.mxu0 %v2272
          %v2384 = vpop.f32.mrf.mxu0
          %v2385 = vadd.f32 %v2244, %v2384
          %2386 = vmatmul.f32.gmra.mxu0 %v2275
          %v2387 = vpop.f32.mrf.mxu0
          %v2388 = vadd.f32 %v2245, %v2387
          %2389 = vmatmul.f32.gmra.mxu0 %v2278
          %v2390 = vpop.f32.mrf.mxu0
          %v2391 = vadd.f32 %v2246, %v2390
          %2392 = vmatmul.f32.gmra.mxu0 %v2281
          %v2393 = vpop.f32.mrf.mxu0
          %v2394 = vadd.f32 %v2247, %v2393
          %2395 = vmatmul.f32.gmra.mxu0 %v2284
          %v2396 = vpop.f32.mrf.mxu0
          %v2397 = vadd.f32 %v2248, %v2396
          %2398 = vmatmul.f32.gmra.mxu0 %v2287
          %v2399 = vpop.f32.mrf.mxu0
          %v2400 = vadd.f32 %v2249, %v2399
          %2401 = vmatmul.f32.gmra.mxu0 %v2290
          %v2402 = vpop.f32.mrf.mxu0
          %v2403 = vadd.f32 %v2250, %v2402
          %2404 = vmatmul.f32.gmra.mxu0 %v2293
          %v2405 = vpop.f32.mrf.mxu0
          %v2406 = vadd.f32 %v2251, %v2405
          %2407 = vmatmul.f32.gmra.mxu0 %v2296
          %v2408 = vpop.f32.mrf.mxu0
          %v2409 = vadd.f32 %v2252, %v2408
          %2410 = vmatmul.f32.gmra.mxu0 %v2299
          %v2411 = vpop.f32.mrf.mxu0
          %v2412 = vadd.f32 %v2253, %v2411
          %2413 = vmatmul.f32.gmra.mxu0 %v2302
          %v2414 = vpop.f32.mrf.mxu0
          %v2415 = vadd.f32 %v2254, %v2414
          %2416 = vdwg.mxu0
          %2417 = vmax.xlane.f32.xlu0 %v2370
          %v2418 = vpop.xlane.xlu0 %2417
          %2419 = vmax.xlane.f32.xlu0 %v2373
          %v2420 = vpop.xlane.xlu0 %2419
          %2421 = vmax.xlane.f32.xlu0 %v2376
          %v2422 = vpop.xlane.xlu0 %2421
          %2423 = vmax.xlane.f32.xlu0 %v2379
          %v2424 = vpop.xlane.xlu0 %2423
          %2425 = vmax.xlane.f32.xlu0 %v2382
          %v2426 = vpop.xlane.xlu0 %2425
          %2427 = vmax.xlane.f32.xlu0 %v2385
          %v2428 = vpop.xlane.xlu0 %2427
          %2429 = vmax.xlane.f32.xlu0 %v2388
          %v2430 = vpop.xlane.xlu0 %2429
          %2431 = vmax.xlane.f32.xlu0 %v2391
          %v2432 = vpop.xlane.xlu0 %2431
          %2433 = vmax.xlane.f32.xlu0 %v2394
          %v2434 = vpop.xlane.xlu0 %2433
          %2435 = vmax.xlane.f32.xlu0 %v2397
          %v2436 = vpop.xlane.xlu0 %2435
          %2437 = vmax.xlane.f32.xlu0 %v2400
          %v2438 = vpop.xlane.xlu0 %2437
          %2439 = vmax.xlane.f32.xlu0 %v2403
          %v2440 = vpop.xlane.xlu0 %2439
          %2441 = vmax.xlane.f32.xlu0 %v2406
          %v2442 = vpop.xlane.xlu0 %2441
          %2443 = vmax.xlane.f32.xlu0 %v2409
          %v2444 = vpop.xlane.xlu0 %2443
          %2445 = vmax.xlane.f32.xlu0 %v2412
          %v2446 = vpop.xlane.xlu0 %2445
          %2447 = vmax.xlane.f32.xlu0 %v2415
          %v2448 = vpop.xlane.xlu0 %2447
          %v2449 = vmax.f32 %v2147, %v2418
          %v2450 = vmax.f32 %v2148, %v2420
          %v2451 = vmax.f32 %v2149, %v2422
          %v2452 = vmax.f32 %v2150, %v2424
          %v2453 = vmax.f32 %v2151, %v2426
          %v2454 = vmax.f32 %v2152, %v2428
          %v2455 = vmax.f32 %v2153, %v2430
          %v2456 = vmax.f32 %v2154, %v2432
          %v2457 = vmax.f32 %v2155, %v2434
          %v2458 = vmax.f32 %v2156, %v2436
          %v2459 = vmax.f32 %v2157, %v2438
          %v2460 = vmax.f32 %v2158, %v2440
          %v2461 = vmax.f32 %v2159, %v2442
          %v2462 = vmax.f32 %v2160, %v2444
          %v2463 = vmax.f32 %v2161, %v2446
          %v2464 = vmax.f32 %v2162, %v2448
          %v2465 = vsub.f32 %v2147, %v2449
          %v2466 = vsub.f32 %v2148, %v2450
          %v2467 = vsub.f32 %v2149, %v2451
          %v2468 = vsub.f32 %v2150, %v2452
          %v2469 = vsub.f32 %v2151, %v2453
          %v2470 = vsub.f32 %v2152, %v2454
          %v2471 = vsub.f32 %v2153, %v2455
          %v2472 = vsub.f32 %v2154, %v2456
          %v2473 = vsub.f32 %v2155, %v2457
          %v2474 = vsub.f32 %v2156, %v2458
          %v2475 = vsub.f32 %v2157, %v2459
          %v2476 = vsub.f32 %v2158, %v2460
          %v2477 = vsub.f32 %v2159, %v2461
          %v2478 = vsub.f32 %v2160, %v2462
          %v2479 = vsub.f32 %v2161, %v2463
          %v2480 = vsub.f32 %v2162, %v2464
          %v2481 = vmul.f32 %v2465, 1.442695
          %v2482 = vpow.pop %v2481
          %v2483 = vmul.f32 %v2466, 1.442695
          %v2484 = vpow.pop %v2483
          %v2485 = vmul.f32 %v2467, 1.442695
          %v2486 = vpow.pop %v2485
          %v2487 = vmul.f32 %v2468, 1.442695
          %v2488 = vpow.pop %v2487
          %v2489 = vmul.f32 %v2469, 1.442695
          %v2490 = vpow.pop %v2489
          %v2491 = vmul.f32 %v2470, 1.442695
          %v2492 = vpow.pop %v2491
          %v2493 = vmul.f32 %v2471, 1.442695
          %v2494 = vpow.pop %v2493
          %v2495 = vmul.f32 %v2472, 1.442695
          %v2496 = vpow.pop %v2495
          %v2497 = vmul.f32 %v2473, 1.442695
          %v2498 = vpow.pop %v2497
          %v2499 = vmul.f32 %v2474, 1.442695
          %v2500 = vpow.pop %v2499
          %v2501 = vmul.f32 %v2475, 1.442695
          %v2502 = vpow.pop %v2501
          %v2503 = vmul.f32 %v2476, 1.442695
          %v2504 = vpow.pop %v2503
          %v2505 = vmul.f32 %v2477, 1.442695
          %v2506 = vpow.pop %v2505
          %v2507 = vmul.f32 %v2478, 1.442695
          %v2508 = vpow.pop %v2507
          %v2509 = vmul.f32 %v2479, 1.442695
          %v2510 = vpow.pop %v2509
          %v2511 = vmul.f32 %v2480, 1.442695
          %v2512 = vpow.pop %v2511
          %v2513 = vsub.f32 %v2370, %v2449
          %v2514 = vsub.f32 %v2373, %v2450
          %v2515 = vsub.f32 %v2376, %v2451
          %v2516 = vsub.f32 %v2379, %v2452
          %v2517 = vsub.f32 %v2382, %v2453
          %v2518 = vsub.f32 %v2385, %v2454
          %v2519 = vsub.f32 %v2388, %v2455
          %v2520 = vsub.f32 %v2391, %v2456
          %v2521 = vsub.f32 %v2394, %v2457
          %v2522 = vsub.f32 %v2397, %v2458
          %v2523 = vsub.f32 %v2400, %v2459
          %v2524 = vsub.f32 %v2403, %v2460
          %v2525 = vsub.f32 %v2406, %v2461
          %v2526 = vsub.f32 %v2409, %v2462
          %v2527 = vsub.f32 %v2412, %v2463
          %v2528 = vsub.f32 %v2415, %v2464
          %v2529 = vmul.f32 %v2513, 1.442695
          %v2530 = vpow.pop %v2529
          %v2531 = vmul.f32 %v2514, 1.442695
          %v2532 = vpow.pop %v2531
          %v2533 = vmul.f32 %v2515, 1.442695
          %v2534 = vpow.pop %v2533
          %v2535 = vmul.f32 %v2516, 1.442695
          %v2536 = vpow.pop %v2535
          %v2537 = vmul.f32 %v2517, 1.442695
          %v2538 = vpow.pop %v2537
          %v2539 = vmul.f32 %v2518, 1.442695
          %v2540 = vpow.pop %v2539
          %v2541 = vmul.f32 %v2519, 1.442695
          %v2542 = vpow.pop %v2541
          %v2543 = vmul.f32 %v2520, 1.442695
          %v2544 = vpow.pop %v2543
          %v2545 = vmul.f32 %v2521, 1.442695
          %v2546 = vpow.pop %v2545
          %v2547 = vmul.f32 %v2522, 1.442695
          %v2548 = vpow.pop %v2547
          %v2549 = vmul.f32 %v2523, 1.442695
          %v2550 = vpow.pop %v2549
          %v2551 = vmul.f32 %v2524, 1.442695
          %v2552 = vpow.pop %v2551
          %v2553 = vmul.f32 %v2525, 1.442695
          %v2554 = vpow.pop %v2553
          %v2555 = vmul.f32 %v2526, 1.442695
          %v2556 = vpow.pop %v2555
          %v2557 = vmul.f32 %v2527, 1.442695
          %v2558 = vpow.pop %v2557
          %v2559 = vmul.f32 %v2528, 1.442695
          %v2560 = vpow.pop %v2559
          %v2561 = vmul.f32 %v2482, %v2163
          %v2562 = vmul.f32 %v2484, %v2164
          %v2563 = vmul.f32 %v2486, %v2165
          %v2564 = vmul.f32 %v2488, %v2166
          %v2565 = vmul.f32 %v2490, %v2167
          %v2566 = vmul.f32 %v2492, %v2168
          %v2567 = vmul.f32 %v2494, %v2169
          %v2568 = vmul.f32 %v2496, %v2170
          %v2569 = vmul.f32 %v2498, %v2171
          %v2570 = vmul.f32 %v2500, %v2172
          %v2571 = vmul.f32 %v2502, %v2173
          %v2572 = vmul.f32 %v2504, %v2174
          %v2573 = vmul.f32 %v2506, %v2175
          %v2574 = vmul.f32 %v2508, %v2176
          %v2575 = vmul.f32 %v2510, %v2177
          %v2576 = vmul.f32 %v2512, %v2178
          %2577 = vadd.xlane.f32.xlu0 %v2530
          %v2578 = vpop.xlane.xlu0 %2577
          %2579 = vadd.xlane.f32.xlu0 %v2532
          %v2580 = vpop.xlane.xlu0 %2579
          %2581 = vadd.xlane.f32.xlu0 %v2534
          %v2582 = vpop.xlane.xlu0 %2581
          %2583 = vadd.xlane.f32.xlu0 %v2536
          %v2584 = vpop.xlane.xlu0 %2583
          %2585 = vadd.xlane.f32.xlu0 %v2538
          %v2586 = vpop.xlane.xlu0 %2585
          %2587 = vadd.xlane.f32.xlu0 %v2540
          %v2588 = vpop.xlane.xlu0 %2587
          %2589 = vadd.xlane.f32.xlu0 %v2542
          %v2590 = vpop.xlane.xlu0 %2589
          %2591 = vadd.xlane.f32.xlu0 %v2544
          %v2592 = vpop.xlane.xlu0 %2591
          %2593 = vadd.xlane.f32.xlu0 %v2546
          %v2594 = vpop.xlane.xlu0 %2593
          %2595 = vadd.xlane.f32.xlu0 %v2548
          %v2596 = vpop.xlane.xlu0 %2595
          %2597 = vadd.xlane.f32.xlu0 %v2550
          %v2598 = vpop.xlane.xlu0 %2597
          %2599 = vadd.xlane.f32.xlu0 %v2552
          %v2600 = vpop.xlane.xlu0 %2599
          %2601 = vadd.xlane.f32.xlu0 %v2554
          %v2602 = vpop.xlane.xlu0 %2601
          %2603 = vadd.xlane.f32.xlu0 %v2556
          %v2604 = vpop.xlane.xlu0 %2603
          %2605 = vadd.xlane.f32.xlu0 %v2558
          %v2606 = vpop.xlane.xlu0 %2605
          %2607 = vadd.xlane.f32.xlu0 %v2560
          %v2608 = vpop.xlane.xlu0 %2607
          %v2609 = vadd.f32 %v2561, %v2578
          %v2610 = vadd.f32 %v2562, %v2580
          %v2611 = vadd.f32 %v2563, %v2582
          %v2612 = vadd.f32 %v2564, %v2584
          %v2613 = vadd.f32 %v2565, %v2586
          %v2614 = vadd.f32 %v2566, %v2588
          %v2615 = vadd.f32 %v2567, %v2590
          %v2616 = vadd.f32 %v2568, %v2592
          %v2617 = vadd.f32 %v2569, %v2594
          %v2618 = vadd.f32 %v2570, %v2596
          %v2619 = vadd.f32 %v2571, %v2598
          %v2620 = vadd.f32 %v2572, %v2600
          %v2621 = vadd.f32 %v2573, %v2602
          %v2622 = vadd.f32 %v2574, %v2604
          %v2623 = vadd.f32 %v2575, %v2606
          %v2624 = vadd.f32 %v2576, %v2608
          %v2625 = vmul.f32 %v2482, %v2179
          %v2626 = vmul.f32 %v2484, %v2180
          %v2627 = vmul.f32 %v2486, %v2181
          %v2628 = vmul.f32 %v2488, %v2182
          %v2629 = vmul.f32 %v2490, %v2183
          %v2630 = vmul.f32 %v2492, %v2184
          %v2631 = vmul.f32 %v2494, %v2185
          %v2632 = vmul.f32 %v2496, %v2186
          %v2633 = vmul.f32 %v2498, %v2187
          %v2634 = vmul.f32 %v2500, %v2188
          %v2635 = vmul.f32 %v2502, %v2189
          %v2636 = vmul.f32 %v2504, %v2190
          %v2637 = vmul.f32 %v2506, %v2191
          %v2638 = vmul.f32 %v2508, %v2192
          %v2639 = vmul.f32 %v2510, %v2193
          %v2640 = vmul.f32 %v2512, %v2194
          %2641 = vmatpush.msra.mxu0 %v2234
          %2642 = vmatpush.msra.mxu0 %v2233
          %2643 = vmatpush.msra.mxu0 %v2232
          %2644 = vmatpush.msra.mxu0 %v2231
          %2645 = vmatpush.msra.mxu0 %v2230
          %2646 = vmatpush.msra.mxu0 %v2229
          %2647 = vmatpush.msra.mxu0 %v2228
          %2648 = vmatpush.msra.mxu0 %v2227
          %2649 = vmatpush.msra.mxu0 %v2226
          %2650 = vmatpush.msra.mxu0 %v2225
          %2651 = vmatpush.msra.mxu0 %v2224
          %2652 = vmatpush.msra.mxu0 %v2223
          %2653 = vmatpush.msra.mxu0 %v2222
          %2654 = vmatpush.msra.mxu0 %v2221
          %2655 = vmatpush.msra.mxu0 %v2220
          %2656 = vmatpush.msra.mxu0 %v2219
          %2657 = vmatmul.f32.gmra.mxu0 %v2530
          %v2658 = vpop.f32.mrf.mxu0
          %v2659 = vadd.f32 0.0, %v2658
          %2660 = vmatmul.f32.gmra.mxu0 %v2532
          %v2661 = vpop.f32.mrf.mxu0
          %v2662 = vadd.f32 0.0, %v2661
          %2663 = vmatmul.f32.gmra.mxu0 %v2534
          %v2664 = vpop.f32.mrf.mxu0
          %v2665 = vadd.f32 0.0, %v2664
          %2666 = vmatmul.f32.gmra.mxu0 %v2536
          %v2667 = vpop.f32.mrf.mxu0
          %v2668 = vadd.f32 0.0, %v2667
          %2669 = vmatmul.f32.gmra.mxu0 %v2538
          %v2670 = vpop.f32.mrf.mxu0
          %v2671 = vadd.f32 0.0, %v2670
          %2672 = vmatmul.f32.gmra.mxu0 %v2540
          %v2673 = vpop.f32.mrf.mxu0
          %v2674 = vadd.f32 0.0, %v2673
          %2675 = vmatmul.f32.gmra.mxu0 %v2542
          %v2676 = vpop.f32.mrf.mxu0
          %v2677 = vadd.f32 0.0, %v2676
          %2678 = vmatmul.f32.gmra.mxu0 %v2544
          %v2679 = vpop.f32.mrf.mxu0
          %v2680 = vadd.f32 0.0, %v2679
          %2681 = vmatmul.f32.gmra.mxu0 %v2546
          %v2682 = vpop.f32.mrf.mxu0
          %v2683 = vadd.f32 0.0, %v2682
          %2684 = vmatmul.f32.gmra.mxu0 %v2548
          %v2685 = vpop.f32.mrf.mxu0
          %v2686 = vadd.f32 0.0, %v2685
          %2687 = vmatmul.f32.gmra.mxu0 %v2550
          %v2688 = vpop.f32.mrf.mxu0
          %v2689 = vadd.f32 0.0, %v2688
          %2690 = vmatmul.f32.gmra.mxu0 %v2552
          %v2691 = vpop.f32.mrf.mxu0
          %v2692 = vadd.f32 0.0, %v2691
          %2693 = vmatmul.f32.gmra.mxu0 %v2554
          %v2694 = vpop.f32.mrf.mxu0
          %v2695 = vadd.f32 0.0, %v2694
          %2696 = vmatmul.f32.gmra.mxu0 %v2556
          %v2697 = vpop.f32.mrf.mxu0
          %v2698 = vadd.f32 0.0, %v2697
          %2699 = vmatmul.f32.gmra.mxu0 %v2558
          %v2700 = vpop.f32.mrf.mxu0
          %v2701 = vadd.f32 0.0, %v2700
          %2702 = vmatmul.f32.gmra.mxu0 %v2560
          %v2703 = vpop.f32.mrf.mxu0
          %v2704 = vadd.f32 0.0, %v2703
          %2705 = vdwg.mxu0
          %v2706 = vadd.f32 %v2625, %v2659
          %v2707 = vadd.f32 %v2626, %v2662
          %v2708 = vadd.f32 %v2627, %v2665
          %v2709 = vadd.f32 %v2628, %v2668
          %v2710 = vadd.f32 %v2629, %v2671
          %v2711 = vadd.f32 %v2630, %v2674
          %v2712 = vadd.f32 %v2631, %v2677
          %v2713 = vadd.f32 %v2632, %v2680
          %v2714 = vadd.f32 %v2633, %v2683
          %v2715 = vadd.f32 %v2634, %v2686
          %v2716 = vadd.f32 %v2635, %v2689
          %v2717 = vadd.f32 %v2636, %v2692
          %v2718 = vadd.f32 %v2637, %v2695
          %v2719 = vadd.f32 %v2638, %v2698
          %v2720 = vadd.f32 %v2639, %v2701
          %v2721 = vadd.f32 %v2640, %v2704
        $region89: #{tpu_custom_call.1} parent=55 // loop_footer
          %s2144 = sadd.s32 %s2142, 1
        $region90: #{tpu_custom_call.1} parent=55 // loop_footer_branch
          %2141 = sbr.rel target = $region86
        $region91: #{tpu_custom_call.1} parent=55 // loop_exit
          _
        %v2722 = vrcp.pop %v2163
        %v2723 = vmul.f32 %v2163, %v2722
        %v2724 = vsub.f32 1.0, %v2723
        %v2725 = vmul.f32 %v2722, %v2724
        %v2726 = vadd.f32 %v2722, %v2725
        %vm2727 = vweird.f32 %v2163
        %vm2728 = vweird.f32 %v2722
        %vm2729 = vmor %vm2727, %vm2728
        %v2730 = vsel %vm2729, %v2722, %v2726
        %v2731 = vand.u32 2147483647, %v2163
        %vm2732 = vcmp.eq.f32.partialorder %v2731, 8.507059e+37
        %v2733 = vand.u32 %v2163, 2147483648
        %v2734 = vor.u32 1.1754944e-38, %v2733
        %v2735 = vsel %vm2732, %v2734, %v2730
        %v2736 = vrcp.pop %v2164
        %v2737 = vmul.f32 %v2164, %v2736
        %v2738 = vsub.f32 1.0, %v2737
        %v2739 = vmul.f32 %v2736, %v2738
        %v2740 = vadd.f32 %v2736, %v2739
        %vm2741 = vweird.f32 %v2164
        %vm2742 = vweird.f32 %v2736
        %vm2743 = vmor %vm2741, %vm2742
        %v2744 = vsel %vm2743, %v2736, %v2740
        %v2745 = vand.u32 2147483647, %v2164
        %vm2746 = vcmp.eq.f32.partialorder %v2745, 8.507059e+37
        %v2747 = vand.u32 %v2164, 2147483648
        %v2748 = vor.u32 1.1754944e-38, %v2747
        %v2749 = vsel %vm2746, %v2748, %v2744
        %v2750 = vrcp.pop %v2165
        %v2751 = vmul.f32 %v2165, %v2750
        %v2752 = vsub.f32 1.0, %v2751
        %v2753 = vmul.f32 %v2750, %v2752
        %v2754 = vadd.f32 %v2750, %v2753
        %vm2755 = vweird.f32 %v2165
        %vm2756 = vweird.f32 %v2750
        %vm2757 = vmor %vm2755, %vm2756
        %v2758 = vsel %vm2757, %v2750, %v2754
        %v2759 = vand.u32 2147483647, %v2165
        %vm2760 = vcmp.eq.f32.partialorder %v2759, 8.507059e+37
        %v2761 = vand.u32 %v2165, 2147483648
        %v2762 = vor.u32 1.1754944e-38, %v2761
        %v2763 = vsel %vm2760, %v2762, %v2758
        %v2764 = vrcp.pop %v2166
        %v2765 = vmul.f32 %v2166, %v2764
        %v2766 = vsub.f32 1.0, %v2765
        %v2767 = vmul.f32 %v2764, %v2766
        %v2768 = vadd.f32 %v2764, %v2767
        %vm2769 = vweird.f32 %v2166
        %vm2770 = vweird.f32 %v2764
        %vm2771 = vmor %vm2769, %vm2770
        %v2772 = vsel %vm2771, %v2764, %v2768
        %v2773 = vand.u32 2147483647, %v2166
        %vm2774 = vcmp.eq.f32.partialorder %v2773, 8.507059e+37
        %v2775 = vand.u32 %v2166, 2147483648
        %v2776 = vor.u32 1.1754944e-38, %v2775
        %v2777 = vsel %vm2774, %v2776, %v2772
        %v2778 = vrcp.pop %v2167
        %v2779 = vmul.f32 %v2167, %v2778
        %v2780 = vsub.f32 1.0, %v2779
        %v2781 = vmul.f32 %v2778, %v2780
        %v2782 = vadd.f32 %v2778, %v2781
        %vm2783 = vweird.f32 %v2167
        %vm2784 = vweird.f32 %v2778
        %vm2785 = vmor %vm2783, %vm2784
        %v2786 = vsel %vm2785, %v2778, %v2782
        %v2787 = vand.u32 2147483647, %v2167
        %vm2788 = vcmp.eq.f32.partialorder %v2787, 8.507059e+37
        %v2789 = vand.u32 %v2167, 2147483648
        %v2790 = vor.u32 1.1754944e-38, %v2789
        %v2791 = vsel %vm2788, %v2790, %v2786
        %v2792 = vrcp.pop %v2168
        %v2793 = vmul.f32 %v2168, %v2792
        %v2794 = vsub.f32 1.0, %v2793
        %v2795 = vmul.f32 %v2792, %v2794
        %v2796 = vadd.f32 %v2792, %v2795
        %vm2797 = vweird.f32 %v2168
        %vm2798 = vweird.f32 %v2792
        %vm2799 = vmor %vm2797, %vm2798
        %v2800 = vsel %vm2799, %v2792, %v2796
        %v2801 = vand.u32 2147483647, %v2168
        %vm2802 = vcmp.eq.f32.partialorder %v2801, 8.507059e+37
        %v2803 = vand.u32 %v2168, 2147483648
        %v2804 = vor.u32 1.1754944e-38, %v2803
        %v2805 = vsel %vm2802, %v2804, %v2800
        %v2806 = vrcp.pop %v2169
        %v2807 = vmul.f32 %v2169, %v2806
        %v2808 = vsub.f32 1.0, %v2807
        %v2809 = vmul.f32 %v2806, %v2808
        %v2810 = vadd.f32 %v2806, %v2809
        %vm2811 = vweird.f32 %v2169
        %vm2812 = vweird.f32 %v2806
        %vm2813 = vmor %vm2811, %vm2812
        %v2814 = vsel %vm2813, %v2806, %v2810
        %v2815 = vand.u32 2147483647, %v2169
        %vm2816 = vcmp.eq.f32.partialorder %v2815, 8.507059e+37
        %v2817 = vand.u32 %v2169, 2147483648
        %v2818 = vor.u32 1.1754944e-38, %v2817
        %v2819 = vsel %vm2816, %v2818, %v2814
        %v2820 = vrcp.pop %v2170
        %v2821 = vmul.f32 %v2170, %v2820
        %v2822 = vsub.f32 1.0, %v2821
        %v2823 = vmul.f32 %v2820, %v2822
        %v2824 = vadd.f32 %v2820, %v2823
        %vm2825 = vweird.f32 %v2170
        %vm2826 = vweird.f32 %v2820
        %vm2827 = vmor %vm2825, %vm2826
        %v2828 = vsel %vm2827, %v2820, %v2824
        %v2829 = vand.u32 2147483647, %v2170
        %vm2830 = vcmp.eq.f32.partialorder %v2829, 8.507059e+37
        %v2831 = vand.u32 %v2170, 2147483648
        %v2832 = vor.u32 1.1754944e-38, %v2831
        %v2833 = vsel %vm2830, %v2832, %v2828
        %v2834 = vrcp.pop %v2171
        %v2835 = vmul.f32 %v2171, %v2834
        %v2836 = vsub.f32 1.0, %v2835
        %v2837 = vmul.f32 %v2834, %v2836
        %v2838 = vadd.f32 %v2834, %v2837
        %vm2839 = vweird.f32 %v2171
        %vm2840 = vweird.f32 %v2834
        %vm2841 = vmor %vm2839, %vm2840
        %v2842 = vsel %vm2841, %v2834, %v2838
        %v2843 = vand.u32 2147483647, %v2171
        %vm2844 = vcmp.eq.f32.partialorder %v2843, 8.507059e+37
        %v2845 = vand.u32 %v2171, 2147483648
        %v2846 = vor.u32 1.1754944e-38, %v2845
        %v2847 = vsel %vm2844, %v2846, %v2842
        %v2848 = vrcp.pop %v2172
        %v2849 = vmul.f32 %v2172, %v2848
        %v2850 = vsub.f32 1.0, %v2849
        %v2851 = vmul.f32 %v2848, %v2850
        %v2852 = vadd.f32 %v2848, %v2851
        %vm2853 = vweird.f32 %v2172
        %vm2854 = vweird.f32 %v2848
        %vm2855 = vmor %vm2853, %vm2854
        %v2856 = vsel %vm2855, %v2848, %v2852
        %v2857 = vand.u32 2147483647, %v2172
        %vm2858 = vcmp.eq.f32.partialorder %v2857, 8.507059e+37
        %v2859 = vand.u32 %v2172, 2147483648
        %v2860 = vor.u32 1.1754944e-38, %v2859
        %v2861 = vsel %vm2858, %v2860, %v2856
        %v2862 = vrcp.pop %v2173
        %v2863 = vmul.f32 %v2173, %v2862
        %v2864 = vsub.f32 1.0, %v2863
        %v2865 = vmul.f32 %v2862, %v2864
        %v2866 = vadd.f32 %v2862, %v2865
        %vm2867 = vweird.f32 %v2173
        %vm2868 = vweird.f32 %v2862
        %vm2869 = vmor %vm2867, %vm2868
        %v2870 = vsel %vm2869, %v2862, %v2866
        %v2871 = vand.u32 2147483647, %v2173
        %vm2872 = vcmp.eq.f32.partialorder %v2871, 8.507059e+37
        %v2873 = vand.u32 %v2173, 2147483648
        %v2874 = vor.u32 1.1754944e-38, %v2873
        %v2875 = vsel %vm2872, %v2874, %v2870
        %v2876 = vrcp.pop %v2174
        %v2877 = vmul.f32 %v2174, %v2876
        %v2878 = vsub.f32 1.0, %v2877
        %v2879 = vmul.f32 %v2876, %v2878
        %v2880 = vadd.f32 %v2876, %v2879
        %vm2881 = vweird.f32 %v2174
        %vm2882 = vweird.f32 %v2876
        %vm2883 = vmor %vm2881, %vm2882
        %v2884 = vsel %vm2883, %v2876, %v2880
        %v2885 = vand.u32 2147483647, %v2174
        %vm2886 = vcmp.eq.f32.partialorder %v2885, 8.507059e+37
        %v2887 = vand.u32 %v2174, 2147483648
        %v2888 = vor.u32 1.1754944e-38, %v2887
        %v2889 = vsel %vm2886, %v2888, %v2884
        %v2890 = vrcp.pop %v2175
        %v2891 = vmul.f32 %v2175, %v2890
        %v2892 = vsub.f32 1.0, %v2891
        %v2893 = vmul.f32 %v2890, %v2892
        %v2894 = vadd.f32 %v2890, %v2893
        %vm2895 = vweird.f32 %v2175
        %vm2896 = vweird.f32 %v2890
        %vm2897 = vmor %vm2895, %vm2896
        %v2898 = vsel %vm2897, %v2890, %v2894
        %v2899 = vand.u32 2147483647, %v2175
        %vm2900 = vcmp.eq.f32.partialorder %v2899, 8.507059e+37
        %v2901 = vand.u32 %v2175, 2147483648
        %v2902 = vor.u32 1.1754944e-38, %v2901
        %v2903 = vsel %vm2900, %v2902, %v2898
        %v2904 = vrcp.pop %v2176
        %v2905 = vmul.f32 %v2176, %v2904
        %v2906 = vsub.f32 1.0, %v2905
        %v2907 = vmul.f32 %v2904, %v2906
        %v2908 = vadd.f32 %v2904, %v2907
        %vm2909 = vweird.f32 %v2176
        %vm2910 = vweird.f32 %v2904
        %vm2911 = vmor %vm2909, %vm2910
        %v2912 = vsel %vm2911, %v2904, %v2908
        %v2913 = vand.u32 2147483647, %v2176
        %vm2914 = vcmp.eq.f32.partialorder %v2913, 8.507059e+37
        %v2915 = vand.u32 %v2176, 2147483648
        %v2916 = vor.u32 1.1754944e-38, %v2915
        %v2917 = vsel %vm2914, %v2916, %v2912
        %v2918 = vrcp.pop %v2177
        %v2919 = vmul.f32 %v2177, %v2918
        %v2920 = vsub.f32 1.0, %v2919
        %v2921 = vmul.f32 %v2918, %v2920
        %v2922 = vadd.f32 %v2918, %v2921
        %vm2923 = vweird.f32 %v2177
        %vm2924 = vweird.f32 %v2918
        %vm2925 = vmor %vm2923, %vm2924
        %v2926 = vsel %vm2925, %v2918, %v2922
        %v2927 = vand.u32 2147483647, %v2177
        %vm2928 = vcmp.eq.f32.partialorder %v2927, 8.507059e+37
        %v2929 = vand.u32 %v2177, 2147483648
        %v2930 = vor.u32 1.1754944e-38, %v2929
        %v2931 = vsel %vm2928, %v2930, %v2926
        %v2932 = vrcp.pop %v2178
        %v2933 = vmul.f32 %v2178, %v2932
        %v2934 = vsub.f32 1.0, %v2933
        %v2935 = vmul.f32 %v2932, %v2934
        %v2936 = vadd.f32 %v2932, %v2935
        %vm2937 = vweird.f32 %v2178
        %vm2938 = vweird.f32 %v2932
        %vm2939 = vmor %vm2937, %vm2938
        %v2940 = vsel %vm2939, %v2932, %v2936
        %v2941 = vand.u32 2147483647, %v2178
        %vm2942 = vcmp.eq.f32.partialorder %v2941, 8.507059e+37
        %v2943 = vand.u32 %v2178, 2147483648
        %v2944 = vor.u32 1.1754944e-38, %v2943
        %v2945 = vsel %vm2942, %v2944, %v2940
        %v2946 = vmul.f32 %v2179, %v2735
        %v2947 = vmul.f32 %v2180, %v2749
        %v2948 = vmul.f32 %v2181, %v2763
        %v2949 = vmul.f32 %v2182, %v2777
        %v2950 = vmul.f32 %v2183, %v2791
        %v2951 = vmul.f32 %v2184, %v2805
        %v2952 = vmul.f32 %v2185, %v2819
        %v2953 = vmul.f32 %v2186, %v2833
        %v2954 = vmul.f32 %v2187, %v2847
        %v2955 = vmul.f32 %v2188, %v2861
        %v2956 = vmul.f32 %v2189, %v2875
        %v2957 = vmul.f32 %v2190, %v2889
        %v2958 = vmul.f32 %v2191, %v2903
        %v2959 = vmul.f32 %v2192, %v2917
        %v2960 = vmul.f32 %v2193, %v2931
        %v2961 = vmul.f32 %v2194, %v2945
        %vm2962 = vcmask 261120
        %2963 = vst.msk [vmem:[#allocation4] sm:$0xff] %vm2962, %v2946
        %2964 = vst.msk [vmem:[#allocation4 + $0x10] sm:$0xff] %vm2962, %v2947
        %2965 = vst.msk [vmem:[#allocation4 + $0x20] sm:$0xff] %vm2962, %v2948
        %2966 = vst.msk [vmem:[#allocation4 + $0x30] sm:$0xff] %vm2962, %v2949
        %2967 = vst.msk [vmem:[#allocation4 + $0x40] sm:$0xff] %vm2962, %v2950
        %2968 = vst.msk [vmem:[#allocation4 + $0x50] sm:$0xff] %vm2962, %v2951
        %2969 = vst.msk [vmem:[#allocation4 + $0x60] sm:$0xff] %vm2962, %v2952
        %2970 = vst.msk [vmem:[#allocation4 + $0x70] sm:$0xff] %vm2962, %v2953
        %2971 = vst.msk [vmem:[#allocation4 + $0x80] sm:$0xff] %vm2962, %v2954
        %2972 = vst.msk [vmem:[#allocation4 + $0x90] sm:$0xff] %vm2962, %v2955
        %2973 = vst.msk [vmem:[#allocation4 + $0xa0] sm:$0xff] %vm2962, %v2956
        %2974 = vst.msk [vmem:[#allocation4 + $0xb0] sm:$0xff] %vm2962, %v2957
        %2975 = vst.msk [vmem:[#allocation4 + $0xc0] sm:$0xff] %vm2962, %v2958
        %2976 = vst.msk [vmem:[#allocation4 + $0xd0] sm:$0xff] %vm2962, %v2959
        %2977 = vst.msk [vmem:[#allocation4 + $0xe0] sm:$0xff] %vm2962, %v2960
        %2978 = vst.msk [vmem:[#allocation4 + $0xf0] sm:$0xff] %vm2962, %v2961
        // While loop
        $region92: #{tpu_custom_call.1} parent=55 // loop_pre_header
          _
        $region93: #{tpu_custom_call.1} parent=55 // loop_header
          %s2980 = sphi 0, %s2982
          %p2981 = scmp.ge.s32.totalorder %s2980, %s2140
          %v2985 = vphi -inf, %v3350
          %v2986 = vphi -inf, %v3351
          %v2987 = vphi -inf, %v3352
          %v2988 = vphi -inf, %v3353
          %v2989 = vphi -inf, %v3354
          %v2990 = vphi -inf, %v3355
          %v2991 = vphi -inf, %v3356
          %v2992 = vphi -inf, %v3357
          %v2993 = vphi -inf, %v3358
          %v2994 = vphi -inf, %v3359
          %v2995 = vphi -inf, %v3360
          %v2996 = vphi -inf, %v3361
          %v2997 = vphi -inf, %v3362
          %v2998 = vphi -inf, %v3363
          %v2999 = vphi -inf, %v3364
          %v3000 = vphi -inf, %v3365
          %v3001 = vphi 0.0, %v3510
          %v3002 = vphi 0.0, %v3511
          %v3003 = vphi 0.0, %v3512
          %v3004 = vphi 0.0, %v3513
          %v3005 = vphi 0.0, %v3514
          %v3006 = vphi 0.0, %v3515
          %v3007 = vphi 0.0, %v3516
          %v3008 = vphi 0.0, %v3517
          %v3009 = vphi 0.0, %v3518
          %v3010 = vphi 0.0, %v3519
          %v3011 = vphi 0.0, %v3520
          %v3012 = vphi 0.0, %v3521
          %v3013 = vphi 0.0, %v3522
          %v3014 = vphi 0.0, %v3523
          %v3015 = vphi 0.0, %v3524
          %v3016 = vphi 0.0, %v3525
          %v3017 = vphi 0.0, %v3671
          %v3018 = vphi 0.0, %v3672
          %v3019 = vphi 0.0, %v3673
          %v3020 = vphi 0.0, %v3674
          %v3021 = vphi 0.0, %v3675
          %v3022 = vphi 0.0, %v3676
          %v3023 = vphi 0.0, %v3677
          %v3024 = vphi 0.0, %v3678
          %v3025 = vphi 0.0, %v3679
          %v3026 = vphi 0.0, %v3680
          %v3027 = vphi 0.0, %v3681
          %v3028 = vphi 0.0, %v3682
          %v3029 = vphi 0.0, %v3683
          %v3030 = vphi 0.0, %v3684
          %v3031 = vphi 0.0, %v3685
          %v3032 = vphi 0.0, %v3686
        $region94: #{tpu_custom_call.1} parent=55 // loop_header_branch
          %2984 = sbr.rel (%p2981) target = $region98
        $region95: #{tpu_custom_call.1} parent=55 // loop_body
          %s3033 = smul.u32 %s2980, 128
          %s3034 = sshra.s32 %s3033, 3
          %s3035 = sand.u32 %s3033, 7
          %s3036 = smul.u32 %s3034, 2
          %s3037 = smul.addr %s3036, 8
          %s3038 = scalar_lea.vmem [#allocation2], %s3037
          %v3039 = vld [vmem:[%s3038] sm:$0xff]
          %v3040 = vld [vmem:[%s3038 + $0x10] sm:$0xff]
          %v3041 = vld [vmem:[%s3038 + $0x20] sm:$0xff]
          %v3042 = vld [vmem:[%s3038 + $0x30] sm:$0xff]
          %v3043 = vld [vmem:[%s3038 + $0x40] sm:$0xff]
          %v3044 = vld [vmem:[%s3038 + $0x50] sm:$0xff]
          %v3045 = vld [vmem:[%s3038 + $0x60] sm:$0xff]
          %v3046 = vld [vmem:[%s3038 + $0x70] sm:$0xff]
          %v3047 = vld [vmem:[%s3038 + $0x80] sm:$0xff]
          %v3048 = vld [vmem:[%s3038 + $0x90] sm:$0xff]
          %v3049 = vld [vmem:[%s3038 + $0xa0] sm:$0xff]
          %v3050 = vld [vmem:[%s3038 + $0xb0] sm:$0xff]
          %v3051 = vld [vmem:[%s3038 + $0xc0] sm:$0xff]
          %v3052 = vld [vmem:[%s3038 + $0xd0] sm:$0xff]
          %v3053 = vld [vmem:[%s3038 + $0xe0] sm:$0xff]
          %v3054 = vld [vmem:[%s3038 + $0xf0] sm:$0xff]
          %s3055 = smul.addr %s3036, 8
          %s3056 = scalar_lea.vmem [#allocation3], %s3055
          %v3057 = vld [vmem:[%s3056] sm:$0xff]
          %v3058 = vld [vmem:[%s3056 + $0x10] sm:$0xff]
          %v3059 = vld [vmem:[%s3056 + $0x20] sm:$0xff]
          %v3060 = vld [vmem:[%s3056 + $0x30] sm:$0xff]
          %v3061 = vld [vmem:[%s3056 + $0x40] sm:$0xff]
          %v3062 = vld [vmem:[%s3056 + $0x50] sm:$0xff]
          %v3063 = vld [vmem:[%s3056 + $0x60] sm:$0xff]
          %v3064 = vld [vmem:[%s3056 + $0x70] sm:$0xff]
          %v3065 = vld [vmem:[%s3056 + $0x80] sm:$0xff]
          %v3066 = vld [vmem:[%s3056 + $0x90] sm:$0xff]
          %v3067 = vld [vmem:[%s3056 + $0xa0] sm:$0xff]
          %v3068 = vld [vmem:[%s3056 + $0xb0] sm:$0xff]
          %v3069 = vld [vmem:[%s3056 + $0xc0] sm:$0xff]
          %v3070 = vld [vmem:[%s3056 + $0xd0] sm:$0xff]
          %v3071 = vld [vmem:[%s3056 + $0xe0] sm:$0xff]
          %v3072 = vld [vmem:[%s3056 + $0xf0] sm:$0xff]
          %p3073 = scmp.eq.s32.totalorder %s2980, %s34
          %s3074 = scalar_select %p3073, 1, 0
          %s3075 = scvt.s32.f32 %s3074
          %v3076 = vstv %s3075
          %v3077 = vmul.f32 %v2124, %v3076
          %v3078 = vmul.f32 %v2125, %v3076
          %v3079 = vmul.f32 %v2126, %v3076
          %v3080 = vmul.f32 %v2127, %v3076
          %v3081 = vmul.f32 %v2128, %v3076
          %v3082 = vmul.f32 %v2129, %v3076
          %v3083 = vmul.f32 %v2130, %v3076
          %v3084 = vmul.f32 %v2131, %v3076
          %v3085 = vmul.f32 %v2132, %v3076
          %v3086 = vmul.f32 %v2133, %v3076
          %v3087 = vmul.f32 %v2134, %v3076
          %v3088 = vmul.f32 %v2135, %v3076
          %v3089 = vmul.f32 %v2136, %v3076
          %v3090 = vmul.f32 %v2137, %v3076
          %v3091 = vmul.f32 %v2138, %v3076
          %v3092 = vmul.f32 %v2139, %v3076
          %3109 = vrot.lane.b32.xlu0 %v2057, 96
          %v3110 = vpop.permute.xlu0 %3109
          %3111 = vrot.lane.b32.xlu0 %v2059, 96
          %v3112 = vpop.permute.xlu0 %3111
          %3113 = vrot.lane.b32.xlu0 %v2061, 96
          %v3114 = vpop.permute.xlu0 %3113
          %3115 = vrot.lane.b32.xlu0 %v2063, 96
          %v3116 = vpop.permute.xlu0 %3115
          %3117 = vrot.lane.b32.xlu0 %v2065, 96
          %v3118 = vpop.permute.xlu0 %3117
          %3119 = vrot.lane.b32.xlu0 %v2067, 96
          %v3120 = vpop.permute.xlu0 %3119
          %3121 = vrot.lane.b32.xlu0 %v2069, 96
          %v3122 = vpop.permute.xlu0 %3121
          %3123 = vrot.lane.b32.xlu0 %v2071, 96
          %v3124 = vpop.permute.xlu0 %3123
          %3125 = vrot.lane.b32.xlu0 %v2073, 96
          %v3126 = vpop.permute.xlu0 %3125
          %3127 = vrot.lane.b32.xlu0 %v2075, 96
          %v3128 = vpop.permute.xlu0 %3127
          %3129 = vrot.lane.b32.xlu0 %v2077, 96
          %v3130 = vpop.permute.xlu0 %3129
          %3131 = vrot.lane.b32.xlu0 %v2079, 96
          %v3132 = vpop.permute.xlu0 %3131
          %3133 = vrot.lane.b32.xlu0 %v2081, 96
          %v3134 = vpop.permute.xlu0 %3133
          %3135 = vrot.lane.b32.xlu0 %v2083, 96
          %v3136 = vpop.permute.xlu0 %3135
          %3137 = vrot.lane.b32.xlu0 %v2085, 96
          %v3138 = vpop.permute.xlu0 %3137
          %3139 = vrot.lane.b32.xlu0 %v2087, 96
          %v3140 = vpop.permute.xlu0 %3139
          %3157 = vrot.lane.b32.xlu0 %v3039, 96
          %v3158 = vpop.permute.xlu0 %3157
          %3159 = vrot.lane.b32.xlu0 %v3040, 96
          %v3160 = vpop.permute.xlu0 %3159
          %3161 = vrot.lane.b32.xlu0 %v3041, 96
          %v3162 = vpop.permute.xlu0 %3161
          %3163 = vrot.lane.b32.xlu0 %v3042, 96
          %v3164 = vpop.permute.xlu0 %3163
          %3165 = vrot.lane.b32.xlu0 %v3043, 96
          %v3166 = vpop.permute.xlu0 %3165
          %3167 = vrot.lane.b32.xlu0 %v3044, 96
          %v3168 = vpop.permute.xlu0 %3167
          %3169 = vrot.lane.b32.xlu0 %v3045, 96
          %v3170 = vpop.permute.xlu0 %3169
          %3171 = vrot.lane.b32.xlu0 %v3046, 96
          %v3172 = vpop.permute.xlu0 %3171
          %3173 = vrot.lane.b32.xlu0 %v3047, 96
          %v3174 = vpop.permute.xlu0 %3173
          %3175 = vrot.lane.b32.xlu0 %v3048, 96
          %v3176 = vpop.permute.xlu0 %3175
          %3177 = vrot.lane.b32.xlu0 %v3049, 96
          %v3178 = vpop.permute.xlu0 %3177
          %3179 = vrot.lane.b32.xlu0 %v3050, 96
          %v3180 = vpop.permute.xlu0 %3179
          %3181 = vrot.lane.b32.xlu0 %v3051, 96
          %v3182 = vpop.permute.xlu0 %3181
          %3183 = vrot.lane.b32.xlu0 %v3052, 96
          %v3184 = vpop.permute.xlu0 %3183
          %3185 = vrot.lane.b32.xlu0 %v3053, 96
          %v3186 = vpop.permute.xlu0 %3185
          %3187 = vrot.lane.b32.xlu0 %v3054, 96
          %v3188 = vpop.permute.xlu0 %3187
          %v3189 = vsel %vm2962, %v3110, 0
          %v3191 = vsel %vm2962, %v3112, 0
          %v3193 = vsel %vm2962, %v3114, 0
          %v3195 = vsel %vm2962, %v3116, 0
          %v3197 = vsel %vm2962, %v3118, 0
          %v3199 = vsel %vm2962, %v3120, 0
          %v3201 = vsel %vm2962, %v3122, 0
          %v3203 = vsel %vm2962, %v3124, 0
          %v3205 = vsel %vm2962, %v3126, 0
          %v3207 = vsel %vm2962, %v3128, 0
          %v3209 = vsel %vm2962, %v3130, 0
          %v3211 = vsel %vm2962, %v3132, 0
          %v3213 = vsel %vm2962, %v3134, 0
          %v3215 = vsel %vm2962, %v3136, 0
          %v3217 = vsel %vm2962, %v3138, 0
          %v3219 = vsel %vm2962, %v3140, 0
          %v3221 = vsel %vm2962, %v3158, 0
          %v3223 = vsel %vm2962, %v3160, 0
          %v3225 = vsel %vm2962, %v3162, 0
          %v3227 = vsel %vm2962, %v3164, 0
          %v3229 = vsel %vm2962, %v3166, 0
          %v3231 = vsel %vm2962, %v3168, 0
          %v3233 = vsel %vm2962, %v3170, 0
          %v3235 = vsel %vm2962, %v3172, 0
          %v3237 = vsel %vm2962, %v3174, 0
          %v3239 = vsel %vm2962, %v3176, 0
          %v3241 = vsel %vm2962, %v3178, 0
          %v3243 = vsel %vm2962, %v3180, 0
          %v3245 = vsel %vm2962, %v3182, 0
          %v3247 = vsel %vm2962, %v3184, 0
          %v3249 = vsel %vm2962, %v3186, 0
          %v3251 = vsel %vm2962, %v3188, 0
          %3253 = vmatpush.xpose.msra.mxu0 %v3251
          %3254 = vmatpush.xpose.msra.mxu0 %v3249
          %3255 = vmatpush.xpose.msra.mxu0 %v3247
          %3256 = vmatpush.xpose.msra.mxu0 %v3245
          %3257 = vmatpush.xpose.msra.mxu0 %v3243
          %3258 = vmatpush.xpose.msra.mxu0 %v3241
          %3259 = vmatpush.xpose.msra.mxu0 %v3239
          %3260 = vmatpush.xpose.msra.mxu0 %v3237
          %3261 = vmatpush.xpose.msra.mxu0 %v3235
          %3262 = vmatpush.xpose.msra.mxu0 %v3233
          %3263 = vmatpush.xpose.msra.mxu0 %v3231
          %3264 = vmatpush.xpose.msra.mxu0 %v3229
          %3265 = vmatpush.xpose.msra.mxu0 %v3227
          %3266 = vmatpush.xpose.msra.mxu0 %v3225
          %3267 = vmatpush.xpose.msra.mxu0 %v3223
          %3268 = vmatpush.xpose.msra.mxu0 %v3221
          %3269 = vmatmul.f32.gmra.mxu0 %v3189
          %v3270 = vpop.f32.mrf.mxu0
          %v3271 = vadd.f32 %v3077, %v3270
          %3272 = vmatmul.f32.gmra.mxu0 %v3191
          %v3273 = vpop.f32.mrf.mxu0
          %v3274 = vadd.f32 %v3078, %v3273
          %3275 = vmatmul.f32.gmra.mxu0 %v3193
          %v3276 = vpop.f32.mrf.mxu0
          %v3277 = vadd.f32 %v3079, %v3276
          %3278 = vmatmul.f32.gmra.mxu0 %v3195
          %v3279 = vpop.f32.mrf.mxu0
          %v3280 = vadd.f32 %v3080, %v3279
          %3281 = vmatmul.f32.gmra.mxu0 %v3197
          %v3282 = vpop.f32.mrf.mxu0
          %v3283 = vadd.f32 %v3081, %v3282
          %3284 = vmatmul.f32.gmra.mxu0 %v3199
          %v3285 = vpop.f32.mrf.mxu0
          %v3286 = vadd.f32 %v3082, %v3285
          %3287 = vmatmul.f32.gmra.mxu0 %v3201
          %v3288 = vpop.f32.mrf.mxu0
          %v3289 = vadd.f32 %v3083, %v3288
          %3290 = vmatmul.f32.gmra.mxu0 %v3203
          %v3291 = vpop.f32.mrf.mxu0
          %v3292 = vadd.f32 %v3084, %v3291
          %3293 = vmatmul.f32.gmra.mxu0 %v3205
          %v3294 = vpop.f32.mrf.mxu0
          %v3295 = vadd.f32 %v3085, %v3294
          %3296 = vmatmul.f32.gmra.mxu0 %v3207
          %v3297 = vpop.f32.mrf.mxu0
          %v3298 = vadd.f32 %v3086, %v3297
          %3299 = vmatmul.f32.gmra.mxu0 %v3209
          %v3300 = vpop.f32.mrf.mxu0
          %v3301 = vadd.f32 %v3087, %v3300
          %3302 = vmatmul.f32.gmra.mxu0 %v3211
          %v3303 = vpop.f32.mrf.mxu0
          %v3304 = vadd.f32 %v3088, %v3303
          %3305 = vmatmul.f32.gmra.mxu0 %v3213
          %v3306 = vpop.f32.mrf.mxu0
          %v3307 = vadd.f32 %v3089, %v3306
          %3308 = vmatmul.f32.gmra.mxu0 %v3215
          %v3309 = vpop.f32.mrf.mxu0
          %v3310 = vadd.f32 %v3090, %v3309
          %3311 = vmatmul.f32.gmra.mxu0 %v3217
          %v3312 = vpop.f32.mrf.mxu0
          %v3313 = vadd.f32 %v3091, %v3312
          %3314 = vmatmul.f32.gmra.mxu0 %v3219
          %v3315 = vpop.f32.mrf.mxu0
          %v3316 = vadd.f32 %v3092, %v3315
          %3317 = vdwg.mxu0
          %3318 = vmax.xlane.f32.xlu0 %v3271
          %v3319 = vpop.xlane.xlu0 %3318
          %3320 = vmax.xlane.f32.xlu0 %v3274
          %v3321 = vpop.xlane.xlu0 %3320
          %3322 = vmax.xlane.f32.xlu0 %v3277
          %v3323 = vpop.xlane.xlu0 %3322
          %3324 = vmax.xlane.f32.xlu0 %v3280
          %v3325 = vpop.xlane.xlu0 %3324
          %3326 = vmax.xlane.f32.xlu0 %v3283
          %v3327 = vpop.xlane.xlu0 %3326
          %3328 = vmax.xlane.f32.xlu0 %v3286
          %v3329 = vpop.xlane.xlu0 %3328
          %3330 = vmax.xlane.f32.xlu0 %v3289
          %v3331 = vpop.xlane.xlu0 %3330
          %3332 = vmax.xlane.f32.xlu0 %v3292
          %v3333 = vpop.xlane.xlu0 %3332
          %3334 = vmax.xlane.f32.xlu0 %v3295
          %v3335 = vpop.xlane.xlu0 %3334
          %3336 = vmax.xlane.f32.xlu0 %v3298
          %v3337 = vpop.xlane.xlu0 %3336
          %3338 = vmax.xlane.f32.xlu0 %v3301
          %v3339 = vpop.xlane.xlu0 %3338
          %3340 = vmax.xlane.f32.xlu0 %v3304
          %v3341 = vpop.xlane.xlu0 %3340
          %3342 = vmax.xlane.f32.xlu0 %v3307
          %v3343 = vpop.xlane.xlu0 %3342
          %3344 = vmax.xlane.f32.xlu0 %v3310
          %v3345 = vpop.xlane.xlu0 %3344
          %3346 = vmax.xlane.f32.xlu0 %v3313
          %v3347 = vpop.xlane.xlu0 %3346
          %3348 = vmax.xlane.f32.xlu0 %v3316
          %v3349 = vpop.xlane.xlu0 %3348
          %v3350 = vmax.f32 %v2985, %v3319
          %v3351 = vmax.f32 %v2986, %v3321
          %v3352 = vmax.f32 %v2987, %v3323
          %v3353 = vmax.f32 %v2988, %v3325
          %v3354 = vmax.f32 %v2989, %v3327
          %v3355 = vmax.f32 %v2990, %v3329
          %v3356 = vmax.f32 %v2991, %v3331
          %v3357 = vmax.f32 %v2992, %v3333
          %v3358 = vmax.f32 %v2993, %v3335
          %v3359 = vmax.f32 %v2994, %v3337
          %v3360 = vmax.f32 %v2995, %v3339
          %v3361 = vmax.f32 %v2996, %v3341
          %v3362 = vmax.f32 %v2997, %v3343
          %v3363 = vmax.f32 %v2998, %v3345
          %v3364 = vmax.f32 %v2999, %v3347
          %v3365 = vmax.f32 %v3000, %v3349
          %v3366 = vsub.f32 %v2985, %v3350
          %v3367 = vsub.f32 %v2986, %v3351
          %v3368 = vsub.f32 %v2987, %v3352
          %v3369 = vsub.f32 %v2988, %v3353
          %v3370 = vsub.f32 %v2989, %v3354
          %v3371 = vsub.f32 %v2990, %v3355
          %v3372 = vsub.f32 %v2991, %v3356
          %v3373 = vsub.f32 %v2992, %v3357
          %v3374 = vsub.f32 %v2993, %v3358
          %v3375 = vsub.f32 %v2994, %v3359
          %v3376 = vsub.f32 %v2995, %v3360
          %v3377 = vsub.f32 %v2996, %v3361
          %v3378 = vsub.f32 %v2997, %v3362
          %v3379 = vsub.f32 %v2998, %v3363
          %v3380 = vsub.f32 %v2999, %v3364
          %v3381 = vsub.f32 %v3000, %v3365
          %v3382 = vmul.f32 %v3366, 1.442695
          %v3383 = vpow.pop %v3382
          %v3384 = vmul.f32 %v3367, 1.442695
          %v3385 = vpow.pop %v3384
          %v3386 = vmul.f32 %v3368, 1.442695
          %v3387 = vpow.pop %v3386
          %v3388 = vmul.f32 %v3369, 1.442695
          %v3389 = vpow.pop %v3388
          %v3390 = vmul.f32 %v3370, 1.442695
          %v3391 = vpow.pop %v3390
          %v3392 = vmul.f32 %v3371, 1.442695
          %v3393 = vpow.pop %v3392
          %v3394 = vmul.f32 %v3372, 1.442695
          %v3395 = vpow.pop %v3394
          %v3396 = vmul.f32 %v3373, 1.442695
          %v3397 = vpow.pop %v3396
          %v3398 = vmul.f32 %v3374, 1.442695
          %v3399 = vpow.pop %v3398
          %v3400 = vmul.f32 %v3375, 1.442695
          %v3401 = vpow.pop %v3400
          %v3402 = vmul.f32 %v3376, 1.442695
          %v3403 = vpow.pop %v3402
          %v3404 = vmul.f32 %v3377, 1.442695
          %v3405 = vpow.pop %v3404
          %v3406 = vmul.f32 %v3378, 1.442695
          %v3407 = vpow.pop %v3406
          %v3408 = vmul.f32 %v3379, 1.442695
          %v3409 = vpow.pop %v3408
          %v3410 = vmul.f32 %v3380, 1.442695
          %v3411 = vpow.pop %v3410
          %v3412 = vmul.f32 %v3381, 1.442695
          %v3413 = vpow.pop %v3412
          %v3414 = vsub.f32 %v3271, %v3350
          %v3415 = vsub.f32 %v3274, %v3351
          %v3416 = vsub.f32 %v3277, %v3352
          %v3417 = vsub.f32 %v3280, %v3353
          %v3418 = vsub.f32 %v3283, %v3354
          %v3419 = vsub.f32 %v3286, %v3355
          %v3420 = vsub.f32 %v3289, %v3356
          %v3421 = vsub.f32 %v3292, %v3357
          %v3422 = vsub.f32 %v3295, %v3358
          %v3423 = vsub.f32 %v3298, %v3359
          %v3424 = vsub.f32 %v3301, %v3360
          %v3425 = vsub.f32 %v3304, %v3361
          %v3426 = vsub.f32 %v3307, %v3362
          %v3427 = vsub.f32 %v3310, %v3363
          %v3428 = vsub.f32 %v3313, %v3364
          %v3429 = vsub.f32 %v3316, %v3365
          %v3430 = vmul.f32 %v3414, 1.442695
          %v3431 = vpow.pop %v3430
          %v3432 = vmul.f32 %v3415, 1.442695
          %v3433 = vpow.pop %v3432
          %v3434 = vmul.f32 %v3416, 1.442695
          %v3435 = vpow.pop %v3434
          %v3436 = vmul.f32 %v3417, 1.442695
          %v3437 = vpow.pop %v3436
          %v3438 = vmul.f32 %v3418, 1.442695
          %v3439 = vpow.pop %v3438
          %v3440 = vmul.f32 %v3419, 1.442695
          %v3441 = vpow.pop %v3440
          %v3442 = vmul.f32 %v3420, 1.442695
          %v3443 = vpow.pop %v3442
          %v3444 = vmul.f32 %v3421, 1.442695
          %v3445 = vpow.pop %v3444
          %v3446 = vmul.f32 %v3422, 1.442695
          %v3447 = vpow.pop %v3446
          %v3448 = vmul.f32 %v3423, 1.442695
          %v3449 = vpow.pop %v3448
          %v3450 = vmul.f32 %v3424, 1.442695
          %v3451 = vpow.pop %v3450
          %v3452 = vmul.f32 %v3425, 1.442695
          %v3453 = vpow.pop %v3452
          %v3454 = vmul.f32 %v3426, 1.442695
          %v3455 = vpow.pop %v3454
          %v3456 = vmul.f32 %v3427, 1.442695
          %v3457 = vpow.pop %v3456
          %v3458 = vmul.f32 %v3428, 1.442695
          %v3459 = vpow.pop %v3458
          %v3460 = vmul.f32 %v3429, 1.442695
          %v3461 = vpow.pop %v3460
          %v3462 = vmul.f32 %v3383, %v3001
          %v3463 = vmul.f32 %v3385, %v3002
          %v3464 = vmul.f32 %v3387, %v3003
          %v3465 = vmul.f32 %v3389, %v3004
          %v3466 = vmul.f32 %v3391, %v3005
          %v3467 = vmul.f32 %v3393, %v3006
          %v3468 = vmul.f32 %v3395, %v3007
          %v3469 = vmul.f32 %v3397, %v3008
          %v3470 = vmul.f32 %v3399, %v3009
          %v3471 = vmul.f32 %v3401, %v3010
          %v3472 = vmul.f32 %v3403, %v3011
          %v3473 = vmul.f32 %v3405, %v3012
          %v3474 = vmul.f32 %v3407, %v3013
          %v3475 = vmul.f32 %v3409, %v3014
          %v3476 = vmul.f32 %v3411, %v3015
          %v3477 = vmul.f32 %v3413, %v3016
          %3478 = vadd.xlane.f32.xlu0 %v3431
          %v3479 = vpop.xlane.xlu0 %3478
          %3480 = vadd.xlane.f32.xlu0 %v3433
          %v3481 = vpop.xlane.xlu0 %3480
          %3482 = vadd.xlane.f32.xlu0 %v3435
          %v3483 = vpop.xlane.xlu0 %3482
          %3484 = vadd.xlane.f32.xlu0 %v3437
          %v3485 = vpop.xlane.xlu0 %3484
          %3486 = vadd.xlane.f32.xlu0 %v3439
          %v3487 = vpop.xlane.xlu0 %3486
          %3488 = vadd.xlane.f32.xlu0 %v3441
          %v3489 = vpop.xlane.xlu0 %3488
          %3490 = vadd.xlane.f32.xlu0 %v3443
          %v3491 = vpop.xlane.xlu0 %3490
          %3492 = vadd.xlane.f32.xlu0 %v3445
          %v3493 = vpop.xlane.xlu0 %3492
          %3494 = vadd.xlane.f32.xlu0 %v3447
          %v3495 = vpop.xlane.xlu0 %3494
          %3496 = vadd.xlane.f32.xlu0 %v3449
          %v3497 = vpop.xlane.xlu0 %3496
          %3498 = vadd.xlane.f32.xlu0 %v3451
          %v3499 = vpop.xlane.xlu0 %3498
          %3500 = vadd.xlane.f32.xlu0 %v3453
          %v3501 = vpop.xlane.xlu0 %3500
          %3502 = vadd.xlane.f32.xlu0 %v3455
          %v3503 = vpop.xlane.xlu0 %3502
          %3504 = vadd.xlane.f32.xlu0 %v3457
          %v3505 = vpop.xlane.xlu0 %3504
          %3506 = vadd.xlane.f32.xlu0 %v3459
          %v3507 = vpop.xlane.xlu0 %3506
          %3508 = vadd.xlane.f32.xlu0 %v3461
          %v3509 = vpop.xlane.xlu0 %3508
          %v3510 = vadd.f32 %v3462, %v3479
          %v3511 = vadd.f32 %v3463, %v3481
          %v3512 = vadd.f32 %v3464, %v3483
          %v3513 = vadd.f32 %v3465, %v3485
          %v3514 = vadd.f32 %v3466, %v3487
          %v3515 = vadd.f32 %v3467, %v3489
          %v3516 = vadd.f32 %v3468, %v3491
          %v3517 = vadd.f32 %v3469, %v3493
          %v3518 = vadd.f32 %v3470, %v3495
          %v3519 = vadd.f32 %v3471, %v3497
          %v3520 = vadd.f32 %v3472, %v3499
          %v3521 = vadd.f32 %v3473, %v3501
          %v3522 = vadd.f32 %v3474, %v3503
          %v3523 = vadd.f32 %v3475, %v3505
          %v3524 = vadd.f32 %v3476, %v3507
          %v3525 = vadd.f32 %v3477, %v3509
          %v3526 = vmul.f32 %v3383, %v3017
          %v3527 = vmul.f32 %v3385, %v3018
          %v3528 = vmul.f32 %v3387, %v3019
          %v3529 = vmul.f32 %v3389, %v3020
          %v3530 = vmul.f32 %v3391, %v3021
          %v3531 = vmul.f32 %v3393, %v3022
          %v3532 = vmul.f32 %v3395, %v3023
          %v3533 = vmul.f32 %v3397, %v3024
          %v3534 = vmul.f32 %v3399, %v3025
          %v3535 = vmul.f32 %v3401, %v3026
          %v3536 = vmul.f32 %v3403, %v3027
          %v3537 = vmul.f32 %v3405, %v3028
          %v3538 = vmul.f32 %v3407, %v3029
          %v3539 = vmul.f32 %v3409, %v3030
          %v3540 = vmul.f32 %v3411, %v3031
          %v3541 = vmul.f32 %v3413, %v3032
          %3558 = vrot.lane.b32.xlu0 %v3057, 96
          %v3559 = vpop.permute.xlu0 %3558
          %3560 = vrot.lane.b32.xlu0 %v3058, 96
          %v3561 = vpop.permute.xlu0 %3560
          %3562 = vrot.lane.b32.xlu0 %v3059, 96
          %v3563 = vpop.permute.xlu0 %3562
          %3564 = vrot.lane.b32.xlu0 %v3060, 96
          %v3565 = vpop.permute.xlu0 %3564
          %3566 = vrot.lane.b32.xlu0 %v3061, 96
          %v3567 = vpop.permute.xlu0 %3566
          %3568 = vrot.lane.b32.xlu0 %v3062, 96
          %v3569 = vpop.permute.xlu0 %3568
          %3570 = vrot.lane.b32.xlu0 %v3063, 96
          %v3571 = vpop.permute.xlu0 %3570
          %3572 = vrot.lane.b32.xlu0 %v3064, 96
          %v3573 = vpop.permute.xlu0 %3572
          %3574 = vrot.lane.b32.xlu0 %v3065, 96
          %v3575 = vpop.permute.xlu0 %3574
          %3576 = vrot.lane.b32.xlu0 %v3066, 96
          %v3577 = vpop.permute.xlu0 %3576
          %3578 = vrot.lane.b32.xlu0 %v3067, 96
          %v3579 = vpop.permute.xlu0 %3578
          %3580 = vrot.lane.b32.xlu0 %v3068, 96
          %v3581 = vpop.permute.xlu0 %3580
          %3582 = vrot.lane.b32.xlu0 %v3069, 96
          %v3583 = vpop.permute.xlu0 %3582
          %3584 = vrot.lane.b32.xlu0 %v3070, 96
          %v3585 = vpop.permute.xlu0 %3584
          %3586 = vrot.lane.b32.xlu0 %v3071, 96
          %v3587 = vpop.permute.xlu0 %3586
          %3588 = vrot.lane.b32.xlu0 %v3072, 96
          %v3589 = vpop.permute.xlu0 %3588
          %3606 = vmatpush.msra.mxu0 %v3589
          %3607 = vmatpush.msra.mxu0 %v3587
          %3608 = vmatpush.msra.mxu0 %v3585
          %3609 = vmatpush.msra.mxu0 %v3583
          %3610 = vmatpush.msra.mxu0 %v3581
          %3611 = vmatpush.msra.mxu0 %v3579
          %3612 = vmatpush.msra.mxu0 %v3577
          %3613 = vmatpush.msra.mxu0 %v3575
          %3614 = vmatpush.msra.mxu0 %v3573
          %3615 = vmatpush.msra.mxu0 %v3571
          %3616 = vmatpush.msra.mxu0 %v3569
          %3617 = vmatpush.msra.mxu0 %v3567
          %3618 = vmatpush.msra.mxu0 %v3565
          %3619 = vmatpush.msra.mxu0 %v3563
          %3620 = vmatpush.msra.mxu0 %v3561
          %3621 = vmatpush.msra.mxu0 %v3559
          %3622 = vmatmul.f32.gmra.mxu0 %v3431
          %v3623 = vpop.f32.mrf.mxu0
          %v3624 = vadd.f32 0.0, %v3623
          %3625 = vmatmul.f32.gmra.mxu0 %v3433
          %v3626 = vpop.f32.mrf.mxu0
          %v3627 = vadd.f32 0.0, %v3626
          %3628 = vmatmul.f32.gmra.mxu0 %v3435
          %v3629 = vpop.f32.mrf.mxu0
          %v3630 = vadd.f32 0.0, %v3629
          %3631 = vmatmul.f32.gmra.mxu0 %v3437
          %v3632 = vpop.f32.mrf.mxu0
          %v3633 = vadd.f32 0.0, %v3632
          %3634 = vmatmul.f32.gmra.mxu0 %v3439
          %v3635 = vpop.f32.mrf.mxu0
          %v3636 = vadd.f32 0.0, %v3635
          %3637 = vmatmul.f32.gmra.mxu0 %v3441
          %v3638 = vpop.f32.mrf.mxu0
          %v3639 = vadd.f32 0.0, %v3638
          %3640 = vmatmul.f32.gmra.mxu0 %v3443
          %v3641 = vpop.f32.mrf.mxu0
          %v3642 = vadd.f32 0.0, %v3641
          %3643 = vmatmul.f32.gmra.mxu0 %v3445
          %v3644 = vpop.f32.mrf.mxu0
          %v3645 = vadd.f32 0.0, %v3644
          %3646 = vmatmul.f32.gmra.mxu0 %v3447
          %v3647 = vpop.f32.mrf.mxu0
          %v3648 = vadd.f32 0.0, %v3647
          %3649 = vmatmul.f32.gmra.mxu0 %v3449
          %v3650 = vpop.f32.mrf.mxu0
          %v3651 = vadd.f32 0.0, %v3650
          %3652 = vmatmul.f32.gmra.mxu0 %v3451
          %v3653 = vpop.f32.mrf.mxu0
          %v3654 = vadd.f32 0.0, %v3653
          %3655 = vmatmul.f32.gmra.mxu0 %v3453
          %v3656 = vpop.f32.mrf.mxu0
          %v3657 = vadd.f32 0.0, %v3656
          %3658 = vmatmul.f32.gmra.mxu0 %v3455
          %v3659 = vpop.f32.mrf.mxu0
          %v3660 = vadd.f32 0.0, %v3659
          %3661 = vmatmul.f32.gmra.mxu0 %v3457
          %v3662 = vpop.f32.mrf.mxu0
          %v3663 = vadd.f32 0.0, %v3662
          %3664 = vmatmul.f32.gmra.mxu0 %v3459
          %v3665 = vpop.f32.mrf.mxu0
          %v3666 = vadd.f32 0.0, %v3665
          %3667 = vmatmul.f32.gmra.mxu0 %v3461
          %v3668 = vpop.f32.mrf.mxu0
          %v3669 = vadd.f32 0.0, %v3668
          %3670 = vdwg.mxu0
          %v3671 = vadd.f32 %v3526, %v3624
          %v3672 = vadd.f32 %v3527, %v3627
          %v3673 = vadd.f32 %v3528, %v3630
          %v3674 = vadd.f32 %v3529, %v3633
          %v3675 = vadd.f32 %v3530, %v3636
          %v3676 = vadd.f32 %v3531, %v3639
          %v3677 = vadd.f32 %v3532, %v3642
          %v3678 = vadd.f32 %v3533, %v3645
          %v3679 = vadd.f32 %v3534, %v3648
          %v3680 = vadd.f32 %v3535, %v3651
          %v3681 = vadd.f32 %v3536, %v3654
          %v3682 = vadd.f32 %v3537, %v3657
          %v3683 = vadd.f32 %v3538, %v3660
          %v3684 = vadd.f32 %v3539, %v3663
          %v3685 = vadd.f32 %v3540, %v3666
          %v3686 = vadd.f32 %v3541, %v3669
        $region96: #{tpu_custom_call.1} parent=55 // loop_footer
          %s2982 = sadd.s32 %s2980, 1
        $region97: #{tpu_custom_call.1} parent=55 // loop_footer_branch
          %2979 = sbr.rel target = $region93
        $region98: #{tpu_custom_call.1} parent=55 // loop_exit
          _
        %v3687 = vrcp.pop %v3001
        %v3688 = vmul.f32 %v3001, %v3687
        %v3689 = vsub.f32 1.0, %v3688
        %v3690 = vmul.f32 %v3687, %v3689
        %v3691 = vadd.f32 %v3687, %v3690
        %vm3692 = vweird.f32 %v3001
        %vm3693 = vweird.f32 %v3687
        %vm3694 = vmor %vm3692, %vm3693
        %v3695 = vsel %vm3694, %v3687, %v3691
        %v3696 = vand.u32 2147483647, %v3001
        %vm3697 = vcmp.eq.f32.partialorder %v3696, 8.507059e+37
        %v3698 = vand.u32 %v3001, 2147483648
        %v3699 = vor.u32 1.1754944e-38, %v3698
        %v3700 = vsel %vm3697, %v3699, %v3695
        %v3701 = vrcp.pop %v3002
        %v3702 = vmul.f32 %v3002, %v3701
        %v3703 = vsub.f32 1.0, %v3702
        %v3704 = vmul.f32 %v3701, %v3703
        %v3705 = vadd.f32 %v3701, %v3704
        %vm3706 = vweird.f32 %v3002
        %vm3707 = vweird.f32 %v3701
        %vm3708 = vmor %vm3706, %vm3707
        %v3709 = vsel %vm3708, %v3701, %v3705
        %v3710 = vand.u32 2147483647, %v3002
        %vm3711 = vcmp.eq.f32.partialorder %v3710, 8.507059e+37
        %v3712 = vand.u32 %v3002, 2147483648
        %v3713 = vor.u32 1.1754944e-38, %v3712
        %v3714 = vsel %vm3711, %v3713, %v3709
        %v3715 = vrcp.pop %v3003
        %v3716 = vmul.f32 %v3003, %v3715
        %v3717 = vsub.f32 1.0, %v3716
        %v3718 = vmul.f32 %v3715, %v3717
        %v3719 = vadd.f32 %v3715, %v3718
        %vm3720 = vweird.f32 %v3003
        %vm3721 = vweird.f32 %v3715
        %vm3722 = vmor %vm3720, %vm3721
        %v3723 = vsel %vm3722, %v3715, %v3719
        %v3724 = vand.u32 2147483647, %v3003
        %vm3725 = vcmp.eq.f32.partialorder %v3724, 8.507059e+37
        %v3726 = vand.u32 %v3003, 2147483648
        %v3727 = vor.u32 1.1754944e-38, %v3726
        %v3728 = vsel %vm3725, %v3727, %v3723
        %v3729 = vrcp.pop %v3004
        %v3730 = vmul.f32 %v3004, %v3729
        %v3731 = vsub.f32 1.0, %v3730
        %v3732 = vmul.f32 %v3729, %v3731
        %v3733 = vadd.f32 %v3729, %v3732
        %vm3734 = vweird.f32 %v3004
        %vm3735 = vweird.f32 %v3729
        %vm3736 = vmor %vm3734, %vm3735
        %v3737 = vsel %vm3736, %v3729, %v3733
        %v3738 = vand.u32 2147483647, %v3004
        %vm3739 = vcmp.eq.f32.partialorder %v3738, 8.507059e+37
        %v3740 = vand.u32 %v3004, 2147483648
        %v3741 = vor.u32 1.1754944e-38, %v3740
        %v3742 = vsel %vm3739, %v3741, %v3737
        %v3743 = vrcp.pop %v3005
        %v3744 = vmul.f32 %v3005, %v3743
        %v3745 = vsub.f32 1.0, %v3744
        %v3746 = vmul.f32 %v3743, %v3745
        %v3747 = vadd.f32 %v3743, %v3746
        %vm3748 = vweird.f32 %v3005
        %vm3749 = vweird.f32 %v3743
        %vm3750 = vmor %vm3748, %vm3749
        %v3751 = vsel %vm3750, %v3743, %v3747
        %v3752 = vand.u32 2147483647, %v3005
        %vm3753 = vcmp.eq.f32.partialorder %v3752, 8.507059e+37
        %v3754 = vand.u32 %v3005, 2147483648
        %v3755 = vor.u32 1.1754944e-38, %v3754
        %v3756 = vsel %vm3753, %v3755, %v3751
        %v3757 = vrcp.pop %v3006
        %v3758 = vmul.f32 %v3006, %v3757
        %v3759 = vsub.f32 1.0, %v3758
        %v3760 = vmul.f32 %v3757, %v3759
        %v3761 = vadd.f32 %v3757, %v3760
        %vm3762 = vweird.f32 %v3006
        %vm3763 = vweird.f32 %v3757
        %vm3764 = vmor %vm3762, %vm3763
        %v3765 = vsel %vm3764, %v3757, %v3761
        %v3766 = vand.u32 2147483647, %v3006
        %vm3767 = vcmp.eq.f32.partialorder %v3766, 8.507059e+37
        %v3768 = vand.u32 %v3006, 2147483648
        %v3769 = vor.u32 1.1754944e-38, %v3768
        %v3770 = vsel %vm3767, %v3769, %v3765
        %v3771 = vrcp.pop %v3007
        %v3772 = vmul.f32 %v3007, %v3771
        %v3773 = vsub.f32 1.0, %v3772
        %v3774 = vmul.f32 %v3771, %v3773
        %v3775 = vadd.f32 %v3771, %v3774
        %vm3776 = vweird.f32 %v3007
        %vm3777 = vweird.f32 %v3771
        %vm3778 = vmor %vm3776, %vm3777
        %v3779 = vsel %vm3778, %v3771, %v3775
        %v3780 = vand.u32 2147483647, %v3007
        %vm3781 = vcmp.eq.f32.partialorder %v3780, 8.507059e+37
        %v3782 = vand.u32 %v3007, 2147483648
        %v3783 = vor.u32 1.1754944e-38, %v3782
        %v3784 = vsel %vm3781, %v3783, %v3779
        %v3785 = vrcp.pop %v3008
        %v3786 = vmul.f32 %v3008, %v3785
        %v3787 = vsub.f32 1.0, %v3786
        %v3788 = vmul.f32 %v3785, %v3787
        %v3789 = vadd.f32 %v3785, %v3788
        %vm3790 = vweird.f32 %v3008
        %vm3791 = vweird.f32 %v3785
        %vm3792 = vmor %vm3790, %vm3791
        %v3793 = vsel %vm3792, %v3785, %v3789
        %v3794 = vand.u32 2147483647, %v3008
        %vm3795 = vcmp.eq.f32.partialorder %v3794, 8.507059e+37
        %v3796 = vand.u32 %v3008, 2147483648
        %v3797 = vor.u32 1.1754944e-38, %v3796
        %v3798 = vsel %vm3795, %v3797, %v3793
        %v3799 = vrcp.pop %v3009
        %v3800 = vmul.f32 %v3009, %v3799
        %v3801 = vsub.f32 1.0, %v3800
        %v3802 = vmul.f32 %v3799, %v3801
        %v3803 = vadd.f32 %v3799, %v3802
        %vm3804 = vweird.f32 %v3009
        %vm3805 = vweird.f32 %v3799
        %vm3806 = vmor %vm3804, %vm3805
        %v3807 = vsel %vm3806, %v3799, %v3803
        %v3808 = vand.u32 2147483647, %v3009
        %vm3809 = vcmp.eq.f32.partialorder %v3808, 8.507059e+37
        %v3810 = vand.u32 %v3009, 2147483648
        %v3811 = vor.u32 1.1754944e-38, %v3810
        %v3812 = vsel %vm3809, %v3811, %v3807
        %v3813 = vrcp.pop %v3010
        %v3814 = vmul.f32 %v3010, %v3813
        %v3815 = vsub.f32 1.0, %v3814
        %v3816 = vmul.f32 %v3813, %v3815
        %v3817 = vadd.f32 %v3813, %v3816
        %vm3818 = vweird.f32 %v3010
        %vm3819 = vweird.f32 %v3813
        %vm3820 = vmor %vm3818, %vm3819
        %v3821 = vsel %vm3820, %v3813, %v3817
        %v3822 = vand.u32 2147483647, %v3010
        %vm3823 = vcmp.eq.f32.partialorder %v3822, 8.507059e+37
        %v3824 = vand.u32 %v3010, 2147483648
        %v3825 = vor.u32 1.1754944e-38, %v3824
        %v3826 = vsel %vm3823, %v3825, %v3821
        %v3827 = vrcp.pop %v3011
        %v3828 = vmul.f32 %v3011, %v3827
        %v3829 = vsub.f32 1.0, %v3828
        %v3830 = vmul.f32 %v3827, %v3829
        %v3831 = vadd.f32 %v3827, %v3830
        %vm3832 = vweird.f32 %v3011
        %vm3833 = vweird.f32 %v3827
        %vm3834 = vmor %vm3832, %vm3833
        %v3835 = vsel %vm3834, %v3827, %v3831
        %v3836 = vand.u32 2147483647, %v3011
        %vm3837 = vcmp.eq.f32.partialorder %v3836, 8.507059e+37
        %v3838 = vand.u32 %v3011, 2147483648
        %v3839 = vor.u32 1.1754944e-38, %v3838
        %v3840 = vsel %vm3837, %v3839, %v3835
        %v3841 = vrcp.pop %v3012
        %v3842 = vmul.f32 %v3012, %v3841
        %v3843 = vsub.f32 1.0, %v3842
        %v3844 = vmul.f32 %v3841, %v3843
        %v3845 = vadd.f32 %v3841, %v3844
        %vm3846 = vweird.f32 %v3012
        %vm3847 = vweird.f32 %v3841
        %vm3848 = vmor %vm3846, %vm3847
        %v3849 = vsel %vm3848, %v3841, %v3845
        %v3850 = vand.u32 2147483647, %v3012
        %vm3851 = vcmp.eq.f32.partialorder %v3850, 8.507059e+37
        %v3852 = vand.u32 %v3012, 2147483648
        %v3853 = vor.u32 1.1754944e-38, %v3852
        %v3854 = vsel %vm3851, %v3853, %v3849
        %v3855 = vrcp.pop %v3013
        %v3856 = vmul.f32 %v3013, %v3855
        %v3857 = vsub.f32 1.0, %v3856
        %v3858 = vmul.f32 %v3855, %v3857
        %v3859 = vadd.f32 %v3855, %v3858
        %vm3860 = vweird.f32 %v3013
        %vm3861 = vweird.f32 %v3855
        %vm3862 = vmor %vm3860, %vm3861
        %v3863 = vsel %vm3862, %v3855, %v3859
        %v3864 = vand.u32 2147483647, %v3013
        %vm3865 = vcmp.eq.f32.partialorder %v3864, 8.507059e+37
        %v3866 = vand.u32 %v3013, 2147483648
        %v3867 = vor.u32 1.1754944e-38, %v3866
        %v3868 = vsel %vm3865, %v3867, %v3863
        %v3869 = vrcp.pop %v3014
        %v3870 = vmul.f32 %v3014, %v3869
        %v3871 = vsub.f32 1.0, %v3870
        %v3872 = vmul.f32 %v3869, %v3871
        %v3873 = vadd.f32 %v3869, %v3872
        %vm3874 = vweird.f32 %v3014
        %vm3875 = vweird.f32 %v3869
        %vm3876 = vmor %vm3874, %vm3875
        %v3877 = vsel %vm3876, %v3869, %v3873
        %v3878 = vand.u32 2147483647, %v3014
        %vm3879 = vcmp.eq.f32.partialorder %v3878, 8.507059e+37
        %v3880 = vand.u32 %v3014, 2147483648
        %v3881 = vor.u32 1.1754944e-38, %v3880
        %v3882 = vsel %vm3879, %v3881, %v3877
        %v3883 = vrcp.pop %v3015
        %v3884 = vmul.f32 %v3015, %v3883
        %v3885 = vsub.f32 1.0, %v3884
        %v3886 = vmul.f32 %v3883, %v3885
        %v3887 = vadd.f32 %v3883, %v3886
        %vm3888 = vweird.f32 %v3015
        %vm3889 = vweird.f32 %v3883
        %vm3890 = vmor %vm3888, %vm3889
        %v3891 = vsel %vm3890, %v3883, %v3887
        %v3892 = vand.u32 2147483647, %v3015
        %vm3893 = vcmp.eq.f32.partialorder %v3892, 8.507059e+37
        %v3894 = vand.u32 %v3015, 2147483648
        %v3895 = vor.u32 1.1754944e-38, %v3894
        %v3896 = vsel %vm3893, %v3895, %v3891
        %v3897 = vrcp.pop %v3016
        %v3898 = vmul.f32 %v3016, %v3897
        %v3899 = vsub.f32 1.0, %v3898
        %v3900 = vmul.f32 %v3897, %v3899
        %v3901 = vadd.f32 %v3897, %v3900
        %vm3902 = vweird.f32 %v3016
        %vm3903 = vweird.f32 %v3897
        %vm3904 = vmor %vm3902, %vm3903
        %v3905 = vsel %vm3904, %v3897, %v3901
        %v3906 = vand.u32 2147483647, %v3016
        %vm3907 = vcmp.eq.f32.partialorder %v3906, 8.507059e+37
        %v3908 = vand.u32 %v3016, 2147483648
        %v3909 = vor.u32 1.1754944e-38, %v3908
        %v3910 = vsel %vm3907, %v3909, %v3905
        %v3911 = vmul.f32 %v3017, %v3700
        %v3912 = vmul.f32 %v3018, %v3714
        %v3913 = vmul.f32 %v3019, %v3728
        %v3914 = vmul.f32 %v3020, %v3742
        %v3915 = vmul.f32 %v3021, %v3756
        %v3916 = vmul.f32 %v3022, %v3770
        %v3917 = vmul.f32 %v3023, %v3784
        %v3918 = vmul.f32 %v3024, %v3798
        %v3919 = vmul.f32 %v3025, %v3812
        %v3920 = vmul.f32 %v3026, %v3826
        %v3921 = vmul.f32 %v3027, %v3840
        %v3922 = vmul.f32 %v3028, %v3854
        %v3923 = vmul.f32 %v3029, %v3868
        %v3924 = vmul.f32 %v3030, %v3882
        %v3925 = vmul.f32 %v3031, %v3896
        %v3926 = vmul.f32 %v3032, %v3910
        %3943 = vrot.lane.b32.xlu0 %v3911, 32
        %v3944 = vpop.permute.xlu0 %3943
        %3945 = vrot.lane.b32.xlu0 %v3912, 32
        %v3946 = vpop.permute.xlu0 %3945
        %3947 = vrot.lane.b32.xlu0 %v3913, 32
        %v3948 = vpop.permute.xlu0 %3947
        %3949 = vrot.lane.b32.xlu0 %v3914, 32
        %v3950 = vpop.permute.xlu0 %3949
        %3951 = vrot.lane.b32.xlu0 %v3915, 32
        %v3952 = vpop.permute.xlu0 %3951
        %3953 = vrot.lane.b32.xlu0 %v3916, 32
        %v3954 = vpop.permute.xlu0 %3953
        %3955 = vrot.lane.b32.xlu0 %v3917, 32
        %v3956 = vpop.permute.xlu0 %3955
        %3957 = vrot.lane.b32.xlu0 %v3918, 32
        %v3958 = vpop.permute.xlu0 %3957
        %3959 = vrot.lane.b32.xlu0 %v3919, 32
        %v3960 = vpop.permute.xlu0 %3959
        %3961 = vrot.lane.b32.xlu0 %v3920, 32
        %v3962 = vpop.permute.xlu0 %3961
        %3963 = vrot.lane.b32.xlu0 %v3921, 32
        %v3964 = vpop.permute.xlu0 %3963
        %3965 = vrot.lane.b32.xlu0 %v3922, 32
        %v3966 = vpop.permute.xlu0 %3965
        %3967 = vrot.lane.b32.xlu0 %v3923, 32
        %v3968 = vpop.permute.xlu0 %3967
        %3969 = vrot.lane.b32.xlu0 %v3924, 32
        %v3970 = vpop.permute.xlu0 %3969
        %3971 = vrot.lane.b32.xlu0 %v3925, 32
        %v3972 = vpop.permute.xlu0 %3971
        %3973 = vrot.lane.b32.xlu0 %v3926, 32
        %v3974 = vpop.permute.xlu0 %3973
        %vm3991 = vcmask 523520
        %3992 = vst.msk [vmem:[#allocation4] sm:$0xff] %vm3991, %v3944
        %3993 = vst.msk [vmem:[#allocation4 + $0x10] sm:$0xff] %vm3991, %v3946
        %3994 = vst.msk [vmem:[#allocation4 + $0x20] sm:$0xff] %vm3991, %v3948
        %3995 = vst.msk [vmem:[#allocation4 + $0x30] sm:$0xff] %vm3991, %v3950
        %3996 = vst.msk [vmem:[#allocation4 + $0x40] sm:$0xff] %vm3991, %v3952
        %3997 = vst.msk [vmem:[#allocation4 + $0x50] sm:$0xff] %vm3991, %v3954
        %3998 = vst.msk [vmem:[#allocation4 + $0x60] sm:$0xff] %vm3991, %v3956
        %3999 = vst.msk [vmem:[#allocation4 + $0x70] sm:$0xff] %vm3991, %v3958
        %4000 = vst.msk [vmem:[#allocation4 + $0x80] sm:$0xff] %vm3991, %v3960
        %4001 = vst.msk [vmem:[#allocation4 + $0x90] sm:$0xff] %vm3991, %v3962
        %4002 = vst.msk [vmem:[#allocation4 + $0xa0] sm:$0xff] %vm3991, %v3964
        %4003 = vst.msk [vmem:[#allocation4 + $0xb0] sm:$0xff] %vm3991, %v3966
        %4004 = vst.msk [vmem:[#allocation4 + $0xc0] sm:$0xff] %vm3991, %v3968
        %4005 = vst.msk [vmem:[#allocation4 + $0xd0] sm:$0xff] %vm3991, %v3970
        %4006 = vst.msk [vmem:[#allocation4 + $0xe0] sm:$0xff] %vm3991, %v3972
        %4007 = vst.msk [vmem:[#allocation4 + $0xf0] sm:$0xff] %vm3991, %v3974
        // While loop
        $region99: #{tpu_custom_call.1} parent=55 // loop_pre_header
          _
        $region100: #{tpu_custom_call.1} parent=55 // loop_header
          %s4009 = sphi 0, %s4011
          %p4010 = scmp.ge.s32.totalorder %s4009, %s2140
          %v4014 = vphi -inf, %v4379
          %v4015 = vphi -inf, %v4380
          %v4016 = vphi -inf, %v4381
          %v4017 = vphi -inf, %v4382
          %v4018 = vphi -inf, %v4383
          %v4019 = vphi -inf, %v4384
          %v4020 = vphi -inf, %v4385
          %v4021 = vphi -inf, %v4386
          %v4022 = vphi -inf, %v4387
          %v4023 = vphi -inf, %v4388
          %v4024 = vphi -inf, %v4389
          %v4025 = vphi -inf, %v4390
          %v4026 = vphi -inf, %v4391
          %v4027 = vphi -inf, %v4392
          %v4028 = vphi -inf, %v4393
          %v4029 = vphi -inf, %v4394
          %v4030 = vphi 0.0, %v4539
          %v4031 = vphi 0.0, %v4540
          %v4032 = vphi 0.0, %v4541
          %v4033 = vphi 0.0, %v4542
          %v4034 = vphi 0.0, %v4543
          %v4035 = vphi 0.0, %v4544
          %v4036 = vphi 0.0, %v4545
          %v4037 = vphi 0.0, %v4546
          %v4038 = vphi 0.0, %v4547
          %v4039 = vphi 0.0, %v4548
          %v4040 = vphi 0.0, %v4549
          %v4041 = vphi 0.0, %v4550
          %v4042 = vphi 0.0, %v4551
          %v4043 = vphi 0.0, %v4552
          %v4044 = vphi 0.0, %v4553
          %v4045 = vphi 0.0, %v4554
          %v4046 = vphi 0.0, %v4700
          %v4047 = vphi 0.0, %v4701
          %v4048 = vphi 0.0, %v4702
          %v4049 = vphi 0.0, %v4703
          %v4050 = vphi 0.0, %v4704
          %v4051 = vphi 0.0, %v4705
          %v4052 = vphi 0.0, %v4706
          %v4053 = vphi 0.0, %v4707
          %v4054 = vphi 0.0, %v4708
          %v4055 = vphi 0.0, %v4709
          %v4056 = vphi 0.0, %v4710
          %v4057 = vphi 0.0, %v4711
          %v4058 = vphi 0.0, %v4712
          %v4059 = vphi 0.0, %v4713
          %v4060 = vphi 0.0, %v4714
          %v4061 = vphi 0.0, %v4715
        $region101: #{tpu_custom_call.1} parent=55 // loop_header_branch
          %4013 = sbr.rel (%p4010) target = $region105
        $region102: #{tpu_custom_call.1} parent=55 // loop_body
          %s4062 = smul.u32 %s4009, 128
          %s4063 = sshra.s32 %s4062, 3
          %s4064 = sand.u32 %s4062, 7
          %s4065 = smul.u32 %s4063, 2
          %s4066 = smul.addr %s4065, 8
          %s4067 = scalar_lea.vmem [#allocation2], %s4066
          %v4068 = vld [vmem:[%s4067] sm:$0xff]
          %v4069 = vld [vmem:[%s4067 + $0x10] sm:$0xff]
          %v4070 = vld [vmem:[%s4067 + $0x20] sm:$0xff]
          %v4071 = vld [vmem:[%s4067 + $0x30] sm:$0xff]
          %v4072 = vld [vmem:[%s4067 + $0x40] sm:$0xff]
          %v4073 = vld [vmem:[%s4067 + $0x50] sm:$0xff]
          %v4074 = vld [vmem:[%s4067 + $0x60] sm:$0xff]
          %v4075 = vld [vmem:[%s4067 + $0x70] sm:$0xff]
          %v4076 = vld [vmem:[%s4067 + $0x80] sm:$0xff]
          %v4077 = vld [vmem:[%s4067 + $0x90] sm:$0xff]
          %v4078 = vld [vmem:[%s4067 + $0xa0] sm:$0xff]
          %v4079 = vld [vmem:[%s4067 + $0xb0] sm:$0xff]
          %v4080 = vld [vmem:[%s4067 + $0xc0] sm:$0xff]
          %v4081 = vld [vmem:[%s4067 + $0xd0] sm:$0xff]
          %v4082 = vld [vmem:[%s4067 + $0xe0] sm:$0xff]
          %v4083 = vld [vmem:[%s4067 + $0xf0] sm:$0xff]
          %s4084 = smul.addr %s4065, 8
          %s4085 = scalar_lea.vmem [#allocation3], %s4084
          %v4086 = vld [vmem:[%s4085] sm:$0xff]
          %v4087 = vld [vmem:[%s4085 + $0x10] sm:$0xff]
          %v4088 = vld [vmem:[%s4085 + $0x20] sm:$0xff]
          %v4089 = vld [vmem:[%s4085 + $0x30] sm:$0xff]
          %v4090 = vld [vmem:[%s4085 + $0x40] sm:$0xff]
          %v4091 = vld [vmem:[%s4085 + $0x50] sm:$0xff]
          %v4092 = vld [vmem:[%s4085 + $0x60] sm:$0xff]
          %v4093 = vld [vmem:[%s4085 + $0x70] sm:$0xff]
          %v4094 = vld [vmem:[%s4085 + $0x80] sm:$0xff]
          %v4095 = vld [vmem:[%s4085 + $0x90] sm:$0xff]
          %v4096 = vld [vmem:[%s4085 + $0xa0] sm:$0xff]
          %v4097 = vld [vmem:[%s4085 + $0xb0] sm:$0xff]
          %v4098 = vld [vmem:[%s4085 + $0xc0] sm:$0xff]
          %v4099 = vld [vmem:[%s4085 + $0xd0] sm:$0xff]
          %v4100 = vld [vmem:[%s4085 + $0xe0] sm:$0xff]
          %v4101 = vld [vmem:[%s4085 + $0xf0] sm:$0xff]
          %p4102 = scmp.eq.s32.totalorder %s4009, %s34
          %s4103 = scalar_select %p4102, 1, 0
          %s4104 = scvt.s32.f32 %s4103
          %v4105 = vstv %s4104
          %v4106 = vmul.f32 %v2124, %v4105
          %v4107 = vmul.f32 %v2125, %v4105
          %v4108 = vmul.f32 %v2126, %v4105
          %v4109 = vmul.f32 %v2127, %v4105
          %v4110 = vmul.f32 %v2128, %v4105
          %v4111 = vmul.f32 %v2129, %v4105
          %v4112 = vmul.f32 %v2130, %v4105
          %v4113 = vmul.f32 %v2131, %v4105
          %v4114 = vmul.f32 %v2132, %v4105
          %v4115 = vmul.f32 %v2133, %v4105
          %v4116 = vmul.f32 %v2134, %v4105
          %v4117 = vmul.f32 %v2135, %v4105
          %v4118 = vmul.f32 %v2136, %v4105
          %v4119 = vmul.f32 %v2137, %v4105
          %v4120 = vmul.f32 %v2138, %v4105
          %v4121 = vmul.f32 %v2139, %v4105
          %4138 = vrot.lane.b32.xlu0 %v2057, 64
          %v4139 = vpop.permute.xlu0 %4138
          %4140 = vrot.lane.b32.xlu0 %v2059, 64
          %v4141 = vpop.permute.xlu0 %4140
          %4142 = vrot.lane.b32.xlu0 %v2061, 64
          %v4143 = vpop.permute.xlu0 %4142
          %4144 = vrot.lane.b32.xlu0 %v2063, 64
          %v4145 = vpop.permute.xlu0 %4144
          %4146 = vrot.lane.b32.xlu0 %v2065, 64
          %v4147 = vpop.permute.xlu0 %4146
          %4148 = vrot.lane.b32.xlu0 %v2067, 64
          %v4149 = vpop.permute.xlu0 %4148
          %4150 = vrot.lane.b32.xlu0 %v2069, 64
          %v4151 = vpop.permute.xlu0 %4150
          %4152 = vrot.lane.b32.xlu0 %v2071, 64
          %v4153 = vpop.permute.xlu0 %4152
          %4154 = vrot.lane.b32.xlu0 %v2073, 64
          %v4155 = vpop.permute.xlu0 %4154
          %4156 = vrot.lane.b32.xlu0 %v2075, 64
          %v4157 = vpop.permute.xlu0 %4156
          %4158 = vrot.lane.b32.xlu0 %v2077, 64
          %v4159 = vpop.permute.xlu0 %4158
          %4160 = vrot.lane.b32.xlu0 %v2079, 64
          %v4161 = vpop.permute.xlu0 %4160
          %4162 = vrot.lane.b32.xlu0 %v2081, 64
          %v4163 = vpop.permute.xlu0 %4162
          %4164 = vrot.lane.b32.xlu0 %v2083, 64
          %v4165 = vpop.permute.xlu0 %4164
          %4166 = vrot.lane.b32.xlu0 %v2085, 64
          %v4167 = vpop.permute.xlu0 %4166
          %4168 = vrot.lane.b32.xlu0 %v2087, 64
          %v4169 = vpop.permute.xlu0 %4168
          %4186 = vrot.lane.b32.xlu0 %v4068, 64
          %v4187 = vpop.permute.xlu0 %4186
          %4188 = vrot.lane.b32.xlu0 %v4069, 64
          %v4189 = vpop.permute.xlu0 %4188
          %4190 = vrot.lane.b32.xlu0 %v4070, 64
          %v4191 = vpop.permute.xlu0 %4190
          %4192 = vrot.lane.b32.xlu0 %v4071, 64
          %v4193 = vpop.permute.xlu0 %4192
          %4194 = vrot.lane.b32.xlu0 %v4072, 64
          %v4195 = vpop.permute.xlu0 %4194
          %4196 = vrot.lane.b32.xlu0 %v4073, 64
          %v4197 = vpop.permute.xlu0 %4196
          %4198 = vrot.lane.b32.xlu0 %v4074, 64
          %v4199 = vpop.permute.xlu0 %4198
          %4200 = vrot.lane.b32.xlu0 %v4075, 64
          %v4201 = vpop.permute.xlu0 %4200
          %4202 = vrot.lane.b32.xlu0 %v4076, 64
          %v4203 = vpop.permute.xlu0 %4202
          %4204 = vrot.lane.b32.xlu0 %v4077, 64
          %v4205 = vpop.permute.xlu0 %4204
          %4206 = vrot.lane.b32.xlu0 %v4078, 64
          %v4207 = vpop.permute.xlu0 %4206
          %4208 = vrot.lane.b32.xlu0 %v4079, 64
          %v4209 = vpop.permute.xlu0 %4208
          %4210 = vrot.lane.b32.xlu0 %v4080, 64
          %v4211 = vpop.permute.xlu0 %4210
          %4212 = vrot.lane.b32.xlu0 %v4081, 64
          %v4213 = vpop.permute.xlu0 %4212
          %4214 = vrot.lane.b32.xlu0 %v4082, 64
          %v4215 = vpop.permute.xlu0 %4214
          %4216 = vrot.lane.b32.xlu0 %v4083, 64
          %v4217 = vpop.permute.xlu0 %4216
          %v4218 = vsel %vm2962, %v4139, 0
          %v4220 = vsel %vm2962, %v4141, 0
          %v4222 = vsel %vm2962, %v4143, 0
          %v4224 = vsel %vm2962, %v4145, 0
          %v4226 = vsel %vm2962, %v4147, 0
          %v4228 = vsel %vm2962, %v4149, 0
          %v4230 = vsel %vm2962, %v4151, 0
          %v4232 = vsel %vm2962, %v4153, 0
          %v4234 = vsel %vm2962, %v4155, 0
          %v4236 = vsel %vm2962, %v4157, 0
          %v4238 = vsel %vm2962, %v4159, 0
          %v4240 = vsel %vm2962, %v4161, 0
          %v4242 = vsel %vm2962, %v4163, 0
          %v4244 = vsel %vm2962, %v4165, 0
          %v4246 = vsel %vm2962, %v4167, 0
          %v4248 = vsel %vm2962, %v4169, 0
          %v4250 = vsel %vm2962, %v4187, 0
          %v4252 = vsel %vm2962, %v4189, 0
          %v4254 = vsel %vm2962, %v4191, 0
          %v4256 = vsel %vm2962, %v4193, 0
          %v4258 = vsel %vm2962, %v4195, 0
          %v4260 = vsel %vm2962, %v4197, 0
          %v4262 = vsel %vm2962, %v4199, 0
          %v4264 = vsel %vm2962, %v4201, 0
          %v4266 = vsel %vm2962, %v4203, 0
          %v4268 = vsel %vm2962, %v4205, 0
          %v4270 = vsel %vm2962, %v4207, 0
          %v4272 = vsel %vm2962, %v4209, 0
          %v4274 = vsel %vm2962, %v4211, 0
          %v4276 = vsel %vm2962, %v4213, 0
          %v4278 = vsel %vm2962, %v4215, 0
          %v4280 = vsel %vm2962, %v4217, 0
          %4282 = vmatpush.xpose.msra.mxu0 %v4280
          %4283 = vmatpush.xpose.msra.mxu0 %v4278
          %4284 = vmatpush.xpose.msra.mxu0 %v4276
          %4285 = vmatpush.xpose.msra.mxu0 %v4274
          %4286 = vmatpush.xpose.msra.mxu0 %v4272
          %4287 = vmatpush.xpose.msra.mxu0 %v4270
          %4288 = vmatpush.xpose.msra.mxu0 %v4268
          %4289 = vmatpush.xpose.msra.mxu0 %v4266
          %4290 = vmatpush.xpose.msra.mxu0 %v4264
          %4291 = vmatpush.xpose.msra.mxu0 %v4262
          %4292 = vmatpush.xpose.msra.mxu0 %v4260
          %4293 = vmatpush.xpose.msra.mxu0 %v4258
          %4294 = vmatpush.xpose.msra.mxu0 %v4256
          %4295 = vmatpush.xpose.msra.mxu0 %v4254
          %4296 = vmatpush.xpose.msra.mxu0 %v4252
          %4297 = vmatpush.xpose.msra.mxu0 %v4250
          %4298 = vmatmul.f32.gmra.mxu0 %v4218
          %v4299 = vpop.f32.mrf.mxu0
          %v4300 = vadd.f32 %v4106, %v4299
          %4301 = vmatmul.f32.gmra.mxu0 %v4220
          %v4302 = vpop.f32.mrf.mxu0
          %v4303 = vadd.f32 %v4107, %v4302
          %4304 = vmatmul.f32.gmra.mxu0 %v4222
          %v4305 = vpop.f32.mrf.mxu0
          %v4306 = vadd.f32 %v4108, %v4305
          %4307 = vmatmul.f32.gmra.mxu0 %v4224
          %v4308 = vpop.f32.mrf.mxu0
          %v4309 = vadd.f32 %v4109, %v4308
          %4310 = vmatmul.f32.gmra.mxu0 %v4226
          %v4311 = vpop.f32.mrf.mxu0
          %v4312 = vadd.f32 %v4110, %v4311
          %4313 = vmatmul.f32.gmra.mxu0 %v4228
          %v4314 = vpop.f32.mrf.mxu0
          %v4315 = vadd.f32 %v4111, %v4314
          %4316 = vmatmul.f32.gmra.mxu0 %v4230
          %v4317 = vpop.f32.mrf.mxu0
          %v4318 = vadd.f32 %v4112, %v4317
          %4319 = vmatmul.f32.gmra.mxu0 %v4232
          %v4320 = vpop.f32.mrf.mxu0
          %v4321 = vadd.f32 %v4113, %v4320
          %4322 = vmatmul.f32.gmra.mxu0 %v4234
          %v4323 = vpop.f32.mrf.mxu0
          %v4324 = vadd.f32 %v4114, %v4323
          %4325 = vmatmul.f32.gmra.mxu0 %v4236
          %v4326 = vpop.f32.mrf.mxu0
          %v4327 = vadd.f32 %v4115, %v4326
          %4328 = vmatmul.f32.gmra.mxu0 %v4238
          %v4329 = vpop.f32.mrf.mxu0
          %v4330 = vadd.f32 %v4116, %v4329
          %4331 = vmatmul.f32.gmra.mxu0 %v4240
          %v4332 = vpop.f32.mrf.mxu0
          %v4333 = vadd.f32 %v4117, %v4332
          %4334 = vmatmul.f32.gmra.mxu0 %v4242
          %v4335 = vpop.f32.mrf.mxu0
          %v4336 = vadd.f32 %v4118, %v4335
          %4337 = vmatmul.f32.gmra.mxu0 %v4244
          %v4338 = vpop.f32.mrf.mxu0
          %v4339 = vadd.f32 %v4119, %v4338
          %4340 = vmatmul.f32.gmra.mxu0 %v4246
          %v4341 = vpop.f32.mrf.mxu0
          %v4342 = vadd.f32 %v4120, %v4341
          %4343 = vmatmul.f32.gmra.mxu0 %v4248
          %v4344 = vpop.f32.mrf.mxu0
          %v4345 = vadd.f32 %v4121, %v4344
          %4346 = vdwg.mxu0
          %4347 = vmax.xlane.f32.xlu0 %v4300
          %v4348 = vpop.xlane.xlu0 %4347
          %4349 = vmax.xlane.f32.xlu0 %v4303
          %v4350 = vpop.xlane.xlu0 %4349
          %4351 = vmax.xlane.f32.xlu0 %v4306
          %v4352 = vpop.xlane.xlu0 %4351
          %4353 = vmax.xlane.f32.xlu0 %v4309
          %v4354 = vpop.xlane.xlu0 %4353
          %4355 = vmax.xlane.f32.xlu0 %v4312
          %v4356 = vpop.xlane.xlu0 %4355
          %4357 = vmax.xlane.f32.xlu0 %v4315
          %v4358 = vpop.xlane.xlu0 %4357
          %4359 = vmax.xlane.f32.xlu0 %v4318
          %v4360 = vpop.xlane.xlu0 %4359
          %4361 = vmax.xlane.f32.xlu0 %v4321
          %v4362 = vpop.xlane.xlu0 %4361
          %4363 = vmax.xlane.f32.xlu0 %v4324
          %v4364 = vpop.xlane.xlu0 %4363
          %4365 = vmax.xlane.f32.xlu0 %v4327
          %v4366 = vpop.xlane.xlu0 %4365
          %4367 = vmax.xlane.f32.xlu0 %v4330
          %v4368 = vpop.xlane.xlu0 %4367
          %4369 = vmax.xlane.f32.xlu0 %v4333
          %v4370 = vpop.xlane.xlu0 %4369
          %4371 = vmax.xlane.f32.xlu0 %v4336
          %v4372 = vpop.xlane.xlu0 %4371
          %4373 = vmax.xlane.f32.xlu0 %v4339
          %v4374 = vpop.xlane.xlu0 %4373
          %4375 = vmax.xlane.f32.xlu0 %v4342
          %v4376 = vpop.xlane.xlu0 %4375
          %4377 = vmax.xlane.f32.xlu0 %v4345
          %v4378 = vpop.xlane.xlu0 %4377
          %v4379 = vmax.f32 %v4014, %v4348
          %v4380 = vmax.f32 %v4015, %v4350
          %v4381 = vmax.f32 %v4016, %v4352
          %v4382 = vmax.f32 %v4017, %v4354
          %v4383 = vmax.f32 %v4018, %v4356
          %v4384 = vmax.f32 %v4019, %v4358
          %v4385 = vmax.f32 %v4020, %v4360
          %v4386 = vmax.f32 %v4021, %v4362
          %v4387 = vmax.f32 %v4022, %v4364
          %v4388 = vmax.f32 %v4023, %v4366
          %v4389 = vmax.f32 %v4024, %v4368
          %v4390 = vmax.f32 %v4025, %v4370
          %v4391 = vmax.f32 %v4026, %v4372
          %v4392 = vmax.f32 %v4027, %v4374
          %v4393 = vmax.f32 %v4028, %v4376
          %v4394 = vmax.f32 %v4029, %v4378
          %v4395 = vsub.f32 %v4014, %v4379
          %v4396 = vsub.f32 %v4015, %v4380
          %v4397 = vsub.f32 %v4016, %v4381
          %v4398 = vsub.f32 %v4017, %v4382
          %v4399 = vsub.f32 %v4018, %v4383
          %v4400 = vsub.f32 %v4019, %v4384
          %v4401 = vsub.f32 %v4020, %v4385
          %v4402 = vsub.f32 %v4021, %v4386
          %v4403 = vsub.f32 %v4022, %v4387
          %v4404 = vsub.f32 %v4023, %v4388
          %v4405 = vsub.f32 %v4024, %v4389
          %v4406 = vsub.f32 %v4025, %v4390
          %v4407 = vsub.f32 %v4026, %v4391
          %v4408 = vsub.f32 %v4027, %v4392
          %v4409 = vsub.f32 %v4028, %v4393
          %v4410 = vsub.f32 %v4029, %v4394
          %v4411 = vmul.f32 %v4395, 1.442695
          %v4412 = vpow.pop %v4411
          %v4413 = vmul.f32 %v4396, 1.442695
          %v4414 = vpow.pop %v4413
          %v4415 = vmul.f32 %v4397, 1.442695
          %v4416 = vpow.pop %v4415
          %v4417 = vmul.f32 %v4398, 1.442695
          %v4418 = vpow.pop %v4417
          %v4419 = vmul.f32 %v4399, 1.442695
          %v4420 = vpow.pop %v4419
          %v4421 = vmul.f32 %v4400, 1.442695
          %v4422 = vpow.pop %v4421
          %v4423 = vmul.f32 %v4401, 1.442695
          %v4424 = vpow.pop %v4423
          %v4425 = vmul.f32 %v4402, 1.442695
          %v4426 = vpow.pop %v4425
          %v4427 = vmul.f32 %v4403, 1.442695
          %v4428 = vpow.pop %v4427
          %v4429 = vmul.f32 %v4404, 1.442695
          %v4430 = vpow.pop %v4429
          %v4431 = vmul.f32 %v4405, 1.442695
          %v4432 = vpow.pop %v4431
          %v4433 = vmul.f32 %v4406, 1.442695
          %v4434 = vpow.pop %v4433
          %v4435 = vmul.f32 %v4407, 1.442695
          %v4436 = vpow.pop %v4435
          %v4437 = vmul.f32 %v4408, 1.442695
          %v4438 = vpow.pop %v4437
          %v4439 = vmul.f32 %v4409, 1.442695
          %v4440 = vpow.pop %v4439
          %v4441 = vmul.f32 %v4410, 1.442695
          %v4442 = vpow.pop %v4441
          %v4443 = vsub.f32 %v4300, %v4379
          %v4444 = vsub.f32 %v4303, %v4380
          %v4445 = vsub.f32 %v4306, %v4381
          %v4446 = vsub.f32 %v4309, %v4382
          %v4447 = vsub.f32 %v4312, %v4383
          %v4448 = vsub.f32 %v4315, %v4384
          %v4449 = vsub.f32 %v4318, %v4385
          %v4450 = vsub.f32 %v4321, %v4386
          %v4451 = vsub.f32 %v4324, %v4387
          %v4452 = vsub.f32 %v4327, %v4388
          %v4453 = vsub.f32 %v4330, %v4389
          %v4454 = vsub.f32 %v4333, %v4390
          %v4455 = vsub.f32 %v4336, %v4391
          %v4456 = vsub.f32 %v4339, %v4392
          %v4457 = vsub.f32 %v4342, %v4393
          %v4458 = vsub.f32 %v4345, %v4394
          %v4459 = vmul.f32 %v4443, 1.442695
          %v4460 = vpow.pop %v4459
          %v4461 = vmul.f32 %v4444, 1.442695
          %v4462 = vpow.pop %v4461
          %v4463 = vmul.f32 %v4445, 1.442695
          %v4464 = vpow.pop %v4463
          %v4465 = vmul.f32 %v4446, 1.442695
          %v4466 = vpow.pop %v4465
          %v4467 = vmul.f32 %v4447, 1.442695
          %v4468 = vpow.pop %v4467
          %v4469 = vmul.f32 %v4448, 1.442695
          %v4470 = vpow.pop %v4469
          %v4471 = vmul.f32 %v4449, 1.442695
          %v4472 = vpow.pop %v4471
          %v4473 = vmul.f32 %v4450, 1.442695
          %v4474 = vpow.pop %v4473
          %v4475 = vmul.f32 %v4451, 1.442695
          %v4476 = vpow.pop %v4475
          %v4477 = vmul.f32 %v4452, 1.442695
          %v4478 = vpow.pop %v4477
          %v4479 = vmul.f32 %v4453, 1.442695
          %v4480 = vpow.pop %v4479
          %v4481 = vmul.f32 %v4454, 1.442695
          %v4482 = vpow.pop %v4481
          %v4483 = vmul.f32 %v4455, 1.442695
          %v4484 = vpow.pop %v4483
          %v4485 = vmul.f32 %v4456, 1.442695
          %v4486 = vpow.pop %v4485
          %v4487 = vmul.f32 %v4457, 1.442695
          %v4488 = vpow.pop %v4487
          %v4489 = vmul.f32 %v4458, 1.442695
          %v4490 = vpow.pop %v4489
          %v4491 = vmul.f32 %v4412, %v4030
          %v4492 = vmul.f32 %v4414, %v4031
          %v4493 = vmul.f32 %v4416, %v4032
          %v4494 = vmul.f32 %v4418, %v4033
          %v4495 = vmul.f32 %v4420, %v4034
          %v4496 = vmul.f32 %v4422, %v4035
          %v4497 = vmul.f32 %v4424, %v4036
          %v4498 = vmul.f32 %v4426, %v4037
          %v4499 = vmul.f32 %v4428, %v4038
          %v4500 = vmul.f32 %v4430, %v4039
          %v4501 = vmul.f32 %v4432, %v4040
          %v4502 = vmul.f32 %v4434, %v4041
          %v4503 = vmul.f32 %v4436, %v4042
          %v4504 = vmul.f32 %v4438, %v4043
          %v4505 = vmul.f32 %v4440, %v4044
          %v4506 = vmul.f32 %v4442, %v4045
          %4507 = vadd.xlane.f32.xlu0 %v4460
          %v4508 = vpop.xlane.xlu0 %4507
          %4509 = vadd.xlane.f32.xlu0 %v4462
          %v4510 = vpop.xlane.xlu0 %4509
          %4511 = vadd.xlane.f32.xlu0 %v4464
          %v4512 = vpop.xlane.xlu0 %4511
          %4513 = vadd.xlane.f32.xlu0 %v4466
          %v4514 = vpop.xlane.xlu0 %4513
          %4515 = vadd.xlane.f32.xlu0 %v4468
          %v4516 = vpop.xlane.xlu0 %4515
          %4517 = vadd.xlane.f32.xlu0 %v4470
          %v4518 = vpop.xlane.xlu0 %4517
          %4519 = vadd.xlane.f32.xlu0 %v4472
          %v4520 = vpop.xlane.xlu0 %4519
          %4521 = vadd.xlane.f32.xlu0 %v4474
          %v4522 = vpop.xlane.xlu0 %4521
          %4523 = vadd.xlane.f32.xlu0 %v4476
          %v4524 = vpop.xlane.xlu0 %4523
          %4525 = vadd.xlane.f32.xlu0 %v4478
          %v4526 = vpop.xlane.xlu0 %4525
          %4527 = vadd.xlane.f32.xlu0 %v4480
          %v4528 = vpop.xlane.xlu0 %4527
          %4529 = vadd.xlane.f32.xlu0 %v4482
          %v4530 = vpop.xlane.xlu0 %4529
          %4531 = vadd.xlane.f32.xlu0 %v4484
          %v4532 = vpop.xlane.xlu0 %4531
          %4533 = vadd.xlane.f32.xlu0 %v4486
          %v4534 = vpop.xlane.xlu0 %4533
          %4535 = vadd.xlane.f32.xlu0 %v4488
          %v4536 = vpop.xlane.xlu0 %4535
          %4537 = vadd.xlane.f32.xlu0 %v4490
          %v4538 = vpop.xlane.xlu0 %4537
          %v4539 = vadd.f32 %v4491, %v4508
          %v4540 = vadd.f32 %v4492, %v4510
          %v4541 = vadd.f32 %v4493, %v4512
          %v4542 = vadd.f32 %v4494, %v4514
          %v4543 = vadd.f32 %v4495, %v4516
          %v4544 = vadd.f32 %v4496, %v4518
          %v4545 = vadd.f32 %v4497, %v4520
          %v4546 = vadd.f32 %v4498, %v4522
          %v4547 = vadd.f32 %v4499, %v4524
          %v4548 = vadd.f32 %v4500, %v4526
          %v4549 = vadd.f32 %v4501, %v4528
          %v4550 = vadd.f32 %v4502, %v4530
          %v4551 = vadd.f32 %v4503, %v4532
          %v4552 = vadd.f32 %v4504, %v4534
          %v4553 = vadd.f32 %v4505, %v4536
          %v4554 = vadd.f32 %v4506, %v4538
          %v4555 = vmul.f32 %v4412, %v4046
          %v4556 = vmul.f32 %v4414, %v4047
          %v4557 = vmul.f32 %v4416, %v4048
          %v4558 = vmul.f32 %v4418, %v4049
          %v4559 = vmul.f32 %v4420, %v4050
          %v4560 = vmul.f32 %v4422, %v4051
          %v4561 = vmul.f32 %v4424, %v4052
          %v4562 = vmul.f32 %v4426, %v4053
          %v4563 = vmul.f32 %v4428, %v4054
          %v4564 = vmul.f32 %v4430, %v4055
          %v4565 = vmul.f32 %v4432, %v4056
          %v4566 = vmul.f32 %v4434, %v4057
          %v4567 = vmul.f32 %v4436, %v4058
          %v4568 = vmul.f32 %v4438, %v4059
          %v4569 = vmul.f32 %v4440, %v4060
          %v4570 = vmul.f32 %v4442, %v4061
          %4587 = vrot.lane.b32.xlu0 %v4086, 64
          %v4588 = vpop.permute.xlu0 %4587
          %4589 = vrot.lane.b32.xlu0 %v4087, 64
          %v4590 = vpop.permute.xlu0 %4589
          %4591 = vrot.lane.b32.xlu0 %v4088, 64
          %v4592 = vpop.permute.xlu0 %4591
          %4593 = vrot.lane.b32.xlu0 %v4089, 64
          %v4594 = vpop.permute.xlu0 %4593
          %4595 = vrot.lane.b32.xlu0 %v4090, 64
          %v4596 = vpop.permute.xlu0 %4595
          %4597 = vrot.lane.b32.xlu0 %v4091, 64
          %v4598 = vpop.permute.xlu0 %4597
          %4599 = vrot.lane.b32.xlu0 %v4092, 64
          %v4600 = vpop.permute.xlu0 %4599
          %4601 = vrot.lane.b32.xlu0 %v4093, 64
          %v4602 = vpop.permute.xlu0 %4601
          %4603 = vrot.lane.b32.xlu0 %v4094, 64
          %v4604 = vpop.permute.xlu0 %4603
          %4605 = vrot.lane.b32.xlu0 %v4095, 64
          %v4606 = vpop.permute.xlu0 %4605
          %4607 = vrot.lane.b32.xlu0 %v4096, 64
          %v4608 = vpop.permute.xlu0 %4607
          %4609 = vrot.lane.b32.xlu0 %v4097, 64
          %v4610 = vpop.permute.xlu0 %4609
          %4611 = vrot.lane.b32.xlu0 %v4098, 64
          %v4612 = vpop.permute.xlu0 %4611
          %4613 = vrot.lane.b32.xlu0 %v4099, 64
          %v4614 = vpop.permute.xlu0 %4613
          %4615 = vrot.lane.b32.xlu0 %v4100, 64
          %v4616 = vpop.permute.xlu0 %4615
          %4617 = vrot.lane.b32.xlu0 %v4101, 64
          %v4618 = vpop.permute.xlu0 %4617
          %4635 = vmatpush.msra.mxu0 %v4618
          %4636 = vmatpush.msra.mxu0 %v4616
          %4637 = vmatpush.msra.mxu0 %v4614
          %4638 = vmatpush.msra.mxu0 %v4612
          %4639 = vmatpush.msra.mxu0 %v4610
          %4640 = vmatpush.msra.mxu0 %v4608
          %4641 = vmatpush.msra.mxu0 %v4606
          %4642 = vmatpush.msra.mxu0 %v4604
          %4643 = vmatpush.msra.mxu0 %v4602
          %4644 = vmatpush.msra.mxu0 %v4600
          %4645 = vmatpush.msra.mxu0 %v4598
          %4646 = vmatpush.msra.mxu0 %v4596
          %4647 = vmatpush.msra.mxu0 %v4594
          %4648 = vmatpush.msra.mxu0 %v4592
          %4649 = vmatpush.msra.mxu0 %v4590
          %4650 = vmatpush.msra.mxu0 %v4588
          %4651 = vmatmul.f32.gmra.mxu0 %v4460
          %v4652 = vpop.f32.mrf.mxu0
          %v4653 = vadd.f32 0.0, %v4652
          %4654 = vmatmul.f32.gmra.mxu0 %v4462
          %v4655 = vpop.f32.mrf.mxu0
          %v4656 = vadd.f32 0.0, %v4655
          %4657 = vmatmul.f32.gmra.mxu0 %v4464
          %v4658 = vpop.f32.mrf.mxu0
          %v4659 = vadd.f32 0.0, %v4658
          %4660 = vmatmul.f32.gmra.mxu0 %v4466
          %v4661 = vpop.f32.mrf.mxu0
          %v4662 = vadd.f32 0.0, %v4661
          %4663 = vmatmul.f32.gmra.mxu0 %v4468
          %v4664 = vpop.f32.mrf.mxu0
          %v4665 = vadd.f32 0.0, %v4664
          %4666 = vmatmul.f32.gmra.mxu0 %v4470
          %v4667 = vpop.f32.mrf.mxu0
          %v4668 = vadd.f32 0.0, %v4667
          %4669 = vmatmul.f32.gmra.mxu0 %v4472
          %v4670 = vpop.f32.mrf.mxu0
          %v4671 = vadd.f32 0.0, %v4670
          %4672 = vmatmul.f32.gmra.mxu0 %v4474
          %v4673 = vpop.f32.mrf.mxu0
          %v4674 = vadd.f32 0.0, %v4673
          %4675 = vmatmul.f32.gmra.mxu0 %v4476
          %v4676 = vpop.f32.mrf.mxu0
          %v4677 = vadd.f32 0.0, %v4676
          %4678 = vmatmul.f32.gmra.mxu0 %v4478
          %v4679 = vpop.f32.mrf.mxu0
          %v4680 = vadd.f32 0.0, %v4679
          %4681 = vmatmul.f32.gmra.mxu0 %v4480
          %v4682 = vpop.f32.mrf.mxu0
          %v4683 = vadd.f32 0.0, %v4682
          %4684 = vmatmul.f32.gmra.mxu0 %v4482
          %v4685 = vpop.f32.mrf.mxu0
          %v4686 = vadd.f32 0.0, %v4685
          %4687 = vmatmul.f32.gmra.mxu0 %v4484
          %v4688 = vpop.f32.mrf.mxu0
          %v4689 = vadd.f32 0.0, %v4688
          %4690 = vmatmul.f32.gmra.mxu0 %v4486
          %v4691 = vpop.f32.mrf.mxu0
          %v4692 = vadd.f32 0.0, %v4691
          %4693 = vmatmul.f32.gmra.mxu0 %v4488
          %v4694 = vpop.f32.mrf.mxu0
          %v4695 = vadd.f32 0.0, %v4694
          %4696 = vmatmul.f32.gmra.mxu0 %v4490
          %v4697 = vpop.f32.mrf.mxu0
          %v4698 = vadd.f32 0.0, %v4697
          %4699 = vdwg.mxu0
          %v4700 = vadd.f32 %v4555, %v4653
          %v4701 = vadd.f32 %v4556, %v4656
          %v4702 = vadd.f32 %v4557, %v4659
          %v4703 = vadd.f32 %v4558, %v4662
          %v4704 = vadd.f32 %v4559, %v4665
          %v4705 = vadd.f32 %v4560, %v4668
          %v4706 = vadd.f32 %v4561, %v4671
          %v4707 = vadd.f32 %v4562, %v4674
          %v4708 = vadd.f32 %v4563, %v4677
          %v4709 = vadd.f32 %v4564, %v4680
          %v4710 = vadd.f32 %v4565, %v4683
          %v4711 = vadd.f32 %v4566, %v4686
          %v4712 = vadd.f32 %v4567, %v4689
          %v4713 = vadd.f32 %v4568, %v4692
          %v4714 = vadd.f32 %v4569, %v4695
          %v4715 = vadd.f32 %v4570, %v4698
        $region103: #{tpu_custom_call.1} parent=55 // loop_footer
          %s4011 = sadd.s32 %s4009, 1
        $region104: #{tpu_custom_call.1} parent=55 // loop_footer_branch
          %4008 = sbr.rel target = $region100
        $region105: #{tpu_custom_call.1} parent=55 // loop_exit
          _
        %v4716 = vrcp.pop %v4030
        %v4717 = vmul.f32 %v4030, %v4716
        %v4718 = vsub.f32 1.0, %v4717
        %v4719 = vmul.f32 %v4716, %v4718
        %v4720 = vadd.f32 %v4716, %v4719
        %vm4721 = vweird.f32 %v4030
        %vm4722 = vweird.f32 %v4716
        %vm4723 = vmor %vm4721, %vm4722
        %v4724 = vsel %vm4723, %v4716, %v4720
        %v4725 = vand.u32 2147483647, %v4030
        %vm4726 = vcmp.eq.f32.partialorder %v4725, 8.507059e+37
        %v4727 = vand.u32 %v4030, 2147483648
        %v4728 = vor.u32 1.1754944e-38, %v4727
        %v4729 = vsel %vm4726, %v4728, %v4724
        %v4730 = vrcp.pop %v4031
        %v4731 = vmul.f32 %v4031, %v4730
        %v4732 = vsub.f32 1.0, %v4731
        %v4733 = vmul.f32 %v4730, %v4732
        %v4734 = vadd.f32 %v4730, %v4733
        %vm4735 = vweird.f32 %v4031
        %vm4736 = vweird.f32 %v4730
        %vm4737 = vmor %vm4735, %vm4736
        %v4738 = vsel %vm4737, %v4730, %v4734
        %v4739 = vand.u32 2147483647, %v4031
        %vm4740 = vcmp.eq.f32.partialorder %v4739, 8.507059e+37
        %v4741 = vand.u32 %v4031, 2147483648
        %v4742 = vor.u32 1.1754944e-38, %v4741
        %v4743 = vsel %vm4740, %v4742, %v4738
        %v4744 = vrcp.pop %v4032
        %v4745 = vmul.f32 %v4032, %v4744
        %v4746 = vsub.f32 1.0, %v4745
        %v4747 = vmul.f32 %v4744, %v4746
        %v4748 = vadd.f32 %v4744, %v4747
        %vm4749 = vweird.f32 %v4032
        %vm4750 = vweird.f32 %v4744
        %vm4751 = vmor %vm4749, %vm4750
        %v4752 = vsel %vm4751, %v4744, %v4748
        %v4753 = vand.u32 2147483647, %v4032
        %vm4754 = vcmp.eq.f32.partialorder %v4753, 8.507059e+37
        %v4755 = vand.u32 %v4032, 2147483648
        %v4756 = vor.u32 1.1754944e-38, %v4755
        %v4757 = vsel %vm4754, %v4756, %v4752
        %v4758 = vrcp.pop %v4033
        %v4759 = vmul.f32 %v4033, %v4758
        %v4760 = vsub.f32 1.0, %v4759
        %v4761 = vmul.f32 %v4758, %v4760
        %v4762 = vadd.f32 %v4758, %v4761
        %vm4763 = vweird.f32 %v4033
        %vm4764 = vweird.f32 %v4758
        %vm4765 = vmor %vm4763, %vm4764
        %v4766 = vsel %vm4765, %v4758, %v4762
        %v4767 = vand.u32 2147483647, %v4033
        %vm4768 = vcmp.eq.f32.partialorder %v4767, 8.507059e+37
        %v4769 = vand.u32 %v4033, 2147483648
        %v4770 = vor.u32 1.1754944e-38, %v4769
        %v4771 = vsel %vm4768, %v4770, %v4766
        %v4772 = vrcp.pop %v4034
        %v4773 = vmul.f32 %v4034, %v4772
        %v4774 = vsub.f32 1.0, %v4773
        %v4775 = vmul.f32 %v4772, %v4774
        %v4776 = vadd.f32 %v4772, %v4775
        %vm4777 = vweird.f32 %v4034
        %vm4778 = vweird.f32 %v4772
        %vm4779 = vmor %vm4777, %vm4778
        %v4780 = vsel %vm4779, %v4772, %v4776
        %v4781 = vand.u32 2147483647, %v4034
        %vm4782 = vcmp.eq.f32.partialorder %v4781, 8.507059e+37
        %v4783 = vand.u32 %v4034, 2147483648
        %v4784 = vor.u32 1.1754944e-38, %v4783
        %v4785 = vsel %vm4782, %v4784, %v4780
        %v4786 = vrcp.pop %v4035
        %v4787 = vmul.f32 %v4035, %v4786
        %v4788 = vsub.f32 1.0, %v4787
        %v4789 = vmul.f32 %v4786, %v4788
        %v4790 = vadd.f32 %v4786, %v4789
        %vm4791 = vweird.f32 %v4035
        %vm4792 = vweird.f32 %v4786
        %vm4793 = vmor %vm4791, %vm4792
        %v4794 = vsel %vm4793, %v4786, %v4790
        %v4795 = vand.u32 2147483647, %v4035
        %vm4796 = vcmp.eq.f32.partialorder %v4795, 8.507059e+37
        %v4797 = vand.u32 %v4035, 2147483648
        %v4798 = vor.u32 1.1754944e-38, %v4797
        %v4799 = vsel %vm4796, %v4798, %v4794
        %v4800 = vrcp.pop %v4036
        %v4801 = vmul.f32 %v4036, %v4800
        %v4802 = vsub.f32 1.0, %v4801
        %v4803 = vmul.f32 %v4800, %v4802
        %v4804 = vadd.f32 %v4800, %v4803
        %vm4805 = vweird.f32 %v4036
        %vm4806 = vweird.f32 %v4800
        %vm4807 = vmor %vm4805, %vm4806
        %v4808 = vsel %vm4807, %v4800, %v4804
        %v4809 = vand.u32 2147483647, %v4036
        %vm4810 = vcmp.eq.f32.partialorder %v4809, 8.507059e+37
        %v4811 = vand.u32 %v4036, 2147483648
        %v4812 = vor.u32 1.1754944e-38, %v4811
        %v4813 = vsel %vm4810, %v4812, %v4808
        %v4814 = vrcp.pop %v4037
        %v4815 = vmul.f32 %v4037, %v4814
        %v4816 = vsub.f32 1.0, %v4815
        %v4817 = vmul.f32 %v4814, %v4816
        %v4818 = vadd.f32 %v4814, %v4817
        %vm4819 = vweird.f32 %v4037
        %vm4820 = vweird.f32 %v4814
        %vm4821 = vmor %vm4819, %vm4820
        %v4822 = vsel %vm4821, %v4814, %v4818
        %v4823 = vand.u32 2147483647, %v4037
        %vm4824 = vcmp.eq.f32.partialorder %v4823, 8.507059e+37
        %v4825 = vand.u32 %v4037, 2147483648
        %v4826 = vor.u32 1.1754944e-38, %v4825
        %v4827 = vsel %vm4824, %v4826, %v4822
        %v4828 = vrcp.pop %v4038
        %v4829 = vmul.f32 %v4038, %v4828
        %v4830 = vsub.f32 1.0, %v4829
        %v4831 = vmul.f32 %v4828, %v4830
        %v4832 = vadd.f32 %v4828, %v4831
        %vm4833 = vweird.f32 %v4038
        %vm4834 = vweird.f32 %v4828
        %vm4835 = vmor %vm4833, %vm4834
        %v4836 = vsel %vm4835, %v4828, %v4832
        %v4837 = vand.u32 2147483647, %v4038
        %vm4838 = vcmp.eq.f32.partialorder %v4837, 8.507059e+37
        %v4839 = vand.u32 %v4038, 2147483648
        %v4840 = vor.u32 1.1754944e-38, %v4839
        %v4841 = vsel %vm4838, %v4840, %v4836
        %v4842 = vrcp.pop %v4039
        %v4843 = vmul.f32 %v4039, %v4842
        %v4844 = vsub.f32 1.0, %v4843
        %v4845 = vmul.f32 %v4842, %v4844
        %v4846 = vadd.f32 %v4842, %v4845
        %vm4847 = vweird.f32 %v4039
        %vm4848 = vweird.f32 %v4842
        %vm4849 = vmor %vm4847, %vm4848
        %v4850 = vsel %vm4849, %v4842, %v4846
        %v4851 = vand.u32 2147483647, %v4039
        %vm4852 = vcmp.eq.f32.partialorder %v4851, 8.507059e+37
        %v4853 = vand.u32 %v4039, 2147483648
        %v4854 = vor.u32 1.1754944e-38, %v4853
        %v4855 = vsel %vm4852, %v4854, %v4850
        %v4856 = vrcp.pop %v4040
        %v4857 = vmul.f32 %v4040, %v4856
        %v4858 = vsub.f32 1.0, %v4857
        %v4859 = vmul.f32 %v4856, %v4858
        %v4860 = vadd.f32 %v4856, %v4859
        %vm4861 = vweird.f32 %v4040
        %vm4862 = vweird.f32 %v4856
        %vm4863 = vmor %vm4861, %vm4862
        %v4864 = vsel %vm4863, %v4856, %v4860
        %v4865 = vand.u32 2147483647, %v4040
        %vm4866 = vcmp.eq.f32.partialorder %v4865, 8.507059e+37
        %v4867 = vand.u32 %v4040, 2147483648
        %v4868 = vor.u32 1.1754944e-38, %v4867
        %v4869 = vsel %vm4866, %v4868, %v4864
        %v4870 = vrcp.pop %v4041
        %v4871 = vmul.f32 %v4041, %v4870
        %v4872 = vsub.f32 1.0, %v4871
        %v4873 = vmul.f32 %v4870, %v4872
        %v4874 = vadd.f32 %v4870, %v4873
        %vm4875 = vweird.f32 %v4041
        %vm4876 = vweird.f32 %v4870
        %vm4877 = vmor %vm4875, %vm4876
        %v4878 = vsel %vm4877, %v4870, %v4874
        %v4879 = vand.u32 2147483647, %v4041
        %vm4880 = vcmp.eq.f32.partialorder %v4879, 8.507059e+37
        %v4881 = vand.u32 %v4041, 2147483648
        %v4882 = vor.u32 1.1754944e-38, %v4881
        %v4883 = vsel %vm4880, %v4882, %v4878
        %v4884 = vrcp.pop %v4042
        %v4885 = vmul.f32 %v4042, %v4884
        %v4886 = vsub.f32 1.0, %v4885
        %v4887 = vmul.f32 %v4884, %v4886
        %v4888 = vadd.f32 %v4884, %v4887
        %vm4889 = vweird.f32 %v4042
        %vm4890 = vweird.f32 %v4884
        %vm4891 = vmor %vm4889, %vm4890
        %v4892 = vsel %vm4891, %v4884, %v4888
        %v4893 = vand.u32 2147483647, %v4042
        %vm4894 = vcmp.eq.f32.partialorder %v4893, 8.507059e+37
        %v4895 = vand.u32 %v4042, 2147483648
        %v4896 = vor.u32 1.1754944e-38, %v4895
        %v4897 = vsel %vm4894, %v4896, %v4892
        %v4898 = vrcp.pop %v4043
        %v4899 = vmul.f32 %v4043, %v4898
        %v4900 = vsub.f32 1.0, %v4899
        %v4901 = vmul.f32 %v4898, %v4900
        %v4902 = vadd.f32 %v4898, %v4901
        %vm4903 = vweird.f32 %v4043
        %vm4904 = vweird.f32 %v4898
        %vm4905 = vmor %vm4903, %vm4904
        %v4906 = vsel %vm4905, %v4898, %v4902
        %v4907 = vand.u32 2147483647, %v4043
        %vm4908 = vcmp.eq.f32.partialorder %v4907, 8.507059e+37
        %v4909 = vand.u32 %v4043, 2147483648
        %v4910 = vor.u32 1.1754944e-38, %v4909
        %v4911 = vsel %vm4908, %v4910, %v4906
        %v4912 = vrcp.pop %v4044
        %v4913 = vmul.f32 %v4044, %v4912
        %v4914 = vsub.f32 1.0, %v4913
        %v4915 = vmul.f32 %v4912, %v4914
        %v4916 = vadd.f32 %v4912, %v4915
        %vm4917 = vweird.f32 %v4044
        %vm4918 = vweird.f32 %v4912
        %vm4919 = vmor %vm4917, %vm4918
        %v4920 = vsel %vm4919, %v4912, %v4916
        %v4921 = vand.u32 2147483647, %v4044
        %vm4922 = vcmp.eq.f32.partialorder %v4921, 8.507059e+37
        %v4923 = vand.u32 %v4044, 2147483648
        %v4924 = vor.u32 1.1754944e-38, %v4923
        %v4925 = vsel %vm4922, %v4924, %v4920
        %v4926 = vrcp.pop %v4045
        %v4927 = vmul.f32 %v4045, %v4926
        %v4928 = vsub.f32 1.0, %v4927
        %v4929 = vmul.f32 %v4926, %v4928
        %v4930 = vadd.f32 %v4926, %v4929
        %vm4931 = vweird.f32 %v4045
        %vm4932 = vweird.f32 %v4926
        %vm4933 = vmor %vm4931, %vm4932
        %v4934 = vsel %vm4933, %v4926, %v4930
        %v4935 = vand.u32 2147483647, %v4045
        %vm4936 = vcmp.eq.f32.partialorder %v4935, 8.507059e+37
        %v4937 = vand.u32 %v4045, 2147483648
        %v4938 = vor.u32 1.1754944e-38, %v4937
        %v4939 = vsel %vm4936, %v4938, %v4934
        %v4940 = vmul.f32 %v4046, %v4729
        %v4941 = vmul.f32 %v4047, %v4743
        %v4942 = vmul.f32 %v4048, %v4757
        %v4943 = vmul.f32 %v4049, %v4771
        %v4944 = vmul.f32 %v4050, %v4785
        %v4945 = vmul.f32 %v4051, %v4799
        %v4946 = vmul.f32 %v4052, %v4813
        %v4947 = vmul.f32 %v4053, %v4827
        %v4948 = vmul.f32 %v4054, %v4841
        %v4949 = vmul.f32 %v4055, %v4855
        %v4950 = vmul.f32 %v4056, %v4869
        %v4951 = vmul.f32 %v4057, %v4883
        %v4952 = vmul.f32 %v4058, %v4897
        %v4953 = vmul.f32 %v4059, %v4911
        %v4954 = vmul.f32 %v4060, %v4925
        %v4955 = vmul.f32 %v4061, %v4939
        %4972 = vrot.lane.b32.xlu0 %v4940, 64
        %v4973 = vpop.permute.xlu0 %4972
        %4974 = vrot.lane.b32.xlu0 %v4941, 64
        %v4975 = vpop.permute.xlu0 %4974
        %4976 = vrot.lane.b32.xlu0 %v4942, 64
        %v4977 = vpop.permute.xlu0 %4976
        %4978 = vrot.lane.b32.xlu0 %v4943, 64
        %v4979 = vpop.permute.xlu0 %4978
        %4980 = vrot.lane.b32.xlu0 %v4944, 64
        %v4981 = vpop.permute.xlu0 %4980
        %4982 = vrot.lane.b32.xlu0 %v4945, 64
        %v4983 = vpop.permute.xlu0 %4982
        %4984 = vrot.lane.b32.xlu0 %v4946, 64
        %v4985 = vpop.permute.xlu0 %4984
        %4986 = vrot.lane.b32.xlu0 %v4947, 64
        %v4987 = vpop.permute.xlu0 %4986
        %4988 = vrot.lane.b32.xlu0 %v4948, 64
        %v4989 = vpop.permute.xlu0 %4988
        %4990 = vrot.lane.b32.xlu0 %v4949, 64
        %v4991 = vpop.permute.xlu0 %4990
        %4992 = vrot.lane.b32.xlu0 %v4950, 64
        %v4993 = vpop.permute.xlu0 %4992
        %4994 = vrot.lane.b32.xlu0 %v4951, 64
        %v4995 = vpop.permute.xlu0 %4994
        %4996 = vrot.lane.b32.xlu0 %v4952, 64
        %v4997 = vpop.permute.xlu0 %4996
        %4998 = vrot.lane.b32.xlu0 %v4953, 64
        %v4999 = vpop.permute.xlu0 %4998
        %5000 = vrot.lane.b32.xlu0 %v4954, 64
        %v5001 = vpop.permute.xlu0 %5000
        %5002 = vrot.lane.b32.xlu0 %v4955, 64
        %v5003 = vpop.permute.xlu0 %5002
        %vm5020 = vcmask 785920
        %5021 = vst.msk [vmem:[#allocation4] sm:$0xff] %vm5020, %v4973
        %5022 = vst.msk [vmem:[#allocation4 + $0x10] sm:$0xff] %vm5020, %v4975
        %5023 = vst.msk [vmem:[#allocation4 + $0x20] sm:$0xff] %vm5020, %v4977
        %5024 = vst.msk [vmem:[#allocation4 + $0x30] sm:$0xff] %vm5020, %v4979
        %5025 = vst.msk [vmem:[#allocation4 + $0x40] sm:$0xff] %vm5020, %v4981
        %5026 = vst.msk [vmem:[#allocation4 + $0x50] sm:$0xff] %vm5020, %v4983
        %5027 = vst.msk [vmem:[#allocation4 + $0x60] sm:$0xff] %vm5020, %v4985
        %5028 = vst.msk [vmem:[#allocation4 + $0x70] sm:$0xff] %vm5020, %v4987
        %5029 = vst.msk [vmem:[#allocation4 + $0x80] sm:$0xff] %vm5020, %v4989
        %5030 = vst.msk [vmem:[#allocation4 + $0x90] sm:$0xff] %vm5020, %v4991
        %5031 = vst.msk [vmem:[#allocation4 + $0xa0] sm:$0xff] %vm5020, %v4993
        %5032 = vst.msk [vmem:[#allocation4 + $0xb0] sm:$0xff] %vm5020, %v4995
        %5033 = vst.msk [vmem:[#allocation4 + $0xc0] sm:$0xff] %vm5020, %v4997
        %5034 = vst.msk [vmem:[#allocation4 + $0xd0] sm:$0xff] %vm5020, %v4999
        %5035 = vst.msk [vmem:[#allocation4 + $0xe0] sm:$0xff] %vm5020, %v5001
        %5036 = vst.msk [vmem:[#allocation4 + $0xf0] sm:$0xff] %vm5020, %v5003
        // While loop
        $region106: #{tpu_custom_call.1} parent=55 // loop_pre_header
          _
        $region107: #{tpu_custom_call.1} parent=55 // loop_header
          %s5038 = sphi 0, %s5040
          %p5039 = scmp.ge.s32.totalorder %s5038, %s2140
          %v5043 = vphi -inf, %v5408
          %v5044 = vphi -inf, %v5409
          %v5045 = vphi -inf, %v5410
          %v5046 = vphi -inf, %v5411
          %v5047 = vphi -inf, %v5412
          %v5048 = vphi -inf, %v5413
          %v5049 = vphi -inf, %v5414
          %v5050 = vphi -inf, %v5415
          %v5051 = vphi -inf, %v5416
          %v5052 = vphi -inf, %v5417
          %v5053 = vphi -inf, %v5418
          %v5054 = vphi -inf, %v5419
          %v5055 = vphi -inf, %v5420
          %v5056 = vphi -inf, %v5421
          %v5057 = vphi -inf, %v5422
          %v5058 = vphi -inf, %v5423
          %v5059 = vphi 0.0, %v5568
          %v5060 = vphi 0.0, %v5569
          %v5061 = vphi 0.0, %v5570
          %v5062 = vphi 0.0, %v5571
          %v5063 = vphi 0.0, %v5572
          %v5064 = vphi 0.0, %v5573
          %v5065 = vphi 0.0, %v5574
          %v5066 = vphi 0.0, %v5575
          %v5067 = vphi 0.0, %v5576
          %v5068 = vphi 0.0, %v5577
          %v5069 = vphi 0.0, %v5578
          %v5070 = vphi 0.0, %v5579
          %v5071 = vphi 0.0, %v5580
          %v5072 = vphi 0.0, %v5581
          %v5073 = vphi 0.0, %v5582
          %v5074 = vphi 0.0, %v5583
          %v5075 = vphi 0.0, %v5729
          %v5076 = vphi 0.0, %v5730
          %v5077 = vphi 0.0, %v5731
          %v5078 = vphi 0.0, %v5732
          %v5079 = vphi 0.0, %v5733
          %v5080 = vphi 0.0, %v5734
          %v5081 = vphi 0.0, %v5735
          %v5082 = vphi 0.0, %v5736
          %v5083 = vphi 0.0, %v5737
          %v5084 = vphi 0.0, %v5738
          %v5085 = vphi 0.0, %v5739
          %v5086 = vphi 0.0, %v5740
          %v5087 = vphi 0.0, %v5741
          %v5088 = vphi 0.0, %v5742
          %v5089 = vphi 0.0, %v5743
          %v5090 = vphi 0.0, %v5744
        $region108: #{tpu_custom_call.1} parent=55 // loop_header_branch
          %5042 = sbr.rel (%p5039) target = $region112
        $region109: #{tpu_custom_call.1} parent=55 // loop_body
          %s5091 = smul.u32 %s5038, 128
          %s5092 = sshra.s32 %s5091, 3
          %s5093 = sand.u32 %s5091, 7
          %s5094 = smul.u32 %s5092, 2
          %s5095 = smul.addr %s5094, 8
          %s5096 = scalar_lea.vmem [#allocation2], %s5095
          %v5097 = vld [vmem:[%s5096] sm:$0xff]
          %v5098 = vld [vmem:[%s5096 + $0x10] sm:$0xff]
          %v5099 = vld [vmem:[%s5096 + $0x20] sm:$0xff]
          %v5100 = vld [vmem:[%s5096 + $0x30] sm:$0xff]
          %v5101 = vld [vmem:[%s5096 + $0x40] sm:$0xff]
          %v5102 = vld [vmem:[%s5096 + $0x50] sm:$0xff]
          %v5103 = vld [vmem:[%s5096 + $0x60] sm:$0xff]
          %v5104 = vld [vmem:[%s5096 + $0x70] sm:$0xff]
          %v5105 = vld [vmem:[%s5096 + $0x80] sm:$0xff]
          %v5106 = vld [vmem:[%s5096 + $0x90] sm:$0xff]
          %v5107 = vld [vmem:[%s5096 + $0xa0] sm:$0xff]
          %v5108 = vld [vmem:[%s5096 + $0xb0] sm:$0xff]
          %v5109 = vld [vmem:[%s5096 + $0xc0] sm:$0xff]
          %v5110 = vld [vmem:[%s5096 + $0xd0] sm:$0xff]
          %v5111 = vld [vmem:[%s5096 + $0xe0] sm:$0xff]
          %v5112 = vld [vmem:[%s5096 + $0xf0] sm:$0xff]
          %s5113 = smul.addr %s5094, 8
          %s5114 = scalar_lea.vmem [#allocation3], %s5113
          %v5115 = vld [vmem:[%s5114] sm:$0xff]
          %v5116 = vld [vmem:[%s5114 + $0x10] sm:$0xff]
          %v5117 = vld [vmem:[%s5114 + $0x20] sm:$0xff]
          %v5118 = vld [vmem:[%s5114 + $0x30] sm:$0xff]
          %v5119 = vld [vmem:[%s5114 + $0x40] sm:$0xff]
          %v5120 = vld [vmem:[%s5114 + $0x50] sm:$0xff]
          %v5121 = vld [vmem:[%s5114 + $0x60] sm:$0xff]
          %v5122 = vld [vmem:[%s5114 + $0x70] sm:$0xff]
          %v5123 = vld [vmem:[%s5114 + $0x80] sm:$0xff]
          %v5124 = vld [vmem:[%s5114 + $0x90] sm:$0xff]
          %v5125 = vld [vmem:[%s5114 + $0xa0] sm:$0xff]
          %v5126 = vld [vmem:[%s5114 + $0xb0] sm:$0xff]
          %v5127 = vld [vmem:[%s5114 + $0xc0] sm:$0xff]
          %v5128 = vld [vmem:[%s5114 + $0xd0] sm:$0xff]
          %v5129 = vld [vmem:[%s5114 + $0xe0] sm:$0xff]
          %v5130 = vld [vmem:[%s5114 + $0xf0] sm:$0xff]
          %p5131 = scmp.eq.s32.totalorder %s5038, %s34
          %s5132 = scalar_select %p5131, 1, 0
          %s5133 = scvt.s32.f32 %s5132
          %v5134 = vstv %s5133
          %v5135 = vmul.f32 %v2124, %v5134
          %v5136 = vmul.f32 %v2125, %v5134
          %v5137 = vmul.f32 %v2126, %v5134
          %v5138 = vmul.f32 %v2127, %v5134
          %v5139 = vmul.f32 %v2128, %v5134
          %v5140 = vmul.f32 %v2129, %v5134
          %v5141 = vmul.f32 %v2130, %v5134
          %v5142 = vmul.f32 %v2131, %v5134
          %v5143 = vmul.f32 %v2132, %v5134
          %v5144 = vmul.f32 %v2133, %v5134
          %v5145 = vmul.f32 %v2134, %v5134
          %v5146 = vmul.f32 %v2135, %v5134
          %v5147 = vmul.f32 %v2136, %v5134
          %v5148 = vmul.f32 %v2137, %v5134
          %v5149 = vmul.f32 %v2138, %v5134
          %v5150 = vmul.f32 %v2139, %v5134
          %5167 = vrot.lane.b32.xlu0 %v2057, 32
          %v5168 = vpop.permute.xlu0 %5167
          %5169 = vrot.lane.b32.xlu0 %v2059, 32
          %v5170 = vpop.permute.xlu0 %5169
          %5171 = vrot.lane.b32.xlu0 %v2061, 32
          %v5172 = vpop.permute.xlu0 %5171
          %5173 = vrot.lane.b32.xlu0 %v2063, 32
          %v5174 = vpop.permute.xlu0 %5173
          %5175 = vrot.lane.b32.xlu0 %v2065, 32
          %v5176 = vpop.permute.xlu0 %5175
          %5177 = vrot.lane.b32.xlu0 %v2067, 32
          %v5178 = vpop.permute.xlu0 %5177
          %5179 = vrot.lane.b32.xlu0 %v2069, 32
          %v5180 = vpop.permute.xlu0 %5179
          %5181 = vrot.lane.b32.xlu0 %v2071, 32
          %v5182 = vpop.permute.xlu0 %5181
          %5183 = vrot.lane.b32.xlu0 %v2073, 32
          %v5184 = vpop.permute.xlu0 %5183
          %5185 = vrot.lane.b32.xlu0 %v2075, 32
          %v5186 = vpop.permute.xlu0 %5185
          %5187 = vrot.lane.b32.xlu0 %v2077, 32
          %v5188 = vpop.permute.xlu0 %5187
          %5189 = vrot.lane.b32.xlu0 %v2079, 32
          %v5190 = vpop.permute.xlu0 %5189
          %5191 = vrot.lane.b32.xlu0 %v2081, 32
          %v5192 = vpop.permute.xlu0 %5191
          %5193 = vrot.lane.b32.xlu0 %v2083, 32
          %v5194 = vpop.permute.xlu0 %5193
          %5195 = vrot.lane.b32.xlu0 %v2085, 32
          %v5196 = vpop.permute.xlu0 %5195
          %5197 = vrot.lane.b32.xlu0 %v2087, 32
          %v5198 = vpop.permute.xlu0 %5197
          %5215 = vrot.lane.b32.xlu0 %v5097, 32
          %v5216 = vpop.permute.xlu0 %5215
          %5217 = vrot.lane.b32.xlu0 %v5098, 32
          %v5218 = vpop.permute.xlu0 %5217
          %5219 = vrot.lane.b32.xlu0 %v5099, 32
          %v5220 = vpop.permute.xlu0 %5219
          %5221 = vrot.lane.b32.xlu0 %v5100, 32
          %v5222 = vpop.permute.xlu0 %5221
          %5223 = vrot.lane.b32.xlu0 %v5101, 32
          %v5224 = vpop.permute.xlu0 %5223
          %5225 = vrot.lane.b32.xlu0 %v5102, 32
          %v5226 = vpop.permute.xlu0 %5225
          %5227 = vrot.lane.b32.xlu0 %v5103, 32
          %v5228 = vpop.permute.xlu0 %5227
          %5229 = vrot.lane.b32.xlu0 %v5104, 32
          %v5230 = vpop.permute.xlu0 %5229
          %5231 = vrot.lane.b32.xlu0 %v5105, 32
          %v5232 = vpop.permute.xlu0 %5231
          %5233 = vrot.lane.b32.xlu0 %v5106, 32
          %v5234 = vpop.permute.xlu0 %5233
          %5235 = vrot.lane.b32.xlu0 %v5107, 32
          %v5236 = vpop.permute.xlu0 %5235
          %5237 = vrot.lane.b32.xlu0 %v5108, 32
          %v5238 = vpop.permute.xlu0 %5237
          %5239 = vrot.lane.b32.xlu0 %v5109, 32
          %v5240 = vpop.permute.xlu0 %5239
          %5241 = vrot.lane.b32.xlu0 %v5110, 32
          %v5242 = vpop.permute.xlu0 %5241
          %5243 = vrot.lane.b32.xlu0 %v5111, 32
          %v5244 = vpop.permute.xlu0 %5243
          %5245 = vrot.lane.b32.xlu0 %v5112, 32
          %v5246 = vpop.permute.xlu0 %5245
          %v5247 = vsel %vm2962, %v5168, 0
          %v5249 = vsel %vm2962, %v5170, 0
          %v5251 = vsel %vm2962, %v5172, 0
          %v5253 = vsel %vm2962, %v5174, 0
          %v5255 = vsel %vm2962, %v5176, 0
          %v5257 = vsel %vm2962, %v5178, 0
          %v5259 = vsel %vm2962, %v5180, 0
          %v5261 = vsel %vm2962, %v5182, 0
          %v5263 = vsel %vm2962, %v5184, 0
          %v5265 = vsel %vm2962, %v5186, 0
          %v5267 = vsel %vm2962, %v5188, 0
          %v5269 = vsel %vm2962, %v5190, 0
          %v5271 = vsel %vm2962, %v5192, 0
          %v5273 = vsel %vm2962, %v5194, 0
          %v5275 = vsel %vm2962, %v5196, 0
          %v5277 = vsel %vm2962, %v5198, 0
          %v5279 = vsel %vm2962, %v5216, 0
          %v5281 = vsel %vm2962, %v5218, 0
          %v5283 = vsel %vm2962, %v5220, 0
          %v5285 = vsel %vm2962, %v5222, 0
          %v5287 = vsel %vm2962, %v5224, 0
          %v5289 = vsel %vm2962, %v5226, 0
          %v5291 = vsel %vm2962, %v5228, 0
          %v5293 = vsel %vm2962, %v5230, 0
          %v5295 = vsel %vm2962, %v5232, 0
          %v5297 = vsel %vm2962, %v5234, 0
          %v5299 = vsel %vm2962, %v5236, 0
          %v5301 = vsel %vm2962, %v5238, 0
          %v5303 = vsel %vm2962, %v5240, 0
          %v5305 = vsel %vm2962, %v5242, 0
          %v5307 = vsel %vm2962, %v5244, 0
          %v5309 = vsel %vm2962, %v5246, 0
          %5311 = vmatpush.xpose.msra.mxu0 %v5309
          %5312 = vmatpush.xpose.msra.mxu0 %v5307
          %5313 = vmatpush.xpose.msra.mxu0 %v5305
          %5314 = vmatpush.xpose.msra.mxu0 %v5303
          %5315 = vmatpush.xpose.msra.mxu0 %v5301
          %5316 = vmatpush.xpose.msra.mxu0 %v5299
          %5317 = vmatpush.xpose.msra.mxu0 %v5297
          %5318 = vmatpush.xpose.msra.mxu0 %v5295
          %5319 = vmatpush.xpose.msra.mxu0 %v5293
          %5320 = vmatpush.xpose.msra.mxu0 %v5291
          %5321 = vmatpush.xpose.msra.mxu0 %v5289
          %5322 = vmatpush.xpose.msra.mxu0 %v5287
          %5323 = vmatpush.xpose.msra.mxu0 %v5285
          %5324 = vmatpush.xpose.msra.mxu0 %v5283
          %5325 = vmatpush.xpose.msra.mxu0 %v5281
          %5326 = vmatpush.xpose.msra.mxu0 %v5279
          %5327 = vmatmul.f32.gmra.mxu0 %v5247
          %v5328 = vpop.f32.mrf.mxu0
          %v5329 = vadd.f32 %v5135, %v5328
          %5330 = vmatmul.f32.gmra.mxu0 %v5249
          %v5331 = vpop.f32.mrf.mxu0
          %v5332 = vadd.f32 %v5136, %v5331
          %5333 = vmatmul.f32.gmra.mxu0 %v5251
          %v5334 = vpop.f32.mrf.mxu0
          %v5335 = vadd.f32 %v5137, %v5334
          %5336 = vmatmul.f32.gmra.mxu0 %v5253
          %v5337 = vpop.f32.mrf.mxu0
          %v5338 = vadd.f32 %v5138, %v5337
          %5339 = vmatmul.f32.gmra.mxu0 %v5255
          %v5340 = vpop.f32.mrf.mxu0
          %v5341 = vadd.f32 %v5139, %v5340
          %5342 = vmatmul.f32.gmra.mxu0 %v5257
          %v5343 = vpop.f32.mrf.mxu0
          %v5344 = vadd.f32 %v5140, %v5343
          %5345 = vmatmul.f32.gmra.mxu0 %v5259
          %v5346 = vpop.f32.mrf.mxu0
          %v5347 = vadd.f32 %v5141, %v5346
          %5348 = vmatmul.f32.gmra.mxu0 %v5261
          %v5349 = vpop.f32.mrf.mxu0
          %v5350 = vadd.f32 %v5142, %v5349
          %5351 = vmatmul.f32.gmra.mxu0 %v5263
          %v5352 = vpop.f32.mrf.mxu0
          %v5353 = vadd.f32 %v5143, %v5352
          %5354 = vmatmul.f32.gmra.mxu0 %v5265
          %v5355 = vpop.f32.mrf.mxu0
          %v5356 = vadd.f32 %v5144, %v5355
          %5357 = vmatmul.f32.gmra.mxu0 %v5267
          %v5358 = vpop.f32.mrf.mxu0
          %v5359 = vadd.f32 %v5145, %v5358
          %5360 = vmatmul.f32.gmra.mxu0 %v5269
          %v5361 = vpop.f32.mrf.mxu0
          %v5362 = vadd.f32 %v5146, %v5361
          %5363 = vmatmul.f32.gmra.mxu0 %v5271
          %v5364 = vpop.f32.mrf.mxu0
          %v5365 = vadd.f32 %v5147, %v5364
          %5366 = vmatmul.f32.gmra.mxu0 %v5273
          %v5367 = vpop.f32.mrf.mxu0
          %v5368 = vadd.f32 %v5148, %v5367
          %5369 = vmatmul.f32.gmra.mxu0 %v5275
          %v5370 = vpop.f32.mrf.mxu0
          %v5371 = vadd.f32 %v5149, %v5370
          %5372 = vmatmul.f32.gmra.mxu0 %v5277
          %v5373 = vpop.f32.mrf.mxu0
          %v5374 = vadd.f32 %v5150, %v5373
          %5375 = vdwg.mxu0
          %5376 = vmax.xlane.f32.xlu0 %v5329
          %v5377 = vpop.xlane.xlu0 %5376
          %5378 = vmax.xlane.f32.xlu0 %v5332
          %v5379 = vpop.xlane.xlu0 %5378
          %5380 = vmax.xlane.f32.xlu0 %v5335
          %v5381 = vpop.xlane.xlu0 %5380
          %5382 = vmax.xlane.f32.xlu0 %v5338
          %v5383 = vpop.xlane.xlu0 %5382
          %5384 = vmax.xlane.f32.xlu0 %v5341
          %v5385 = vpop.xlane.xlu0 %5384
          %5386 = vmax.xlane.f32.xlu0 %v5344
          %v5387 = vpop.xlane.xlu0 %5386
          %5388 = vmax.xlane.f32.xlu0 %v5347
          %v5389 = vpop.xlane.xlu0 %5388
          %5390 = vmax.xlane.f32.xlu0 %v5350
          %v5391 = vpop.xlane.xlu0 %5390
          %5392 = vmax.xlane.f32.xlu0 %v5353
          %v5393 = vpop.xlane.xlu0 %5392
          %5394 = vmax.xlane.f32.xlu0 %v5356
          %v5395 = vpop.xlane.xlu0 %5394
          %5396 = vmax.xlane.f32.xlu0 %v5359
          %v5397 = vpop.xlane.xlu0 %5396
          %5398 = vmax.xlane.f32.xlu0 %v5362
          %v5399 = vpop.xlane.xlu0 %5398
          %5400 = vmax.xlane.f32.xlu0 %v5365
          %v5401 = vpop.xlane.xlu0 %5400
          %5402 = vmax.xlane.f32.xlu0 %v5368
          %v5403 = vpop.xlane.xlu0 %5402
          %5404 = vmax.xlane.f32.xlu0 %v5371
          %v5405 = vpop.xlane.xlu0 %5404
          %5406 = vmax.xlane.f32.xlu0 %v5374
          %v5407 = vpop.xlane.xlu0 %5406
          %v5408 = vmax.f32 %v5043, %v5377
          %v5409 = vmax.f32 %v5044, %v5379
          %v5410 = vmax.f32 %v5045, %v5381
          %v5411 = vmax.f32 %v5046, %v5383
          %v5412 = vmax.f32 %v5047, %v5385
          %v5413 = vmax.f32 %v5048, %v5387
          %v5414 = vmax.f32 %v5049, %v5389
          %v5415 = vmax.f32 %v5050, %v5391
          %v5416 = vmax.f32 %v5051, %v5393
          %v5417 = vmax.f32 %v5052, %v5395
          %v5418 = vmax.f32 %v5053, %v5397
          %v5419 = vmax.f32 %v5054, %v5399
          %v5420 = vmax.f32 %v5055, %v5401
          %v5421 = vmax.f32 %v5056, %v5403
          %v5422 = vmax.f32 %v5057, %v5405
          %v5423 = vmax.f32 %v5058, %v5407
          %v5424 = vsub.f32 %v5043, %v5408
          %v5425 = vsub.f32 %v5044, %v5409
          %v5426 = vsub.f32 %v5045, %v5410
          %v5427 = vsub.f32 %v5046, %v5411
          %v5428 = vsub.f32 %v5047, %v5412
          %v5429 = vsub.f32 %v5048, %v5413
          %v5430 = vsub.f32 %v5049, %v5414
          %v5431 = vsub.f32 %v5050, %v5415
          %v5432 = vsub.f32 %v5051, %v5416
          %v5433 = vsub.f32 %v5052, %v5417
          %v5434 = vsub.f32 %v5053, %v5418
          %v5435 = vsub.f32 %v5054, %v5419
          %v5436 = vsub.f32 %v5055, %v5420
          %v5437 = vsub.f32 %v5056, %v5421
          %v5438 = vsub.f32 %v5057, %v5422
          %v5439 = vsub.f32 %v5058, %v5423
          %v5440 = vmul.f32 %v5424, 1.442695
          %v5441 = vpow.pop %v5440
          %v5442 = vmul.f32 %v5425, 1.442695
          %v5443 = vpow.pop %v5442
          %v5444 = vmul.f32 %v5426, 1.442695
          %v5445 = vpow.pop %v5444
          %v5446 = vmul.f32 %v5427, 1.442695
          %v5447 = vpow.pop %v5446
          %v5448 = vmul.f32 %v5428, 1.442695
          %v5449 = vpow.pop %v5448
          %v5450 = vmul.f32 %v5429, 1.442695
          %v5451 = vpow.pop %v5450
          %v5452 = vmul.f32 %v5430, 1.442695
          %v5453 = vpow.pop %v5452
          %v5454 = vmul.f32 %v5431, 1.442695
          %v5455 = vpow.pop %v5454
          %v5456 = vmul.f32 %v5432, 1.442695
          %v5457 = vpow.pop %v5456
          %v5458 = vmul.f32 %v5433, 1.442695
          %v5459 = vpow.pop %v5458
          %v5460 = vmul.f32 %v5434, 1.442695
          %v5461 = vpow.pop %v5460
          %v5462 = vmul.f32 %v5435, 1.442695
          %v5463 = vpow.pop %v5462
          %v5464 = vmul.f32 %v5436, 1.442695
          %v5465 = vpow.pop %v5464
          %v5466 = vmul.f32 %v5437, 1.442695
          %v5467 = vpow.pop %v5466
          %v5468 = vmul.f32 %v5438, 1.442695
          %v5469 = vpow.pop %v5468
          %v5470 = vmul.f32 %v5439, 1.442695
          %v5471 = vpow.pop %v5470
          %v5472 = vsub.f32 %v5329, %v5408
          %v5473 = vsub.f32 %v5332, %v5409
          %v5474 = vsub.f32 %v5335, %v5410
          %v5475 = vsub.f32 %v5338, %v5411
          %v5476 = vsub.f32 %v5341, %v5412
          %v5477 = vsub.f32 %v5344, %v5413
          %v5478 = vsub.f32 %v5347, %v5414
          %v5479 = vsub.f32 %v5350, %v5415
          %v5480 = vsub.f32 %v5353, %v5416
          %v5481 = vsub.f32 %v5356, %v5417
          %v5482 = vsub.f32 %v5359, %v5418
          %v5483 = vsub.f32 %v5362, %v5419
          %v5484 = vsub.f32 %v5365, %v5420
          %v5485 = vsub.f32 %v5368, %v5421
          %v5486 = vsub.f32 %v5371, %v5422
          %v5487 = vsub.f32 %v5374, %v5423
          %v5488 = vmul.f32 %v5472, 1.442695
          %v5489 = vpow.pop %v5488
          %v5490 = vmul.f32 %v5473, 1.442695
          %v5491 = vpow.pop %v5490
          %v5492 = vmul.f32 %v5474, 1.442695
          %v5493 = vpow.pop %v5492
          %v5494 = vmul.f32 %v5475, 1.442695
          %v5495 = vpow.pop %v5494
          %v5496 = vmul.f32 %v5476, 1.442695
          %v5497 = vpow.pop %v5496
          %v5498 = vmul.f32 %v5477, 1.442695
          %v5499 = vpow.pop %v5498
          %v5500 = vmul.f32 %v5478, 1.442695
          %v5501 = vpow.pop %v5500
          %v5502 = vmul.f32 %v5479, 1.442695
          %v5503 = vpow.pop %v5502
          %v5504 = vmul.f32 %v5480, 1.442695
          %v5505 = vpow.pop %v5504
          %v5506 = vmul.f32 %v5481, 1.442695
          %v5507 = vpow.pop %v5506
          %v5508 = vmul.f32 %v5482, 1.442695
          %v5509 = vpow.pop %v5508
          %v5510 = vmul.f32 %v5483, 1.442695
          %v5511 = vpow.pop %v5510
          %v5512 = vmul.f32 %v5484, 1.442695
          %v5513 = vpow.pop %v5512
          %v5514 = vmul.f32 %v5485, 1.442695
          %v5515 = vpow.pop %v5514
          %v5516 = vmul.f32 %v5486, 1.442695
          %v5517 = vpow.pop %v5516
          %v5518 = vmul.f32 %v5487, 1.442695
          %v5519 = vpow.pop %v5518
          %v5520 = vmul.f32 %v5441, %v5059
          %v5521 = vmul.f32 %v5443, %v5060
          %v5522 = vmul.f32 %v5445, %v5061
          %v5523 = vmul.f32 %v5447, %v5062
          %v5524 = vmul.f32 %v5449, %v5063
          %v5525 = vmul.f32 %v5451, %v5064
          %v5526 = vmul.f32 %v5453, %v5065
          %v5527 = vmul.f32 %v5455, %v5066
          %v5528 = vmul.f32 %v5457, %v5067
          %v5529 = vmul.f32 %v5459, %v5068
          %v5530 = vmul.f32 %v5461, %v5069
          %v5531 = vmul.f32 %v5463, %v5070
          %v5532 = vmul.f32 %v5465, %v5071
          %v5533 = vmul.f32 %v5467, %v5072
          %v5534 = vmul.f32 %v5469, %v5073
          %v5535 = vmul.f32 %v5471, %v5074
          %5536 = vadd.xlane.f32.xlu0 %v5489
          %v5537 = vpop.xlane.xlu0 %5536
          %5538 = vadd.xlane.f32.xlu0 %v5491
          %v5539 = vpop.xlane.xlu0 %5538
          %5540 = vadd.xlane.f32.xlu0 %v5493
          %v5541 = vpop.xlane.xlu0 %5540
          %5542 = vadd.xlane.f32.xlu0 %v5495
          %v5543 = vpop.xlane.xlu0 %5542
          %5544 = vadd.xlane.f32.xlu0 %v5497
          %v5545 = vpop.xlane.xlu0 %5544
          %5546 = vadd.xlane.f32.xlu0 %v5499
          %v5547 = vpop.xlane.xlu0 %5546
          %5548 = vadd.xlane.f32.xlu0 %v5501
          %v5549 = vpop.xlane.xlu0 %5548
          %5550 = vadd.xlane.f32.xlu0 %v5503
          %v5551 = vpop.xlane.xlu0 %5550
          %5552 = vadd.xlane.f32.xlu0 %v5505
          %v5553 = vpop.xlane.xlu0 %5552
          %5554 = vadd.xlane.f32.xlu0 %v5507
          %v5555 = vpop.xlane.xlu0 %5554
          %5556 = vadd.xlane.f32.xlu0 %v5509
          %v5557 = vpop.xlane.xlu0 %5556
          %5558 = vadd.xlane.f32.xlu0 %v5511
          %v5559 = vpop.xlane.xlu0 %5558
          %5560 = vadd.xlane.f32.xlu0 %v5513
          %v5561 = vpop.xlane.xlu0 %5560
          %5562 = vadd.xlane.f32.xlu0 %v5515
          %v5563 = vpop.xlane.xlu0 %5562
          %5564 = vadd.xlane.f32.xlu0 %v5517
          %v5565 = vpop.xlane.xlu0 %5564
          %5566 = vadd.xlane.f32.xlu0 %v5519
          %v5567 = vpop.xlane.xlu0 %5566
          %v5568 = vadd.f32 %v5520, %v5537
          %v5569 = vadd.f32 %v5521, %v5539
          %v5570 = vadd.f32 %v5522, %v5541
          %v5571 = vadd.f32 %v5523, %v5543
          %v5572 = vadd.f32 %v5524, %v5545
          %v5573 = vadd.f32 %v5525, %v5547
          %v5574 = vadd.f32 %v5526, %v5549
          %v5575 = vadd.f32 %v5527, %v5551
          %v5576 = vadd.f32 %v5528, %v5553
          %v5577 = vadd.f32 %v5529, %v5555
          %v5578 = vadd.f32 %v5530, %v5557
          %v5579 = vadd.f32 %v5531, %v5559
          %v5580 = vadd.f32 %v5532, %v5561
          %v5581 = vadd.f32 %v5533, %v5563
          %v5582 = vadd.f32 %v5534, %v5565
          %v5583 = vadd.f32 %v5535, %v5567
          %v5584 = vmul.f32 %v5441, %v5075
          %v5585 = vmul.f32 %v5443, %v5076
          %v5586 = vmul.f32 %v5445, %v5077
          %v5587 = vmul.f32 %v5447, %v5078
          %v5588 = vmul.f32 %v5449, %v5079
          %v5589 = vmul.f32 %v5451, %v5080
          %v5590 = vmul.f32 %v5453, %v5081
          %v5591 = vmul.f32 %v5455, %v5082
          %v5592 = vmul.f32 %v5457, %v5083
          %v5593 = vmul.f32 %v5459, %v5084
          %v5594 = vmul.f32 %v5461, %v5085
          %v5595 = vmul.f32 %v5463, %v5086
          %v5596 = vmul.f32 %v5465, %v5087
          %v5597 = vmul.f32 %v5467, %v5088
          %v5598 = vmul.f32 %v5469, %v5089
          %v5599 = vmul.f32 %v5471, %v5090
          %5616 = vrot.lane.b32.xlu0 %v5115, 32
          %v5617 = vpop.permute.xlu0 %5616
          %5618 = vrot.lane.b32.xlu0 %v5116, 32
          %v5619 = vpop.permute.xlu0 %5618
          %5620 = vrot.lane.b32.xlu0 %v5117, 32
          %v5621 = vpop.permute.xlu0 %5620
          %5622 = vrot.lane.b32.xlu0 %v5118, 32
          %v5623 = vpop.permute.xlu0 %5622
          %5624 = vrot.lane.b32.xlu0 %v5119, 32
          %v5625 = vpop.permute.xlu0 %5624
          %5626 = vrot.lane.b32.xlu0 %v5120, 32
          %v5627 = vpop.permute.xlu0 %5626
          %5628 = vrot.lane.b32.xlu0 %v5121, 32
          %v5629 = vpop.permute.xlu0 %5628
          %5630 = vrot.lane.b32.xlu0 %v5122, 32
          %v5631 = vpop.permute.xlu0 %5630
          %5632 = vrot.lane.b32.xlu0 %v5123, 32
          %v5633 = vpop.permute.xlu0 %5632
          %5634 = vrot.lane.b32.xlu0 %v5124, 32
          %v5635 = vpop.permute.xlu0 %5634
          %5636 = vrot.lane.b32.xlu0 %v5125, 32
          %v5637 = vpop.permute.xlu0 %5636
          %5638 = vrot.lane.b32.xlu0 %v5126, 32
          %v5639 = vpop.permute.xlu0 %5638
          %5640 = vrot.lane.b32.xlu0 %v5127, 32
          %v5641 = vpop.permute.xlu0 %5640
          %5642 = vrot.lane.b32.xlu0 %v5128, 32
          %v5643 = vpop.permute.xlu0 %5642
          %5644 = vrot.lane.b32.xlu0 %v5129, 32
          %v5645 = vpop.permute.xlu0 %5644
          %5646 = vrot.lane.b32.xlu0 %v5130, 32
          %v5647 = vpop.permute.xlu0 %5646
          %5664 = vmatpush.msra.mxu0 %v5647
          %5665 = vmatpush.msra.mxu0 %v5645
          %5666 = vmatpush.msra.mxu0 %v5643
          %5667 = vmatpush.msra.mxu0 %v5641
          %5668 = vmatpush.msra.mxu0 %v5639
          %5669 = vmatpush.msra.mxu0 %v5637
          %5670 = vmatpush.msra.mxu0 %v5635
          %5671 = vmatpush.msra.mxu0 %v5633
          %5672 = vmatpush.msra.mxu0 %v5631
          %5673 = vmatpush.msra.mxu0 %v5629
          %5674 = vmatpush.msra.mxu0 %v5627
          %5675 = vmatpush.msra.mxu0 %v5625
          %5676 = vmatpush.msra.mxu0 %v5623
          %5677 = vmatpush.msra.mxu0 %v5621
          %5678 = vmatpush.msra.mxu0 %v5619
          %5679 = vmatpush.msra.mxu0 %v5617
          %5680 = vmatmul.f32.gmra.mxu0 %v5489
          %v5681 = vpop.f32.mrf.mxu0
          %v5682 = vadd.f32 0.0, %v5681
          %5683 = vmatmul.f32.gmra.mxu0 %v5491
          %v5684 = vpop.f32.mrf.mxu0
          %v5685 = vadd.f32 0.0, %v5684
          %5686 = vmatmul.f32.gmra.mxu0 %v5493
          %v5687 = vpop.f32.mrf.mxu0
          %v5688 = vadd.f32 0.0, %v5687
          %5689 = vmatmul.f32.gmra.mxu0 %v5495
          %v5690 = vpop.f32.mrf.mxu0
          %v5691 = vadd.f32 0.0, %v5690
          %5692 = vmatmul.f32.gmra.mxu0 %v5497
          %v5693 = vpop.f32.mrf.mxu0
          %v5694 = vadd.f32 0.0, %v5693
          %5695 = vmatmul.f32.gmra.mxu0 %v5499
          %v5696 = vpop.f32.mrf.mxu0
          %v5697 = vadd.f32 0.0, %v5696
          %5698 = vmatmul.f32.gmra.mxu0 %v5501
          %v5699 = vpop.f32.mrf.mxu0
          %v5700 = vadd.f32 0.0, %v5699
          %5701 = vmatmul.f32.gmra.mxu0 %v5503
          %v5702 = vpop.f32.mrf.mxu0
          %v5703 = vadd.f32 0.0, %v5702
          %5704 = vmatmul.f32.gmra.mxu0 %v5505
          %v5705 = vpop.f32.mrf.mxu0
          %v5706 = vadd.f32 0.0, %v5705
          %5707 = vmatmul.f32.gmra.mxu0 %v5507
          %v5708 = vpop.f32.mrf.mxu0
          %v5709 = vadd.f32 0.0, %v5708
          %5710 = vmatmul.f32.gmra.mxu0 %v5509
          %v5711 = vpop.f32.mrf.mxu0
          %v5712 = vadd.f32 0.0, %v5711
          %5713 = vmatmul.f32.gmra.mxu0 %v5511
          %v5714 = vpop.f32.mrf.mxu0
          %v5715 = vadd.f32 0.0, %v5714
          %5716 = vmatmul.f32.gmra.mxu0 %v5513
          %v5717 = vpop.f32.mrf.mxu0
          %v5718 = vadd.f32 0.0, %v5717
          %5719 = vmatmul.f32.gmra.mxu0 %v5515
          %v5720 = vpop.f32.mrf.mxu0
          %v5721 = vadd.f32 0.0, %v5720
          %5722 = vmatmul.f32.gmra.mxu0 %v5517
          %v5723 = vpop.f32.mrf.mxu0
          %v5724 = vadd.f32 0.0, %v5723
          %5725 = vmatmul.f32.gmra.mxu0 %v5519
          %v5726 = vpop.f32.mrf.mxu0
          %v5727 = vadd.f32 0.0, %v5726
          %5728 = vdwg.mxu0
          %v5729 = vadd.f32 %v5584, %v5682
          %v5730 = vadd.f32 %v5585, %v5685
          %v5731 = vadd.f32 %v5586, %v5688
          %v5732 = vadd.f32 %v5587, %v5691
          %v5733 = vadd.f32 %v5588, %v5694
          %v5734 = vadd.f32 %v5589, %v5697
          %v5735 = vadd.f32 %v5590, %v5700
          %v5736 = vadd.f32 %v5591, %v5703
          %v5737 = vadd.f32 %v5592, %v5706
          %v5738 = vadd.f32 %v5593, %v5709
          %v5739 = vadd.f32 %v5594, %v5712
          %v5740 = vadd.f32 %v5595, %v5715
          %v5741 = vadd.f32 %v5596, %v5718
          %v5742 = vadd.f32 %v5597, %v5721
          %v5743 = vadd.f32 %v5598, %v5724
          %v5744 = vadd.f32 %v5599, %v5727
        $region110: #{tpu_custom_call.1} parent=55 // loop_footer
          %s5040 = sadd.s32 %s5038, 1
        $region111: #{tpu_custom_call.1} parent=55 // loop_footer_branch
          %5037 = sbr.rel target = $region107
        $region112: #{tpu_custom_call.1} parent=55 // loop_exit
          _
        %v5745 = vrcp.pop %v5059
        %v5746 = vmul.f32 %v5059, %v5745
        %v5747 = vsub.f32 1.0, %v5746
        %v5748 = vmul.f32 %v5745, %v5747
        %v5749 = vadd.f32 %v5745, %v5748
        %vm5750 = vweird.f32 %v5059
        %vm5751 = vweird.f32 %v5745
        %vm5752 = vmor %vm5750, %vm5751
        %v5753 = vsel %vm5752, %v5745, %v5749
        %v5754 = vand.u32 2147483647, %v5059
        %vm5755 = vcmp.eq.f32.partialorder %v5754, 8.507059e+37
        %v5756 = vand.u32 %v5059, 2147483648
        %v5757 = vor.u32 1.1754944e-38, %v5756
        %v5758 = vsel %vm5755, %v5757, %v5753
        %v5759 = vrcp.pop %v5060
        %v5760 = vmul.f32 %v5060, %v5759
        %v5761 = vsub.f32 1.0, %v5760
        %v5762 = vmul.f32 %v5759, %v5761
        %v5763 = vadd.f32 %v5759, %v5762
        %vm5764 = vweird.f32 %v5060
        %vm5765 = vweird.f32 %v5759
        %vm5766 = vmor %vm5764, %vm5765
        %v5767 = vsel %vm5766, %v5759, %v5763
        %v5768 = vand.u32 2147483647, %v5060
        %vm5769 = vcmp.eq.f32.partialorder %v5768, 8.507059e+37
        %v5770 = vand.u32 %v5060, 2147483648
        %v5771 = vor.u32 1.1754944e-38, %v5770
        %v5772 = vsel %vm5769, %v5771, %v5767
        %v5773 = vrcp.pop %v5061
        %v5774 = vmul.f32 %v5061, %v5773
        %v5775 = vsub.f32 1.0, %v5774
        %v5776 = vmul.f32 %v5773, %v5775
        %v5777 = vadd.f32 %v5773, %v5776
        %vm5778 = vweird.f32 %v5061
        %vm5779 = vweird.f32 %v5773
        %vm5780 = vmor %vm5778, %vm5779
        %v5781 = vsel %vm5780, %v5773, %v5777
        %v5782 = vand.u32 2147483647, %v5061
        %vm5783 = vcmp.eq.f32.partialorder %v5782, 8.507059e+37
        %v5784 = vand.u32 %v5061, 2147483648
        %v5785 = vor.u32 1.1754944e-38, %v5784
        %v5786 = vsel %vm5783, %v5785, %v5781
        %v5787 = vrcp.pop %v5062
        %v5788 = vmul.f32 %v5062, %v5787
        %v5789 = vsub.f32 1.0, %v5788
        %v5790 = vmul.f32 %v5787, %v5789
        %v5791 = vadd.f32 %v5787, %v5790
        %vm5792 = vweird.f32 %v5062
        %vm5793 = vweird.f32 %v5787
        %vm5794 = vmor %vm5792, %vm5793
        %v5795 = vsel %vm5794, %v5787, %v5791
        %v5796 = vand.u32 2147483647, %v5062
        %vm5797 = vcmp.eq.f32.partialorder %v5796, 8.507059e+37
        %v5798 = vand.u32 %v5062, 2147483648
        %v5799 = vor.u32 1.1754944e-38, %v5798
        %v5800 = vsel %vm5797, %v5799, %v5795
        %v5801 = vrcp.pop %v5063
        %v5802 = vmul.f32 %v5063, %v5801
        %v5803 = vsub.f32 1.0, %v5802
        %v5804 = vmul.f32 %v5801, %v5803
        %v5805 = vadd.f32 %v5801, %v5804
        %vm5806 = vweird.f32 %v5063
        %vm5807 = vweird.f32 %v5801
        %vm5808 = vmor %vm5806, %vm5807
        %v5809 = vsel %vm5808, %v5801, %v5805
        %v5810 = vand.u32 2147483647, %v5063
        %vm5811 = vcmp.eq.f32.partialorder %v5810, 8.507059e+37
        %v5812 = vand.u32 %v5063, 2147483648
        %v5813 = vor.u32 1.1754944e-38, %v5812
        %v5814 = vsel %vm5811, %v5813, %v5809
        %v5815 = vrcp.pop %v5064
        %v5816 = vmul.f32 %v5064, %v5815
        %v5817 = vsub.f32 1.0, %v5816
        %v5818 = vmul.f32 %v5815, %v5817
        %v5819 = vadd.f32 %v5815, %v5818
        %vm5820 = vweird.f32 %v5064
        %vm5821 = vweird.f32 %v5815
        %vm5822 = vmor %vm5820, %vm5821
        %v5823 = vsel %vm5822, %v5815, %v5819
        %v5824 = vand.u32 2147483647, %v5064
        %vm5825 = vcmp.eq.f32.partialorder %v5824, 8.507059e+37
        %v5826 = vand.u32 %v5064, 2147483648
        %v5827 = vor.u32 1.1754944e-38, %v5826
        %v5828 = vsel %vm5825, %v5827, %v5823
        %v5829 = vrcp.pop %v5065
        %v5830 = vmul.f32 %v5065, %v5829
        %v5831 = vsub.f32 1.0, %v5830
        %v5832 = vmul.f32 %v5829, %v5831
        %v5833 = vadd.f32 %v5829, %v5832
        %vm5834 = vweird.f32 %v5065
        %vm5835 = vweird.f32 %v5829
        %vm5836 = vmor %vm5834, %vm5835
        %v5837 = vsel %vm5836, %v5829, %v5833
        %v5838 = vand.u32 2147483647, %v5065
        %vm5839 = vcmp.eq.f32.partialorder %v5838, 8.507059e+37
        %v5840 = vand.u32 %v5065, 2147483648
        %v5841 = vor.u32 1.1754944e-38, %v5840
        %v5842 = vsel %vm5839, %v5841, %v5837
        %v5843 = vrcp.pop %v5066
        %v5844 = vmul.f32 %v5066, %v5843
        %v5845 = vsub.f32 1.0, %v5844
        %v5846 = vmul.f32 %v5843, %v5845
        %v5847 = vadd.f32 %v5843, %v5846
        %vm5848 = vweird.f32 %v5066
        %vm5849 = vweird.f32 %v5843
        %vm5850 = vmor %vm5848, %vm5849
        %v5851 = vsel %vm5850, %v5843, %v5847
        %v5852 = vand.u32 2147483647, %v5066
        %vm5853 = vcmp.eq.f32.partialorder %v5852, 8.507059e+37
        %v5854 = vand.u32 %v5066, 2147483648
        %v5855 = vor.u32 1.1754944e-38, %v5854
        %v5856 = vsel %vm5853, %v5855, %v5851
        %v5857 = vrcp.pop %v5067
        %v5858 = vmul.f32 %v5067, %v5857
        %v5859 = vsub.f32 1.0, %v5858
        %v5860 = vmul.f32 %v5857, %v5859
        %v5861 = vadd.f32 %v5857, %v5860
        %vm5862 = vweird.f32 %v5067
        %vm5863 = vweird.f32 %v5857
        %vm5864 = vmor %vm5862, %vm5863
        %v5865 = vsel %vm5864, %v5857, %v5861
        %v5866 = vand.u32 2147483647, %v5067
        %vm5867 = vcmp.eq.f32.partialorder %v5866, 8.507059e+37
        %v5868 = vand.u32 %v5067, 2147483648
        %v5869 = vor.u32 1.1754944e-38, %v5868
        %v5870 = vsel %vm5867, %v5869, %v5865
        %v5871 = vrcp.pop %v5068
        %v5872 = vmul.f32 %v5068, %v5871
        %v5873 = vsub.f32 1.0, %v5872
        %v5874 = vmul.f32 %v5871, %v5873
        %v5875 = vadd.f32 %v5871, %v5874
        %vm5876 = vweird.f32 %v5068
        %vm5877 = vweird.f32 %v5871
        %vm5878 = vmor %vm5876, %vm5877
        %v5879 = vsel %vm5878, %v5871, %v5875
        %v5880 = vand.u32 2147483647, %v5068
        %vm5881 = vcmp.eq.f32.partialorder %v5880, 8.507059e+37
        %v5882 = vand.u32 %v5068, 2147483648
        %v5883 = vor.u32 1.1754944e-38, %v5882
        %v5884 = vsel %vm5881, %v5883, %v5879
        %v5885 = vrcp.pop %v5069
        %v5886 = vmul.f32 %v5069, %v5885
        %v5887 = vsub.f32 1.0, %v5886
        %v5888 = vmul.f32 %v5885, %v5887
        %v5889 = vadd.f32 %v5885, %v5888
        %vm5890 = vweird.f32 %v5069
        %vm5891 = vweird.f32 %v5885
        %vm5892 = vmor %vm5890, %vm5891
        %v5893 = vsel %vm5892, %v5885, %v5889
        %v5894 = vand.u32 2147483647, %v5069
        %vm5895 = vcmp.eq.f32.partialorder %v5894, 8.507059e+37
        %v5896 = vand.u32 %v5069, 2147483648
        %v5897 = vor.u32 1.1754944e-38, %v5896
        %v5898 = vsel %vm5895, %v5897, %v5893
        %v5899 = vrcp.pop %v5070
        %v5900 = vmul.f32 %v5070, %v5899
        %v5901 = vsub.f32 1.0, %v5900
        %v5902 = vmul.f32 %v5899, %v5901
        %v5903 = vadd.f32 %v5899, %v5902
        %vm5904 = vweird.f32 %v5070
        %vm5905 = vweird.f32 %v5899
        %vm5906 = vmor %vm5904, %vm5905
        %v5907 = vsel %vm5906, %v5899, %v5903
        %v5908 = vand.u32 2147483647, %v5070
        %vm5909 = vcmp.eq.f32.partialorder %v5908, 8.507059e+37
        %v5910 = vand.u32 %v5070, 2147483648
        %v5911 = vor.u32 1.1754944e-38, %v5910
        %v5912 = vsel %vm5909, %v5911, %v5907
        %v5913 = vrcp.pop %v5071
        %v5914 = vmul.f32 %v5071, %v5913
        %v5915 = vsub.f32 1.0, %v5914
        %v5916 = vmul.f32 %v5913, %v5915
        %v5917 = vadd.f32 %v5913, %v5916
        %vm5918 = vweird.f32 %v5071
        %vm5919 = vweird.f32 %v5913
        %vm5920 = vmor %vm5918, %vm5919
        %v5921 = vsel %vm5920, %v5913, %v5917
        %v5922 = vand.u32 2147483647, %v5071
        %vm5923 = vcmp.eq.f32.partialorder %v5922, 8.507059e+37
        %v5924 = vand.u32 %v5071, 2147483648
        %v5925 = vor.u32 1.1754944e-38, %v5924
        %v5926 = vsel %vm5923, %v5925, %v5921
        %v5927 = vrcp.pop %v5072
        %v5928 = vmul.f32 %v5072, %v5927
        %v5929 = vsub.f32 1.0, %v5928
        %v5930 = vmul.f32 %v5927, %v5929
        %v5931 = vadd.f32 %v5927, %v5930
        %vm5932 = vweird.f32 %v5072
        %vm5933 = vweird.f32 %v5927
        %vm5934 = vmor %vm5932, %vm5933
        %v5935 = vsel %vm5934, %v5927, %v5931
        %v5936 = vand.u32 2147483647, %v5072
        %vm5937 = vcmp.eq.f32.partialorder %v5936, 8.507059e+37
        %v5938 = vand.u32 %v5072, 2147483648
        %v5939 = vor.u32 1.1754944e-38, %v5938
        %v5940 = vsel %vm5937, %v5939, %v5935
        %v5941 = vrcp.pop %v5073
        %v5942 = vmul.f32 %v5073, %v5941
        %v5943 = vsub.f32 1.0, %v5942
        %v5944 = vmul.f32 %v5941, %v5943
        %v5945 = vadd.f32 %v5941, %v5944
        %vm5946 = vweird.f32 %v5073
        %vm5947 = vweird.f32 %v5941
        %vm5948 = vmor %vm5946, %vm5947
        %v5949 = vsel %vm5948, %v5941, %v5945
        %v5950 = vand.u32 2147483647, %v5073
        %vm5951 = vcmp.eq.f32.partialorder %v5950, 8.507059e+37
        %v5952 = vand.u32 %v5073, 2147483648
        %v5953 = vor.u32 1.1754944e-38, %v5952
        %v5954 = vsel %vm5951, %v5953, %v5949
        %v5955 = vrcp.pop %v5074
        %v5956 = vmul.f32 %v5074, %v5955
        %v5957 = vsub.f32 1.0, %v5956
        %v5958 = vmul.f32 %v5955, %v5957
        %v5959 = vadd.f32 %v5955, %v5958
        %vm5960 = vweird.f32 %v5074
        %vm5961 = vweird.f32 %v5955
        %vm5962 = vmor %vm5960, %vm5961
        %v5963 = vsel %vm5962, %v5955, %v5959
        %v5964 = vand.u32 2147483647, %v5074
        %vm5965 = vcmp.eq.f32.partialorder %v5964, 8.507059e+37
        %v5966 = vand.u32 %v5074, 2147483648
        %v5967 = vor.u32 1.1754944e-38, %v5966
        %v5968 = vsel %vm5965, %v5967, %v5963
        %v5969 = vmul.f32 %v5075, %v5758
        %v5970 = vmul.f32 %v5076, %v5772
        %v5971 = vmul.f32 %v5077, %v5786
        %v5972 = vmul.f32 %v5078, %v5800
        %v5973 = vmul.f32 %v5079, %v5814
        %v5974 = vmul.f32 %v5080, %v5828
        %v5975 = vmul.f32 %v5081, %v5842
        %v5976 = vmul.f32 %v5082, %v5856
        %v5977 = vmul.f32 %v5083, %v5870
        %v5978 = vmul.f32 %v5084, %v5884
        %v5979 = vmul.f32 %v5085, %v5898
        %v5980 = vmul.f32 %v5086, %v5912
        %v5981 = vmul.f32 %v5087, %v5926
        %v5982 = vmul.f32 %v5088, %v5940
        %v5983 = vmul.f32 %v5089, %v5954
        %v5984 = vmul.f32 %v5090, %v5968
        %6001 = vrot.lane.b32.xlu0 %v5969, 96
        %v6002 = vpop.permute.xlu0 %6001
        %6003 = vrot.lane.b32.xlu0 %v5970, 96
        %v6004 = vpop.permute.xlu0 %6003
        %6005 = vrot.lane.b32.xlu0 %v5971, 96
        %v6006 = vpop.permute.xlu0 %6005
        %6007 = vrot.lane.b32.xlu0 %v5972, 96
        %v6008 = vpop.permute.xlu0 %6007
        %6009 = vrot.lane.b32.xlu0 %v5973, 96
        %v6010 = vpop.permute.xlu0 %6009
        %6011 = vrot.lane.b32.xlu0 %v5974, 96
        %v6012 = vpop.permute.xlu0 %6011
        %6013 = vrot.lane.b32.xlu0 %v5975, 96
        %v6014 = vpop.permute.xlu0 %6013
        %6015 = vrot.lane.b32.xlu0 %v5976, 96
        %v6016 = vpop.permute.xlu0 %6015
        %6017 = vrot.lane.b32.xlu0 %v5977, 96
        %v6018 = vpop.permute.xlu0 %6017
        %6019 = vrot.lane.b32.xlu0 %v5978, 96
        %v6020 = vpop.permute.xlu0 %6019
        %6021 = vrot.lane.b32.xlu0 %v5979, 96
        %v6022 = vpop.permute.xlu0 %6021
        %6023 = vrot.lane.b32.xlu0 %v5980, 96
        %v6024 = vpop.permute.xlu0 %6023
        %6025 = vrot.lane.b32.xlu0 %v5981, 96
        %v6026 = vpop.permute.xlu0 %6025
        %6027 = vrot.lane.b32.xlu0 %v5982, 96
        %v6028 = vpop.permute.xlu0 %6027
        %6029 = vrot.lane.b32.xlu0 %v5983, 96
        %v6030 = vpop.permute.xlu0 %6029
        %6031 = vrot.lane.b32.xlu0 %v5984, 96
        %v6032 = vpop.permute.xlu0 %6031
        %vm6049 = vcmask 1048320
        %6050 = vst.msk [vmem:[#allocation4] sm:$0xff] %vm6049, %v6002
        %6051 = vst.msk [vmem:[#allocation4 + $0x10] sm:$0xff] %vm6049, %v6004
        %6052 = vst.msk [vmem:[#allocation4 + $0x20] sm:$0xff] %vm6049, %v6006
        %6053 = vst.msk [vmem:[#allocation4 + $0x30] sm:$0xff] %vm6049, %v6008
        %6054 = vst.msk [vmem:[#allocation4 + $0x40] sm:$0xff] %vm6049, %v6010
        %6055 = vst.msk [vmem:[#allocation4 + $0x50] sm:$0xff] %vm6049, %v6012
        %6056 = vst.msk [vmem:[#allocation4 + $0x60] sm:$0xff] %vm6049, %v6014
        %6057 = vst.msk [vmem:[#allocation4 + $0x70] sm:$0xff] %vm6049, %v6016
        %6058 = vst.msk [vmem:[#allocation4 + $0x80] sm:$0xff] %vm6049, %v6018
        %6059 = vst.msk [vmem:[#allocation4 + $0x90] sm:$0xff] %vm6049, %v6020
        %6060 = vst.msk [vmem:[#allocation4 + $0xa0] sm:$0xff] %vm6049, %v6022
        %6061 = vst.msk [vmem:[#allocation4 + $0xb0] sm:$0xff] %vm6049, %v6024
        %6062 = vst.msk [vmem:[#allocation4 + $0xc0] sm:$0xff] %vm6049, %v6026
        %6063 = vst.msk [vmem:[#allocation4 + $0xd0] sm:$0xff] %vm6049, %v6028
        %6064 = vst.msk [vmem:[#allocation4 + $0xe0] sm:$0xff] %vm6049, %v6030
        %6065 = vst.msk [vmem:[#allocation4 + $0xf0] sm:$0xff] %vm6049, %v6032
        // While loop
        $region113: #{tpu_custom_call.1} parent=55 // loop_pre_header
          _
        $region114: #{tpu_custom_call.1} parent=55 // loop_header
          %s6067 = sphi 0, %s6069
          %p6068 = scmp.ge.s32.totalorder %s6067, %s2140
          %v6072 = vphi -inf, %v6373
          %v6073 = vphi -inf, %v6374
          %v6074 = vphi -inf, %v6375
          %v6075 = vphi -inf, %v6376
          %v6076 = vphi -inf, %v6377
          %v6077 = vphi -inf, %v6378
          %v6078 = vphi -inf, %v6379
          %v6079 = vphi -inf, %v6380
          %v6080 = vphi -inf, %v6381
          %v6081 = vphi -inf, %v6382
          %v6082 = vphi -inf, %v6383
          %v6083 = vphi -inf, %v6384
          %v6084 = vphi -inf, %v6385
          %v6085 = vphi -inf, %v6386
          %v6086 = vphi -inf, %v6387
          %v6087 = vphi -inf, %v6388
          %v6088 = vphi 0.0, %v6533
          %v6089 = vphi 0.0, %v6534
          %v6090 = vphi 0.0, %v6535
          %v6091 = vphi 0.0, %v6536
          %v6092 = vphi 0.0, %v6537
          %v6093 = vphi 0.0, %v6538
          %v6094 = vphi 0.0, %v6539
          %v6095 = vphi 0.0, %v6540
          %v6096 = vphi 0.0, %v6541
          %v6097 = vphi 0.0, %v6542
          %v6098 = vphi 0.0, %v6543
          %v6099 = vphi 0.0, %v6544
          %v6100 = vphi 0.0, %v6545
          %v6101 = vphi 0.0, %v6546
          %v6102 = vphi 0.0, %v6547
          %v6103 = vphi 0.0, %v6548
          %v6104 = vphi 0.0, %v6630
          %v6105 = vphi 0.0, %v6631
          %v6106 = vphi 0.0, %v6632
          %v6107 = vphi 0.0, %v6633
          %v6108 = vphi 0.0, %v6634
          %v6109 = vphi 0.0, %v6635
          %v6110 = vphi 0.0, %v6636
          %v6111 = vphi 0.0, %v6637
          %v6112 = vphi 0.0, %v6638
          %v6113 = vphi 0.0, %v6639
          %v6114 = vphi 0.0, %v6640
          %v6115 = vphi 0.0, %v6641
          %v6116 = vphi 0.0, %v6642
          %v6117 = vphi 0.0, %v6643
          %v6118 = vphi 0.0, %v6644
          %v6119 = vphi 0.0, %v6645
        $region115: #{tpu_custom_call.1} parent=55 // loop_header_branch
          %6071 = sbr.rel (%p6068) target = $region119
        $region116: #{tpu_custom_call.1} parent=55 // loop_body
          %s6120 = smul.u32 %s6067, 128
          %s6121 = sshra.s32 %s6120, 3
          %s6122 = sand.u32 %s6120, 7
          %s6123 = smul.u32 %s6121, 2
          %s6124 = smul.addr %s6123, 8
          %s6125 = scalar_lea.vmem [#allocation2], %s6124
          %v6126 = vld [vmem:[%s6125 + $0x8] sm:$0xff]
          %v6127 = vld [vmem:[%s6125 + $0x18] sm:$0xff]
          %v6128 = vld [vmem:[%s6125 + $0x28] sm:$0xff]
          %v6129 = vld [vmem:[%s6125 + $0x38] sm:$0xff]
          %v6130 = vld [vmem:[%s6125 + $0x48] sm:$0xff]
          %v6131 = vld [vmem:[%s6125 + $0x58] sm:$0xff]
          %v6132 = vld [vmem:[%s6125 + $0x68] sm:$0xff]
          %v6133 = vld [vmem:[%s6125 + $0x78] sm:$0xff]
          %v6134 = vld [vmem:[%s6125 + $0x88] sm:$0xff]
          %v6135 = vld [vmem:[%s6125 + $0x98] sm:$0xff]
          %v6136 = vld [vmem:[%s6125 + $0xa8] sm:$0xff]
          %v6137 = vld [vmem:[%s6125 + $0xb8] sm:$0xff]
          %v6138 = vld [vmem:[%s6125 + $0xc8] sm:$0xff]
          %v6139 = vld [vmem:[%s6125 + $0xd8] sm:$0xff]
          %v6140 = vld [vmem:[%s6125 + $0xe8] sm:$0xff]
          %v6141 = vld [vmem:[%s6125 + $0xf8] sm:$0xff]
          %s6142 = smul.addr %s6123, 8
          %s6143 = scalar_lea.vmem [#allocation3], %s6142
          %v6144 = vld [vmem:[%s6143 + $0x8] sm:$0xff]
          %v6145 = vld [vmem:[%s6143 + $0x18] sm:$0xff]
          %v6146 = vld [vmem:[%s6143 + $0x28] sm:$0xff]
          %v6147 = vld [vmem:[%s6143 + $0x38] sm:$0xff]
          %v6148 = vld [vmem:[%s6143 + $0x48] sm:$0xff]
          %v6149 = vld [vmem:[%s6143 + $0x58] sm:$0xff]
          %v6150 = vld [vmem:[%s6143 + $0x68] sm:$0xff]
          %v6151 = vld [vmem:[%s6143 + $0x78] sm:$0xff]
          %v6152 = vld [vmem:[%s6143 + $0x88] sm:$0xff]
          %v6153 = vld [vmem:[%s6143 + $0x98] sm:$0xff]
          %v6154 = vld [vmem:[%s6143 + $0xa8] sm:$0xff]
          %v6155 = vld [vmem:[%s6143 + $0xb8] sm:$0xff]
          %v6156 = vld [vmem:[%s6143 + $0xc8] sm:$0xff]
          %v6157 = vld [vmem:[%s6143 + $0xd8] sm:$0xff]
          %v6158 = vld [vmem:[%s6143 + $0xe8] sm:$0xff]
          %v6159 = vld [vmem:[%s6143 + $0xf8] sm:$0xff]
          %p6160 = scmp.eq.s32.totalorder %s6067, %s34
          %s6161 = scalar_select %p6160, 1, 0
          %s6162 = scvt.s32.f32 %s6161
          %v6163 = vstv %s6162
          %v6164 = vmul.f32 %v2124, %v6163
          %v6165 = vmul.f32 %v2125, %v6163
          %v6166 = vmul.f32 %v2126, %v6163
          %v6167 = vmul.f32 %v2127, %v6163
          %v6168 = vmul.f32 %v2128, %v6163
          %v6169 = vmul.f32 %v2129, %v6163
          %v6170 = vmul.f32 %v2130, %v6163
          %v6171 = vmul.f32 %v2131, %v6163
          %v6172 = vmul.f32 %v2132, %v6163
          %v6173 = vmul.f32 %v2133, %v6163
          %v6174 = vmul.f32 %v2134, %v6163
          %v6175 = vmul.f32 %v2135, %v6163
          %v6176 = vmul.f32 %v2136, %v6163
          %v6177 = vmul.f32 %v2137, %v6163
          %v6178 = vmul.f32 %v2138, %v6163
          %v6179 = vmul.f32 %v2139, %v6163
          %v6181 = vsel %vm2962, %v2058, 0
          %v6184 = vsel %vm2962, %v2060, 0
          %v6187 = vsel %vm2962, %v2062, 0
          %v6190 = vsel %vm2962, %v2064, 0
          %v6193 = vsel %vm2962, %v2066, 0
          %v6196 = vsel %vm2962, %v2068, 0
          %v6199 = vsel %vm2962, %v2070, 0
          %v6202 = vsel %vm2962, %v2072, 0
          %v6205 = vsel %vm2962, %v2074, 0
          %v6208 = vsel %vm2962, %v2076, 0
          %v6211 = vsel %vm2962, %v2078, 0
          %v6214 = vsel %vm2962, %v2080, 0
          %v6217 = vsel %vm2962, %v2082, 0
          %v6220 = vsel %vm2962, %v2084, 0
          %v6223 = vsel %vm2962, %v2086, 0
          %v6226 = vsel %vm2962, %v2088, 0
          %v6229 = vsel %vm2962, %v6126, 0
          %v6232 = vsel %vm2962, %v6127, 0
          %v6235 = vsel %vm2962, %v6128, 0
          %v6238 = vsel %vm2962, %v6129, 0
          %v6241 = vsel %vm2962, %v6130, 0
          %v6244 = vsel %vm2962, %v6131, 0
          %v6247 = vsel %vm2962, %v6132, 0
          %v6250 = vsel %vm2962, %v6133, 0
          %v6253 = vsel %vm2962, %v6134, 0
          %v6256 = vsel %vm2962, %v6135, 0
          %v6259 = vsel %vm2962, %v6136, 0
          %v6262 = vsel %vm2962, %v6137, 0
          %v6265 = vsel %vm2962, %v6138, 0
          %v6268 = vsel %vm2962, %v6139, 0
          %v6271 = vsel %vm2962, %v6140, 0
          %v6274 = vsel %vm2962, %v6141, 0
          %6276 = vmatpush.xpose.msra.mxu0 %v6274
          %6277 = vmatpush.xpose.msra.mxu0 %v6271
          %6278 = vmatpush.xpose.msra.mxu0 %v6268
          %6279 = vmatpush.xpose.msra.mxu0 %v6265
          %6280 = vmatpush.xpose.msra.mxu0 %v6262
          %6281 = vmatpush.xpose.msra.mxu0 %v6259
          %6282 = vmatpush.xpose.msra.mxu0 %v6256
          %6283 = vmatpush.xpose.msra.mxu0 %v6253
          %6284 = vmatpush.xpose.msra.mxu0 %v6250
          %6285 = vmatpush.xpose.msra.mxu0 %v6247
          %6286 = vmatpush.xpose.msra.mxu0 %v6244
          %6287 = vmatpush.xpose.msra.mxu0 %v6241
          %6288 = vmatpush.xpose.msra.mxu0 %v6238
          %6289 = vmatpush.xpose.msra.mxu0 %v6235
          %6290 = vmatpush.xpose.msra.mxu0 %v6232
          %6291 = vmatpush.xpose.msra.mxu0 %v6229
          %6292 = vmatmul.f32.gmra.mxu0 %v6181
          %v6293 = vpop.f32.mrf.mxu0
          %v6294 = vadd.f32 %v6164, %v6293
          %6295 = vmatmul.f32.gmra.mxu0 %v6184
          %v6296 = vpop.f32.mrf.mxu0
          %v6297 = vadd.f32 %v6165, %v6296
          %6298 = vmatmul.f32.gmra.mxu0 %v6187
          %v6299 = vpop.f32.mrf.mxu0
          %v6300 = vadd.f32 %v6166, %v6299
          %6301 = vmatmul.f32.gmra.mxu0 %v6190
          %v6302 = vpop.f32.mrf.mxu0
          %v6303 = vadd.f32 %v6167, %v6302
          %6304 = vmatmul.f32.gmra.mxu0 %v6193
          %v6305 = vpop.f32.mrf.mxu0
          %v6306 = vadd.f32 %v6168, %v6305
          %6307 = vmatmul.f32.gmra.mxu0 %v6196
          %v6308 = vpop.f32.mrf.mxu0
          %v6309 = vadd.f32 %v6169, %v6308
          %6310 = vmatmul.f32.gmra.mxu0 %v6199
          %v6311 = vpop.f32.mrf.mxu0
          %v6312 = vadd.f32 %v6170, %v6311
          %6313 = vmatmul.f32.gmra.mxu0 %v6202
          %v6314 = vpop.f32.mrf.mxu0
          %v6315 = vadd.f32 %v6171, %v6314
          %6316 = vmatmul.f32.gmra.mxu0 %v6205
          %v6317 = vpop.f32.mrf.mxu0
          %v6318 = vadd.f32 %v6172, %v6317
          %6319 = vmatmul.f32.gmra.mxu0 %v6208
          %v6320 = vpop.f32.mrf.mxu0
          %v6321 = vadd.f32 %v6173, %v6320
          %6322 = vmatmul.f32.gmra.mxu0 %v6211
          %v6323 = vpop.f32.mrf.mxu0
          %v6324 = vadd.f32 %v6174, %v6323
          %6325 = vmatmul.f32.gmra.mxu0 %v6214
          %v6326 = vpop.f32.mrf.mxu0
          %v6327 = vadd.f32 %v6175, %v6326
          %6328 = vmatmul.f32.gmra.mxu0 %v6217
          %v6329 = vpop.f32.mrf.mxu0
          %v6330 = vadd.f32 %v6176, %v6329
          %6331 = vmatmul.f32.gmra.mxu0 %v6220
          %v6332 = vpop.f32.mrf.mxu0
          %v6333 = vadd.f32 %v6177, %v6332
          %6334 = vmatmul.f32.gmra.mxu0 %v6223
          %v6335 = vpop.f32.mrf.mxu0
          %v6336 = vadd.f32 %v6178, %v6335
          %6337 = vmatmul.f32.gmra.mxu0 %v6226
          %v6338 = vpop.f32.mrf.mxu0
          %v6339 = vadd.f32 %v6179, %v6338
          %6340 = vdwg.mxu0
          %6341 = vmax.xlane.f32.xlu0 %v6294
          %v6342 = vpop.xlane.xlu0 %6341
          %6343 = vmax.xlane.f32.xlu0 %v6297
          %v6344 = vpop.xlane.xlu0 %6343
          %6345 = vmax.xlane.f32.xlu0 %v6300
          %v6346 = vpop.xlane.xlu0 %6345
          %6347 = vmax.xlane.f32.xlu0 %v6303
          %v6348 = vpop.xlane.xlu0 %6347
          %6349 = vmax.xlane.f32.xlu0 %v6306
          %v6350 = vpop.xlane.xlu0 %6349
          %6351 = vmax.xlane.f32.xlu0 %v6309
          %v6352 = vpop.xlane.xlu0 %6351
          %6353 = vmax.xlane.f32.xlu0 %v6312
          %v6354 = vpop.xlane.xlu0 %6353
          %6355 = vmax.xlane.f32.xlu0 %v6315
          %v6356 = vpop.xlane.xlu0 %6355
          %6357 = vmax.xlane.f32.xlu0 %v6318
          %v6358 = vpop.xlane.xlu0 %6357
          %6359 = vmax.xlane.f32.xlu0 %v6321
          %v6360 = vpop.xlane.xlu0 %6359
          %6361 = vmax.xlane.f32.xlu0 %v6324
          %v6362 = vpop.xlane.xlu0 %6361
          %6363 = vmax.xlane.f32.xlu0 %v6327
          %v6364 = vpop.xlane.xlu0 %6363
          %6365 = vmax.xlane.f32.xlu0 %v6330
          %v6366 = vpop.xlane.xlu0 %6365
          %6367 = vmax.xlane.f32.xlu0 %v6333
          %v6368 = vpop.xlane.xlu0 %6367
          %6369 = vmax.xlane.f32.xlu0 %v6336
          %v6370 = vpop.xlane.xlu0 %6369
          %6371 = vmax.xlane.f32.xlu0 %v6339
          %v6372 = vpop.xlane.xlu0 %6371
          %v6373 = vmax.f32 %v6072, %v6342
          %v6374 = vmax.f32 %v6073, %v6344
          %v6375 = vmax.f32 %v6074, %v6346
          %v6376 = vmax.f32 %v6075, %v6348
          %v6377 = vmax.f32 %v6076, %v6350
          %v6378 = vmax.f32 %v6077, %v6352
          %v6379 = vmax.f32 %v6078, %v6354
          %v6380 = vmax.f32 %v6079, %v6356
          %v6381 = vmax.f32 %v6080, %v6358
          %v6382 = vmax.f32 %v6081, %v6360
          %v6383 = vmax.f32 %v6082, %v6362
          %v6384 = vmax.f32 %v6083, %v6364
          %v6385 = vmax.f32 %v6084, %v6366
          %v6386 = vmax.f32 %v6085, %v6368
          %v6387 = vmax.f32 %v6086, %v6370
          %v6388 = vmax.f32 %v6087, %v6372
          %v6389 = vsub.f32 %v6072, %v6373
          %v6390 = vsub.f32 %v6073, %v6374
          %v6391 = vsub.f32 %v6074, %v6375
          %v6392 = vsub.f32 %v6075, %v6376
          %v6393 = vsub.f32 %v6076, %v6377
          %v6394 = vsub.f32 %v6077, %v6378
          %v6395 = vsub.f32 %v6078, %v6379
          %v6396 = vsub.f32 %v6079, %v6380
          %v6397 = vsub.f32 %v6080, %v6381
          %v6398 = vsub.f32 %v6081, %v6382
          %v6399 = vsub.f32 %v6082, %v6383
          %v6400 = vsub.f32 %v6083, %v6384
          %v6401 = vsub.f32 %v6084, %v6385
          %v6402 = vsub.f32 %v6085, %v6386
          %v6403 = vsub.f32 %v6086, %v6387
          %v6404 = vsub.f32 %v6087, %v6388
          %v6405 = vmul.f32 %v6389, 1.442695
          %v6406 = vpow.pop %v6405
          %v6407 = vmul.f32 %v6390, 1.442695
          %v6408 = vpow.pop %v6407
          %v6409 = vmul.f32 %v6391, 1.442695
          %v6410 = vpow.pop %v6409
          %v6411 = vmul.f32 %v6392, 1.442695
          %v6412 = vpow.pop %v6411
          %v6413 = vmul.f32 %v6393, 1.442695
          %v6414 = vpow.pop %v6413
          %v6415 = vmul.f32 %v6394, 1.442695
          %v6416 = vpow.pop %v6415
          %v6417 = vmul.f32 %v6395, 1.442695
          %v6418 = vpow.pop %v6417
          %v6419 = vmul.f32 %v6396, 1.442695
          %v6420 = vpow.pop %v6419
          %v6421 = vmul.f32 %v6397, 1.442695
          %v6422 = vpow.pop %v6421
          %v6423 = vmul.f32 %v6398, 1.442695
          %v6424 = vpow.pop %v6423
          %v6425 = vmul.f32 %v6399, 1.442695
          %v6426 = vpow.pop %v6425
          %v6427 = vmul.f32 %v6400, 1.442695
          %v6428 = vpow.pop %v6427
          %v6429 = vmul.f32 %v6401, 1.442695
          %v6430 = vpow.pop %v6429
          %v6431 = vmul.f32 %v6402, 1.442695
          %v6432 = vpow.pop %v6431
          %v6433 = vmul.f32 %v6403, 1.442695
          %v6434 = vpow.pop %v6433
          %v6435 = vmul.f32 %v6404, 1.442695
          %v6436 = vpow.pop %v6435
          %v6437 = vsub.f32 %v6294, %v6373
          %v6438 = vsub.f32 %v6297, %v6374
          %v6439 = vsub.f32 %v6300, %v6375
          %v6440 = vsub.f32 %v6303, %v6376
          %v6441 = vsub.f32 %v6306, %v6377
          %v6442 = vsub.f32 %v6309, %v6378
          %v6443 = vsub.f32 %v6312, %v6379
          %v6444 = vsub.f32 %v6315, %v6380
          %v6445 = vsub.f32 %v6318, %v6381
          %v6446 = vsub.f32 %v6321, %v6382
          %v6447 = vsub.f32 %v6324, %v6383
          %v6448 = vsub.f32 %v6327, %v6384
          %v6449 = vsub.f32 %v6330, %v6385
          %v6450 = vsub.f32 %v6333, %v6386
          %v6451 = vsub.f32 %v6336, %v6387
          %v6452 = vsub.f32 %v6339, %v6388
          %v6453 = vmul.f32 %v6437, 1.442695
          %v6454 = vpow.pop %v6453
          %v6455 = vmul.f32 %v6438, 1.442695
          %v6456 = vpow.pop %v6455
          %v6457 = vmul.f32 %v6439, 1.442695
          %v6458 = vpow.pop %v6457
          %v6459 = vmul.f32 %v6440, 1.442695
          %v6460 = vpow.pop %v6459
          %v6461 = vmul.f32 %v6441, 1.442695
          %v6462 = vpow.pop %v6461
          %v6463 = vmul.f32 %v6442, 1.442695
          %v6464 = vpow.pop %v6463
          %v6465 = vmul.f32 %v6443, 1.442695
          %v6466 = vpow.pop %v6465
          %v6467 = vmul.f32 %v6444, 1.442695
          %v6468 = vpow.pop %v6467
          %v6469 = vmul.f32 %v6445, 1.442695
          %v6470 = vpow.pop %v6469
          %v6471 = vmul.f32 %v6446, 1.442695
          %v6472 = vpow.pop %v6471
          %v6473 = vmul.f32 %v6447, 1.442695
          %v6474 = vpow.pop %v6473
          %v6475 = vmul.f32 %v6448, 1.442695
          %v6476 = vpow.pop %v6475
          %v6477 = vmul.f32 %v6449, 1.442695
          %v6478 = vpow.pop %v6477
          %v6479 = vmul.f32 %v6450, 1.442695
          %v6480 = vpow.pop %v6479
          %v6481 = vmul.f32 %v6451, 1.442695
          %v6482 = vpow.pop %v6481
          %v6483 = vmul.f32 %v6452, 1.442695
          %v6484 = vpow.pop %v6483
          %v6485 = vmul.f32 %v6406, %v6088
          %v6486 = vmul.f32 %v6408, %v6089
          %v6487 = vmul.f32 %v6410, %v6090
          %v6488 = vmul.f32 %v6412, %v6091
          %v6489 = vmul.f32 %v6414, %v6092
          %v6490 = vmul.f32 %v6416, %v6093
          %v6491 = vmul.f32 %v6418, %v6094
          %v6492 = vmul.f32 %v6420, %v6095
          %v6493 = vmul.f32 %v6422, %v6096
          %v6494 = vmul.f32 %v6424, %v6097
          %v6495 = vmul.f32 %v6426, %v6098
          %v6496 = vmul.f32 %v6428, %v6099
          %v6497 = vmul.f32 %v6430, %v6100
          %v6498 = vmul.f32 %v6432, %v6101
          %v6499 = vmul.f32 %v6434, %v6102
          %v6500 = vmul.f32 %v6436, %v6103
          %6501 = vadd.xlane.f32.xlu0 %v6454
          %v6502 = vpop.xlane.xlu0 %6501
          %6503 = vadd.xlane.f32.xlu0 %v6456
          %v6504 = vpop.xlane.xlu0 %6503
          %6505 = vadd.xlane.f32.xlu0 %v6458
          %v6506 = vpop.xlane.xlu0 %6505
          %6507 = vadd.xlane.f32.xlu0 %v6460
          %v6508 = vpop.xlane.xlu0 %6507
          %6509 = vadd.xlane.f32.xlu0 %v6462
          %v6510 = vpop.xlane.xlu0 %6509
          %6511 = vadd.xlane.f32.xlu0 %v6464
          %v6512 = vpop.xlane.xlu0 %6511
          %6513 = vadd.xlane.f32.xlu0 %v6466
          %v6514 = vpop.xlane.xlu0 %6513
          %6515 = vadd.xlane.f32.xlu0 %v6468
          %v6516 = vpop.xlane.xlu0 %6515
          %6517 = vadd.xlane.f32.xlu0 %v6470
          %v6518 = vpop.xlane.xlu0 %6517
          %6519 = vadd.xlane.f32.xlu0 %v6472
          %v6520 = vpop.xlane.xlu0 %6519
          %6521 = vadd.xlane.f32.xlu0 %v6474
          %v6522 = vpop.xlane.xlu0 %6521
          %6523 = vadd.xlane.f32.xlu0 %v6476
          %v6524 = vpop.xlane.xlu0 %6523
          %6525 = vadd.xlane.f32.xlu0 %v6478
          %v6526 = vpop.xlane.xlu0 %6525
          %6527 = vadd.xlane.f32.xlu0 %v6480
          %v6528 = vpop.xlane.xlu0 %6527
          %6529 = vadd.xlane.f32.xlu0 %v6482
          %v6530 = vpop.xlane.xlu0 %6529
          %6531 = vadd.xlane.f32.xlu0 %v6484
          %v6532 = vpop.xlane.xlu0 %6531
          %v6533 = vadd.f32 %v6485, %v6502
          %v6534 = vadd.f32 %v6486, %v6504
          %v6535 = vadd.f32 %v6487, %v6506
          %v6536 = vadd.f32 %v6488, %v6508
          %v6537 = vadd.f32 %v6489, %v6510
          %v6538 = vadd.f32 %v6490, %v6512
          %v6539 = vadd.f32 %v6491, %v6514
          %v6540 = vadd.f32 %v6492, %v6516
          %v6541 = vadd.f32 %v6493, %v6518
          %v6542 = vadd.f32 %v6494, %v6520
          %v6543 = vadd.f32 %v6495, %v6522
          %v6544 = vadd.f32 %v6496, %v6524
          %v6545 = vadd.f32 %v6497, %v6526
          %v6546 = vadd.f32 %v6498, %v6528
          %v6547 = vadd.f32 %v6499, %v6530
          %v6548 = vadd.f32 %v6500, %v6532
          %v6549 = vmul.f32 %v6406, %v6104
          %v6550 = vmul.f32 %v6408, %v6105
          %v6551 = vmul.f32 %v6410, %v6106
          %v6552 = vmul.f32 %v6412, %v6107
          %v6553 = vmul.f32 %v6414, %v6108
          %v6554 = vmul.f32 %v6416, %v6109
          %v6555 = vmul.f32 %v6418, %v6110
          %v6556 = vmul.f32 %v6420, %v6111
          %v6557 = vmul.f32 %v6422, %v6112
          %v6558 = vmul.f32 %v6424, %v6113
          %v6559 = vmul.f32 %v6426, %v6114
          %v6560 = vmul.f32 %v6428, %v6115
          %v6561 = vmul.f32 %v6430, %v6116
          %v6562 = vmul.f32 %v6432, %v6117
          %v6563 = vmul.f32 %v6434, %v6118
          %v6564 = vmul.f32 %v6436, %v6119
          %6565 = vmatpush.msra.mxu0 %v6159
          %6566 = vmatpush.msra.mxu0 %v6158
          %6567 = vmatpush.msra.mxu0 %v6157
          %6568 = vmatpush.msra.mxu0 %v6156
          %6569 = vmatpush.msra.mxu0 %v6155
          %6570 = vmatpush.msra.mxu0 %v6154
          %6571 = vmatpush.msra.mxu0 %v6153
          %6572 = vmatpush.msra.mxu0 %v6152
          %6573 = vmatpush.msra.mxu0 %v6151
          %6574 = vmatpush.msra.mxu0 %v6150
          %6575 = vmatpush.msra.mxu0 %v6149
          %6576 = vmatpush.msra.mxu0 %v6148
          %6577 = vmatpush.msra.mxu0 %v6147
          %6578 = vmatpush.msra.mxu0 %v6146
          %6579 = vmatpush.msra.mxu0 %v6145
          %6580 = vmatpush.msra.mxu0 %v6144
          %6581 = vmatmul.f32.gmra.mxu0 %v6454
          %v6582 = vpop.f32.mrf.mxu0
          %v6583 = vadd.f32 0.0, %v6582
          %6584 = vmatmul.f32.gmra.mxu0 %v6456
          %v6585 = vpop.f32.mrf.mxu0
          %v6586 = vadd.f32 0.0, %v6585
          %6587 = vmatmul.f32.gmra.mxu0 %v6458
          %v6588 = vpop.f32.mrf.mxu0
          %v6589 = vadd.f32 0.0, %v6588
          %6590 = vmatmul.f32.gmra.mxu0 %v6460
          %v6591 = vpop.f32.mrf.mxu0
          %v6592 = vadd.f32 0.0, %v6591
          %6593 = vmatmul.f32.gmra.mxu0 %v6462
          %v6594 = vpop.f32.mrf.mxu0
          %v6595 = vadd.f32 0.0, %v6594
          %6596 = vmatmul.f32.gmra.mxu0 %v6464
          %v6597 = vpop.f32.mrf.mxu0
          %v6598 = vadd.f32 0.0, %v6597
          %6599 = vmatmul.f32.gmra.mxu0 %v6466
          %v6600 = vpop.f32.mrf.mxu0
          %v6601 = vadd.f32 0.0, %v6600
          %6602 = vmatmul.f32.gmra.mxu0 %v6468
          %v6603 = vpop.f32.mrf.mxu0
          %v6604 = vadd.f32 0.0, %v6603
          %6605 = vmatmul.f32.gmra.mxu0 %v6470
          %v6606 = vpop.f32.mrf.mxu0
          %v6607 = vadd.f32 0.0, %v6606
          %6608 = vmatmul.f32.gmra.mxu0 %v6472
          %v6609 = vpop.f32.mrf.mxu0
          %v6610 = vadd.f32 0.0, %v6609
          %6611 = vmatmul.f32.gmra.mxu0 %v6474
          %v6612 = vpop.f32.mrf.mxu0
          %v6613 = vadd.f32 0.0, %v6612
          %6614 = vmatmul.f32.gmra.mxu0 %v6476
          %v6615 = vpop.f32.mrf.mxu0
          %v6616 = vadd.f32 0.0, %v6615
          %6617 = vmatmul.f32.gmra.mxu0 %v6478
          %v6618 = vpop.f32.mrf.mxu0
          %v6619 = vadd.f32 0.0, %v6618
          %6620 = vmatmul.f32.gmra.mxu0 %v6480
          %v6621 = vpop.f32.mrf.mxu0
          %v6622 = vadd.f32 0.0, %v6621
          %6623 = vmatmul.f32.gmra.mxu0 %v6482
          %v6624 = vpop.f32.mrf.mxu0
          %v6625 = vadd.f32 0.0, %v6624
          %6626 = vmatmul.f32.gmra.mxu0 %v6484
          %v6627 = vpop.f32.mrf.mxu0
          %v6628 = vadd.f32 0.0, %v6627
          %6629 = vdwg.mxu0
          %v6630 = vadd.f32 %v6549, %v6583
          %v6631 = vadd.f32 %v6550, %v6586
          %v6632 = vadd.f32 %v6551, %v6589
          %v6633 = vadd.f32 %v6552, %v6592
          %v6634 = vadd.f32 %v6553, %v6595
          %v6635 = vadd.f32 %v6554, %v6598
          %v6636 = vadd.f32 %v6555, %v6601
          %v6637 = vadd.f32 %v6556, %v6604
          %v6638 = vadd.f32 %v6557, %v6607
          %v6639 = vadd.f32 %v6558, %v6610
          %v6640 = vadd.f32 %v6559, %v6613
          %v6641 = vadd.f32 %v6560, %v6616
          %v6642 = vadd.f32 %v6561, %v6619
          %v6643 = vadd.f32 %v6562, %v6622
          %v6644 = vadd.f32 %v6563, %v6625
          %v6645 = vadd.f32 %v6564, %v6628
        $region117: #{tpu_custom_call.1} parent=55 // loop_footer
          %s6069 = sadd.s32 %s6067, 1
        $region118: #{tpu_custom_call.1} parent=55 // loop_footer_branch
          %6066 = sbr.rel target = $region114
        $region119: #{tpu_custom_call.1} parent=55 // loop_exit
          _
        %v6646 = vrcp.pop %v6088
        %v6647 = vmul.f32 %v6088, %v6646
        %v6648 = vsub.f32 1.0, %v6647
        %v6649 = vmul.f32 %v6646, %v6648
        %v6650 = vadd.f32 %v6646, %v6649
        %vm6651 = vweird.f32 %v6088
        %vm6652 = vweird.f32 %v6646
        %vm6653 = vmor %vm6651, %vm6652
        %v6654 = vsel %vm6653, %v6646, %v6650
        %v6655 = vand.u32 2147483647, %v6088
        %vm6656 = vcmp.eq.f32.partialorder %v6655, 8.507059e+37
        %v6657 = vand.u32 %v6088, 2147483648
        %v6658 = vor.u32 1.1754944e-38, %v6657
        %v6659 = vsel %vm6656, %v6658, %v6654
        %v6660 = vrcp.pop %v6089
        %v6661 = vmul.f32 %v6089, %v6660
        %v6662 = vsub.f32 1.0, %v6661
        %v6663 = vmul.f32 %v6660, %v6662
        %v6664 = vadd.f32 %v6660, %v6663
        %vm6665 = vweird.f32 %v6089
        %vm6666 = vweird.f32 %v6660
        %vm6667 = vmor %vm6665, %vm6666
        %v6668 = vsel %vm6667, %v6660, %v6664
        %v6669 = vand.u32 2147483647, %v6089
        %vm6670 = vcmp.eq.f32.partialorder %v6669, 8.507059e+37
        %v6671 = vand.u32 %v6089, 2147483648
        %v6672 = vor.u32 1.1754944e-38, %v6671
        %v6673 = vsel %vm6670, %v6672, %v6668
        %v6674 = vrcp.pop %v6090
        %v6675 = vmul.f32 %v6090, %v6674
        %v6676 = vsub.f32 1.0, %v6675
        %v6677 = vmul.f32 %v6674, %v6676
        %v6678 = vadd.f32 %v6674, %v6677
        %vm6679 = vweird.f32 %v6090
        %vm6680 = vweird.f32 %v6674
        %vm6681 = vmor %vm6679, %vm6680
        %v6682 = vsel %vm6681, %v6674, %v6678
        %v6683 = vand.u32 2147483647, %v6090
        %vm6684 = vcmp.eq.f32.partialorder %v6683, 8.507059e+37
        %v6685 = vand.u32 %v6090, 2147483648
        %v6686 = vor.u32 1.1754944e-38, %v6685
        %v6687 = vsel %vm6684, %v6686, %v6682
        %v6688 = vrcp.pop %v6091
        %v6689 = vmul.f32 %v6091, %v6688
        %v6690 = vsub.f32 1.0, %v6689
        %v6691 = vmul.f32 %v6688, %v6690
        %v6692 = vadd.f32 %v6688, %v6691
        %vm6693 = vweird.f32 %v6091
        %vm6694 = vweird.f32 %v6688
        %vm6695 = vmor %vm6693, %vm6694
        %v6696 = vsel %vm6695, %v6688, %v6692
        %v6697 = vand.u32 2147483647, %v6091
        %vm6698 = vcmp.eq.f32.partialorder %v6697, 8.507059e+37
        %v6699 = vand.u32 %v6091, 2147483648
        %v6700 = vor.u32 1.1754944e-38, %v6699
        %v6701 = vsel %vm6698, %v6700, %v6696
        %v6702 = vrcp.pop %v6092
        %v6703 = vmul.f32 %v6092, %v6702
        %v6704 = vsub.f32 1.0, %v6703
        %v6705 = vmul.f32 %v6702, %v6704
        %v6706 = vadd.f32 %v6702, %v6705
        %vm6707 = vweird.f32 %v6092
        %vm6708 = vweird.f32 %v6702
        %vm6709 = vmor %vm6707, %vm6708
        %v6710 = vsel %vm6709, %v6702, %v6706
        %v6711 = vand.u32 2147483647, %v6092
        %vm6712 = vcmp.eq.f32.partialorder %v6711, 8.507059e+37
        %v6713 = vand.u32 %v6092, 2147483648
        %v6714 = vor.u32 1.1754944e-38, %v6713
        %v6715 = vsel %vm6712, %v6714, %v6710
        %v6716 = vrcp.pop %v6093
        %v6717 = vmul.f32 %v6093, %v6716
        %v6718 = vsub.f32 1.0, %v6717
        %v6719 = vmul.f32 %v6716, %v6718
        %v6720 = vadd.f32 %v6716, %v6719
        %vm6721 = vweird.f32 %v6093
        %vm6722 = vweird.f32 %v6716
        %vm6723 = vmor %vm6721, %vm6722
        %v6724 = vsel %vm6723, %v6716, %v6720
        %v6725 = vand.u32 2147483647, %v6093
        %vm6726 = vcmp.eq.f32.partialorder %v6725, 8.507059e+37
        %v6727 = vand.u32 %v6093, 2147483648
        %v6728 = vor.u32 1.1754944e-38, %v6727
        %v6729 = vsel %vm6726, %v6728, %v6724
        %v6730 = vrcp.pop %v6094
        %v6731 = vmul.f32 %v6094, %v6730
        %v6732 = vsub.f32 1.0, %v6731
        %v6733 = vmul.f32 %v6730, %v6732
        %v6734 = vadd.f32 %v6730, %v6733
        %vm6735 = vweird.f32 %v6094
        %vm6736 = vweird.f32 %v6730
        %vm6737 = vmor %vm6735, %vm6736
        %v6738 = vsel %vm6737, %v6730, %v6734
        %v6739 = vand.u32 2147483647, %v6094
        %vm6740 = vcmp.eq.f32.partialorder %v6739, 8.507059e+37
        %v6741 = vand.u32 %v6094, 2147483648
        %v6742 = vor.u32 1.1754944e-38, %v6741
        %v6743 = vsel %vm6740, %v6742, %v6738
        %v6744 = vrcp.pop %v6095
        %v6745 = vmul.f32 %v6095, %v6744
        %v6746 = vsub.f32 1.0, %v6745
        %v6747 = vmul.f32 %v6744, %v6746
        %v6748 = vadd.f32 %v6744, %v6747
        %vm6749 = vweird.f32 %v6095
        %vm6750 = vweird.f32 %v6744
        %vm6751 = vmor %vm6749, %vm6750
        %v6752 = vsel %vm6751, %v6744, %v6748
        %v6753 = vand.u32 2147483647, %v6095
        %vm6754 = vcmp.eq.f32.partialorder %v6753, 8.507059e+37
        %v6755 = vand.u32 %v6095, 2147483648
        %v6756 = vor.u32 1.1754944e-38, %v6755
        %v6757 = vsel %vm6754, %v6756, %v6752
        %v6758 = vrcp.pop %v6096
        %v6759 = vmul.f32 %v6096, %v6758
        %v6760 = vsub.f32 1.0, %v6759
        %v6761 = vmul.f32 %v6758, %v6760
        %v6762 = vadd.f32 %v6758, %v6761
        %vm6763 = vweird.f32 %v6096
        %vm6764 = vweird.f32 %v6758
        %vm6765 = vmor %vm6763, %vm6764
        %v6766 = vsel %vm6765, %v6758, %v6762
        %v6767 = vand.u32 2147483647, %v6096
        %vm6768 = vcmp.eq.f32.partialorder %v6767, 8.507059e+37
        %v6769 = vand.u32 %v6096, 2147483648
        %v6770 = vor.u32 1.1754944e-38, %v6769
        %v6771 = vsel %vm6768, %v6770, %v6766
        %v6772 = vrcp.pop %v6097
        %v6773 = vmul.f32 %v6097, %v6772
        %v6774 = vsub.f32 1.0, %v6773
        %v6775 = vmul.f32 %v6772, %v6774
        %v6776 = vadd.f32 %v6772, %v6775
        %vm6777 = vweird.f32 %v6097
        %vm6778 = vweird.f32 %v6772
        %vm6779 = vmor %vm6777, %vm6778
        %v6780 = vsel %vm6779, %v6772, %v6776
        %v6781 = vand.u32 2147483647, %v6097
        %vm6782 = vcmp.eq.f32.partialorder %v6781, 8.507059e+37
        %v6783 = vand.u32 %v6097, 2147483648
        %v6784 = vor.u32 1.1754944e-38, %v6783
        %v6785 = vsel %vm6782, %v6784, %v6780
        %v6786 = vrcp.pop %v6098
        %v6787 = vmul.f32 %v6098, %v6786
        %v6788 = vsub.f32 1.0, %v6787
        %v6789 = vmul.f32 %v6786, %v6788
        %v6790 = vadd.f32 %v6786, %v6789
        %vm6791 = vweird.f32 %v6098
        %vm6792 = vweird.f32 %v6786
        %vm6793 = vmor %vm6791, %vm6792
        %v6794 = vsel %vm6793, %v6786, %v6790
        %v6795 = vand.u32 2147483647, %v6098
        %vm6796 = vcmp.eq.f32.partialorder %v6795, 8.507059e+37
        %v6797 = vand.u32 %v6098, 2147483648
        %v6798 = vor.u32 1.1754944e-38, %v6797
        %v6799 = vsel %vm6796, %v6798, %v6794
        %v6800 = vrcp.pop %v6099
        %v6801 = vmul.f32 %v6099, %v6800
        %v6802 = vsub.f32 1.0, %v6801
        %v6803 = vmul.f32 %v6800, %v6802
        %v6804 = vadd.f32 %v6800, %v6803
        %vm6805 = vweird.f32 %v6099
        %vm6806 = vweird.f32 %v6800
        %vm6807 = vmor %vm6805, %vm6806
        %v6808 = vsel %vm6807, %v6800, %v6804
        %v6809 = vand.u32 2147483647, %v6099
        %vm6810 = vcmp.eq.f32.partialorder %v6809, 8.507059e+37
        %v6811 = vand.u32 %v6099, 2147483648
        %v6812 = vor.u32 1.1754944e-38, %v6811
        %v6813 = vsel %vm6810, %v6812, %v6808
        %v6814 = vrcp.pop %v6100
        %v6815 = vmul.f32 %v6100, %v6814
        %v6816 = vsub.f32 1.0, %v6815
        %v6817 = vmul.f32 %v6814, %v6816
        %v6818 = vadd.f32 %v6814, %v6817
        %vm6819 = vweird.f32 %v6100
        %vm6820 = vweird.f32 %v6814
        %vm6821 = vmor %vm6819, %vm6820
        %v6822 = vsel %vm6821, %v6814, %v6818
        %v6823 = vand.u32 2147483647, %v6100
        %vm6824 = vcmp.eq.f32.partialorder %v6823, 8.507059e+37
        %v6825 = vand.u32 %v6100, 2147483648
        %v6826 = vor.u32 1.1754944e-38, %v6825
        %v6827 = vsel %vm6824, %v6826, %v6822
        %v6828 = vrcp.pop %v6101
        %v6829 = vmul.f32 %v6101, %v6828
        %v6830 = vsub.f32 1.0, %v6829
        %v6831 = vmul.f32 %v6828, %v6830
        %v6832 = vadd.f32 %v6828, %v6831
        %vm6833 = vweird.f32 %v6101
        %vm6834 = vweird.f32 %v6828
        %vm6835 = vmor %vm6833, %vm6834
        %v6836 = vsel %vm6835, %v6828, %v6832
        %v6837 = vand.u32 2147483647, %v6101
        %vm6838 = vcmp.eq.f32.partialorder %v6837, 8.507059e+37
        %v6839 = vand.u32 %v6101, 2147483648
        %v6840 = vor.u32 1.1754944e-38, %v6839
        %v6841 = vsel %vm6838, %v6840, %v6836
        %v6842 = vrcp.pop %v6102
        %v6843 = vmul.f32 %v6102, %v6842
        %v6844 = vsub.f32 1.0, %v6843
        %v6845 = vmul.f32 %v6842, %v6844
        %v6846 = vadd.f32 %v6842, %v6845
        %vm6847 = vweird.f32 %v6102
        %vm6848 = vweird.f32 %v6842
        %vm6849 = vmor %vm6847, %vm6848
        %v6850 = vsel %vm6849, %v6842, %v6846
        %v6851 = vand.u32 2147483647, %v6102
        %vm6852 = vcmp.eq.f32.partialorder %v6851, 8.507059e+37
        %v6853 = vand.u32 %v6102, 2147483648
        %v6854 = vor.u32 1.1754944e-38, %v6853
        %v6855 = vsel %vm6852, %v6854, %v6850
        %v6856 = vrcp.pop %v6103
        %v6857 = vmul.f32 %v6103, %v6856
        %v6858 = vsub.f32 1.0, %v6857
        %v6859 = vmul.f32 %v6856, %v6858
        %v6860 = vadd.f32 %v6856, %v6859
        %vm6861 = vweird.f32 %v6103
        %vm6862 = vweird.f32 %v6856
        %vm6863 = vmor %vm6861, %vm6862
        %v6864 = vsel %vm6863, %v6856, %v6860
        %v6865 = vand.u32 2147483647, %v6103
        %vm6866 = vcmp.eq.f32.partialorder %v6865, 8.507059e+37
        %v6867 = vand.u32 %v6103, 2147483648
        %v6868 = vor.u32 1.1754944e-38, %v6867
        %v6869 = vsel %vm6866, %v6868, %v6864
        %v6870 = vmul.f32 %v6104, %v6659
        %v6871 = vmul.f32 %v6105, %v6673
        %v6872 = vmul.f32 %v6106, %v6687
        %v6873 = vmul.f32 %v6107, %v6701
        %v6874 = vmul.f32 %v6108, %v6715
        %v6875 = vmul.f32 %v6109, %v6729
        %v6876 = vmul.f32 %v6110, %v6743
        %v6877 = vmul.f32 %v6111, %v6757
        %v6878 = vmul.f32 %v6112, %v6771
        %v6879 = vmul.f32 %v6113, %v6785
        %v6880 = vmul.f32 %v6114, %v6799
        %v6881 = vmul.f32 %v6115, %v6813
        %v6882 = vmul.f32 %v6116, %v6827
        %v6883 = vmul.f32 %v6117, %v6841
        %v6884 = vmul.f32 %v6118, %v6855
        %v6885 = vmul.f32 %v6119, %v6869
        %6886 = vst.msk [vmem:[#allocation4 + $0x8] sm:$0xff] %vm2962, %v6870
        %6887 = vst.msk [vmem:[#allocation4 + $0x18] sm:$0xff] %vm2962, %v6871
        %6888 = vst.msk [vmem:[#allocation4 + $0x28] sm:$0xff] %vm2962, %v6872
        %6889 = vst.msk [vmem:[#allocation4 + $0x38] sm:$0xff] %vm2962, %v6873
        %6890 = vst.msk [vmem:[#allocation4 + $0x48] sm:$0xff] %vm2962, %v6874
        %6891 = vst.msk [vmem:[#allocation4 + $0x58] sm:$0xff] %vm2962, %v6875
        %6892 = vst.msk [vmem:[#allocation4 + $0x68] sm:$0xff] %vm2962, %v6876
        %6893 = vst.msk [vmem:[#allocation4 + $0x78] sm:$0xff] %vm2962, %v6877
        %6894 = vst.msk [vmem:[#allocation4 + $0x88] sm:$0xff] %vm2962, %v6878
        %6895 = vst.msk [vmem:[#allocation4 + $0x98] sm:$0xff] %vm2962, %v6879
        %6896 = vst.msk [vmem:[#allocation4 + $0xa8] sm:$0xff] %vm2962, %v6880
        %6897 = vst.msk [vmem:[#allocation4 + $0xb8] sm:$0xff] %vm2962, %v6881
        %6898 = vst.msk [vmem:[#allocation4 + $0xc8] sm:$0xff] %vm2962, %v6882
        %6899 = vst.msk [vmem:[#allocation4 + $0xd8] sm:$0xff] %vm2962, %v6883
        %6900 = vst.msk [vmem:[#allocation4 + $0xe8] sm:$0xff] %vm2962, %v6884
        %6901 = vst.msk [vmem:[#allocation4 + $0xf8] sm:$0xff] %vm2962, %v6885
        // While loop
        $region120: #{tpu_custom_call.1} parent=55 // loop_pre_header
          _
        $region121: #{tpu_custom_call.1} parent=55 // loop_header
          %s6903 = sphi 0, %s6905
          %p6904 = scmp.ge.s32.totalorder %s6903, %s2140
          %v6908 = vphi -inf, %v7273
          %v6909 = vphi -inf, %v7274
          %v6910 = vphi -inf, %v7275
          %v6911 = vphi -inf, %v7276
          %v6912 = vphi -inf, %v7277
          %v6913 = vphi -inf, %v7278
          %v6914 = vphi -inf, %v7279
          %v6915 = vphi -inf, %v7280
          %v6916 = vphi -inf, %v7281
          %v6917 = vphi -inf, %v7282
          %v6918 = vphi -inf, %v7283
          %v6919 = vphi -inf, %v7284
          %v6920 = vphi -inf, %v7285
          %v6921 = vphi -inf, %v7286
          %v6922 = vphi -inf, %v7287
          %v6923 = vphi -inf, %v7288
          %v6924 = vphi 0.0, %v7433
          %v6925 = vphi 0.0, %v7434
          %v6926 = vphi 0.0, %v7435
          %v6927 = vphi 0.0, %v7436
          %v6928 = vphi 0.0, %v7437
          %v6929 = vphi 0.0, %v7438
          %v6930 = vphi 0.0, %v7439
          %v6931 = vphi 0.0, %v7440
          %v6932 = vphi 0.0, %v7441
          %v6933 = vphi 0.0, %v7442
          %v6934 = vphi 0.0, %v7443
          %v6935 = vphi 0.0, %v7444
          %v6936 = vphi 0.0, %v7445
          %v6937 = vphi 0.0, %v7446
          %v6938 = vphi 0.0, %v7447
          %v6939 = vphi 0.0, %v7448
          %v6940 = vphi 0.0, %v7594
          %v6941 = vphi 0.0, %v7595
          %v6942 = vphi 0.0, %v7596
          %v6943 = vphi 0.0, %v7597
          %v6944 = vphi 0.0, %v7598
          %v6945 = vphi 0.0, %v7599
          %v6946 = vphi 0.0, %v7600
          %v6947 = vphi 0.0, %v7601
          %v6948 = vphi 0.0, %v7602
          %v6949 = vphi 0.0, %v7603
          %v6950 = vphi 0.0, %v7604
          %v6951 = vphi 0.0, %v7605
          %v6952 = vphi 0.0, %v7606
          %v6953 = vphi 0.0, %v7607
          %v6954 = vphi 0.0, %v7608
          %v6955 = vphi 0.0, %v7609
        $region122: #{tpu_custom_call.1} parent=55 // loop_header_branch
          %6907 = sbr.rel (%p6904) target = $region126
        $region123: #{tpu_custom_call.1} parent=55 // loop_body
          %s6956 = smul.u32 %s6903, 128
          %s6957 = sshra.s32 %s6956, 3
          %s6958 = sand.u32 %s6956, 7
          %s6959 = smul.u32 %s6957, 2
          %s6960 = smul.addr %s6959, 8
          %s6961 = scalar_lea.vmem [#allocation2], %s6960
          %v6962 = vld [vmem:[%s6961 + $0x8] sm:$0xff]
          %v6963 = vld [vmem:[%s6961 + $0x18] sm:$0xff]
          %v6964 = vld [vmem:[%s6961 + $0x28] sm:$0xff]
          %v6965 = vld [vmem:[%s6961 + $0x38] sm:$0xff]
          %v6966 = vld [vmem:[%s6961 + $0x48] sm:$0xff]
          %v6967 = vld [vmem:[%s6961 + $0x58] sm:$0xff]
          %v6968 = vld [vmem:[%s6961 + $0x68] sm:$0xff]
          %v6969 = vld [vmem:[%s6961 + $0x78] sm:$0xff]
          %v6970 = vld [vmem:[%s6961 + $0x88] sm:$0xff]
          %v6971 = vld [vmem:[%s6961 + $0x98] sm:$0xff]
          %v6972 = vld [vmem:[%s6961 + $0xa8] sm:$0xff]
          %v6973 = vld [vmem:[%s6961 + $0xb8] sm:$0xff]
          %v6974 = vld [vmem:[%s6961 + $0xc8] sm:$0xff]
          %v6975 = vld [vmem:[%s6961 + $0xd8] sm:$0xff]
          %v6976 = vld [vmem:[%s6961 + $0xe8] sm:$0xff]
          %v6977 = vld [vmem:[%s6961 + $0xf8] sm:$0xff]
          %s6978 = smul.addr %s6959, 8
          %s6979 = scalar_lea.vmem [#allocation3], %s6978
          %v6980 = vld [vmem:[%s6979 + $0x8] sm:$0xff]
          %v6981 = vld [vmem:[%s6979 + $0x18] sm:$0xff]
          %v6982 = vld [vmem:[%s6979 + $0x28] sm:$0xff]
          %v6983 = vld [vmem:[%s6979 + $0x38] sm:$0xff]
          %v6984 = vld [vmem:[%s6979 + $0x48] sm:$0xff]
          %v6985 = vld [vmem:[%s6979 + $0x58] sm:$0xff]
          %v6986 = vld [vmem:[%s6979 + $0x68] sm:$0xff]
          %v6987 = vld [vmem:[%s6979 + $0x78] sm:$0xff]
          %v6988 = vld [vmem:[%s6979 + $0x88] sm:$0xff]
          %v6989 = vld [vmem:[%s6979 + $0x98] sm:$0xff]
          %v6990 = vld [vmem:[%s6979 + $0xa8] sm:$0xff]
          %v6991 = vld [vmem:[%s6979 + $0xb8] sm:$0xff]
          %v6992 = vld [vmem:[%s6979 + $0xc8] sm:$0xff]
          %v6993 = vld [vmem:[%s6979 + $0xd8] sm:$0xff]
          %v6994 = vld [vmem:[%s6979 + $0xe8] sm:$0xff]
          %v6995 = vld [vmem:[%s6979 + $0xf8] sm:$0xff]
          %p6996 = scmp.eq.s32.totalorder %s6903, %s34
          %s6997 = scalar_select %p6996, 1, 0
          %s6998 = scvt.s32.f32 %s6997
          %v6999 = vstv %s6998
          %v7000 = vmul.f32 %v2124, %v6999
          %v7001 = vmul.f32 %v2125, %v6999
          %v7002 = vmul.f32 %v2126, %v6999
          %v7003 = vmul.f32 %v2127, %v6999
          %v7004 = vmul.f32 %v2128, %v6999
          %v7005 = vmul.f32 %v2129, %v6999
          %v7006 = vmul.f32 %v2130, %v6999
          %v7007 = vmul.f32 %v2131, %v6999
          %v7008 = vmul.f32 %v2132, %v6999
          %v7009 = vmul.f32 %v2133, %v6999
          %v7010 = vmul.f32 %v2134, %v6999
          %v7011 = vmul.f32 %v2135, %v6999
          %v7012 = vmul.f32 %v2136, %v6999
          %v7013 = vmul.f32 %v2137, %v6999
          %v7014 = vmul.f32 %v2138, %v6999
          %v7015 = vmul.f32 %v2139, %v6999
          %7032 = vrot.lane.b32.xlu0 %v2058, 96
          %v7033 = vpop.permute.xlu0 %7032
          %7034 = vrot.lane.b32.xlu0 %v2060, 96
          %v7035 = vpop.permute.xlu0 %7034
          %7036 = vrot.lane.b32.xlu0 %v2062, 96
          %v7037 = vpop.permute.xlu0 %7036
          %7038 = vrot.lane.b32.xlu0 %v2064, 96
          %v7039 = vpop.permute.xlu0 %7038
          %7040 = vrot.lane.b32.xlu0 %v2066, 96
          %v7041 = vpop.permute.xlu0 %7040
          %7042 = vrot.lane.b32.xlu0 %v2068, 96
          %v7043 = vpop.permute.xlu0 %7042
          %7044 = vrot.lane.b32.xlu0 %v2070, 96
          %v7045 = vpop.permute.xlu0 %7044
          %7046 = vrot.lane.b32.xlu0 %v2072, 96
          %v7047 = vpop.permute.xlu0 %7046
          %7048 = vrot.lane.b32.xlu0 %v2074, 96
          %v7049 = vpop.permute.xlu0 %7048
          %7050 = vrot.lane.b32.xlu0 %v2076, 96
          %v7051 = vpop.permute.xlu0 %7050
          %7052 = vrot.lane.b32.xlu0 %v2078, 96
          %v7053 = vpop.permute.xlu0 %7052
          %7054 = vrot.lane.b32.xlu0 %v2080, 96
          %v7055 = vpop.permute.xlu0 %7054
          %7056 = vrot.lane.b32.xlu0 %v2082, 96
          %v7057 = vpop.permute.xlu0 %7056
          %7058 = vrot.lane.b32.xlu0 %v2084, 96
          %v7059 = vpop.permute.xlu0 %7058
          %7060 = vrot.lane.b32.xlu0 %v2086, 96
          %v7061 = vpop.permute.xlu0 %7060
          %7062 = vrot.lane.b32.xlu0 %v2088, 96
          %v7063 = vpop.permute.xlu0 %7062
          %7080 = vrot.lane.b32.xlu0 %v6962, 96
          %v7081 = vpop.permute.xlu0 %7080
          %7082 = vrot.lane.b32.xlu0 %v6963, 96
          %v7083 = vpop.permute.xlu0 %7082
          %7084 = vrot.lane.b32.xlu0 %v6964, 96
          %v7085 = vpop.permute.xlu0 %7084
          %7086 = vrot.lane.b32.xlu0 %v6965, 96
          %v7087 = vpop.permute.xlu0 %7086
          %7088 = vrot.lane.b32.xlu0 %v6966, 96
          %v7089 = vpop.permute.xlu0 %7088
          %7090 = vrot.lane.b32.xlu0 %v6967, 96
          %v7091 = vpop.permute.xlu0 %7090
          %7092 = vrot.lane.b32.xlu0 %v6968, 96
          %v7093 = vpop.permute.xlu0 %7092
          %7094 = vrot.lane.b32.xlu0 %v6969, 96
          %v7095 = vpop.permute.xlu0 %7094
          %7096 = vrot.lane.b32.xlu0 %v6970, 96
          %v7097 = vpop.permute.xlu0 %7096
          %7098 = vrot.lane.b32.xlu0 %v6971, 96
          %v7099 = vpop.permute.xlu0 %7098
          %7100 = vrot.lane.b32.xlu0 %v6972, 96
          %v7101 = vpop.permute.xlu0 %7100
          %7102 = vrot.lane.b32.xlu0 %v6973, 96
          %v7103 = vpop.permute.xlu0 %7102
          %7104 = vrot.lane.b32.xlu0 %v6974, 96
          %v7105 = vpop.permute.xlu0 %7104
          %7106 = vrot.lane.b32.xlu0 %v6975, 96
          %v7107 = vpop.permute.xlu0 %7106
          %7108 = vrot.lane.b32.xlu0 %v6976, 96
          %v7109 = vpop.permute.xlu0 %7108
          %7110 = vrot.lane.b32.xlu0 %v6977, 96
          %v7111 = vpop.permute.xlu0 %7110
          %v7112 = vsel %vm2962, %v7033, 0
          %v7114 = vsel %vm2962, %v7035, 0
          %v7116 = vsel %vm2962, %v7037, 0
          %v7118 = vsel %vm2962, %v7039, 0
          %v7120 = vsel %vm2962, %v7041, 0
          %v7122 = vsel %vm2962, %v7043, 0
          %v7124 = vsel %vm2962, %v7045, 0
          %v7126 = vsel %vm2962, %v7047, 0
          %v7128 = vsel %vm2962, %v7049, 0
          %v7130 = vsel %vm2962, %v7051, 0
          %v7132 = vsel %vm2962, %v7053, 0
          %v7134 = vsel %vm2962, %v7055, 0
          %v7136 = vsel %vm2962, %v7057, 0
          %v7138 = vsel %vm2962, %v7059, 0
          %v7140 = vsel %vm2962, %v7061, 0
          %v7142 = vsel %vm2962, %v7063, 0
          %v7144 = vsel %vm2962, %v7081, 0
          %v7146 = vsel %vm2962, %v7083, 0
          %v7148 = vsel %vm2962, %v7085, 0
          %v7150 = vsel %vm2962, %v7087, 0
          %v7152 = vsel %vm2962, %v7089, 0
          %v7154 = vsel %vm2962, %v7091, 0
          %v7156 = vsel %vm2962, %v7093, 0
          %v7158 = vsel %vm2962, %v7095, 0
          %v7160 = vsel %vm2962, %v7097, 0
          %v7162 = vsel %vm2962, %v7099, 0
          %v7164 = vsel %vm2962, %v7101, 0
          %v7166 = vsel %vm2962, %v7103, 0
          %v7168 = vsel %vm2962, %v7105, 0
          %v7170 = vsel %vm2962, %v7107, 0
          %v7172 = vsel %vm2962, %v7109, 0
          %v7174 = vsel %vm2962, %v7111, 0
          %7176 = vmatpush.xpose.msra.mxu0 %v7174
          %7177 = vmatpush.xpose.msra.mxu0 %v7172
          %7178 = vmatpush.xpose.msra.mxu0 %v7170
          %7179 = vmatpush.xpose.msra.mxu0 %v7168
          %7180 = vmatpush.xpose.msra.mxu0 %v7166
          %7181 = vmatpush.xpose.msra.mxu0 %v7164
          %7182 = vmatpush.xpose.msra.mxu0 %v7162
          %7183 = vmatpush.xpose.msra.mxu0 %v7160
          %7184 = vmatpush.xpose.msra.mxu0 %v7158
          %7185 = vmatpush.xpose.msra.mxu0 %v7156
          %7186 = vmatpush.xpose.msra.mxu0 %v7154
          %7187 = vmatpush.xpose.msra.mxu0 %v7152
          %7188 = vmatpush.xpose.msra.mxu0 %v7150
          %7189 = vmatpush.xpose.msra.mxu0 %v7148
          %7190 = vmatpush.xpose.msra.mxu0 %v7146
          %7191 = vmatpush.xpose.msra.mxu0 %v7144
          %7192 = vmatmul.f32.gmra.mxu0 %v7112
          %v7193 = vpop.f32.mrf.mxu0
          %v7194 = vadd.f32 %v7000, %v7193
          %7195 = vmatmul.f32.gmra.mxu0 %v7114
          %v7196 = vpop.f32.mrf.mxu0
          %v7197 = vadd.f32 %v7001, %v7196
          %7198 = vmatmul.f32.gmra.mxu0 %v7116
          %v7199 = vpop.f32.mrf.mxu0
          %v7200 = vadd.f32 %v7002, %v7199
          %7201 = vmatmul.f32.gmra.mxu0 %v7118
          %v7202 = vpop.f32.mrf.mxu0
          %v7203 = vadd.f32 %v7003, %v7202
          %7204 = vmatmul.f32.gmra.mxu0 %v7120
          %v7205 = vpop.f32.mrf.mxu0
          %v7206 = vadd.f32 %v7004, %v7205
          %7207 = vmatmul.f32.gmra.mxu0 %v7122
          %v7208 = vpop.f32.mrf.mxu0
          %v7209 = vadd.f32 %v7005, %v7208
          %7210 = vmatmul.f32.gmra.mxu0 %v7124
          %v7211 = vpop.f32.mrf.mxu0
          %v7212 = vadd.f32 %v7006, %v7211
          %7213 = vmatmul.f32.gmra.mxu0 %v7126
          %v7214 = vpop.f32.mrf.mxu0
          %v7215 = vadd.f32 %v7007, %v7214
          %7216 = vmatmul.f32.gmra.mxu0 %v7128
          %v7217 = vpop.f32.mrf.mxu0
          %v7218 = vadd.f32 %v7008, %v7217
          %7219 = vmatmul.f32.gmra.mxu0 %v7130
          %v7220 = vpop.f32.mrf.mxu0
          %v7221 = vadd.f32 %v7009, %v7220
          %7222 = vmatmul.f32.gmra.mxu0 %v7132
          %v7223 = vpop.f32.mrf.mxu0
          %v7224 = vadd.f32 %v7010, %v7223
          %7225 = vmatmul.f32.gmra.mxu0 %v7134
          %v7226 = vpop.f32.mrf.mxu0
          %v7227 = vadd.f32 %v7011, %v7226
          %7228 = vmatmul.f32.gmra.mxu0 %v7136
          %v7229 = vpop.f32.mrf.mxu0
          %v7230 = vadd.f32 %v7012, %v7229
          %7231 = vmatmul.f32.gmra.mxu0 %v7138
          %v7232 = vpop.f32.mrf.mxu0
          %v7233 = vadd.f32 %v7013, %v7232
          %7234 = vmatmul.f32.gmra.mxu0 %v7140
          %v7235 = vpop.f32.mrf.mxu0
          %v7236 = vadd.f32 %v7014, %v7235
          %7237 = vmatmul.f32.gmra.mxu0 %v7142
          %v7238 = vpop.f32.mrf.mxu0
          %v7239 = vadd.f32 %v7015, %v7238
          %7240 = vdwg.mxu0
          %7241 = vmax.xlane.f32.xlu0 %v7194
          %v7242 = vpop.xlane.xlu0 %7241
          %7243 = vmax.xlane.f32.xlu0 %v7197
          %v7244 = vpop.xlane.xlu0 %7243
          %7245 = vmax.xlane.f32.xlu0 %v7200
          %v7246 = vpop.xlane.xlu0 %7245
          %7247 = vmax.xlane.f32.xlu0 %v7203
          %v7248 = vpop.xlane.xlu0 %7247
          %7249 = vmax.xlane.f32.xlu0 %v7206
          %v7250 = vpop.xlane.xlu0 %7249
          %7251 = vmax.xlane.f32.xlu0 %v7209
          %v7252 = vpop.xlane.xlu0 %7251
          %7253 = vmax.xlane.f32.xlu0 %v7212
          %v7254 = vpop.xlane.xlu0 %7253
          %7255 = vmax.xlane.f32.xlu0 %v7215
          %v7256 = vpop.xlane.xlu0 %7255
          %7257 = vmax.xlane.f32.xlu0 %v7218
          %v7258 = vpop.xlane.xlu0 %7257
          %7259 = vmax.xlane.f32.xlu0 %v7221
          %v7260 = vpop.xlane.xlu0 %7259
          %7261 = vmax.xlane.f32.xlu0 %v7224
          %v7262 = vpop.xlane.xlu0 %7261
          %7263 = vmax.xlane.f32.xlu0 %v7227
          %v7264 = vpop.xlane.xlu0 %7263
          %7265 = vmax.xlane.f32.xlu0 %v7230
          %v7266 = vpop.xlane.xlu0 %7265
          %7267 = vmax.xlane.f32.xlu0 %v7233
          %v7268 = vpop.xlane.xlu0 %7267
          %7269 = vmax.xlane.f32.xlu0 %v7236
          %v7270 = vpop.xlane.xlu0 %7269
          %7271 = vmax.xlane.f32.xlu0 %v7239
          %v7272 = vpop.xlane.xlu0 %7271
          %v7273 = vmax.f32 %v6908, %v7242
          %v7274 = vmax.f32 %v6909, %v7244
          %v7275 = vmax.f32 %v6910, %v7246
          %v7276 = vmax.f32 %v6911, %v7248
          %v7277 = vmax.f32 %v6912, %v7250
          %v7278 = vmax.f32 %v6913, %v7252
          %v7279 = vmax.f32 %v6914, %v7254
          %v7280 = vmax.f32 %v6915, %v7256
          %v7281 = vmax.f32 %v6916, %v7258
          %v7282 = vmax.f32 %v6917, %v7260
          %v7283 = vmax.f32 %v6918, %v7262
          %v7284 = vmax.f32 %v6919, %v7264
          %v7285 = vmax.f32 %v6920, %v7266
          %v7286 = vmax.f32 %v6921, %v7268
          %v7287 = vmax.f32 %v6922, %v7270
          %v7288 = vmax.f32 %v6923, %v7272
          %v7289 = vsub.f32 %v6908, %v7273
          %v7290 = vsub.f32 %v6909, %v7274
          %v7291 = vsub.f32 %v6910, %v7275
          %v7292 = vsub.f32 %v6911, %v7276
          %v7293 = vsub.f32 %v6912, %v7277
          %v7294 = vsub.f32 %v6913, %v7278
          %v7295 = vsub.f32 %v6914, %v7279
          %v7296 = vsub.f32 %v6915, %v7280
          %v7297 = vsub.f32 %v6916, %v7281
          %v7298 = vsub.f32 %v6917, %v7282
          %v7299 = vsub.f32 %v6918, %v7283
          %v7300 = vsub.f32 %v6919, %v7284
          %v7301 = vsub.f32 %v6920, %v7285
          %v7302 = vsub.f32 %v6921, %v7286
          %v7303 = vsub.f32 %v6922, %v7287
          %v7304 = vsub.f32 %v6923, %v7288
          %v7305 = vmul.f32 %v7289, 1.442695
          %v7306 = vpow.pop %v7305
          %v7307 = vmul.f32 %v7290, 1.442695
          %v7308 = vpow.pop %v7307
          %v7309 = vmul.f32 %v7291, 1.442695
          %v7310 = vpow.pop %v7309
          %v7311 = vmul.f32 %v7292, 1.442695
          %v7312 = vpow.pop %v7311
          %v7313 = vmul.f32 %v7293, 1.442695
          %v7314 = vpow.pop %v7313
          %v7315 = vmul.f32 %v7294, 1.442695
          %v7316 = vpow.pop %v7315
          %v7317 = vmul.f32 %v7295, 1.442695
          %v7318 = vpow.pop %v7317
          %v7319 = vmul.f32 %v7296, 1.442695
          %v7320 = vpow.pop %v7319
          %v7321 = vmul.f32 %v7297, 1.442695
          %v7322 = vpow.pop %v7321
          %v7323 = vmul.f32 %v7298, 1.442695
          %v7324 = vpow.pop %v7323
          %v7325 = vmul.f32 %v7299, 1.442695
          %v7326 = vpow.pop %v7325
          %v7327 = vmul.f32 %v7300, 1.442695
          %v7328 = vpow.pop %v7327
          %v7329 = vmul.f32 %v7301, 1.442695
          %v7330 = vpow.pop %v7329
          %v7331 = vmul.f32 %v7302, 1.442695
          %v7332 = vpow.pop %v7331
          %v7333 = vmul.f32 %v7303, 1.442695
          %v7334 = vpow.pop %v7333
          %v7335 = vmul.f32 %v7304, 1.442695
          %v7336 = vpow.pop %v7335
          %v7337 = vsub.f32 %v7194, %v7273
          %v7338 = vsub.f32 %v7197, %v7274
          %v7339 = vsub.f32 %v7200, %v7275
          %v7340 = vsub.f32 %v7203, %v7276
          %v7341 = vsub.f32 %v7206, %v7277
          %v7342 = vsub.f32 %v7209, %v7278
          %v7343 = vsub.f32 %v7212, %v7279
          %v7344 = vsub.f32 %v7215, %v7280
          %v7345 = vsub.f32 %v7218, %v7281
          %v7346 = vsub.f32 %v7221, %v7282
          %v7347 = vsub.f32 %v7224, %v7283
          %v7348 = vsub.f32 %v7227, %v7284
          %v7349 = vsub.f32 %v7230, %v7285
          %v7350 = vsub.f32 %v7233, %v7286
          %v7351 = vsub.f32 %v7236, %v7287
          %v7352 = vsub.f32 %v7239, %v7288
          %v7353 = vmul.f32 %v7337, 1.442695
          %v7354 = vpow.pop %v7353
          %v7355 = vmul.f32 %v7338, 1.442695
          %v7356 = vpow.pop %v7355
          %v7357 = vmul.f32 %v7339, 1.442695
          %v7358 = vpow.pop %v7357
          %v7359 = vmul.f32 %v7340, 1.442695
          %v7360 = vpow.pop %v7359
          %v7361 = vmul.f32 %v7341, 1.442695
          %v7362 = vpow.pop %v7361
          %v7363 = vmul.f32 %v7342, 1.442695
          %v7364 = vpow.pop %v7363
          %v7365 = vmul.f32 %v7343, 1.442695
          %v7366 = vpow.pop %v7365
          %v7367 = vmul.f32 %v7344, 1.442695
          %v7368 = vpow.pop %v7367
          %v7369 = vmul.f32 %v7345, 1.442695
          %v7370 = vpow.pop %v7369
          %v7371 = vmul.f32 %v7346, 1.442695
          %v7372 = vpow.pop %v7371
          %v7373 = vmul.f32 %v7347, 1.442695
          %v7374 = vpow.pop %v7373
          %v7375 = vmul.f32 %v7348, 1.442695
          %v7376 = vpow.pop %v7375
          %v7377 = vmul.f32 %v7349, 1.442695
          %v7378 = vpow.pop %v7377
          %v7379 = vmul.f32 %v7350, 1.442695
          %v7380 = vpow.pop %v7379
          %v7381 = vmul.f32 %v7351, 1.442695
          %v7382 = vpow.pop %v7381
          %v7383 = vmul.f32 %v7352, 1.442695
          %v7384 = vpow.pop %v7383
          %v7385 = vmul.f32 %v7306, %v6924
          %v7386 = vmul.f32 %v7308, %v6925
          %v7387 = vmul.f32 %v7310, %v6926
          %v7388 = vmul.f32 %v7312, %v6927
          %v7389 = vmul.f32 %v7314, %v6928
          %v7390 = vmul.f32 %v7316, %v6929
          %v7391 = vmul.f32 %v7318, %v6930
          %v7392 = vmul.f32 %v7320, %v6931
          %v7393 = vmul.f32 %v7322, %v6932
          %v7394 = vmul.f32 %v7324, %v6933
          %v7395 = vmul.f32 %v7326, %v6934
          %v7396 = vmul.f32 %v7328, %v6935
          %v7397 = vmul.f32 %v7330, %v6936
          %v7398 = vmul.f32 %v7332, %v6937
          %v7399 = vmul.f32 %v7334, %v6938
          %v7400 = vmul.f32 %v7336, %v6939
          %7401 = vadd.xlane.f32.xlu0 %v7354
          %v7402 = vpop.xlane.xlu0 %7401
          %7403 = vadd.xlane.f32.xlu0 %v7356
          %v7404 = vpop.xlane.xlu0 %7403
          %7405 = vadd.xlane.f32.xlu0 %v7358
          %v7406 = vpop.xlane.xlu0 %7405
          %7407 = vadd.xlane.f32.xlu0 %v7360
          %v7408 = vpop.xlane.xlu0 %7407
          %7409 = vadd.xlane.f32.xlu0 %v7362
          %v7410 = vpop.xlane.xlu0 %7409
          %7411 = vadd.xlane.f32.xlu0 %v7364
          %v7412 = vpop.xlane.xlu0 %7411
          %7413 = vadd.xlane.f32.xlu0 %v7366
          %v7414 = vpop.xlane.xlu0 %7413
          %7415 = vadd.xlane.f32.xlu0 %v7368
          %v7416 = vpop.xlane.xlu0 %7415
          %7417 = vadd.xlane.f32.xlu0 %v7370
          %v7418 = vpop.xlane.xlu0 %7417
          %7419 = vadd.xlane.f32.xlu0 %v7372
          %v7420 = vpop.xlane.xlu0 %7419
          %7421 = vadd.xlane.f32.xlu0 %v7374
          %v7422 = vpop.xlane.xlu0 %7421
          %7423 = vadd.xlane.f32.xlu0 %v7376
          %v7424 = vpop.xlane.xlu0 %7423
          %7425 = vadd.xlane.f32.xlu0 %v7378
          %v7426 = vpop.xlane.xlu0 %7425
          %7427 = vadd.xlane.f32.xlu0 %v7380
          %v7428 = vpop.xlane.xlu0 %7427
          %7429 = vadd.xlane.f32.xlu0 %v7382
          %v7430 = vpop.xlane.xlu0 %7429
          %7431 = vadd.xlane.f32.xlu0 %v7384
          %v7432 = vpop.xlane.xlu0 %7431
          %v7433 = vadd.f32 %v7385, %v7402
          %v7434 = vadd.f32 %v7386, %v7404
          %v7435 = vadd.f32 %v7387, %v7406
          %v7436 = vadd.f32 %v7388, %v7408
          %v7437 = vadd.f32 %v7389, %v7410
          %v7438 = vadd.f32 %v7390, %v7412
          %v7439 = vadd.f32 %v7391, %v7414
          %v7440 = vadd.f32 %v7392, %v7416
          %v7441 = vadd.f32 %v7393, %v7418
          %v7442 = vadd.f32 %v7394, %v7420
          %v7443 = vadd.f32 %v7395, %v7422
          %v7444 = vadd.f32 %v7396, %v7424
          %v7445 = vadd.f32 %v7397, %v7426
          %v7446 = vadd.f32 %v7398, %v7428
          %v7447 = vadd.f32 %v7399, %v7430
          %v7448 = vadd.f32 %v7400, %v7432
          %v7449 = vmul.f32 %v7306, %v6940
          %v7450 = vmul.f32 %v7308, %v6941
          %v7451 = vmul.f32 %v7310, %v6942
          %v7452 = vmul.f32 %v7312, %v6943
          %v7453 = vmul.f32 %v7314, %v6944
          %v7454 = vmul.f32 %v7316, %v6945
          %v7455 = vmul.f32 %v7318, %v6946
          %v7456 = vmul.f32 %v7320, %v6947
          %v7457 = vmul.f32 %v7322, %v6948
          %v7458 = vmul.f32 %v7324, %v6949
          %v7459 = vmul.f32 %v7326, %v6950
          %v7460 = vmul.f32 %v7328, %v6951
          %v7461 = vmul.f32 %v7330, %v6952
          %v7462 = vmul.f32 %v7332, %v6953
          %v7463 = vmul.f32 %v7334, %v6954
          %v7464 = vmul.f32 %v7336, %v6955
          %7481 = vrot.lane.b32.xlu0 %v6980, 96
          %v7482 = vpop.permute.xlu0 %7481
          %7483 = vrot.lane.b32.xlu0 %v6981, 96
          %v7484 = vpop.permute.xlu0 %7483
          %7485 = vrot.lane.b32.xlu0 %v6982, 96
          %v7486 = vpop.permute.xlu0 %7485
          %7487 = vrot.lane.b32.xlu0 %v6983, 96
          %v7488 = vpop.permute.xlu0 %7487
          %7489 = vrot.lane.b32.xlu0 %v6984, 96
          %v7490 = vpop.permute.xlu0 %7489
          %7491 = vrot.lane.b32.xlu0 %v6985, 96
          %v7492 = vpop.permute.xlu0 %7491
          %7493 = vrot.lane.b32.xlu0 %v6986, 96
          %v7494 = vpop.permute.xlu0 %7493
          %7495 = vrot.lane.b32.xlu0 %v6987, 96
          %v7496 = vpop.permute.xlu0 %7495
          %7497 = vrot.lane.b32.xlu0 %v6988, 96
          %v7498 = vpop.permute.xlu0 %7497
          %7499 = vrot.lane.b32.xlu0 %v6989, 96
          %v7500 = vpop.permute.xlu0 %7499
          %7501 = vrot.lane.b32.xlu0 %v6990, 96
          %v7502 = vpop.permute.xlu0 %7501
          %7503 = vrot.lane.b32.xlu0 %v6991, 96
          %v7504 = vpop.permute.xlu0 %7503
          %7505 = vrot.lane.b32.xlu0 %v6992, 96
          %v7506 = vpop.permute.xlu0 %7505
          %7507 = vrot.lane.b32.xlu0 %v6993, 96
          %v7508 = vpop.permute.xlu0 %7507
          %7509 = vrot.lane.b32.xlu0 %v6994, 96
          %v7510 = vpop.permute.xlu0 %7509
          %7511 = vrot.lane.b32.xlu0 %v6995, 96
          %v7512 = vpop.permute.xlu0 %7511
          %7529 = vmatpush.msra.mxu0 %v7512
          %7530 = vmatpush.msra.mxu0 %v7510
          %7531 = vmatpush.msra.mxu0 %v7508
          %7532 = vmatpush.msra.mxu0 %v7506
          %7533 = vmatpush.msra.mxu0 %v7504
          %7534 = vmatpush.msra.mxu0 %v7502
          %7535 = vmatpush.msra.mxu0 %v7500
          %7536 = vmatpush.msra.mxu0 %v7498
          %7537 = vmatpush.msra.mxu0 %v7496
          %7538 = vmatpush.msra.mxu0 %v7494
          %7539 = vmatpush.msra.mxu0 %v7492
          %7540 = vmatpush.msra.mxu0 %v7490
          %7541 = vmatpush.msra.mxu0 %v7488
          %7542 = vmatpush.msra.mxu0 %v7486
          %7543 = vmatpush.msra.mxu0 %v7484
          %7544 = vmatpush.msra.mxu0 %v7482
          %7545 = vmatmul.f32.gmra.mxu0 %v7354
          %v7546 = vpop.f32.mrf.mxu0
          %v7547 = vadd.f32 0.0, %v7546
          %7548 = vmatmul.f32.gmra.mxu0 %v7356
          %v7549 = vpop.f32.mrf.mxu0
          %v7550 = vadd.f32 0.0, %v7549
          %7551 = vmatmul.f32.gmra.mxu0 %v7358
          %v7552 = vpop.f32.mrf.mxu0
          %v7553 = vadd.f32 0.0, %v7552
          %7554 = vmatmul.f32.gmra.mxu0 %v7360
          %v7555 = vpop.f32.mrf.mxu0
          %v7556 = vadd.f32 0.0, %v7555
          %7557 = vmatmul.f32.gmra.mxu0 %v7362
          %v7558 = vpop.f32.mrf.mxu0
          %v7559 = vadd.f32 0.0, %v7558
          %7560 = vmatmul.f32.gmra.mxu0 %v7364
          %v7561 = vpop.f32.mrf.mxu0
          %v7562 = vadd.f32 0.0, %v7561
          %7563 = vmatmul.f32.gmra.mxu0 %v7366
          %v7564 = vpop.f32.mrf.mxu0
          %v7565 = vadd.f32 0.0, %v7564
          %7566 = vmatmul.f32.gmra.mxu0 %v7368
          %v7567 = vpop.f32.mrf.mxu0
          %v7568 = vadd.f32 0.0, %v7567
          %7569 = vmatmul.f32.gmra.mxu0 %v7370
          %v7570 = vpop.f32.mrf.mxu0
          %v7571 = vadd.f32 0.0, %v7570
          %7572 = vmatmul.f32.gmra.mxu0 %v7372
          %v7573 = vpop.f32.mrf.mxu0
          %v7574 = vadd.f32 0.0, %v7573
          %7575 = vmatmul.f32.gmra.mxu0 %v7374
          %v7576 = vpop.f32.mrf.mxu0
          %v7577 = vadd.f32 0.0, %v7576
          %7578 = vmatmul.f32.gmra.mxu0 %v7376
          %v7579 = vpop.f32.mrf.mxu0
          %v7580 = vadd.f32 0.0, %v7579
          %7581 = vmatmul.f32.gmra.mxu0 %v7378
          %v7582 = vpop.f32.mrf.mxu0
          %v7583 = vadd.f32 0.0, %v7582
          %7584 = vmatmul.f32.gmra.mxu0 %v7380
          %v7585 = vpop.f32.mrf.mxu0
          %v7586 = vadd.f32 0.0, %v7585
          %7587 = vmatmul.f32.gmra.mxu0 %v7382
          %v7588 = vpop.f32.mrf.mxu0
          %v7589 = vadd.f32 0.0, %v7588
          %7590 = vmatmul.f32.gmra.mxu0 %v7384
          %v7591 = vpop.f32.mrf.mxu0
          %v7592 = vadd.f32 0.0, %v7591
          %7593 = vdwg.mxu0
          %v7594 = vadd.f32 %v7449, %v7547
          %v7595 = vadd.f32 %v7450, %v7550
          %v7596 = vadd.f32 %v7451, %v7553
          %v7597 = vadd.f32 %v7452, %v7556
          %v7598 = vadd.f32 %v7453, %v7559
          %v7599 = vadd.f32 %v7454, %v7562
          %v7600 = vadd.f32 %v7455, %v7565
          %v7601 = vadd.f32 %v7456, %v7568
          %v7602 = vadd.f32 %v7457, %v7571
          %v7603 = vadd.f32 %v7458, %v7574
          %v7604 = vadd.f32 %v7459, %v7577
          %v7605 = vadd.f32 %v7460, %v7580
          %v7606 = vadd.f32 %v7461, %v7583
          %v7607 = vadd.f32 %v7462, %v7586
          %v7608 = vadd.f32 %v7463, %v7589
          %v7609 = vadd.f32 %v7464, %v7592
        $region124: #{tpu_custom_call.1} parent=55 // loop_footer
          %s6905 = sadd.s32 %s6903, 1
        $region125: #{tpu_custom_call.1} parent=55 // loop_footer_branch
          %6902 = sbr.rel target = $region121
        $region126: #{tpu_custom_call.1} parent=55 // loop_exit
          _
        %v7610 = vrcp.pop %v6924
        %v7611 = vmul.f32 %v6924, %v7610
        %v7612 = vsub.f32 1.0, %v7611
        %v7613 = vmul.f32 %v7610, %v7612
        %v7614 = vadd.f32 %v7610, %v7613
        %vm7615 = vweird.f32 %v6924
        %vm7616 = vweird.f32 %v7610
        %vm7617 = vmor %vm7615, %vm7616
        %v7618 = vsel %vm7617, %v7610, %v7614
        %v7619 = vand.u32 2147483647, %v6924
        %vm7620 = vcmp.eq.f32.partialorder %v7619, 8.507059e+37
        %v7621 = vand.u32 %v6924, 2147483648
        %v7622 = vor.u32 1.1754944e-38, %v7621
        %v7623 = vsel %vm7620, %v7622, %v7618
        %v7624 = vrcp.pop %v6925
        %v7625 = vmul.f32 %v6925, %v7624
        %v7626 = vsub.f32 1.0, %v7625
        %v7627 = vmul.f32 %v7624, %v7626
        %v7628 = vadd.f32 %v7624, %v7627
        %vm7629 = vweird.f32 %v6925
        %vm7630 = vweird.f32 %v7624
        %vm7631 = vmor %vm7629, %vm7630
        %v7632 = vsel %vm7631, %v7624, %v7628
        %v7633 = vand.u32 2147483647, %v6925
        %vm7634 = vcmp.eq.f32.partialorder %v7633, 8.507059e+37
        %v7635 = vand.u32 %v6925, 2147483648
        %v7636 = vor.u32 1.1754944e-38, %v7635
        %v7637 = vsel %vm7634, %v7636, %v7632
        %v7638 = vrcp.pop %v6926
        %v7639 = vmul.f32 %v6926, %v7638
        %v7640 = vsub.f32 1.0, %v7639
        %v7641 = vmul.f32 %v7638, %v7640
        %v7642 = vadd.f32 %v7638, %v7641
        %vm7643 = vweird.f32 %v6926
        %vm7644 = vweird.f32 %v7638
        %vm7645 = vmor %vm7643, %vm7644
        %v7646 = vsel %vm7645, %v7638, %v7642
        %v7647 = vand.u32 2147483647, %v6926
        %vm7648 = vcmp.eq.f32.partialorder %v7647, 8.507059e+37
        %v7649 = vand.u32 %v6926, 2147483648
        %v7650 = vor.u32 1.1754944e-38, %v7649
        %v7651 = vsel %vm7648, %v7650, %v7646
        %v7652 = vrcp.pop %v6927
        %v7653 = vmul.f32 %v6927, %v7652
        %v7654 = vsub.f32 1.0, %v7653
        %v7655 = vmul.f32 %v7652, %v7654
        %v7656 = vadd.f32 %v7652, %v7655
        %vm7657 = vweird.f32 %v6927
        %vm7658 = vweird.f32 %v7652
        %vm7659 = vmor %vm7657, %vm7658
        %v7660 = vsel %vm7659, %v7652, %v7656
        %v7661 = vand.u32 2147483647, %v6927
        %vm7662 = vcmp.eq.f32.partialorder %v7661, 8.507059e+37
        %v7663 = vand.u32 %v6927, 2147483648
        %v7664 = vor.u32 1.1754944e-38, %v7663
        %v7665 = vsel %vm7662, %v7664, %v7660
        %v7666 = vrcp.pop %v6928
        %v7667 = vmul.f32 %v6928, %v7666
        %v7668 = vsub.f32 1.0, %v7667
        %v7669 = vmul.f32 %v7666, %v7668
        %v7670 = vadd.f32 %v7666, %v7669
        %vm7671 = vweird.f32 %v6928
        %vm7672 = vweird.f32 %v7666
        %vm7673 = vmor %vm7671, %vm7672
        %v7674 = vsel %vm7673, %v7666, %v7670
        %v7675 = vand.u32 2147483647, %v6928
        %vm7676 = vcmp.eq.f32.partialorder %v7675, 8.507059e+37
        %v7677 = vand.u32 %v6928, 2147483648
        %v7678 = vor.u32 1.1754944e-38, %v7677
        %v7679 = vsel %vm7676, %v7678, %v7674
        %v7680 = vrcp.pop %v6929
        %v7681 = vmul.f32 %v6929, %v7680
        %v7682 = vsub.f32 1.0, %v7681
        %v7683 = vmul.f32 %v7680, %v7682
        %v7684 = vadd.f32 %v7680, %v7683
        %vm7685 = vweird.f32 %v6929
        %vm7686 = vweird.f32 %v7680
        %vm7687 = vmor %vm7685, %vm7686
        %v7688 = vsel %vm7687, %v7680, %v7684
        %v7689 = vand.u32 2147483647, %v6929
        %vm7690 = vcmp.eq.f32.partialorder %v7689, 8.507059e+37
        %v7691 = vand.u32 %v6929, 2147483648
        %v7692 = vor.u32 1.1754944e-38, %v7691
        %v7693 = vsel %vm7690, %v7692, %v7688
        %v7694 = vrcp.pop %v6930
        %v7695 = vmul.f32 %v6930, %v7694
        %v7696 = vsub.f32 1.0, %v7695
        %v7697 = vmul.f32 %v7694, %v7696
        %v7698 = vadd.f32 %v7694, %v7697
        %vm7699 = vweird.f32 %v6930
        %vm7700 = vweird.f32 %v7694
        %vm7701 = vmor %vm7699, %vm7700
        %v7702 = vsel %vm7701, %v7694, %v7698
        %v7703 = vand.u32 2147483647, %v6930
        %vm7704 = vcmp.eq.f32.partialorder %v7703, 8.507059e+37
        %v7705 = vand.u32 %v6930, 2147483648
        %v7706 = vor.u32 1.1754944e-38, %v7705
        %v7707 = vsel %vm7704, %v7706, %v7702
        %v7708 = vrcp.pop %v6931
        %v7709 = vmul.f32 %v6931, %v7708
        %v7710 = vsub.f32 1.0, %v7709
        %v7711 = vmul.f32 %v7708, %v7710
        %v7712 = vadd.f32 %v7708, %v7711
        %vm7713 = vweird.f32 %v6931
        %vm7714 = vweird.f32 %v7708
        %vm7715 = vmor %vm7713, %vm7714
        %v7716 = vsel %vm7715, %v7708, %v7712
        %v7717 = vand.u32 2147483647, %v6931
        %vm7718 = vcmp.eq.f32.partialorder %v7717, 8.507059e+37
        %v7719 = vand.u32 %v6931, 2147483648
        %v7720 = vor.u32 1.1754944e-38, %v7719
        %v7721 = vsel %vm7718, %v7720, %v7716
        %v7722 = vrcp.pop %v6932
        %v7723 = vmul.f32 %v6932, %v7722
        %v7724 = vsub.f32 1.0, %v7723
        %v7725 = vmul.f32 %v7722, %v7724
        %v7726 = vadd.f32 %v7722, %v7725
        %vm7727 = vweird.f32 %v6932
        %vm7728 = vweird.f32 %v7722
        %vm7729 = vmor %vm7727, %vm7728
        %v7730 = vsel %vm7729, %v7722, %v7726
        %v7731 = vand.u32 2147483647, %v6932
        %vm7732 = vcmp.eq.f32.partialorder %v7731, 8.507059e+37
        %v7733 = vand.u32 %v6932, 2147483648
        %v7734 = vor.u32 1.1754944e-38, %v7733
        %v7735 = vsel %vm7732, %v7734, %v7730
        %v7736 = vrcp.pop %v6933
        %v7737 = vmul.f32 %v6933, %v7736
        %v7738 = vsub.f32 1.0, %v7737
        %v7739 = vmul.f32 %v7736, %v7738
        %v7740 = vadd.f32 %v7736, %v7739
        %vm7741 = vweird.f32 %v6933
        %vm7742 = vweird.f32 %v7736
        %vm7743 = vmor %vm7741, %vm7742
        %v7744 = vsel %vm7743, %v7736, %v7740
        %v7745 = vand.u32 2147483647, %v6933
        %vm7746 = vcmp.eq.f32.partialorder %v7745, 8.507059e+37
        %v7747 = vand.u32 %v6933, 2147483648
        %v7748 = vor.u32 1.1754944e-38, %v7747
        %v7749 = vsel %vm7746, %v7748, %v7744
        %v7750 = vrcp.pop %v6934
        %v7751 = vmul.f32 %v6934, %v7750
        %v7752 = vsub.f32 1.0, %v7751
        %v7753 = vmul.f32 %v7750, %v7752
        %v7754 = vadd.f32 %v7750, %v7753
        %vm7755 = vweird.f32 %v6934
        %vm7756 = vweird.f32 %v7750
        %vm7757 = vmor %vm7755, %vm7756
        %v7758 = vsel %vm7757, %v7750, %v7754
        %v7759 = vand.u32 2147483647, %v6934
        %vm7760 = vcmp.eq.f32.partialorder %v7759, 8.507059e+37
        %v7761 = vand.u32 %v6934, 2147483648
        %v7762 = vor.u32 1.1754944e-38, %v7761
        %v7763 = vsel %vm7760, %v7762, %v7758
        %v7764 = vrcp.pop %v6935
        %v7765 = vmul.f32 %v6935, %v7764
        %v7766 = vsub.f32 1.0, %v7765
        %v7767 = vmul.f32 %v7764, %v7766
        %v7768 = vadd.f32 %v7764, %v7767
        %vm7769 = vweird.f32 %v6935
        %vm7770 = vweird.f32 %v7764
        %vm7771 = vmor %vm7769, %vm7770
        %v7772 = vsel %vm7771, %v7764, %v7768
        %v7773 = vand.u32 2147483647, %v6935
        %vm7774 = vcmp.eq.f32.partialorder %v7773, 8.507059e+37
        %v7775 = vand.u32 %v6935, 2147483648
        %v7776 = vor.u32 1.1754944e-38, %v7775
        %v7777 = vsel %vm7774, %v7776, %v7772
        %v7778 = vrcp.pop %v6936
        %v7779 = vmul.f32 %v6936, %v7778
        %v7780 = vsub.f32 1.0, %v7779
        %v7781 = vmul.f32 %v7778, %v7780
        %v7782 = vadd.f32 %v7778, %v7781
        %vm7783 = vweird.f32 %v6936
        %vm7784 = vweird.f32 %v7778
        %vm7785 = vmor %vm7783, %vm7784
        %v7786 = vsel %vm7785, %v7778, %v7782
        %v7787 = vand.u32 2147483647, %v6936
        %vm7788 = vcmp.eq.f32.partialorder %v7787, 8.507059e+37
        %v7789 = vand.u32 %v6936, 2147483648
        %v7790 = vor.u32 1.1754944e-38, %v7789
        %v7791 = vsel %vm7788, %v7790, %v7786
        %v7792 = vrcp.pop %v6937
        %v7793 = vmul.f32 %v6937, %v7792
        %v7794 = vsub.f32 1.0, %v7793
        %v7795 = vmul.f32 %v7792, %v7794
        %v7796 = vadd.f32 %v7792, %v7795
        %vm7797 = vweird.f32 %v6937
        %vm7798 = vweird.f32 %v7792
        %vm7799 = vmor %vm7797, %vm7798
        %v7800 = vsel %vm7799, %v7792, %v7796
        %v7801 = vand.u32 2147483647, %v6937
        %vm7802 = vcmp.eq.f32.partialorder %v7801, 8.507059e+37
        %v7803 = vand.u32 %v6937, 2147483648
        %v7804 = vor.u32 1.1754944e-38, %v7803
        %v7805 = vsel %vm7802, %v7804, %v7800
        %v7806 = vrcp.pop %v6938
        %v7807 = vmul.f32 %v6938, %v7806
        %v7808 = vsub.f32 1.0, %v7807
        %v7809 = vmul.f32 %v7806, %v7808
        %v7810 = vadd.f32 %v7806, %v7809
        %vm7811 = vweird.f32 %v6938
        %vm7812 = vweird.f32 %v7806
        %vm7813 = vmor %vm7811, %vm7812
        %v7814 = vsel %vm7813, %v7806, %v7810
        %v7815 = vand.u32 2147483647, %v6938
        %vm7816 = vcmp.eq.f32.partialorder %v7815, 8.507059e+37
        %v7817 = vand.u32 %v6938, 2147483648
        %v7818 = vor.u32 1.1754944e-38, %v7817
        %v7819 = vsel %vm7816, %v7818, %v7814
        %v7820 = vrcp.pop %v6939
        %v7821 = vmul.f32 %v6939, %v7820
        %v7822 = vsub.f32 1.0, %v7821
        %v7823 = vmul.f32 %v7820, %v7822
        %v7824 = vadd.f32 %v7820, %v7823
        %vm7825 = vweird.f32 %v6939
        %vm7826 = vweird.f32 %v7820
        %vm7827 = vmor %vm7825, %vm7826
        %v7828 = vsel %vm7827, %v7820, %v7824
        %v7829 = vand.u32 2147483647, %v6939
        %vm7830 = vcmp.eq.f32.partialorder %v7829, 8.507059e+37
        %v7831 = vand.u32 %v6939, 2147483648
        %v7832 = vor.u32 1.1754944e-38, %v7831
        %v7833 = vsel %vm7830, %v7832, %v7828
        %v7834 = vmul.f32 %v6940, %v7623
        %v7835 = vmul.f32 %v6941, %v7637
        %v7836 = vmul.f32 %v6942, %v7651
        %v7837 = vmul.f32 %v6943, %v7665
        %v7838 = vmul.f32 %v6944, %v7679
        %v7839 = vmul.f32 %v6945, %v7693
        %v7840 = vmul.f32 %v6946, %v7707
        %v7841 = vmul.f32 %v6947, %v7721
        %v7842 = vmul.f32 %v6948, %v7735
        %v7843 = vmul.f32 %v6949, %v7749
        %v7844 = vmul.f32 %v6950, %v7763
        %v7845 = vmul.f32 %v6951, %v7777
        %v7846 = vmul.f32 %v6952, %v7791
        %v7847 = vmul.f32 %v6953, %v7805
        %v7848 = vmul.f32 %v6954, %v7819
        %v7849 = vmul.f32 %v6955, %v7833
        %7866 = vrot.lane.b32.xlu0 %v7834, 32
        %v7867 = vpop.permute.xlu0 %7866
        %7868 = vrot.lane.b32.xlu0 %v7835, 32
        %v7869 = vpop.permute.xlu0 %7868
        %7870 = vrot.lane.b32.xlu0 %v7836, 32
        %v7871 = vpop.permute.xlu0 %7870
        %7872 = vrot.lane.b32.xlu0 %v7837, 32
        %v7873 = vpop.permute.xlu0 %7872
        %7874 = vrot.lane.b32.xlu0 %v7838, 32
        %v7875 = vpop.permute.xlu0 %7874
        %7876 = vrot.lane.b32.xlu0 %v7839, 32
        %v7877 = vpop.permute.xlu0 %7876
        %7878 = vrot.lane.b32.xlu0 %v7840, 32
        %v7879 = vpop.permute.xlu0 %7878
        %7880 = vrot.lane.b32.xlu0 %v7841, 32
        %v7881 = vpop.permute.xlu0 %7880
        %7882 = vrot.lane.b32.xlu0 %v7842, 32
        %v7883 = vpop.permute.xlu0 %7882
        %7884 = vrot.lane.b32.xlu0 %v7843, 32
        %v7885 = vpop.permute.xlu0 %7884
        %7886 = vrot.lane.b32.xlu0 %v7844, 32
        %v7887 = vpop.permute.xlu0 %7886
        %7888 = vrot.lane.b32.xlu0 %v7845, 32
        %v7889 = vpop.permute.xlu0 %7888
        %7890 = vrot.lane.b32.xlu0 %v7846, 32
        %v7891 = vpop.permute.xlu0 %7890
        %7892 = vrot.lane.b32.xlu0 %v7847, 32
        %v7893 = vpop.permute.xlu0 %7892
        %7894 = vrot.lane.b32.xlu0 %v7848, 32
        %v7895 = vpop.permute.xlu0 %7894
        %7896 = vrot.lane.b32.xlu0 %v7849, 32
        %v7897 = vpop.permute.xlu0 %7896
        %7914 = vst.msk [vmem:[#allocation4 + $0x8] sm:$0xff] %vm3991, %v7867
        %7915 = vst.msk [vmem:[#allocation4 + $0x18] sm:$0xff] %vm3991, %v7869
        %7916 = vst.msk [vmem:[#allocation4 + $0x28] sm:$0xff] %vm3991, %v7871
        %7917 = vst.msk [vmem:[#allocation4 + $0x38] sm:$0xff] %vm3991, %v7873
        %7918 = vst.msk [vmem:[#allocation4 + $0x48] sm:$0xff] %vm3991, %v7875
        %7919 = vst.msk [vmem:[#allocation4 + $0x58] sm:$0xff] %vm3991, %v7877
        %7920 = vst.msk [vmem:[#allocation4 + $0x68] sm:$0xff] %vm3991, %v7879
        %7921 = vst.msk [vmem:[#allocation4 + $0x78] sm:$0xff] %vm3991, %v7881
        %7922 = vst.msk [vmem:[#allocation4 + $0x88] sm:$0xff] %vm3991, %v7883
        %7923 = vst.msk [vmem:[#allocation4 + $0x98] sm:$0xff] %vm3991, %v7885
        %7924 = vst.msk [vmem:[#allocation4 + $0xa8] sm:$0xff] %vm3991, %v7887
        %7925 = vst.msk [vmem:[#allocation4 + $0xb8] sm:$0xff] %vm3991, %v7889
        %7926 = vst.msk [vmem:[#allocation4 + $0xc8] sm:$0xff] %vm3991, %v7891
        %7927 = vst.msk [vmem:[#allocation4 + $0xd8] sm:$0xff] %vm3991, %v7893
        %7928 = vst.msk [vmem:[#allocation4 + $0xe8] sm:$0xff] %vm3991, %v7895
        %7929 = vst.msk [vmem:[#allocation4 + $0xf8] sm:$0xff] %vm3991, %v7897
        // While loop
        $region127: #{tpu_custom_call.1} parent=55 // loop_pre_header
          _
        $region128: #{tpu_custom_call.1} parent=55 // loop_header
          %s7931 = sphi 0, %s7933
          %p7932 = scmp.ge.s32.totalorder %s7931, %s2140
          %v7936 = vphi -inf, %v8301
          %v7937 = vphi -inf, %v8302
          %v7938 = vphi -inf, %v8303
          %v7939 = vphi -inf, %v8304
          %v7940 = vphi -inf, %v8305
          %v7941 = vphi -inf, %v8306
          %v7942 = vphi -inf, %v8307
          %v7943 = vphi -inf, %v8308
          %v7944 = vphi -inf, %v8309
          %v7945 = vphi -inf, %v8310
          %v7946 = vphi -inf, %v8311
          %v7947 = vphi -inf, %v8312
          %v7948 = vphi -inf, %v8313
          %v7949 = vphi -inf, %v8314
          %v7950 = vphi -inf, %v8315
          %v7951 = vphi -inf, %v8316
          %v7952 = vphi 0.0, %v8461
          %v7953 = vphi 0.0, %v8462
          %v7954 = vphi 0.0, %v8463
          %v7955 = vphi 0.0, %v8464
          %v7956 = vphi 0.0, %v8465
          %v7957 = vphi 0.0, %v8466
          %v7958 = vphi 0.0, %v8467
          %v7959 = vphi 0.0, %v8468
          %v7960 = vphi 0.0, %v8469
          %v7961 = vphi 0.0, %v8470
          %v7962 = vphi 0.0, %v8471
          %v7963 = vphi 0.0, %v8472
          %v7964 = vphi 0.0, %v8473
          %v7965 = vphi 0.0, %v8474
          %v7966 = vphi 0.0, %v8475
          %v7967 = vphi 0.0, %v8476
          %v7968 = vphi 0.0, %v8622
          %v7969 = vphi 0.0, %v8623
          %v7970 = vphi 0.0, %v8624
          %v7971 = vphi 0.0, %v8625
          %v7972 = vphi 0.0, %v8626
          %v7973 = vphi 0.0, %v8627
          %v7974 = vphi 0.0, %v8628
          %v7975 = vphi 0.0, %v8629
          %v7976 = vphi 0.0, %v8630
          %v7977 = vphi 0.0, %v8631
          %v7978 = vphi 0.0, %v8632
          %v7979 = vphi 0.0, %v8633
          %v7980 = vphi 0.0, %v8634
          %v7981 = vphi 0.0, %v8635
          %v7982 = vphi 0.0, %v8636
          %v7983 = vphi 0.0, %v8637
        $region129: #{tpu_custom_call.1} parent=55 // loop_header_branch
          %7935 = sbr.rel (%p7932) target = $region133
        $region130: #{tpu_custom_call.1} parent=55 // loop_body
          %s7984 = smul.u32 %s7931, 128
          %s7985 = sshra.s32 %s7984, 3
          %s7986 = sand.u32 %s7984, 7
          %s7987 = smul.u32 %s7985, 2
          %s7988 = smul.addr %s7987, 8
          %s7989 = scalar_lea.vmem [#allocation2], %s7988
          %v7990 = vld [vmem:[%s7989 + $0x8] sm:$0xff]
          %v7991 = vld [vmem:[%s7989 + $0x18] sm:$0xff]
          %v7992 = vld [vmem:[%s7989 + $0x28] sm:$0xff]
          %v7993 = vld [vmem:[%s7989 + $0x38] sm:$0xff]
          %v7994 = vld [vmem:[%s7989 + $0x48] sm:$0xff]
          %v7995 = vld [vmem:[%s7989 + $0x58] sm:$0xff]
          %v7996 = vld [vmem:[%s7989 + $0x68] sm:$0xff]
          %v7997 = vld [vmem:[%s7989 + $0x78] sm:$0xff]
          %v7998 = vld [vmem:[%s7989 + $0x88] sm:$0xff]
          %v7999 = vld [vmem:[%s7989 + $0x98] sm:$0xff]
          %v8000 = vld [vmem:[%s7989 + $0xa8] sm:$0xff]
          %v8001 = vld [vmem:[%s7989 + $0xb8] sm:$0xff]
          %v8002 = vld [vmem:[%s7989 + $0xc8] sm:$0xff]
          %v8003 = vld [vmem:[%s7989 + $0xd8] sm:$0xff]
          %v8004 = vld [vmem:[%s7989 + $0xe8] sm:$0xff]
          %v8005 = vld [vmem:[%s7989 + $0xf8] sm:$0xff]
          %s8006 = smul.addr %s7987, 8
          %s8007 = scalar_lea.vmem [#allocation3], %s8006
          %v8008 = vld [vmem:[%s8007 + $0x8] sm:$0xff]
          %v8009 = vld [vmem:[%s8007 + $0x18] sm:$0xff]
          %v8010 = vld [vmem:[%s8007 + $0x28] sm:$0xff]
          %v8011 = vld [vmem:[%s8007 + $0x38] sm:$0xff]
          %v8012 = vld [vmem:[%s8007 + $0x48] sm:$0xff]
          %v8013 = vld [vmem:[%s8007 + $0x58] sm:$0xff]
          %v8014 = vld [vmem:[%s8007 + $0x68] sm:$0xff]
          %v8015 = vld [vmem:[%s8007 + $0x78] sm:$0xff]
          %v8016 = vld [vmem:[%s8007 + $0x88] sm:$0xff]
          %v8017 = vld [vmem:[%s8007 + $0x98] sm:$0xff]
          %v8018 = vld [vmem:[%s8007 + $0xa8] sm:$0xff]
          %v8019 = vld [vmem:[%s8007 + $0xb8] sm:$0xff]
          %v8020 = vld [vmem:[%s8007 + $0xc8] sm:$0xff]
          %v8021 = vld [vmem:[%s8007 + $0xd8] sm:$0xff]
          %v8022 = vld [vmem:[%s8007 + $0xe8] sm:$0xff]
          %v8023 = vld [vmem:[%s8007 + $0xf8] sm:$0xff]
          %p8024 = scmp.eq.s32.totalorder %s7931, %s34
          %s8025 = scalar_select %p8024, 1, 0
          %s8026 = scvt.s32.f32 %s8025
          %v8027 = vstv %s8026
          %v8028 = vmul.f32 %v2124, %v8027
          %v8029 = vmul.f32 %v2125, %v8027
          %v8030 = vmul.f32 %v2126, %v8027
          %v8031 = vmul.f32 %v2127, %v8027
          %v8032 = vmul.f32 %v2128, %v8027
          %v8033 = vmul.f32 %v2129, %v8027
          %v8034 = vmul.f32 %v2130, %v8027
          %v8035 = vmul.f32 %v2131, %v8027
          %v8036 = vmul.f32 %v2132, %v8027
          %v8037 = vmul.f32 %v2133, %v8027
          %v8038 = vmul.f32 %v2134, %v8027
          %v8039 = vmul.f32 %v2135, %v8027
          %v8040 = vmul.f32 %v2136, %v8027
          %v8041 = vmul.f32 %v2137, %v8027
          %v8042 = vmul.f32 %v2138, %v8027
          %v8043 = vmul.f32 %v2139, %v8027
          %8060 = vrot.lane.b32.xlu0 %v2058, 64
          %v8061 = vpop.permute.xlu0 %8060
          %8062 = vrot.lane.b32.xlu0 %v2060, 64
          %v8063 = vpop.permute.xlu0 %8062
          %8064 = vrot.lane.b32.xlu0 %v2062, 64
          %v8065 = vpop.permute.xlu0 %8064
          %8066 = vrot.lane.b32.xlu0 %v2064, 64
          %v8067 = vpop.permute.xlu0 %8066
          %8068 = vrot.lane.b32.xlu0 %v2066, 64
          %v8069 = vpop.permute.xlu0 %8068
          %8070 = vrot.lane.b32.xlu0 %v2068, 64
          %v8071 = vpop.permute.xlu0 %8070
          %8072 = vrot.lane.b32.xlu0 %v2070, 64
          %v8073 = vpop.permute.xlu0 %8072
          %8074 = vrot.lane.b32.xlu0 %v2072, 64
          %v8075 = vpop.permute.xlu0 %8074
          %8076 = vrot.lane.b32.xlu0 %v2074, 64
          %v8077 = vpop.permute.xlu0 %8076
          %8078 = vrot.lane.b32.xlu0 %v2076, 64
          %v8079 = vpop.permute.xlu0 %8078
          %8080 = vrot.lane.b32.xlu0 %v2078, 64
          %v8081 = vpop.permute.xlu0 %8080
          %8082 = vrot.lane.b32.xlu0 %v2080, 64
          %v8083 = vpop.permute.xlu0 %8082
          %8084 = vrot.lane.b32.xlu0 %v2082, 64
          %v8085 = vpop.permute.xlu0 %8084
          %8086 = vrot.lane.b32.xlu0 %v2084, 64
          %v8087 = vpop.permute.xlu0 %8086
          %8088 = vrot.lane.b32.xlu0 %v2086, 64
          %v8089 = vpop.permute.xlu0 %8088
          %8090 = vrot.lane.b32.xlu0 %v2088, 64
          %v8091 = vpop.permute.xlu0 %8090
          %8108 = vrot.lane.b32.xlu0 %v7990, 64
          %v8109 = vpop.permute.xlu0 %8108
          %8110 = vrot.lane.b32.xlu0 %v7991, 64
          %v8111 = vpop.permute.xlu0 %8110
          %8112 = vrot.lane.b32.xlu0 %v7992, 64
          %v8113 = vpop.permute.xlu0 %8112
          %8114 = vrot.lane.b32.xlu0 %v7993, 64
          %v8115 = vpop.permute.xlu0 %8114
          %8116 = vrot.lane.b32.xlu0 %v7994, 64
          %v8117 = vpop.permute.xlu0 %8116
          %8118 = vrot.lane.b32.xlu0 %v7995, 64
          %v8119 = vpop.permute.xlu0 %8118
          %8120 = vrot.lane.b32.xlu0 %v7996, 64
          %v8121 = vpop.permute.xlu0 %8120
          %8122 = vrot.lane.b32.xlu0 %v7997, 64
          %v8123 = vpop.permute.xlu0 %8122
          %8124 = vrot.lane.b32.xlu0 %v7998, 64
          %v8125 = vpop.permute.xlu0 %8124
          %8126 = vrot.lane.b32.xlu0 %v7999, 64
          %v8127 = vpop.permute.xlu0 %8126
          %8128 = vrot.lane.b32.xlu0 %v8000, 64
          %v8129 = vpop.permute.xlu0 %8128
          %8130 = vrot.lane.b32.xlu0 %v8001, 64
          %v8131 = vpop.permute.xlu0 %8130
          %8132 = vrot.lane.b32.xlu0 %v8002, 64
          %v8133 = vpop.permute.xlu0 %8132
          %8134 = vrot.lane.b32.xlu0 %v8003, 64
          %v8135 = vpop.permute.xlu0 %8134
          %8136 = vrot.lane.b32.xlu0 %v8004, 64
          %v8137 = vpop.permute.xlu0 %8136
          %8138 = vrot.lane.b32.xlu0 %v8005, 64
          %v8139 = vpop.permute.xlu0 %8138
          %v8140 = vsel %vm2962, %v8061, 0
          %v8142 = vsel %vm2962, %v8063, 0
          %v8144 = vsel %vm2962, %v8065, 0
          %v8146 = vsel %vm2962, %v8067, 0
          %v8148 = vsel %vm2962, %v8069, 0
          %v8150 = vsel %vm2962, %v8071, 0
          %v8152 = vsel %vm2962, %v8073, 0
          %v8154 = vsel %vm2962, %v8075, 0
          %v8156 = vsel %vm2962, %v8077, 0
          %v8158 = vsel %vm2962, %v8079, 0
          %v8160 = vsel %vm2962, %v8081, 0
          %v8162 = vsel %vm2962, %v8083, 0
          %v8164 = vsel %vm2962, %v8085, 0
          %v8166 = vsel %vm2962, %v8087, 0
          %v8168 = vsel %vm2962, %v8089, 0
          %v8170 = vsel %vm2962, %v8091, 0
          %v8172 = vsel %vm2962, %v8109, 0
          %v8174 = vsel %vm2962, %v8111, 0
          %v8176 = vsel %vm2962, %v8113, 0
          %v8178 = vsel %vm2962, %v8115, 0
          %v8180 = vsel %vm2962, %v8117, 0
          %v8182 = vsel %vm2962, %v8119, 0
          %v8184 = vsel %vm2962, %v8121, 0
          %v8186 = vsel %vm2962, %v8123, 0
          %v8188 = vsel %vm2962, %v8125, 0
          %v8190 = vsel %vm2962, %v8127, 0
          %v8192 = vsel %vm2962, %v8129, 0
          %v8194 = vsel %vm2962, %v8131, 0
          %v8196 = vsel %vm2962, %v8133, 0
          %v8198 = vsel %vm2962, %v8135, 0
          %v8200 = vsel %vm2962, %v8137, 0
          %v8202 = vsel %vm2962, %v8139, 0
          %8204 = vmatpush.xpose.msra.mxu0 %v8202
          %8205 = vmatpush.xpose.msra.mxu0 %v8200
          %8206 = vmatpush.xpose.msra.mxu0 %v8198
          %8207 = vmatpush.xpose.msra.mxu0 %v8196
          %8208 = vmatpush.xpose.msra.mxu0 %v8194
          %8209 = vmatpush.xpose.msra.mxu0 %v8192
          %8210 = vmatpush.xpose.msra.mxu0 %v8190
          %8211 = vmatpush.xpose.msra.mxu0 %v8188
          %8212 = vmatpush.xpose.msra.mxu0 %v8186
          %8213 = vmatpush.xpose.msra.mxu0 %v8184
          %8214 = vmatpush.xpose.msra.mxu0 %v8182
          %8215 = vmatpush.xpose.msra.mxu0 %v8180
          %8216 = vmatpush.xpose.msra.mxu0 %v8178
          %8217 = vmatpush.xpose.msra.mxu0 %v8176
          %8218 = vmatpush.xpose.msra.mxu0 %v8174
          %8219 = vmatpush.xpose.msra.mxu0 %v8172
          %8220 = vmatmul.f32.gmra.mxu0 %v8140
          %v8221 = vpop.f32.mrf.mxu0
          %v8222 = vadd.f32 %v8028, %v8221
          %8223 = vmatmul.f32.gmra.mxu0 %v8142
          %v8224 = vpop.f32.mrf.mxu0
          %v8225 = vadd.f32 %v8029, %v8224
          %8226 = vmatmul.f32.gmra.mxu0 %v8144
          %v8227 = vpop.f32.mrf.mxu0
          %v8228 = vadd.f32 %v8030, %v8227
          %8229 = vmatmul.f32.gmra.mxu0 %v8146
          %v8230 = vpop.f32.mrf.mxu0
          %v8231 = vadd.f32 %v8031, %v8230
          %8232 = vmatmul.f32.gmra.mxu0 %v8148
          %v8233 = vpop.f32.mrf.mxu0
          %v8234 = vadd.f32 %v8032, %v8233
          %8235 = vmatmul.f32.gmra.mxu0 %v8150
          %v8236 = vpop.f32.mrf.mxu0
          %v8237 = vadd.f32 %v8033, %v8236
          %8238 = vmatmul.f32.gmra.mxu0 %v8152
          %v8239 = vpop.f32.mrf.mxu0
          %v8240 = vadd.f32 %v8034, %v8239
          %8241 = vmatmul.f32.gmra.mxu0 %v8154
          %v8242 = vpop.f32.mrf.mxu0
          %v8243 = vadd.f32 %v8035, %v8242
          %8244 = vmatmul.f32.gmra.mxu0 %v8156
          %v8245 = vpop.f32.mrf.mxu0
          %v8246 = vadd.f32 %v8036, %v8245
          %8247 = vmatmul.f32.gmra.mxu0 %v8158
          %v8248 = vpop.f32.mrf.mxu0
          %v8249 = vadd.f32 %v8037, %v8248
          %8250 = vmatmul.f32.gmra.mxu0 %v8160
          %v8251 = vpop.f32.mrf.mxu0
          %v8252 = vadd.f32 %v8038, %v8251
          %8253 = vmatmul.f32.gmra.mxu0 %v8162
          %v8254 = vpop.f32.mrf.mxu0
          %v8255 = vadd.f32 %v8039, %v8254
          %8256 = vmatmul.f32.gmra.mxu0 %v8164
          %v8257 = vpop.f32.mrf.mxu0
          %v8258 = vadd.f32 %v8040, %v8257
          %8259 = vmatmul.f32.gmra.mxu0 %v8166
          %v8260 = vpop.f32.mrf.mxu0
          %v8261 = vadd.f32 %v8041, %v8260
          %8262 = vmatmul.f32.gmra.mxu0 %v8168
          %v8263 = vpop.f32.mrf.mxu0
          %v8264 = vadd.f32 %v8042, %v8263
          %8265 = vmatmul.f32.gmra.mxu0 %v8170
          %v8266 = vpop.f32.mrf.mxu0
          %v8267 = vadd.f32 %v8043, %v8266
          %8268 = vdwg.mxu0
          %8269 = vmax.xlane.f32.xlu0 %v8222
          %v8270 = vpop.xlane.xlu0 %8269
          %8271 = vmax.xlane.f32.xlu0 %v8225
          %v8272 = vpop.xlane.xlu0 %8271
          %8273 = vmax.xlane.f32.xlu0 %v8228
          %v8274 = vpop.xlane.xlu0 %8273
          %8275 = vmax.xlane.f32.xlu0 %v8231
          %v8276 = vpop.xlane.xlu0 %8275
          %8277 = vmax.xlane.f32.xlu0 %v8234
          %v8278 = vpop.xlane.xlu0 %8277
          %8279 = vmax.xlane.f32.xlu0 %v8237
          %v8280 = vpop.xlane.xlu0 %8279
          %8281 = vmax.xlane.f32.xlu0 %v8240
          %v8282 = vpop.xlane.xlu0 %8281
          %8283 = vmax.xlane.f32.xlu0 %v8243
          %v8284 = vpop.xlane.xlu0 %8283
          %8285 = vmax.xlane.f32.xlu0 %v8246
          %v8286 = vpop.xlane.xlu0 %8285
          %8287 = vmax.xlane.f32.xlu0 %v8249
          %v8288 = vpop.xlane.xlu0 %8287
          %8289 = vmax.xlane.f32.xlu0 %v8252
          %v8290 = vpop.xlane.xlu0 %8289
          %8291 = vmax.xlane.f32.xlu0 %v8255
          %v8292 = vpop.xlane.xlu0 %8291
          %8293 = vmax.xlane.f32.xlu0 %v8258
          %v8294 = vpop.xlane.xlu0 %8293
          %8295 = vmax.xlane.f32.xlu0 %v8261
          %v8296 = vpop.xlane.xlu0 %8295
          %8297 = vmax.xlane.f32.xlu0 %v8264
          %v8298 = vpop.xlane.xlu0 %8297
          %8299 = vmax.xlane.f32.xlu0 %v8267
          %v8300 = vpop.xlane.xlu0 %8299
          %v8301 = vmax.f32 %v7936, %v8270
          %v8302 = vmax.f32 %v7937, %v8272
          %v8303 = vmax.f32 %v7938, %v8274
          %v8304 = vmax.f32 %v7939, %v8276
          %v8305 = vmax.f32 %v7940, %v8278
          %v8306 = vmax.f32 %v7941, %v8280
          %v8307 = vmax.f32 %v7942, %v8282
          %v8308 = vmax.f32 %v7943, %v8284
          %v8309 = vmax.f32 %v7944, %v8286
          %v8310 = vmax.f32 %v7945, %v8288
          %v8311 = vmax.f32 %v7946, %v8290
          %v8312 = vmax.f32 %v7947, %v8292
          %v8313 = vmax.f32 %v7948, %v8294
          %v8314 = vmax.f32 %v7949, %v8296
          %v8315 = vmax.f32 %v7950, %v8298
          %v8316 = vmax.f32 %v7951, %v8300
          %v8317 = vsub.f32 %v7936, %v8301
          %v8318 = vsub.f32 %v7937, %v8302
          %v8319 = vsub.f32 %v7938, %v8303
          %v8320 = vsub.f32 %v7939, %v8304
          %v8321 = vsub.f32 %v7940, %v8305
          %v8322 = vsub.f32 %v7941, %v8306
          %v8323 = vsub.f32 %v7942, %v8307
          %v8324 = vsub.f32 %v7943, %v8308
          %v8325 = vsub.f32 %v7944, %v8309
          %v8326 = vsub.f32 %v7945, %v8310
          %v8327 = vsub.f32 %v7946, %v8311
          %v8328 = vsub.f32 %v7947, %v8312
          %v8329 = vsub.f32 %v7948, %v8313
          %v8330 = vsub.f32 %v7949, %v8314
          %v8331 = vsub.f32 %v7950, %v8315
          %v8332 = vsub.f32 %v7951, %v8316
          %v8333 = vmul.f32 %v8317, 1.442695
          %v8334 = vpow.pop %v8333
          %v8335 = vmul.f32 %v8318, 1.442695
          %v8336 = vpow.pop %v8335
          %v8337 = vmul.f32 %v8319, 1.442695
          %v8338 = vpow.pop %v8337
          %v8339 = vmul.f32 %v8320, 1.442695
          %v8340 = vpow.pop %v8339
          %v8341 = vmul.f32 %v8321, 1.442695
          %v8342 = vpow.pop %v8341
          %v8343 = vmul.f32 %v8322, 1.442695
          %v8344 = vpow.pop %v8343
          %v8345 = vmul.f32 %v8323, 1.442695
          %v8346 = vpow.pop %v8345
          %v8347 = vmul.f32 %v8324, 1.442695
          %v8348 = vpow.pop %v8347
          %v8349 = vmul.f32 %v8325, 1.442695
          %v8350 = vpow.pop %v8349
          %v8351 = vmul.f32 %v8326, 1.442695
          %v8352 = vpow.pop %v8351
          %v8353 = vmul.f32 %v8327, 1.442695
          %v8354 = vpow.pop %v8353
          %v8355 = vmul.f32 %v8328, 1.442695
          %v8356 = vpow.pop %v8355
          %v8357 = vmul.f32 %v8329, 1.442695
          %v8358 = vpow.pop %v8357
          %v8359 = vmul.f32 %v8330, 1.442695
          %v8360 = vpow.pop %v8359
          %v8361 = vmul.f32 %v8331, 1.442695
          %v8362 = vpow.pop %v8361
          %v8363 = vmul.f32 %v8332, 1.442695
          %v8364 = vpow.pop %v8363
          %v8365 = vsub.f32 %v8222, %v8301
          %v8366 = vsub.f32 %v8225, %v8302
          %v8367 = vsub.f32 %v8228, %v8303
          %v8368 = vsub.f32 %v8231, %v8304
          %v8369 = vsub.f32 %v8234, %v8305
          %v8370 = vsub.f32 %v8237, %v8306
          %v8371 = vsub.f32 %v8240, %v8307
          %v8372 = vsub.f32 %v8243, %v8308
          %v8373 = vsub.f32 %v8246, %v8309
          %v8374 = vsub.f32 %v8249, %v8310
          %v8375 = vsub.f32 %v8252, %v8311
          %v8376 = vsub.f32 %v8255, %v8312
          %v8377 = vsub.f32 %v8258, %v8313
          %v8378 = vsub.f32 %v8261, %v8314
          %v8379 = vsub.f32 %v8264, %v8315
          %v8380 = vsub.f32 %v8267, %v8316
          %v8381 = vmul.f32 %v8365, 1.442695
          %v8382 = vpow.pop %v8381
          %v8383 = vmul.f32 %v8366, 1.442695
          %v8384 = vpow.pop %v8383
          %v8385 = vmul.f32 %v8367, 1.442695
          %v8386 = vpow.pop %v8385
          %v8387 = vmul.f32 %v8368, 1.442695
          %v8388 = vpow.pop %v8387
          %v8389 = vmul.f32 %v8369, 1.442695
          %v8390 = vpow.pop %v8389
          %v8391 = vmul.f32 %v8370, 1.442695
          %v8392 = vpow.pop %v8391
          %v8393 = vmul.f32 %v8371, 1.442695
          %v8394 = vpow.pop %v8393
          %v8395 = vmul.f32 %v8372, 1.442695
          %v8396 = vpow.pop %v8395
          %v8397 = vmul.f32 %v8373, 1.442695
          %v8398 = vpow.pop %v8397
          %v8399 = vmul.f32 %v8374, 1.442695
          %v8400 = vpow.pop %v8399
          %v8401 = vmul.f32 %v8375, 1.442695
          %v8402 = vpow.pop %v8401
          %v8403 = vmul.f32 %v8376, 1.442695
          %v8404 = vpow.pop %v8403
          %v8405 = vmul.f32 %v8377, 1.442695
          %v8406 = vpow.pop %v8405
          %v8407 = vmul.f32 %v8378, 1.442695
          %v8408 = vpow.pop %v8407
          %v8409 = vmul.f32 %v8379, 1.442695
          %v8410 = vpow.pop %v8409
          %v8411 = vmul.f32 %v8380, 1.442695
          %v8412 = vpow.pop %v8411
          %v8413 = vmul.f32 %v8334, %v7952
          %v8414 = vmul.f32 %v8336, %v7953
          %v8415 = vmul.f32 %v8338, %v7954
          %v8416 = vmul.f32 %v8340, %v7955
          %v8417 = vmul.f32 %v8342, %v7956
          %v8418 = vmul.f32 %v8344, %v7957
          %v8419 = vmul.f32 %v8346, %v7958
          %v8420 = vmul.f32 %v8348, %v7959
          %v8421 = vmul.f32 %v8350, %v7960
          %v8422 = vmul.f32 %v8352, %v7961
          %v8423 = vmul.f32 %v8354, %v7962
          %v8424 = vmul.f32 %v8356, %v7963
          %v8425 = vmul.f32 %v8358, %v7964
          %v8426 = vmul.f32 %v8360, %v7965
          %v8427 = vmul.f32 %v8362, %v7966
          %v8428 = vmul.f32 %v8364, %v7967
          %8429 = vadd.xlane.f32.xlu0 %v8382
          %v8430 = vpop.xlane.xlu0 %8429
          %8431 = vadd.xlane.f32.xlu0 %v8384
          %v8432 = vpop.xlane.xlu0 %8431
          %8433 = vadd.xlane.f32.xlu0 %v8386
          %v8434 = vpop.xlane.xlu0 %8433
          %8435 = vadd.xlane.f32.xlu0 %v8388
          %v8436 = vpop.xlane.xlu0 %8435
          %8437 = vadd.xlane.f32.xlu0 %v8390
          %v8438 = vpop.xlane.xlu0 %8437
          %8439 = vadd.xlane.f32.xlu0 %v8392
          %v8440 = vpop.xlane.xlu0 %8439
          %8441 = vadd.xlane.f32.xlu0 %v8394
          %v8442 = vpop.xlane.xlu0 %8441
          %8443 = vadd.xlane.f32.xlu0 %v8396
          %v8444 = vpop.xlane.xlu0 %8443
          %8445 = vadd.xlane.f32.xlu0 %v8398
          %v8446 = vpop.xlane.xlu0 %8445
          %8447 = vadd.xlane.f32.xlu0 %v8400
          %v8448 = vpop.xlane.xlu0 %8447
          %8449 = vadd.xlane.f32.xlu0 %v8402
          %v8450 = vpop.xlane.xlu0 %8449
          %8451 = vadd.xlane.f32.xlu0 %v8404
          %v8452 = vpop.xlane.xlu0 %8451
          %8453 = vadd.xlane.f32.xlu0 %v8406
          %v8454 = vpop.xlane.xlu0 %8453
          %8455 = vadd.xlane.f32.xlu0 %v8408
          %v8456 = vpop.xlane.xlu0 %8455
          %8457 = vadd.xlane.f32.xlu0 %v8410
          %v8458 = vpop.xlane.xlu0 %8457
          %8459 = vadd.xlane.f32.xlu0 %v8412
          %v8460 = vpop.xlane.xlu0 %8459
          %v8461 = vadd.f32 %v8413, %v8430
          %v8462 = vadd.f32 %v8414, %v8432
          %v8463 = vadd.f32 %v8415, %v8434
          %v8464 = vadd.f32 %v8416, %v8436
          %v8465 = vadd.f32 %v8417, %v8438
          %v8466 = vadd.f32 %v8418, %v8440
          %v8467 = vadd.f32 %v8419, %v8442
          %v8468 = vadd.f32 %v8420, %v8444
          %v8469 = vadd.f32 %v8421, %v8446
          %v8470 = vadd.f32 %v8422, %v8448
          %v8471 = vadd.f32 %v8423, %v8450
          %v8472 = vadd.f32 %v8424, %v8452
          %v8473 = vadd.f32 %v8425, %v8454
          %v8474 = vadd.f32 %v8426, %v8456
          %v8475 = vadd.f32 %v8427, %v8458
          %v8476 = vadd.f32 %v8428, %v8460
          %v8477 = vmul.f32 %v8334, %v7968
          %v8478 = vmul.f32 %v8336, %v7969
          %v8479 = vmul.f32 %v8338, %v7970
          %v8480 = vmul.f32 %v8340, %v7971
          %v8481 = vmul.f32 %v8342, %v7972
          %v8482 = vmul.f32 %v8344, %v7973
          %v8483 = vmul.f32 %v8346, %v7974
          %v8484 = vmul.f32 %v8348, %v7975
          %v8485 = vmul.f32 %v8350, %v7976
          %v8486 = vmul.f32 %v8352, %v7977
          %v8487 = vmul.f32 %v8354, %v7978
          %v8488 = vmul.f32 %v8356, %v7979
          %v8489 = vmul.f32 %v8358, %v7980
          %v8490 = vmul.f32 %v8360, %v7981
          %v8491 = vmul.f32 %v8362, %v7982
          %v8492 = vmul.f32 %v8364, %v7983
          %8509 = vrot.lane.b32.xlu0 %v8008, 64
          %v8510 = vpop.permute.xlu0 %8509
          %8511 = vrot.lane.b32.xlu0 %v8009, 64
          %v8512 = vpop.permute.xlu0 %8511
          %8513 = vrot.lane.b32.xlu0 %v8010, 64
          %v8514 = vpop.permute.xlu0 %8513
          %8515 = vrot.lane.b32.xlu0 %v8011, 64
          %v8516 = vpop.permute.xlu0 %8515
          %8517 = vrot.lane.b32.xlu0 %v8012, 64
          %v8518 = vpop.permute.xlu0 %8517
          %8519 = vrot.lane.b32.xlu0 %v8013, 64
          %v8520 = vpop.permute.xlu0 %8519
          %8521 = vrot.lane.b32.xlu0 %v8014, 64
          %v8522 = vpop.permute.xlu0 %8521
          %8523 = vrot.lane.b32.xlu0 %v8015, 64
          %v8524 = vpop.permute.xlu0 %8523
          %8525 = vrot.lane.b32.xlu0 %v8016, 64
          %v8526 = vpop.permute.xlu0 %8525
          %8527 = vrot.lane.b32.xlu0 %v8017, 64
          %v8528 = vpop.permute.xlu0 %8527
          %8529 = vrot.lane.b32.xlu0 %v8018, 64
          %v8530 = vpop.permute.xlu0 %8529
          %8531 = vrot.lane.b32.xlu0 %v8019, 64
          %v8532 = vpop.permute.xlu0 %8531
          %8533 = vrot.lane.b32.xlu0 %v8020, 64
          %v8534 = vpop.permute.xlu0 %8533
          %8535 = vrot.lane.b32.xlu0 %v8021, 64
          %v8536 = vpop.permute.xlu0 %8535
          %8537 = vrot.lane.b32.xlu0 %v8022, 64
          %v8538 = vpop.permute.xlu0 %8537
          %8539 = vrot.lane.b32.xlu0 %v8023, 64
          %v8540 = vpop.permute.xlu0 %8539
          %8557 = vmatpush.msra.mxu0 %v8540
          %8558 = vmatpush.msra.mxu0 %v8538
          %8559 = vmatpush.msra.mxu0 %v8536
          %8560 = vmatpush.msra.mxu0 %v8534
          %8561 = vmatpush.msra.mxu0 %v8532
          %8562 = vmatpush.msra.mxu0 %v8530
          %8563 = vmatpush.msra.mxu0 %v8528
          %8564 = vmatpush.msra.mxu0 %v8526
          %8565 = vmatpush.msra.mxu0 %v8524
          %8566 = vmatpush.msra.mxu0 %v8522
          %8567 = vmatpush.msra.mxu0 %v8520
          %8568 = vmatpush.msra.mxu0 %v8518
          %8569 = vmatpush.msra.mxu0 %v8516
          %8570 = vmatpush.msra.mxu0 %v8514
          %8571 = vmatpush.msra.mxu0 %v8512
          %8572 = vmatpush.msra.mxu0 %v8510
          %8573 = vmatmul.f32.gmra.mxu0 %v8382
          %v8574 = vpop.f32.mrf.mxu0
          %v8575 = vadd.f32 0.0, %v8574
          %8576 = vmatmul.f32.gmra.mxu0 %v8384
          %v8577 = vpop.f32.mrf.mxu0
          %v8578 = vadd.f32 0.0, %v8577
          %8579 = vmatmul.f32.gmra.mxu0 %v8386
          %v8580 = vpop.f32.mrf.mxu0
          %v8581 = vadd.f32 0.0, %v8580
          %8582 = vmatmul.f32.gmra.mxu0 %v8388
          %v8583 = vpop.f32.mrf.mxu0
          %v8584 = vadd.f32 0.0, %v8583
          %8585 = vmatmul.f32.gmra.mxu0 %v8390
          %v8586 = vpop.f32.mrf.mxu0
          %v8587 = vadd.f32 0.0, %v8586
          %8588 = vmatmul.f32.gmra.mxu0 %v8392
          %v8589 = vpop.f32.mrf.mxu0
          %v8590 = vadd.f32 0.0, %v8589
          %8591 = vmatmul.f32.gmra.mxu0 %v8394
          %v8592 = vpop.f32.mrf.mxu0
          %v8593 = vadd.f32 0.0, %v8592
          %8594 = vmatmul.f32.gmra.mxu0 %v8396
          %v8595 = vpop.f32.mrf.mxu0
          %v8596 = vadd.f32 0.0, %v8595
          %8597 = vmatmul.f32.gmra.mxu0 %v8398
          %v8598 = vpop.f32.mrf.mxu0
          %v8599 = vadd.f32 0.0, %v8598
          %8600 = vmatmul.f32.gmra.mxu0 %v8400
          %v8601 = vpop.f32.mrf.mxu0
          %v8602 = vadd.f32 0.0, %v8601
          %8603 = vmatmul.f32.gmra.mxu0 %v8402
          %v8604 = vpop.f32.mrf.mxu0
          %v8605 = vadd.f32 0.0, %v8604
          %8606 = vmatmul.f32.gmra.mxu0 %v8404
          %v8607 = vpop.f32.mrf.mxu0
          %v8608 = vadd.f32 0.0, %v8607
          %8609 = vmatmul.f32.gmra.mxu0 %v8406
          %v8610 = vpop.f32.mrf.mxu0
          %v8611 = vadd.f32 0.0, %v8610
          %8612 = vmatmul.f32.gmra.mxu0 %v8408
          %v8613 = vpop.f32.mrf.mxu0
          %v8614 = vadd.f32 0.0, %v8613
          %8615 = vmatmul.f32.gmra.mxu0 %v8410
          %v8616 = vpop.f32.mrf.mxu0
          %v8617 = vadd.f32 0.0, %v8616
          %8618 = vmatmul.f32.gmra.mxu0 %v8412
          %v8619 = vpop.f32.mrf.mxu0
          %v8620 = vadd.f32 0.0, %v8619
          %8621 = vdwg.mxu0
          %v8622 = vadd.f32 %v8477, %v8575
          %v8623 = vadd.f32 %v8478, %v8578
          %v8624 = vadd.f32 %v8479, %v8581
          %v8625 = vadd.f32 %v8480, %v8584
          %v8626 = vadd.f32 %v8481, %v8587
          %v8627 = vadd.f32 %v8482, %v8590
          %v8628 = vadd.f32 %v8483, %v8593
          %v8629 = vadd.f32 %v8484, %v8596
          %v8630 = vadd.f32 %v8485, %v8599
          %v8631 = vadd.f32 %v8486, %v8602
          %v8632 = vadd.f32 %v8487, %v8605
          %v8633 = vadd.f32 %v8488, %v8608
          %v8634 = vadd.f32 %v8489, %v8611
          %v8635 = vadd.f32 %v8490, %v8614
          %v8636 = vadd.f32 %v8491, %v8617
          %v8637 = vadd.f32 %v8492, %v8620
        $region131: #{tpu_custom_call.1} parent=55 // loop_footer
          %s7933 = sadd.s32 %s7931, 1
        $region132: #{tpu_custom_call.1} parent=55 // loop_footer_branch
          %7930 = sbr.rel target = $region128
        $region133: #{tpu_custom_call.1} parent=55 // loop_exit
          _
        %v8638 = vrcp.pop %v7952
        %v8639 = vmul.f32 %v7952, %v8638
        %v8640 = vsub.f32 1.0, %v8639
        %v8641 = vmul.f32 %v8638, %v8640
        %v8642 = vadd.f32 %v8638, %v8641
        %vm8643 = vweird.f32 %v7952
        %vm8644 = vweird.f32 %v8638
        %vm8645 = vmor %vm8643, %vm8644
        %v8646 = vsel %vm8645, %v8638, %v8642
        %v8647 = vand.u32 2147483647, %v7952
        %vm8648 = vcmp.eq.f32.partialorder %v8647, 8.507059e+37
        %v8649 = vand.u32 %v7952, 2147483648
        %v8650 = vor.u32 1.1754944e-38, %v8649
        %v8651 = vsel %vm8648, %v8650, %v8646
        %v8652 = vrcp.pop %v7953
        %v8653 = vmul.f32 %v7953, %v8652
        %v8654 = vsub.f32 1.0, %v8653
        %v8655 = vmul.f32 %v8652, %v8654
        %v8656 = vadd.f32 %v8652, %v8655
        %vm8657 = vweird.f32 %v7953
        %vm8658 = vweird.f32 %v8652
        %vm8659 = vmor %vm8657, %vm8658
        %v8660 = vsel %vm8659, %v8652, %v8656
        %v8661 = vand.u32 2147483647, %v7953
        %vm8662 = vcmp.eq.f32.partialorder %v8661, 8.507059e+37
        %v8663 = vand.u32 %v7953, 2147483648
        %v8664 = vor.u32 1.1754944e-38, %v8663
        %v8665 = vsel %vm8662, %v8664, %v8660
        %v8666 = vrcp.pop %v7954
        %v8667 = vmul.f32 %v7954, %v8666
        %v8668 = vsub.f32 1.0, %v8667
        %v8669 = vmul.f32 %v8666, %v8668
        %v8670 = vadd.f32 %v8666, %v8669
        %vm8671 = vweird.f32 %v7954
        %vm8672 = vweird.f32 %v8666
        %vm8673 = vmor %vm8671, %vm8672
        %v8674 = vsel %vm8673, %v8666, %v8670
        %v8675 = vand.u32 2147483647, %v7954
        %vm8676 = vcmp.eq.f32.partialorder %v8675, 8.507059e+37
        %v8677 = vand.u32 %v7954, 2147483648
        %v8678 = vor.u32 1.1754944e-38, %v8677
        %v8679 = vsel %vm8676, %v8678, %v8674
        %v8680 = vrcp.pop %v7955
        %v8681 = vmul.f32 %v7955, %v8680
        %v8682 = vsub.f32 1.0, %v8681
        %v8683 = vmul.f32 %v8680, %v8682
        %v8684 = vadd.f32 %v8680, %v8683
        %vm8685 = vweird.f32 %v7955
        %vm8686 = vweird.f32 %v8680
        %vm8687 = vmor %vm8685, %vm8686
        %v8688 = vsel %vm8687, %v8680, %v8684
        %v8689 = vand.u32 2147483647, %v7955
        %vm8690 = vcmp.eq.f32.partialorder %v8689, 8.507059e+37
        %v8691 = vand.u32 %v7955, 2147483648
        %v8692 = vor.u32 1.1754944e-38, %v8691
        %v8693 = vsel %vm8690, %v8692, %v8688
        %v8694 = vrcp.pop %v7956
        %v8695 = vmul.f32 %v7956, %v8694
        %v8696 = vsub.f32 1.0, %v8695
        %v8697 = vmul.f32 %v8694, %v8696
        %v8698 = vadd.f32 %v8694, %v8697
        %vm8699 = vweird.f32 %v7956
        %vm8700 = vweird.f32 %v8694
        %vm8701 = vmor %vm8699, %vm8700
        %v8702 = vsel %vm8701, %v8694, %v8698
        %v8703 = vand.u32 2147483647, %v7956
        %vm8704 = vcmp.eq.f32.partialorder %v8703, 8.507059e+37
        %v8705 = vand.u32 %v7956, 2147483648
        %v8706 = vor.u32 1.1754944e-38, %v8705
        %v8707 = vsel %vm8704, %v8706, %v8702
        %v8708 = vrcp.pop %v7957
        %v8709 = vmul.f32 %v7957, %v8708
        %v8710 = vsub.f32 1.0, %v8709
        %v8711 = vmul.f32 %v8708, %v8710
        %v8712 = vadd.f32 %v8708, %v8711
        %vm8713 = vweird.f32 %v7957
        %vm8714 = vweird.f32 %v8708
        %vm8715 = vmor %vm8713, %vm8714
        %v8716 = vsel %vm8715, %v8708, %v8712
        %v8717 = vand.u32 2147483647, %v7957
        %vm8718 = vcmp.eq.f32.partialorder %v8717, 8.507059e+37
        %v8719 = vand.u32 %v7957, 2147483648
        %v8720 = vor.u32 1.1754944e-38, %v8719
        %v8721 = vsel %vm8718, %v8720, %v8716
        %v8722 = vrcp.pop %v7958
        %v8723 = vmul.f32 %v7958, %v8722
        %v8724 = vsub.f32 1.0, %v8723
        %v8725 = vmul.f32 %v8722, %v8724
        %v8726 = vadd.f32 %v8722, %v8725
        %vm8727 = vweird.f32 %v7958
        %vm8728 = vweird.f32 %v8722
        %vm8729 = vmor %vm8727, %vm8728
        %v8730 = vsel %vm8729, %v8722, %v8726
        %v8731 = vand.u32 2147483647, %v7958
        %vm8732 = vcmp.eq.f32.partialorder %v8731, 8.507059e+37
        %v8733 = vand.u32 %v7958, 2147483648
        %v8734 = vor.u32 1.1754944e-38, %v8733
        %v8735 = vsel %vm8732, %v8734, %v8730
        %v8736 = vrcp.pop %v7959
        %v8737 = vmul.f32 %v7959, %v8736
        %v8738 = vsub.f32 1.0, %v8737
        %v8739 = vmul.f32 %v8736, %v8738
        %v8740 = vadd.f32 %v8736, %v8739
        %vm8741 = vweird.f32 %v7959
        %vm8742 = vweird.f32 %v8736
        %vm8743 = vmor %vm8741, %vm8742
        %v8744 = vsel %vm8743, %v8736, %v8740
        %v8745 = vand.u32 2147483647, %v7959
        %vm8746 = vcmp.eq.f32.partialorder %v8745, 8.507059e+37
        %v8747 = vand.u32 %v7959, 2147483648
        %v8748 = vor.u32 1.1754944e-38, %v8747
        %v8749 = vsel %vm8746, %v8748, %v8744
        %v8750 = vrcp.pop %v7960
        %v8751 = vmul.f32 %v7960, %v8750
        %v8752 = vsub.f32 1.0, %v8751
        %v8753 = vmul.f32 %v8750, %v8752
        %v8754 = vadd.f32 %v8750, %v8753
        %vm8755 = vweird.f32 %v7960
        %vm8756 = vweird.f32 %v8750
        %vm8757 = vmor %vm8755, %vm8756
        %v8758 = vsel %vm8757, %v8750, %v8754
        %v8759 = vand.u32 2147483647, %v7960
        %vm8760 = vcmp.eq.f32.partialorder %v8759, 8.507059e+37
        %v8761 = vand.u32 %v7960, 2147483648
        %v8762 = vor.u32 1.1754944e-38, %v8761
        %v8763 = vsel %vm8760, %v8762, %v8758
        %v8764 = vrcp.pop %v7961
        %v8765 = vmul.f32 %v7961, %v8764
        %v8766 = vsub.f32 1.0, %v8765
        %v8767 = vmul.f32 %v8764, %v8766
        %v8768 = vadd.f32 %v8764, %v8767
        %vm8769 = vweird.f32 %v7961
        %vm8770 = vweird.f32 %v8764
        %vm8771 = vmor %vm8769, %vm8770
        %v8772 = vsel %vm8771, %v8764, %v8768
        %v8773 = vand.u32 2147483647, %v7961
        %vm8774 = vcmp.eq.f32.partialorder %v8773, 8.507059e+37
        %v8775 = vand.u32 %v7961, 2147483648
        %v8776 = vor.u32 1.1754944e-38, %v8775
        %v8777 = vsel %vm8774, %v8776, %v8772
        %v8778 = vrcp.pop %v7962
        %v8779 = vmul.f32 %v7962, %v8778
        %v8780 = vsub.f32 1.0, %v8779
        %v8781 = vmul.f32 %v8778, %v8780
        %v8782 = vadd.f32 %v8778, %v8781
        %vm8783 = vweird.f32 %v7962
        %vm8784 = vweird.f32 %v8778
        %vm8785 = vmor %vm8783, %vm8784
        %v8786 = vsel %vm8785, %v8778, %v8782
        %v8787 = vand.u32 2147483647, %v7962
        %vm8788 = vcmp.eq.f32.partialorder %v8787, 8.507059e+37
        %v8789 = vand.u32 %v7962, 2147483648
        %v8790 = vor.u32 1.1754944e-38, %v8789
        %v8791 = vsel %vm8788, %v8790, %v8786
        %v8792 = vrcp.pop %v7963
        %v8793 = vmul.f32 %v7963, %v8792
        %v8794 = vsub.f32 1.0, %v8793
        %v8795 = vmul.f32 %v8792, %v8794
        %v8796 = vadd.f32 %v8792, %v8795
        %vm8797 = vweird.f32 %v7963
        %vm8798 = vweird.f32 %v8792
        %vm8799 = vmor %vm8797, %vm8798
        %v8800 = vsel %vm8799, %v8792, %v8796
        %v8801 = vand.u32 2147483647, %v7963
        %vm8802 = vcmp.eq.f32.partialorder %v8801, 8.507059e+37
        %v8803 = vand.u32 %v7963, 2147483648
        %v8804 = vor.u32 1.1754944e-38, %v8803
        %v8805 = vsel %vm8802, %v8804, %v8800
        %v8806 = vrcp.pop %v7964
        %v8807 = vmul.f32 %v7964, %v8806
        %v8808 = vsub.f32 1.0, %v8807
        %v8809 = vmul.f32 %v8806, %v8808
        %v8810 = vadd.f32 %v8806, %v8809
        %vm8811 = vweird.f32 %v7964
        %vm8812 = vweird.f32 %v8806
        %vm8813 = vmor %vm8811, %vm8812
        %v8814 = vsel %vm8813, %v8806, %v8810
        %v8815 = vand.u32 2147483647, %v7964
        %vm8816 = vcmp.eq.f32.partialorder %v8815, 8.507059e+37
        %v8817 = vand.u32 %v7964, 2147483648
        %v8818 = vor.u32 1.1754944e-38, %v8817
        %v8819 = vsel %vm8816, %v8818, %v8814
        %v8820 = vrcp.pop %v7965
        %v8821 = vmul.f32 %v7965, %v8820
        %v8822 = vsub.f32 1.0, %v8821
        %v8823 = vmul.f32 %v8820, %v8822
        %v8824 = vadd.f32 %v8820, %v8823
        %vm8825 = vweird.f32 %v7965
        %vm8826 = vweird.f32 %v8820
        %vm8827 = vmor %vm8825, %vm8826
        %v8828 = vsel %vm8827, %v8820, %v8824
        %v8829 = vand.u32 2147483647, %v7965
        %vm8830 = vcmp.eq.f32.partialorder %v8829, 8.507059e+37
        %v8831 = vand.u32 %v7965, 2147483648
        %v8832 = vor.u32 1.1754944e-38, %v8831
        %v8833 = vsel %vm8830, %v8832, %v8828
        %v8834 = vrcp.pop %v7966
        %v8835 = vmul.f32 %v7966, %v8834
        %v8836 = vsub.f32 1.0, %v8835
        %v8837 = vmul.f32 %v8834, %v8836
        %v8838 = vadd.f32 %v8834, %v8837
        %vm8839 = vweird.f32 %v7966
        %vm8840 = vweird.f32 %v8834
        %vm8841 = vmor %vm8839, %vm8840
        %v8842 = vsel %vm8841, %v8834, %v8838
        %v8843 = vand.u32 2147483647, %v7966
        %vm8844 = vcmp.eq.f32.partialorder %v8843, 8.507059e+37
        %v8845 = vand.u32 %v7966, 2147483648
        %v8846 = vor.u32 1.1754944e-38, %v8845
        %v8847 = vsel %vm8844, %v8846, %v8842
        %v8848 = vrcp.pop %v7967
        %v8849 = vmul.f32 %v7967, %v8848
        %v8850 = vsub.f32 1.0, %v8849
        %v8851 = vmul.f32 %v8848, %v8850
        %v8852 = vadd.f32 %v8848, %v8851
        %vm8853 = vweird.f32 %v7967
        %vm8854 = vweird.f32 %v8848
        %vm8855 = vmor %vm8853, %vm8854
        %v8856 = vsel %vm8855, %v8848, %v8852
        %v8857 = vand.u32 2147483647, %v7967
        %vm8858 = vcmp.eq.f32.partialorder %v8857, 8.507059e+37
        %v8859 = vand.u32 %v7967, 2147483648
        %v8860 = vor.u32 1.1754944e-38, %v8859
        %v8861 = vsel %vm8858, %v8860, %v8856
        %v8862 = vmul.f32 %v7968, %v8651
        %v8863 = vmul.f32 %v7969, %v8665
        %v8864 = vmul.f32 %v7970, %v8679
        %v8865 = vmul.f32 %v7971, %v8693
        %v8866 = vmul.f32 %v7972, %v8707
        %v8867 = vmul.f32 %v7973, %v8721
        %v8868 = vmul.f32 %v7974, %v8735
        %v8869 = vmul.f32 %v7975, %v8749
        %v8870 = vmul.f32 %v7976, %v8763
        %v8871 = vmul.f32 %v7977, %v8777
        %v8872 = vmul.f32 %v7978, %v8791
        %v8873 = vmul.f32 %v7979, %v8805
        %v8874 = vmul.f32 %v7980, %v8819
        %v8875 = vmul.f32 %v7981, %v8833
        %v8876 = vmul.f32 %v7982, %v8847
        %v8877 = vmul.f32 %v7983, %v8861
        %8894 = vrot.lane.b32.xlu0 %v8862, 64
        %v8895 = vpop.permute.xlu0 %8894
        %8896 = vrot.lane.b32.xlu0 %v8863, 64
        %v8897 = vpop.permute.xlu0 %8896
        %8898 = vrot.lane.b32.xlu0 %v8864, 64
        %v8899 = vpop.permute.xlu0 %8898
        %8900 = vrot.lane.b32.xlu0 %v8865, 64
        %v8901 = vpop.permute.xlu0 %8900
        %8902 = vrot.lane.b32.xlu0 %v8866, 64
        %v8903 = vpop.permute.xlu0 %8902
        %8904 = vrot.lane.b32.xlu0 %v8867, 64
        %v8905 = vpop.permute.xlu0 %8904
        %8906 = vrot.lane.b32.xlu0 %v8868, 64
        %v8907 = vpop.permute.xlu0 %8906
        %8908 = vrot.lane.b32.xlu0 %v8869, 64
        %v8909 = vpop.permute.xlu0 %8908
        %8910 = vrot.lane.b32.xlu0 %v8870, 64
        %v8911 = vpop.permute.xlu0 %8910
        %8912 = vrot.lane.b32.xlu0 %v8871, 64
        %v8913 = vpop.permute.xlu0 %8912
        %8914 = vrot.lane.b32.xlu0 %v8872, 64
        %v8915 = vpop.permute.xlu0 %8914
        %8916 = vrot.lane.b32.xlu0 %v8873, 64
        %v8917 = vpop.permute.xlu0 %8916
        %8918 = vrot.lane.b32.xlu0 %v8874, 64
        %v8919 = vpop.permute.xlu0 %8918
        %8920 = vrot.lane.b32.xlu0 %v8875, 64
        %v8921 = vpop.permute.xlu0 %8920
        %8922 = vrot.lane.b32.xlu0 %v8876, 64
        %v8923 = vpop.permute.xlu0 %8922
        %8924 = vrot.lane.b32.xlu0 %v8877, 64
        %v8925 = vpop.permute.xlu0 %8924
        %8942 = vst.msk [vmem:[#allocation4 + $0x8] sm:$0xff] %vm5020, %v8895
        %8943 = vst.msk [vmem:[#allocation4 + $0x18] sm:$0xff] %vm5020, %v8897
        %8944 = vst.msk [vmem:[#allocation4 + $0x28] sm:$0xff] %vm5020, %v8899
        %8945 = vst.msk [vmem:[#allocation4 + $0x38] sm:$0xff] %vm5020, %v8901
        %8946 = vst.msk [vmem:[#allocation4 + $0x48] sm:$0xff] %vm5020, %v8903
        %8947 = vst.msk [vmem:[#allocation4 + $0x58] sm:$0xff] %vm5020, %v8905
        %8948 = vst.msk [vmem:[#allocation4 + $0x68] sm:$0xff] %vm5020, %v8907
        %8949 = vst.msk [vmem:[#allocation4 + $0x78] sm:$0xff] %vm5020, %v8909
        %8950 = vst.msk [vmem:[#allocation4 + $0x88] sm:$0xff] %vm5020, %v8911
        %8951 = vst.msk [vmem:[#allocation4 + $0x98] sm:$0xff] %vm5020, %v8913
        %8952 = vst.msk [vmem:[#allocation4 + $0xa8] sm:$0xff] %vm5020, %v8915
        %8953 = vst.msk [vmem:[#allocation4 + $0xb8] sm:$0xff] %vm5020, %v8917
        %8954 = vst.msk [vmem:[#allocation4 + $0xc8] sm:$0xff] %vm5020, %v8919
        %8955 = vst.msk [vmem:[#allocation4 + $0xd8] sm:$0xff] %vm5020, %v8921
        %8956 = vst.msk [vmem:[#allocation4 + $0xe8] sm:$0xff] %vm5020, %v8923
        %8957 = vst.msk [vmem:[#allocation4 + $0xf8] sm:$0xff] %vm5020, %v8925
        // While loop
        $region134: #{tpu_custom_call.1} parent=55 // loop_pre_header
          _
        $region135: #{tpu_custom_call.1} parent=55 // loop_header
          %s8959 = sphi 0, %s8961
          %p8960 = scmp.ge.s32.totalorder %s8959, %s2140
          %v8964 = vphi -inf, %v9329
          %v8965 = vphi -inf, %v9330
          %v8966 = vphi -inf, %v9331
          %v8967 = vphi -inf, %v9332
          %v8968 = vphi -inf, %v9333
          %v8969 = vphi -inf, %v9334
          %v8970 = vphi -inf, %v9335
          %v8971 = vphi -inf, %v9336
          %v8972 = vphi -inf, %v9337
          %v8973 = vphi -inf, %v9338
          %v8974 = vphi -inf, %v9339
          %v8975 = vphi -inf, %v9340
          %v8976 = vphi -inf, %v9341
          %v8977 = vphi -inf, %v9342
          %v8978 = vphi -inf, %v9343
          %v8979 = vphi -inf, %v9344
          %v8980 = vphi 0.0, %v9489
          %v8981 = vphi 0.0, %v9490
          %v8982 = vphi 0.0, %v9491
          %v8983 = vphi 0.0, %v9492
          %v8984 = vphi 0.0, %v9493
          %v8985 = vphi 0.0, %v9494
          %v8986 = vphi 0.0, %v9495
          %v8987 = vphi 0.0, %v9496
          %v8988 = vphi 0.0, %v9497
          %v8989 = vphi 0.0, %v9498
          %v8990 = vphi 0.0, %v9499
          %v8991 = vphi 0.0, %v9500
          %v8992 = vphi 0.0, %v9501
          %v8993 = vphi 0.0, %v9502
          %v8994 = vphi 0.0, %v9503
          %v8995 = vphi 0.0, %v9504
          %v8996 = vphi 0.0, %v9650
          %v8997 = vphi 0.0, %v9651
          %v8998 = vphi 0.0, %v9652
          %v8999 = vphi 0.0, %v9653
          %v9000 = vphi 0.0, %v9654
          %v9001 = vphi 0.0, %v9655
          %v9002 = vphi 0.0, %v9656
          %v9003 = vphi 0.0, %v9657
          %v9004 = vphi 0.0, %v9658
          %v9005 = vphi 0.0, %v9659
          %v9006 = vphi 0.0, %v9660
          %v9007 = vphi 0.0, %v9661
          %v9008 = vphi 0.0, %v9662
          %v9009 = vphi 0.0, %v9663
          %v9010 = vphi 0.0, %v9664
          %v9011 = vphi 0.0, %v9665
        $region136: #{tpu_custom_call.1} parent=55 // loop_header_branch
          %8963 = sbr.rel (%p8960) target = $region140
        $region137: #{tpu_custom_call.1} parent=55 // loop_body
          %s9012 = smul.u32 %s8959, 128
          %s9013 = sshra.s32 %s9012, 3
          %s9014 = sand.u32 %s9012, 7
          %s9015 = smul.u32 %s9013, 2
          %s9016 = smul.addr %s9015, 8
          %s9017 = scalar_lea.vmem [#allocation2], %s9016
          %v9018 = vld [vmem:[%s9017 + $0x8] sm:$0xff]
          %v9019 = vld [vmem:[%s9017 + $0x18] sm:$0xff]
          %v9020 = vld [vmem:[%s9017 + $0x28] sm:$0xff]
          %v9021 = vld [vmem:[%s9017 + $0x38] sm:$0xff]
          %v9022 = vld [vmem:[%s9017 + $0x48] sm:$0xff]
          %v9023 = vld [vmem:[%s9017 + $0x58] sm:$0xff]
          %v9024 = vld [vmem:[%s9017 + $0x68] sm:$0xff]
          %v9025 = vld [vmem:[%s9017 + $0x78] sm:$0xff]
          %v9026 = vld [vmem:[%s9017 + $0x88] sm:$0xff]
          %v9027 = vld [vmem:[%s9017 + $0x98] sm:$0xff]
          %v9028 = vld [vmem:[%s9017 + $0xa8] sm:$0xff]
          %v9029 = vld [vmem:[%s9017 + $0xb8] sm:$0xff]
          %v9030 = vld [vmem:[%s9017 + $0xc8] sm:$0xff]
          %v9031 = vld [vmem:[%s9017 + $0xd8] sm:$0xff]
          %v9032 = vld [vmem:[%s9017 + $0xe8] sm:$0xff]
          %v9033 = vld [vmem:[%s9017 + $0xf8] sm:$0xff]
          %s9034 = smul.addr %s9015, 8
          %s9035 = scalar_lea.vmem [#allocation3], %s9034
          %v9036 = vld [vmem:[%s9035 + $0x8] sm:$0xff]
          %v9037 = vld [vmem:[%s9035 + $0x18] sm:$0xff]
          %v9038 = vld [vmem:[%s9035 + $0x28] sm:$0xff]
          %v9039 = vld [vmem:[%s9035 + $0x38] sm:$0xff]
          %v9040 = vld [vmem:[%s9035 + $0x48] sm:$0xff]
          %v9041 = vld [vmem:[%s9035 + $0x58] sm:$0xff]
          %v9042 = vld [vmem:[%s9035 + $0x68] sm:$0xff]
          %v9043 = vld [vmem:[%s9035 + $0x78] sm:$0xff]
          %v9044 = vld [vmem:[%s9035 + $0x88] sm:$0xff]
          %v9045 = vld [vmem:[%s9035 + $0x98] sm:$0xff]
          %v9046 = vld [vmem:[%s9035 + $0xa8] sm:$0xff]
          %v9047 = vld [vmem:[%s9035 + $0xb8] sm:$0xff]
          %v9048 = vld [vmem:[%s9035 + $0xc8] sm:$0xff]
          %v9049 = vld [vmem:[%s9035 + $0xd8] sm:$0xff]
          %v9050 = vld [vmem:[%s9035 + $0xe8] sm:$0xff]
          %v9051 = vld [vmem:[%s9035 + $0xf8] sm:$0xff]
          %p9052 = scmp.eq.s32.totalorder %s8959, %s34
          %s9053 = scalar_select %p9052, 1, 0
          %s9054 = scvt.s32.f32 %s9053
          %v9055 = vstv %s9054
          %v9056 = vmul.f32 %v2124, %v9055
          %v9057 = vmul.f32 %v2125, %v9055
          %v9058 = vmul.f32 %v2126, %v9055
          %v9059 = vmul.f32 %v2127, %v9055
          %v9060 = vmul.f32 %v2128, %v9055
          %v9061 = vmul.f32 %v2129, %v9055
          %v9062 = vmul.f32 %v2130, %v9055
          %v9063 = vmul.f32 %v2131, %v9055
          %v9064 = vmul.f32 %v2132, %v9055
          %v9065 = vmul.f32 %v2133, %v9055
          %v9066 = vmul.f32 %v2134, %v9055
          %v9067 = vmul.f32 %v2135, %v9055
          %v9068 = vmul.f32 %v2136, %v9055
          %v9069 = vmul.f32 %v2137, %v9055
          %v9070 = vmul.f32 %v2138, %v9055
          %v9071 = vmul.f32 %v2139, %v9055
          %9088 = vrot.lane.b32.xlu0 %v2058, 32
          %v9089 = vpop.permute.xlu0 %9088
          %9090 = vrot.lane.b32.xlu0 %v2060, 32
          %v9091 = vpop.permute.xlu0 %9090
          %9092 = vrot.lane.b32.xlu0 %v2062, 32
          %v9093 = vpop.permute.xlu0 %9092
          %9094 = vrot.lane.b32.xlu0 %v2064, 32
          %v9095 = vpop.permute.xlu0 %9094
          %9096 = vrot.lane.b32.xlu0 %v2066, 32
          %v9097 = vpop.permute.xlu0 %9096
          %9098 = vrot.lane.b32.xlu0 %v2068, 32
          %v9099 = vpop.permute.xlu0 %9098
          %9100 = vrot.lane.b32.xlu0 %v2070, 32
          %v9101 = vpop.permute.xlu0 %9100
          %9102 = vrot.lane.b32.xlu0 %v2072, 32
          %v9103 = vpop.permute.xlu0 %9102
          %9104 = vrot.lane.b32.xlu0 %v2074, 32
          %v9105 = vpop.permute.xlu0 %9104
          %9106 = vrot.lane.b32.xlu0 %v2076, 32
          %v9107 = vpop.permute.xlu0 %9106
          %9108 = vrot.lane.b32.xlu0 %v2078, 32
          %v9109 = vpop.permute.xlu0 %9108
          %9110 = vrot.lane.b32.xlu0 %v2080, 32
          %v9111 = vpop.permute.xlu0 %9110
          %9112 = vrot.lane.b32.xlu0 %v2082, 32
          %v9113 = vpop.permute.xlu0 %9112
          %9114 = vrot.lane.b32.xlu0 %v2084, 32
          %v9115 = vpop.permute.xlu0 %9114
          %9116 = vrot.lane.b32.xlu0 %v2086, 32
          %v9117 = vpop.permute.xlu0 %9116
          %9118 = vrot.lane.b32.xlu0 %v2088, 32
          %v9119 = vpop.permute.xlu0 %9118
          %9136 = vrot.lane.b32.xlu0 %v9018, 32
          %v9137 = vpop.permute.xlu0 %9136
          %9138 = vrot.lane.b32.xlu0 %v9019, 32
          %v9139 = vpop.permute.xlu0 %9138
          %9140 = vrot.lane.b32.xlu0 %v9020, 32
          %v9141 = vpop.permute.xlu0 %9140
          %9142 = vrot.lane.b32.xlu0 %v9021, 32
          %v9143 = vpop.permute.xlu0 %9142
          %9144 = vrot.lane.b32.xlu0 %v9022, 32
          %v9145 = vpop.permute.xlu0 %9144
          %9146 = vrot.lane.b32.xlu0 %v9023, 32
          %v9147 = vpop.permute.xlu0 %9146
          %9148 = vrot.lane.b32.xlu0 %v9024, 32
          %v9149 = vpop.permute.xlu0 %9148
          %9150 = vrot.lane.b32.xlu0 %v9025, 32
          %v9151 = vpop.permute.xlu0 %9150
          %9152 = vrot.lane.b32.xlu0 %v9026, 32
          %v9153 = vpop.permute.xlu0 %9152
          %9154 = vrot.lane.b32.xlu0 %v9027, 32
          %v9155 = vpop.permute.xlu0 %9154
          %9156 = vrot.lane.b32.xlu0 %v9028, 32
          %v9157 = vpop.permute.xlu0 %9156
          %9158 = vrot.lane.b32.xlu0 %v9029, 32
          %v9159 = vpop.permute.xlu0 %9158
          %9160 = vrot.lane.b32.xlu0 %v9030, 32
          %v9161 = vpop.permute.xlu0 %9160
          %9162 = vrot.lane.b32.xlu0 %v9031, 32
          %v9163 = vpop.permute.xlu0 %9162
          %9164 = vrot.lane.b32.xlu0 %v9032, 32
          %v9165 = vpop.permute.xlu0 %9164
          %9166 = vrot.lane.b32.xlu0 %v9033, 32
          %v9167 = vpop.permute.xlu0 %9166
          %v9168 = vsel %vm2962, %v9089, 0
          %v9170 = vsel %vm2962, %v9091, 0
          %v9172 = vsel %vm2962, %v9093, 0
          %v9174 = vsel %vm2962, %v9095, 0
          %v9176 = vsel %vm2962, %v9097, 0
          %v9178 = vsel %vm2962, %v9099, 0
          %v9180 = vsel %vm2962, %v9101, 0
          %v9182 = vsel %vm2962, %v9103, 0
          %v9184 = vsel %vm2962, %v9105, 0
          %v9186 = vsel %vm2962, %v9107, 0
          %v9188 = vsel %vm2962, %v9109, 0
          %v9190 = vsel %vm2962, %v9111, 0
          %v9192 = vsel %vm2962, %v9113, 0
          %v9194 = vsel %vm2962, %v9115, 0
          %v9196 = vsel %vm2962, %v9117, 0
          %v9198 = vsel %vm2962, %v9119, 0
          %v9200 = vsel %vm2962, %v9137, 0
          %v9202 = vsel %vm2962, %v9139, 0
          %v9204 = vsel %vm2962, %v9141, 0
          %v9206 = vsel %vm2962, %v9143, 0
          %v9208 = vsel %vm2962, %v9145, 0
          %v9210 = vsel %vm2962, %v9147, 0
          %v9212 = vsel %vm2962, %v9149, 0
          %v9214 = vsel %vm2962, %v9151, 0
          %v9216 = vsel %vm2962, %v9153, 0
          %v9218 = vsel %vm2962, %v9155, 0
          %v9220 = vsel %vm2962, %v9157, 0
          %v9222 = vsel %vm2962, %v9159, 0
          %v9224 = vsel %vm2962, %v9161, 0
          %v9226 = vsel %vm2962, %v9163, 0
          %v9228 = vsel %vm2962, %v9165, 0
          %v9230 = vsel %vm2962, %v9167, 0
          %9232 = vmatpush.xpose.msra.mxu0 %v9230
          %9233 = vmatpush.xpose.msra.mxu0 %v9228
          %9234 = vmatpush.xpose.msra.mxu0 %v9226
          %9235 = vmatpush.xpose.msra.mxu0 %v9224
          %9236 = vmatpush.xpose.msra.mxu0 %v9222
          %9237 = vmatpush.xpose.msra.mxu0 %v9220
          %9238 = vmatpush.xpose.msra.mxu0 %v9218
          %9239 = vmatpush.xpose.msra.mxu0 %v9216
          %9240 = vmatpush.xpose.msra.mxu0 %v9214
          %9241 = vmatpush.xpose.msra.mxu0 %v9212
          %9242 = vmatpush.xpose.msra.mxu0 %v9210
          %9243 = vmatpush.xpose.msra.mxu0 %v9208
          %9244 = vmatpush.xpose.msra.mxu0 %v9206
          %9245 = vmatpush.xpose.msra.mxu0 %v9204
          %9246 = vmatpush.xpose.msra.mxu0 %v9202
          %9247 = vmatpush.xpose.msra.mxu0 %v9200
          %9248 = vmatmul.f32.gmra.mxu0 %v9168
          %v9249 = vpop.f32.mrf.mxu0
          %v9250 = vadd.f32 %v9056, %v9249
          %9251 = vmatmul.f32.gmra.mxu0 %v9170
          %v9252 = vpop.f32.mrf.mxu0
          %v9253 = vadd.f32 %v9057, %v9252
          %9254 = vmatmul.f32.gmra.mxu0 %v9172
          %v9255 = vpop.f32.mrf.mxu0
          %v9256 = vadd.f32 %v9058, %v9255
          %9257 = vmatmul.f32.gmra.mxu0 %v9174
          %v9258 = vpop.f32.mrf.mxu0
          %v9259 = vadd.f32 %v9059, %v9258
          %9260 = vmatmul.f32.gmra.mxu0 %v9176
          %v9261 = vpop.f32.mrf.mxu0
          %v9262 = vadd.f32 %v9060, %v9261
          %9263 = vmatmul.f32.gmra.mxu0 %v9178
          %v9264 = vpop.f32.mrf.mxu0
          %v9265 = vadd.f32 %v9061, %v9264
          %9266 = vmatmul.f32.gmra.mxu0 %v9180
          %v9267 = vpop.f32.mrf.mxu0
          %v9268 = vadd.f32 %v9062, %v9267
          %9269 = vmatmul.f32.gmra.mxu0 %v9182
          %v9270 = vpop.f32.mrf.mxu0
          %v9271 = vadd.f32 %v9063, %v9270
          %9272 = vmatmul.f32.gmra.mxu0 %v9184
          %v9273 = vpop.f32.mrf.mxu0
          %v9274 = vadd.f32 %v9064, %v9273
          %9275 = vmatmul.f32.gmra.mxu0 %v9186
          %v9276 = vpop.f32.mrf.mxu0
          %v9277 = vadd.f32 %v9065, %v9276
          %9278 = vmatmul.f32.gmra.mxu0 %v9188
          %v9279 = vpop.f32.mrf.mxu0
          %v9280 = vadd.f32 %v9066, %v9279
          %9281 = vmatmul.f32.gmra.mxu0 %v9190
          %v9282 = vpop.f32.mrf.mxu0
          %v9283 = vadd.f32 %v9067, %v9282
          %9284 = vmatmul.f32.gmra.mxu0 %v9192
          %v9285 = vpop.f32.mrf.mxu0
          %v9286 = vadd.f32 %v9068, %v9285
          %9287 = vmatmul.f32.gmra.mxu0 %v9194
          %v9288 = vpop.f32.mrf.mxu0
          %v9289 = vadd.f32 %v9069, %v9288
          %9290 = vmatmul.f32.gmra.mxu0 %v9196
          %v9291 = vpop.f32.mrf.mxu0
          %v9292 = vadd.f32 %v9070, %v9291
          %9293 = vmatmul.f32.gmra.mxu0 %v9198
          %v9294 = vpop.f32.mrf.mxu0
          %v9295 = vadd.f32 %v9071, %v9294
          %9296 = vdwg.mxu0
          %9297 = vmax.xlane.f32.xlu0 %v9250
          %v9298 = vpop.xlane.xlu0 %9297
          %9299 = vmax.xlane.f32.xlu0 %v9253
          %v9300 = vpop.xlane.xlu0 %9299
          %9301 = vmax.xlane.f32.xlu0 %v9256
          %v9302 = vpop.xlane.xlu0 %9301
          %9303 = vmax.xlane.f32.xlu0 %v9259
          %v9304 = vpop.xlane.xlu0 %9303
          %9305 = vmax.xlane.f32.xlu0 %v9262
          %v9306 = vpop.xlane.xlu0 %9305
          %9307 = vmax.xlane.f32.xlu0 %v9265
          %v9308 = vpop.xlane.xlu0 %9307
          %9309 = vmax.xlane.f32.xlu0 %v9268
          %v9310 = vpop.xlane.xlu0 %9309
          %9311 = vmax.xlane.f32.xlu0 %v9271
          %v9312 = vpop.xlane.xlu0 %9311
          %9313 = vmax.xlane.f32.xlu0 %v9274
          %v9314 = vpop.xlane.xlu0 %9313
          %9315 = vmax.xlane.f32.xlu0 %v9277
          %v9316 = vpop.xlane.xlu0 %9315
          %9317 = vmax.xlane.f32.xlu0 %v9280
          %v9318 = vpop.xlane.xlu0 %9317
          %9319 = vmax.xlane.f32.xlu0 %v9283
          %v9320 = vpop.xlane.xlu0 %9319
          %9321 = vmax.xlane.f32.xlu0 %v9286
          %v9322 = vpop.xlane.xlu0 %9321
          %9323 = vmax.xlane.f32.xlu0 %v9289
          %v9324 = vpop.xlane.xlu0 %9323
          %9325 = vmax.xlane.f32.xlu0 %v9292
          %v9326 = vpop.xlane.xlu0 %9325
          %9327 = vmax.xlane.f32.xlu0 %v9295
          %v9328 = vpop.xlane.xlu0 %9327
          %v9329 = vmax.f32 %v8964, %v9298
          %v9330 = vmax.f32 %v8965, %v9300
          %v9331 = vmax.f32 %v8966, %v9302
          %v9332 = vmax.f32 %v8967, %v9304
          %v9333 = vmax.f32 %v8968, %v9306
          %v9334 = vmax.f32 %v8969, %v9308
          %v9335 = vmax.f32 %v8970, %v9310
          %v9336 = vmax.f32 %v8971, %v9312
          %v9337 = vmax.f32 %v8972, %v9314
          %v9338 = vmax.f32 %v8973, %v9316
          %v9339 = vmax.f32 %v8974, %v9318
          %v9340 = vmax.f32 %v8975, %v9320
          %v9341 = vmax.f32 %v8976, %v9322
          %v9342 = vmax.f32 %v8977, %v9324
          %v9343 = vmax.f32 %v8978, %v9326
          %v9344 = vmax.f32 %v8979, %v9328
          %v9345 = vsub.f32 %v8964, %v9329
          %v9346 = vsub.f32 %v8965, %v9330
          %v9347 = vsub.f32 %v8966, %v9331
          %v9348 = vsub.f32 %v8967, %v9332
          %v9349 = vsub.f32 %v8968, %v9333
          %v9350 = vsub.f32 %v8969, %v9334
          %v9351 = vsub.f32 %v8970, %v9335
          %v9352 = vsub.f32 %v8971, %v9336
          %v9353 = vsub.f32 %v8972, %v9337
          %v9354 = vsub.f32 %v8973, %v9338
          %v9355 = vsub.f32 %v8974, %v9339
          %v9356 = vsub.f32 %v8975, %v9340
          %v9357 = vsub.f32 %v8976, %v9341
          %v9358 = vsub.f32 %v8977, %v9342
          %v9359 = vsub.f32 %v8978, %v9343
          %v9360 = vsub.f32 %v8979, %v9344
          %v9361 = vmul.f32 %v9345, 1.442695
          %v9362 = vpow.pop %v9361
          %v9363 = vmul.f32 %v9346, 1.442695
          %v9364 = vpow.pop %v9363
          %v9365 = vmul.f32 %v9347, 1.442695
          %v9366 = vpow.pop %v9365
          %v9367 = vmul.f32 %v9348, 1.442695
          %v9368 = vpow.pop %v9367
          %v9369 = vmul.f32 %v9349, 1.442695
          %v9370 = vpow.pop %v9369
          %v9371 = vmul.f32 %v9350, 1.442695
          %v9372 = vpow.pop %v9371
          %v9373 = vmul.f32 %v9351, 1.442695
          %v9374 = vpow.pop %v9373
          %v9375 = vmul.f32 %v9352, 1.442695
          %v9376 = vpow.pop %v9375
          %v9377 = vmul.f32 %v9353, 1.442695
          %v9378 = vpow.pop %v9377
          %v9379 = vmul.f32 %v9354, 1.442695
          %v9380 = vpow.pop %v9379
          %v9381 = vmul.f32 %v9355, 1.442695
          %v9382 = vpow.pop %v9381
          %v9383 = vmul.f32 %v9356, 1.442695
          %v9384 = vpow.pop %v9383
          %v9385 = vmul.f32 %v9357, 1.442695
          %v9386 = vpow.pop %v9385
          %v9387 = vmul.f32 %v9358, 1.442695
          %v9388 = vpow.pop %v9387
          %v9389 = vmul.f32 %v9359, 1.442695
          %v9390 = vpow.pop %v9389
          %v9391 = vmul.f32 %v9360, 1.442695
          %v9392 = vpow.pop %v9391
          %v9393 = vsub.f32 %v9250, %v9329
          %v9394 = vsub.f32 %v9253, %v9330
          %v9395 = vsub.f32 %v9256, %v9331
          %v9396 = vsub.f32 %v9259, %v9332
          %v9397 = vsub.f32 %v9262, %v9333
          %v9398 = vsub.f32 %v9265, %v9334
          %v9399 = vsub.f32 %v9268, %v9335
          %v9400 = vsub.f32 %v9271, %v9336
          %v9401 = vsub.f32 %v9274, %v9337
          %v9402 = vsub.f32 %v9277, %v9338
          %v9403 = vsub.f32 %v9280, %v9339
          %v9404 = vsub.f32 %v9283, %v9340
          %v9405 = vsub.f32 %v9286, %v9341
          %v9406 = vsub.f32 %v9289, %v9342
          %v9407 = vsub.f32 %v9292, %v9343
          %v9408 = vsub.f32 %v9295, %v9344
          %v9409 = vmul.f32 %v9393, 1.442695
          %v9410 = vpow.pop %v9409
          %v9411 = vmul.f32 %v9394, 1.442695
          %v9412 = vpow.pop %v9411
          %v9413 = vmul.f32 %v9395, 1.442695
          %v9414 = vpow.pop %v9413
          %v9415 = vmul.f32 %v9396, 1.442695
          %v9416 = vpow.pop %v9415
          %v9417 = vmul.f32 %v9397, 1.442695
          %v9418 = vpow.pop %v9417
          %v9419 = vmul.f32 %v9398, 1.442695
          %v9420 = vpow.pop %v9419
          %v9421 = vmul.f32 %v9399, 1.442695
          %v9422 = vpow.pop %v9421
          %v9423 = vmul.f32 %v9400, 1.442695
          %v9424 = vpow.pop %v9423
          %v9425 = vmul.f32 %v9401, 1.442695
          %v9426 = vpow.pop %v9425
          %v9427 = vmul.f32 %v9402, 1.442695
          %v9428 = vpow.pop %v9427
          %v9429 = vmul.f32 %v9403, 1.442695
          %v9430 = vpow.pop %v9429
          %v9431 = vmul.f32 %v9404, 1.442695
          %v9432 = vpow.pop %v9431
          %v9433 = vmul.f32 %v9405, 1.442695
          %v9434 = vpow.pop %v9433
          %v9435 = vmul.f32 %v9406, 1.442695
          %v9436 = vpow.pop %v9435
          %v9437 = vmul.f32 %v9407, 1.442695
          %v9438 = vpow.pop %v9437
          %v9439 = vmul.f32 %v9408, 1.442695
          %v9440 = vpow.pop %v9439
          %v9441 = vmul.f32 %v9362, %v8980
          %v9442 = vmul.f32 %v9364, %v8981
          %v9443 = vmul.f32 %v9366, %v8982
          %v9444 = vmul.f32 %v9368, %v8983
          %v9445 = vmul.f32 %v9370, %v8984
          %v9446 = vmul.f32 %v9372, %v8985
          %v9447 = vmul.f32 %v9374, %v8986
          %v9448 = vmul.f32 %v9376, %v8987
          %v9449 = vmul.f32 %v9378, %v8988
          %v9450 = vmul.f32 %v9380, %v8989
          %v9451 = vmul.f32 %v9382, %v8990
          %v9452 = vmul.f32 %v9384, %v8991
          %v9453 = vmul.f32 %v9386, %v8992
          %v9454 = vmul.f32 %v9388, %v8993
          %v9455 = vmul.f32 %v9390, %v8994
          %v9456 = vmul.f32 %v9392, %v8995
          %9457 = vadd.xlane.f32.xlu0 %v9410
          %v9458 = vpop.xlane.xlu0 %9457
          %9459 = vadd.xlane.f32.xlu0 %v9412
          %v9460 = vpop.xlane.xlu0 %9459
          %9461 = vadd.xlane.f32.xlu0 %v9414
          %v9462 = vpop.xlane.xlu0 %9461
          %9463 = vadd.xlane.f32.xlu0 %v9416
          %v9464 = vpop.xlane.xlu0 %9463
          %9465 = vadd.xlane.f32.xlu0 %v9418
          %v9466 = vpop.xlane.xlu0 %9465
          %9467 = vadd.xlane.f32.xlu0 %v9420
          %v9468 = vpop.xlane.xlu0 %9467
          %9469 = vadd.xlane.f32.xlu0 %v9422
          %v9470 = vpop.xlane.xlu0 %9469
          %9471 = vadd.xlane.f32.xlu0 %v9424
          %v9472 = vpop.xlane.xlu0 %9471
          %9473 = vadd.xlane.f32.xlu0 %v9426
          %v9474 = vpop.xlane.xlu0 %9473
          %9475 = vadd.xlane.f32.xlu0 %v9428
          %v9476 = vpop.xlane.xlu0 %9475
          %9477 = vadd.xlane.f32.xlu0 %v9430
          %v9478 = vpop.xlane.xlu0 %9477
          %9479 = vadd.xlane.f32.xlu0 %v9432
          %v9480 = vpop.xlane.xlu0 %9479
          %9481 = vadd.xlane.f32.xlu0 %v9434
          %v9482 = vpop.xlane.xlu0 %9481
          %9483 = vadd.xlane.f32.xlu0 %v9436
          %v9484 = vpop.xlane.xlu0 %9483
          %9485 = vadd.xlane.f32.xlu0 %v9438
          %v9486 = vpop.xlane.xlu0 %9485
          %9487 = vadd.xlane.f32.xlu0 %v9440
          %v9488 = vpop.xlane.xlu0 %9487
          %v9489 = vadd.f32 %v9441, %v9458
          %v9490 = vadd.f32 %v9442, %v9460
          %v9491 = vadd.f32 %v9443, %v9462
          %v9492 = vadd.f32 %v9444, %v9464
          %v9493 = vadd.f32 %v9445, %v9466
          %v9494 = vadd.f32 %v9446, %v9468
          %v9495 = vadd.f32 %v9447, %v9470
          %v9496 = vadd.f32 %v9448, %v9472
          %v9497 = vadd.f32 %v9449, %v9474
          %v9498 = vadd.f32 %v9450, %v9476
          %v9499 = vadd.f32 %v9451, %v9478
          %v9500 = vadd.f32 %v9452, %v9480
          %v9501 = vadd.f32 %v9453, %v9482
          %v9502 = vadd.f32 %v9454, %v9484
          %v9503 = vadd.f32 %v9455, %v9486
          %v9504 = vadd.f32 %v9456, %v9488
          %v9505 = vmul.f32 %v9362, %v8996
          %v9506 = vmul.f32 %v9364, %v8997
          %v9507 = vmul.f32 %v9366, %v8998
          %v9508 = vmul.f32 %v9368, %v8999
          %v9509 = vmul.f32 %v9370, %v9000
          %v9510 = vmul.f32 %v9372, %v9001
          %v9511 = vmul.f32 %v9374, %v9002
          %v9512 = vmul.f32 %v9376, %v9003
          %v9513 = vmul.f32 %v9378, %v9004
          %v9514 = vmul.f32 %v9380, %v9005
          %v9515 = vmul.f32 %v9382, %v9006
          %v9516 = vmul.f32 %v9384, %v9007
          %v9517 = vmul.f32 %v9386, %v9008
          %v9518 = vmul.f32 %v9388, %v9009
          %v9519 = vmul.f32 %v9390, %v9010
          %v9520 = vmul.f32 %v9392, %v9011
          %9537 = vrot.lane.b32.xlu0 %v9036, 32
          %v9538 = vpop.permute.xlu0 %9537
          %9539 = vrot.lane.b32.xlu0 %v9037, 32
          %v9540 = vpop.permute.xlu0 %9539
          %9541 = vrot.lane.b32.xlu0 %v9038, 32
          %v9542 = vpop.permute.xlu0 %9541
          %9543 = vrot.lane.b32.xlu0 %v9039, 32
          %v9544 = vpop.permute.xlu0 %9543
          %9545 = vrot.lane.b32.xlu0 %v9040, 32
          %v9546 = vpop.permute.xlu0 %9545
          %9547 = vrot.lane.b32.xlu0 %v9041, 32
          %v9548 = vpop.permute.xlu0 %9547
          %9549 = vrot.lane.b32.xlu0 %v9042, 32
          %v9550 = vpop.permute.xlu0 %9549
          %9551 = vrot.lane.b32.xlu0 %v9043, 32
          %v9552 = vpop.permute.xlu0 %9551
          %9553 = vrot.lane.b32.xlu0 %v9044, 32
          %v9554 = vpop.permute.xlu0 %9553
          %9555 = vrot.lane.b32.xlu0 %v9045, 32
          %v9556 = vpop.permute.xlu0 %9555
          %9557 = vrot.lane.b32.xlu0 %v9046, 32
          %v9558 = vpop.permute.xlu0 %9557
          %9559 = vrot.lane.b32.xlu0 %v9047, 32
          %v9560 = vpop.permute.xlu0 %9559
          %9561 = vrot.lane.b32.xlu0 %v9048, 32
          %v9562 = vpop.permute.xlu0 %9561
          %9563 = vrot.lane.b32.xlu0 %v9049, 32
          %v9564 = vpop.permute.xlu0 %9563
          %9565 = vrot.lane.b32.xlu0 %v9050, 32
          %v9566 = vpop.permute.xlu0 %9565
          %9567 = vrot.lane.b32.xlu0 %v9051, 32
          %v9568 = vpop.permute.xlu0 %9567
          %9585 = vmatpush.msra.mxu0 %v9568
          %9586 = vmatpush.msra.mxu0 %v9566
          %9587 = vmatpush.msra.mxu0 %v9564
          %9588 = vmatpush.msra.mxu0 %v9562
          %9589 = vmatpush.msra.mxu0 %v9560
          %9590 = vmatpush.msra.mxu0 %v9558
          %9591 = vmatpush.msra.mxu0 %v9556
          %9592 = vmatpush.msra.mxu0 %v9554
          %9593 = vmatpush.msra.mxu0 %v9552
          %9594 = vmatpush.msra.mxu0 %v9550
          %9595 = vmatpush.msra.mxu0 %v9548
          %9596 = vmatpush.msra.mxu0 %v9546
          %9597 = vmatpush.msra.mxu0 %v9544
          %9598 = vmatpush.msra.mxu0 %v9542
          %9599 = vmatpush.msra.mxu0 %v9540
          %9600 = vmatpush.msra.mxu0 %v9538
          %9601 = vmatmul.f32.gmra.mxu0 %v9410
          %v9602 = vpop.f32.mrf.mxu0
          %v9603 = vadd.f32 0.0, %v9602
          %9604 = vmatmul.f32.gmra.mxu0 %v9412
          %v9605 = vpop.f32.mrf.mxu0
          %v9606 = vadd.f32 0.0, %v9605
          %9607 = vmatmul.f32.gmra.mxu0 %v9414
          %v9608 = vpop.f32.mrf.mxu0
          %v9609 = vadd.f32 0.0, %v9608
          %9610 = vmatmul.f32.gmra.mxu0 %v9416
          %v9611 = vpop.f32.mrf.mxu0
          %v9612 = vadd.f32 0.0, %v9611
          %9613 = vmatmul.f32.gmra.mxu0 %v9418
          %v9614 = vpop.f32.mrf.mxu0
          %v9615 = vadd.f32 0.0, %v9614
          %9616 = vmatmul.f32.gmra.mxu0 %v9420
          %v9617 = vpop.f32.mrf.mxu0
          %v9618 = vadd.f32 0.0, %v9617
          %9619 = vmatmul.f32.gmra.mxu0 %v9422
          %v9620 = vpop.f32.mrf.mxu0
          %v9621 = vadd.f32 0.0, %v9620
          %9622 = vmatmul.f32.gmra.mxu0 %v9424
          %v9623 = vpop.f32.mrf.mxu0
          %v9624 = vadd.f32 0.0, %v9623
          %9625 = vmatmul.f32.gmra.mxu0 %v9426
          %v9626 = vpop.f32.mrf.mxu0
          %v9627 = vadd.f32 0.0, %v9626
          %9628 = vmatmul.f32.gmra.mxu0 %v9428
          %v9629 = vpop.f32.mrf.mxu0
          %v9630 = vadd.f32 0.0, %v9629
          %9631 = vmatmul.f32.gmra.mxu0 %v9430
          %v9632 = vpop.f32.mrf.mxu0
          %v9633 = vadd.f32 0.0, %v9632
          %9634 = vmatmul.f32.gmra.mxu0 %v9432
          %v9635 = vpop.f32.mrf.mxu0
          %v9636 = vadd.f32 0.0, %v9635
          %9637 = vmatmul.f32.gmra.mxu0 %v9434
          %v9638 = vpop.f32.mrf.mxu0
          %v9639 = vadd.f32 0.0, %v9638
          %9640 = vmatmul.f32.gmra.mxu0 %v9436
          %v9641 = vpop.f32.mrf.mxu0
          %v9642 = vadd.f32 0.0, %v9641
          %9643 = vmatmul.f32.gmra.mxu0 %v9438
          %v9644 = vpop.f32.mrf.mxu0
          %v9645 = vadd.f32 0.0, %v9644
          %9646 = vmatmul.f32.gmra.mxu0 %v9440
          %v9647 = vpop.f32.mrf.mxu0
          %v9648 = vadd.f32 0.0, %v9647
          %9649 = vdwg.mxu0
          %v9650 = vadd.f32 %v9505, %v9603
          %v9651 = vadd.f32 %v9506, %v9606
          %v9652 = vadd.f32 %v9507, %v9609
          %v9653 = vadd.f32 %v9508, %v9612
          %v9654 = vadd.f32 %v9509, %v9615
          %v9655 = vadd.f32 %v9510, %v9618
          %v9656 = vadd.f32 %v9511, %v9621
          %v9657 = vadd.f32 %v9512, %v9624
          %v9658 = vadd.f32 %v9513, %v9627
          %v9659 = vadd.f32 %v9514, %v9630
          %v9660 = vadd.f32 %v9515, %v9633
          %v9661 = vadd.f32 %v9516, %v9636
          %v9662 = vadd.f32 %v9517, %v9639
          %v9663 = vadd.f32 %v9518, %v9642
          %v9664 = vadd.f32 %v9519, %v9645
          %v9665 = vadd.f32 %v9520, %v9648
        $region138: #{tpu_custom_call.1} parent=55 // loop_footer
          %s8961 = sadd.s32 %s8959, 1
        $region139: #{tpu_custom_call.1} parent=55 // loop_footer_branch
          %8958 = sbr.rel target = $region135
        $region140: #{tpu_custom_call.1} parent=55 // loop_exit
          _
        %v9666 = vrcp.pop %v8980
        %v9667 = vmul.f32 %v8980, %v9666
        %v9668 = vsub.f32 1.0, %v9667
        %v9669 = vmul.f32 %v9666, %v9668
        %v9670 = vadd.f32 %v9666, %v9669
        %vm9671 = vweird.f32 %v8980
        %vm9672 = vweird.f32 %v9666
        %vm9673 = vmor %vm9671, %vm9672
        %v9674 = vsel %vm9673, %v9666, %v9670
        %v9675 = vand.u32 2147483647, %v8980
        %vm9676 = vcmp.eq.f32.partialorder %v9675, 8.507059e+37
        %v9677 = vand.u32 %v8980, 2147483648
        %v9678 = vor.u32 1.1754944e-38, %v9677
        %v9679 = vsel %vm9676, %v9678, %v9674
        %v9680 = vrcp.pop %v8981
        %v9681 = vmul.f32 %v8981, %v9680
        %v9682 = vsub.f32 1.0, %v9681
        %v9683 = vmul.f32 %v9680, %v9682
        %v9684 = vadd.f32 %v9680, %v9683
        %vm9685 = vweird.f32 %v8981
        %vm9686 = vweird.f32 %v9680
        %vm9687 = vmor %vm9685, %vm9686
        %v9688 = vsel %vm9687, %v9680, %v9684
        %v9689 = vand.u32 2147483647, %v8981
        %vm9690 = vcmp.eq.f32.partialorder %v9689, 8.507059e+37
        %v9691 = vand.u32 %v8981, 2147483648
        %v9692 = vor.u32 1.1754944e-38, %v9691
        %v9693 = vsel %vm9690, %v9692, %v9688
        %v9694 = vrcp.pop %v8982
        %v9695 = vmul.f32 %v8982, %v9694
        %v9696 = vsub.f32 1.0, %v9695
        %v9697 = vmul.f32 %v9694, %v9696
        %v9698 = vadd.f32 %v9694, %v9697
        %vm9699 = vweird.f32 %v8982
        %vm9700 = vweird.f32 %v9694
        %vm9701 = vmor %vm9699, %vm9700
        %v9702 = vsel %vm9701, %v9694, %v9698
        %v9703 = vand.u32 2147483647, %v8982
        %vm9704 = vcmp.eq.f32.partialorder %v9703, 8.507059e+37
        %v9705 = vand.u32 %v8982, 2147483648
        %v9706 = vor.u32 1.1754944e-38, %v9705
        %v9707 = vsel %vm9704, %v9706, %v9702
        %v9708 = vrcp.pop %v8983
        %v9709 = vmul.f32 %v8983, %v9708
        %v9710 = vsub.f32 1.0, %v9709
        %v9711 = vmul.f32 %v9708, %v9710
        %v9712 = vadd.f32 %v9708, %v9711
        %vm9713 = vweird.f32 %v8983
        %vm9714 = vweird.f32 %v9708
        %vm9715 = vmor %vm9713, %vm9714
        %v9716 = vsel %vm9715, %v9708, %v9712
        %v9717 = vand.u32 2147483647, %v8983
        %vm9718 = vcmp.eq.f32.partialorder %v9717, 8.507059e+37
        %v9719 = vand.u32 %v8983, 2147483648
        %v9720 = vor.u32 1.1754944e-38, %v9719
        %v9721 = vsel %vm9718, %v9720, %v9716
        %v9722 = vrcp.pop %v8984
        %v9723 = vmul.f32 %v8984, %v9722
        %v9724 = vsub.f32 1.0, %v9723
        %v9725 = vmul.f32 %v9722, %v9724
        %v9726 = vadd.f32 %v9722, %v9725
        %vm9727 = vweird.f32 %v8984
        %vm9728 = vweird.f32 %v9722
        %vm9729 = vmor %vm9727, %vm9728
        %v9730 = vsel %vm9729, %v9722, %v9726
        %v9731 = vand.u32 2147483647, %v8984
        %vm9732 = vcmp.eq.f32.partialorder %v9731, 8.507059e+37
        %v9733 = vand.u32 %v8984, 2147483648
        %v9734 = vor.u32 1.1754944e-38, %v9733
        %v9735 = vsel %vm9732, %v9734, %v9730
        %v9736 = vrcp.pop %v8985
        %v9737 = vmul.f32 %v8985, %v9736
        %v9738 = vsub.f32 1.0, %v9737
        %v9739 = vmul.f32 %v9736, %v9738
        %v9740 = vadd.f32 %v9736, %v9739
        %vm9741 = vweird.f32 %v8985
        %vm9742 = vweird.f32 %v9736
        %vm9743 = vmor %vm9741, %vm9742
        %v9744 = vsel %vm9743, %v9736, %v9740
        %v9745 = vand.u32 2147483647, %v8985
        %vm9746 = vcmp.eq.f32.partialorder %v9745, 8.507059e+37
        %v9747 = vand.u32 %v8985, 2147483648
        %v9748 = vor.u32 1.1754944e-38, %v9747
        %v9749 = vsel %vm9746, %v9748, %v9744
        %v9750 = vrcp.pop %v8986
        %v9751 = vmul.f32 %v8986, %v9750
        %v9752 = vsub.f32 1.0, %v9751
        %v9753 = vmul.f32 %v9750, %v9752
        %v9754 = vadd.f32 %v9750, %v9753
        %vm9755 = vweird.f32 %v8986
        %vm9756 = vweird.f32 %v9750
        %vm9757 = vmor %vm9755, %vm9756
        %v9758 = vsel %vm9757, %v9750, %v9754
        %v9759 = vand.u32 2147483647, %v8986
        %vm9760 = vcmp.eq.f32.partialorder %v9759, 8.507059e+37
        %v9761 = vand.u32 %v8986, 2147483648
        %v9762 = vor.u32 1.1754944e-38, %v9761
        %v9763 = vsel %vm9760, %v9762, %v9758
        %v9764 = vrcp.pop %v8987
        %v9765 = vmul.f32 %v8987, %v9764
        %v9766 = vsub.f32 1.0, %v9765
        %v9767 = vmul.f32 %v9764, %v9766
        %v9768 = vadd.f32 %v9764, %v9767
        %vm9769 = vweird.f32 %v8987
        %vm9770 = vweird.f32 %v9764
        %vm9771 = vmor %vm9769, %vm9770
        %v9772 = vsel %vm9771, %v9764, %v9768
        %v9773 = vand.u32 2147483647, %v8987
        %vm9774 = vcmp.eq.f32.partialorder %v9773, 8.507059e+37
        %v9775 = vand.u32 %v8987, 2147483648
        %v9776 = vor.u32 1.1754944e-38, %v9775
        %v9777 = vsel %vm9774, %v9776, %v9772
        %v9778 = vrcp.pop %v8988
        %v9779 = vmul.f32 %v8988, %v9778
        %v9780 = vsub.f32 1.0, %v9779
        %v9781 = vmul.f32 %v9778, %v9780
        %v9782 = vadd.f32 %v9778, %v9781
        %vm9783 = vweird.f32 %v8988
        %vm9784 = vweird.f32 %v9778
        %vm9785 = vmor %vm9783, %vm9784
        %v9786 = vsel %vm9785, %v9778, %v9782
        %v9787 = vand.u32 2147483647, %v8988
        %vm9788 = vcmp.eq.f32.partialorder %v9787, 8.507059e+37
        %v9789 = vand.u32 %v8988, 2147483648
        %v9790 = vor.u32 1.1754944e-38, %v9789
        %v9791 = vsel %vm9788, %v9790, %v9786
        %v9792 = vrcp.pop %v8989
        %v9793 = vmul.f32 %v8989, %v9792
        %v9794 = vsub.f32 1.0, %v9793
        %v9795 = vmul.f32 %v9792, %v9794
        %v9796 = vadd.f32 %v9792, %v9795
        %vm9797 = vweird.f32 %v8989
        %vm9798 = vweird.f32 %v9792
        %vm9799 = vmor %vm9797, %vm9798
        %v9800 = vsel %vm9799, %v9792, %v9796
        %v9801 = vand.u32 2147483647, %v8989
        %vm9802 = vcmp.eq.f32.partialorder %v9801, 8.507059e+37
        %v9803 = vand.u32 %v8989, 2147483648
        %v9804 = vor.u32 1.1754944e-38, %v9803
        %v9805 = vsel %vm9802, %v9804, %v9800
        %v9806 = vrcp.pop %v8990
        %v9807 = vmul.f32 %v8990, %v9806
        %v9808 = vsub.f32 1.0, %v9807
        %v9809 = vmul.f32 %v9806, %v9808
        %v9810 = vadd.f32 %v9806, %v9809
        %vm9811 = vweird.f32 %v8990
        %vm9812 = vweird.f32 %v9806
        %vm9813 = vmor %vm9811, %vm9812
        %v9814 = vsel %vm9813, %v9806, %v9810
        %v9815 = vand.u32 2147483647, %v8990
        %vm9816 = vcmp.eq.f32.partialorder %v9815, 8.507059e+37
        %v9817 = vand.u32 %v8990, 2147483648
        %v9818 = vor.u32 1.1754944e-38, %v9817
        %v9819 = vsel %vm9816, %v9818, %v9814
        %v9820 = vrcp.pop %v8991
        %v9821 = vmul.f32 %v8991, %v9820
        %v9822 = vsub.f32 1.0, %v9821
        %v9823 = vmul.f32 %v9820, %v9822
        %v9824 = vadd.f32 %v9820, %v9823
        %vm9825 = vweird.f32 %v8991
        %vm9826 = vweird.f32 %v9820
        %vm9827 = vmor %vm9825, %vm9826
        %v9828 = vsel %vm9827, %v9820, %v9824
        %v9829 = vand.u32 2147483647, %v8991
        %vm9830 = vcmp.eq.f32.partialorder %v9829, 8.507059e+37
        %v9831 = vand.u32 %v8991, 2147483648
        %v9832 = vor.u32 1.1754944e-38, %v9831
        %v9833 = vsel %vm9830, %v9832, %v9828
        %v9834 = vrcp.pop %v8992
        %v9835 = vmul.f32 %v8992, %v9834
        %v9836 = vsub.f32 1.0, %v9835
        %v9837 = vmul.f32 %v9834, %v9836
        %v9838 = vadd.f32 %v9834, %v9837
        %vm9839 = vweird.f32 %v8992
        %vm9840 = vweird.f32 %v9834
        %vm9841 = vmor %vm9839, %vm9840
        %v9842 = vsel %vm9841, %v9834, %v9838
        %v9843 = vand.u32 2147483647, %v8992
        %vm9844 = vcmp.eq.f32.partialorder %v9843, 8.507059e+37
        %v9845 = vand.u32 %v8992, 2147483648
        %v9846 = vor.u32 1.1754944e-38, %v9845
        %v9847 = vsel %vm9844, %v9846, %v9842
        %v9848 = vrcp.pop %v8993
        %v9849 = vmul.f32 %v8993, %v9848
        %v9850 = vsub.f32 1.0, %v9849
        %v9851 = vmul.f32 %v9848, %v9850
        %v9852 = vadd.f32 %v9848, %v9851
        %vm9853 = vweird.f32 %v8993
        %vm9854 = vweird.f32 %v9848
        %vm9855 = vmor %vm9853, %vm9854
        %v9856 = vsel %vm9855, %v9848, %v9852
        %v9857 = vand.u32 2147483647, %v8993
        %vm9858 = vcmp.eq.f32.partialorder %v9857, 8.507059e+37
        %v9859 = vand.u32 %v8993, 2147483648
        %v9860 = vor.u32 1.1754944e-38, %v9859
        %v9861 = vsel %vm9858, %v9860, %v9856
        %v9862 = vrcp.pop %v8994
        %v9863 = vmul.f32 %v8994, %v9862
        %v9864 = vsub.f32 1.0, %v9863
        %v9865 = vmul.f32 %v9862, %v9864
        %v9866 = vadd.f32 %v9862, %v9865
        %vm9867 = vweird.f32 %v8994
        %vm9868 = vweird.f32 %v9862
        %vm9869 = vmor %vm9867, %vm9868
        %v9870 = vsel %vm9869, %v9862, %v9866
        %v9871 = vand.u32 2147483647, %v8994
        %vm9872 = vcmp.eq.f32.partialorder %v9871, 8.507059e+37
        %v9873 = vand.u32 %v8994, 2147483648
        %v9874 = vor.u32 1.1754944e-38, %v9873
        %v9875 = vsel %vm9872, %v9874, %v9870
        %v9876 = vrcp.pop %v8995
        %v9877 = vmul.f32 %v8995, %v9876
        %v9878 = vsub.f32 1.0, %v9877
        %v9879 = vmul.f32 %v9876, %v9878
        %v9880 = vadd.f32 %v9876, %v9879
        %vm9881 = vweird.f32 %v8995
        %vm9882 = vweird.f32 %v9876
        %vm9883 = vmor %vm9881, %vm9882
        %v9884 = vsel %vm9883, %v9876, %v9880
        %v9885 = vand.u32 2147483647, %v8995
        %vm9886 = vcmp.eq.f32.partialorder %v9885, 8.507059e+37
        %v9887 = vand.u32 %v8995, 2147483648
        %v9888 = vor.u32 1.1754944e-38, %v9887
        %v9889 = vsel %vm9886, %v9888, %v9884
        %v9890 = vmul.f32 %v8996, %v9679
        %v9891 = vmul.f32 %v8997, %v9693
        %v9892 = vmul.f32 %v8998, %v9707
        %v9893 = vmul.f32 %v8999, %v9721
        %v9894 = vmul.f32 %v9000, %v9735
        %v9895 = vmul.f32 %v9001, %v9749
        %v9896 = vmul.f32 %v9002, %v9763
        %v9897 = vmul.f32 %v9003, %v9777
        %v9898 = vmul.f32 %v9004, %v9791
        %v9899 = vmul.f32 %v9005, %v9805
        %v9900 = vmul.f32 %v9006, %v9819
        %v9901 = vmul.f32 %v9007, %v9833
        %v9902 = vmul.f32 %v9008, %v9847
        %v9903 = vmul.f32 %v9009, %v9861
        %v9904 = vmul.f32 %v9010, %v9875
        %v9905 = vmul.f32 %v9011, %v9889
        %9922 = vrot.lane.b32.xlu0 %v9890, 96
        %v9923 = vpop.permute.xlu0 %9922
        %9924 = vrot.lane.b32.xlu0 %v9891, 96
        %v9925 = vpop.permute.xlu0 %9924
        %9926 = vrot.lane.b32.xlu0 %v9892, 96
        %v9927 = vpop.permute.xlu0 %9926
        %9928 = vrot.lane.b32.xlu0 %v9893, 96
        %v9929 = vpop.permute.xlu0 %9928
        %9930 = vrot.lane.b32.xlu0 %v9894, 96
        %v9931 = vpop.permute.xlu0 %9930
        %9932 = vrot.lane.b32.xlu0 %v9895, 96
        %v9933 = vpop.permute.xlu0 %9932
        %9934 = vrot.lane.b32.xlu0 %v9896, 96
        %v9935 = vpop.permute.xlu0 %9934
        %9936 = vrot.lane.b32.xlu0 %v9897, 96
        %v9937 = vpop.permute.xlu0 %9936
        %9938 = vrot.lane.b32.xlu0 %v9898, 96
        %v9939 = vpop.permute.xlu0 %9938
        %9940 = vrot.lane.b32.xlu0 %v9899, 96
        %v9941 = vpop.permute.xlu0 %9940
        %9942 = vrot.lane.b32.xlu0 %v9900, 96
        %v9943 = vpop.permute.xlu0 %9942
        %9944 = vrot.lane.b32.xlu0 %v9901, 96
        %v9945 = vpop.permute.xlu0 %9944
        %9946 = vrot.lane.b32.xlu0 %v9902, 96
        %v9947 = vpop.permute.xlu0 %9946
        %9948 = vrot.lane.b32.xlu0 %v9903, 96
        %v9949 = vpop.permute.xlu0 %9948
        %9950 = vrot.lane.b32.xlu0 %v9904, 96
        %v9951 = vpop.permute.xlu0 %9950
        %9952 = vrot.lane.b32.xlu0 %v9905, 96
        %v9953 = vpop.permute.xlu0 %9952
        %9970 = vst.msk [vmem:[#allocation4 + $0x8] sm:$0xff] %vm6049, %v9923
        %9971 = vst.msk [vmem:[#allocation4 + $0x18] sm:$0xff] %vm6049, %v9925
        %9972 = vst.msk [vmem:[#allocation4 + $0x28] sm:$0xff] %vm6049, %v9927
        %9973 = vst.msk [vmem:[#allocation4 + $0x38] sm:$0xff] %vm6049, %v9929
        %9974 = vst.msk [vmem:[#allocation4 + $0x48] sm:$0xff] %vm6049, %v9931
        %9975 = vst.msk [vmem:[#allocation4 + $0x58] sm:$0xff] %vm6049, %v9933
        %9976 = vst.msk [vmem:[#allocation4 + $0x68] sm:$0xff] %vm6049, %v9935
        %9977 = vst.msk [vmem:[#allocation4 + $0x78] sm:$0xff] %vm6049, %v9937
        %9978 = vst.msk [vmem:[#allocation4 + $0x88] sm:$0xff] %vm6049, %v9939
        %9979 = vst.msk [vmem:[#allocation4 + $0x98] sm:$0xff] %vm6049, %v9941
        %9980 = vst.msk [vmem:[#allocation4 + $0xa8] sm:$0xff] %vm6049, %v9943
        %9981 = vst.msk [vmem:[#allocation4 + $0xb8] sm:$0xff] %vm6049, %v9945
        %9982 = vst.msk [vmem:[#allocation4 + $0xc8] sm:$0xff] %vm6049, %v9947
        %9983 = vst.msk [vmem:[#allocation4 + $0xd8] sm:$0xff] %vm6049, %v9949
        %9984 = vst.msk [vmem:[#allocation4 + $0xe8] sm:$0xff] %vm6049, %v9951
        %9985 = vst.msk [vmem:[#allocation4 + $0xf8] sm:$0xff] %vm6049, %v9953
        %v9986 = vld [vmem:[#allocation4] sm:$0xff]
        %v9987 = vld [vmem:[#allocation4 + $0x8] sm:$0xff]
        %v9988 = vld [vmem:[#allocation4 + $0x10] sm:$0xff]
        %v9989 = vld [vmem:[#allocation4 + $0x18] sm:$0xff]
        %v9990 = vld [vmem:[#allocation4 + $0x20] sm:$0xff]
        %v9991 = vld [vmem:[#allocation4 + $0x28] sm:$0xff]
        %v9992 = vld [vmem:[#allocation4 + $0x30] sm:$0xff]
        %v9993 = vld [vmem:[#allocation4 + $0x38] sm:$0xff]
        %v9994 = vld [vmem:[#allocation4 + $0x40] sm:$0xff]
        %v9995 = vld [vmem:[#allocation4 + $0x48] sm:$0xff]
        %v9996 = vld [vmem:[#allocation4 + $0x50] sm:$0xff]
        %v9997 = vld [vmem:[#allocation4 + $0x58] sm:$0xff]
        %v9998 = vld [vmem:[#allocation4 + $0x60] sm:$0xff]
        %v9999 = vld [vmem:[#allocation4 + $0x68] sm:$0xff]
        %v10000 = vld [vmem:[#allocation4 + $0x70] sm:$0xff]
        %v10001 = vld [vmem:[#allocation4 + $0x78] sm:$0xff]
        %v10002 = vld [vmem:[#allocation4 + $0x80] sm:$0xff]
        %v10003 = vld [vmem:[#allocation4 + $0x88] sm:$0xff]
        %v10004 = vld [vmem:[#allocation4 + $0x90] sm:$0xff]
        %v10005 = vld [vmem:[#allocation4 + $0x98] sm:$0xff]
        %v10006 = vld [vmem:[#allocation4 + $0xa0] sm:$0xff]
        %v10007 = vld [vmem:[#allocation4 + $0xa8] sm:$0xff]
        %v10008 = vld [vmem:[#allocation4 + $0xb0] sm:$0xff]
        %v10009 = vld [vmem:[#allocation4 + $0xb8] sm:$0xff]
        %v10010 = vld [vmem:[#allocation4 + $0xc0] sm:$0xff]
        %v10011 = vld [vmem:[#allocation4 + $0xc8] sm:$0xff]
        %v10012 = vld [vmem:[#allocation4 + $0xd0] sm:$0xff]
        %v10013 = vld [vmem:[#allocation4 + $0xd8] sm:$0xff]
        %v10014 = vld [vmem:[#allocation4 + $0xe0] sm:$0xff]
        %v10015 = vld [vmem:[#allocation4 + $0xe8] sm:$0xff]
        %v10016 = vld [vmem:[#allocation4 + $0xf0] sm:$0xff]
        %v10017 = vld [vmem:[#allocation4 + $0xf8] sm:$0xff]
        %v10018 = vld [vmem:[#allocation14] sm:$0xff]
        %v10019 = vld [vmem:[#allocation14 + $0x8] sm:$0xff]
        %v10020 = vld [vmem:[#allocation14 + $0x10] sm:$0xff]
        %v10021 = vld [vmem:[#allocation14 + $0x18] sm:$0xff]
        %v10022 = vld [vmem:[#allocation14 + $0x20] sm:$0xff]
        %v10023 = vld [vmem:[#allocation14 + $0x28] sm:$0xff]
        %v10024 = vld [vmem:[#allocation14 + $0x30] sm:$0xff]
        %v10025 = vld [vmem:[#allocation14 + $0x38] sm:$0xff]
        %v10026 = vld [vmem:[#allocation14 + $0x40] sm:$0xff]
        %v10027 = vld [vmem:[#allocation14 + $0x48] sm:$0xff]
        %v10028 = vld [vmem:[#allocation14 + $0x50] sm:$0xff]
        %v10029 = vld [vmem:[#allocation14 + $0x58] sm:$0xff]
        %v10030 = vld [vmem:[#allocation14 + $0x60] sm:$0xff]
        %v10031 = vld [vmem:[#allocation14 + $0x68] sm:$0xff]
        %v10032 = vld [vmem:[#allocation14 + $0x70] sm:$0xff]
        %v10033 = vld [vmem:[#allocation14 + $0x78] sm:$0xff]
        %v10034 = vld [vmem:[#allocation14 + $0x80] sm:$0xff]
        %v10035 = vld [vmem:[#allocation14 + $0x88] sm:$0xff]
        %v10036 = vld [vmem:[#allocation14 + $0x90] sm:$0xff]
        %v10037 = vld [vmem:[#allocation14 + $0x98] sm:$0xff]
        %v10038 = vld [vmem:[#allocation14 + $0xa0] sm:$0xff]
        %v10039 = vld [vmem:[#allocation14 + $0xa8] sm:$0xff]
        %v10040 = vld [vmem:[#allocation14 + $0xb0] sm:$0xff]
        %v10041 = vld [vmem:[#allocation14 + $0xb8] sm:$0xff]
        %v10042 = vld [vmem:[#allocation14 + $0xc0] sm:$0xff]
        %v10043 = vld [vmem:[#allocation14 + $0xc8] sm:$0xff]
        %v10044 = vld [vmem:[#allocation14 + $0xd0] sm:$0xff]
        %v10045 = vld [vmem:[#allocation14 + $0xd8] sm:$0xff]
        %v10046 = vld [vmem:[#allocation14 + $0xe0] sm:$0xff]
        %v10047 = vld [vmem:[#allocation14 + $0xe8] sm:$0xff]
        %v10048 = vld [vmem:[#allocation14 + $0xf0] sm:$0xff]
        %v10049 = vld [vmem:[#allocation14 + $0xf8] sm:$0xff]
        %v10050 = vld [vmem:[#allocation14 + $0x100] sm:$0xff]
        %v10051 = vld [vmem:[#allocation14 + $0x108] sm:$0xff]
        %v10052 = vld [vmem:[#allocation14 + $0x110] sm:$0xff]
        %v10053 = vld [vmem:[#allocation14 + $0x118] sm:$0xff]
        %v10054 = vld [vmem:[#allocation14 + $0x120] sm:$0xff]
        %v10055 = vld [vmem:[#allocation14 + $0x128] sm:$0xff]
        %v10056 = vld [vmem:[#allocation14 + $0x130] sm:$0xff]
        %v10057 = vld [vmem:[#allocation14 + $0x138] sm:$0xff]
        %v10058 = vld [vmem:[#allocation14 + $0x140] sm:$0xff]
        %v10059 = vld [vmem:[#allocation14 + $0x148] sm:$0xff]
        %v10060 = vld [vmem:[#allocation14 + $0x150] sm:$0xff]
        %v10061 = vld [vmem:[#allocation14 + $0x158] sm:$0xff]
        %v10062 = vld [vmem:[#allocation14 + $0x160] sm:$0xff]
        %v10063 = vld [vmem:[#allocation14 + $0x168] sm:$0xff]
        %v10064 = vld [vmem:[#allocation14 + $0x170] sm:$0xff]
        %v10065 = vld [vmem:[#allocation14 + $0x178] sm:$0xff]
        %v10066 = vld [vmem:[#allocation14 + $0x180] sm:$0xff]
        %v10067 = vld [vmem:[#allocation14 + $0x188] sm:$0xff]
        %v10068 = vld [vmem:[#allocation14 + $0x190] sm:$0xff]
        %v10069 = vld [vmem:[#allocation14 + $0x198] sm:$0xff]
        %v10070 = vld [vmem:[#allocation14 + $0x1a0] sm:$0xff]
        %v10071 = vld [vmem:[#allocation14 + $0x1a8] sm:$0xff]
        %v10072 = vld [vmem:[#allocation14 + $0x1b0] sm:$0xff]
        %v10073 = vld [vmem:[#allocation14 + $0x1b8] sm:$0xff]
        %v10074 = vld [vmem:[#allocation14 + $0x1c0] sm:$0xff]
        %v10075 = vld [vmem:[#allocation14 + $0x1c8] sm:$0xff]
        %v10076 = vld [vmem:[#allocation14 + $0x1d0] sm:$0xff]
        %v10077 = vld [vmem:[#allocation14 + $0x1d8] sm:$0xff]
        %v10078 = vld [vmem:[#allocation14 + $0x1e0] sm:$0xff]
        %v10079 = vld [vmem:[#allocation14 + $0x1e8] sm:$0xff]
        %v10080 = vld [vmem:[#allocation14 + $0x1f0] sm:$0xff]
        %v10081 = vld [vmem:[#allocation14 + $0x1f8] sm:$0xff]
        %v10082 = vld [vmem:[%s8] sm:$0x3]
        %v10084 = vperm.slane %v10082, 0
        %v10085 = vperm.slane %v10082, 1
        %10088 = vmatpush.xpose.msra.mxu0 %v10048
        %10089 = vmatpush.xpose.msra.mxu0 %v10046
        %10090 = vmatpush.xpose.msra.mxu0 %v10044
        %10091 = vmatpush.xpose.msra.mxu0 %v10042
        %10092 = vmatpush.xpose.msra.mxu0 %v10040
        %10093 = vmatpush.xpose.msra.mxu0 %v10038
        %10094 = vmatpush.xpose.msra.mxu0 %v10036
        %10095 = vmatpush.xpose.msra.mxu0 %v10034
        %10096 = vmatpush.xpose.msra.mxu0 %v10032
        %10097 = vmatpush.xpose.msra.mxu0 %v10030
        %10098 = vmatpush.xpose.msra.mxu0 %v10028
        %10099 = vmatpush.xpose.msra.mxu0 %v10026
        %10100 = vmatpush.xpose.msra.mxu0 %v10024
        %10101 = vmatpush.xpose.msra.mxu0 %v10022
        %10102 = vmatpush.xpose.msra.mxu0 %v10020
        %10103 = vmatpush.xpose.msra.mxu0 %v10018
        %10104 = vmatmul.f32.gmra.mxu0 %v9986
        %v10105 = vpop.f32.mrf.mxu0
        %v10106 = vadd.f32 %v10084, %v10105
        %10107 = vmatmul.f32.gmra.mxu0 %v9988
        %v10108 = vpop.f32.mrf.mxu0
        %v10109 = vadd.f32 %v10084, %v10108
        %10110 = vmatmul.f32.gmra.mxu0 %v9990
        %v10111 = vpop.f32.mrf.mxu0
        %v10112 = vadd.f32 %v10084, %v10111
        %10113 = vmatmul.f32.gmra.mxu0 %v9992
        %v10114 = vpop.f32.mrf.mxu0
        %v10115 = vadd.f32 %v10084, %v10114
        %10116 = vmatmul.f32.gmra.mxu0 %v9994
        %v10117 = vpop.f32.mrf.mxu0
        %v10118 = vadd.f32 %v10084, %v10117
        %10119 = vmatmul.f32.gmra.mxu0 %v9996
        %v10120 = vpop.f32.mrf.mxu0
        %v10121 = vadd.f32 %v10084, %v10120
        %10122 = vmatmul.f32.gmra.mxu0 %v9998
        %v10123 = vpop.f32.mrf.mxu0
        %v10124 = vadd.f32 %v10084, %v10123
        %10125 = vmatmul.f32.gmra.mxu0 %v10000
        %v10126 = vpop.f32.mrf.mxu0
        %v10127 = vadd.f32 %v10084, %v10126
        %10128 = vmatmul.f32.gmra.mxu0 %v10002
        %v10129 = vpop.f32.mrf.mxu0
        %v10130 = vadd.f32 %v10084, %v10129
        %10131 = vmatmul.f32.gmra.mxu0 %v10004
        %v10132 = vpop.f32.mrf.mxu0
        %v10133 = vadd.f32 %v10084, %v10132
        %10134 = vmatmul.f32.gmra.mxu0 %v10006
        %v10135 = vpop.f32.mrf.mxu0
        %v10136 = vadd.f32 %v10084, %v10135
        %10137 = vmatmul.f32.gmra.mxu0 %v10008
        %v10138 = vpop.f32.mrf.mxu0
        %v10139 = vadd.f32 %v10084, %v10138
        %10140 = vmatmul.f32.gmra.mxu0 %v10010
        %v10141 = vpop.f32.mrf.mxu0
        %v10142 = vadd.f32 %v10084, %v10141
        %10143 = vmatmul.f32.gmra.mxu0 %v10012
        %v10144 = vpop.f32.mrf.mxu0
        %v10145 = vadd.f32 %v10084, %v10144
        %10146 = vmatmul.f32.gmra.mxu0 %v10014
        %v10147 = vpop.f32.mrf.mxu0
        %v10148 = vadd.f32 %v10084, %v10147
        %10149 = vmatmul.f32.gmra.mxu0 %v10016
        %v10150 = vpop.f32.mrf.mxu0
        %v10151 = vadd.f32 %v10084, %v10150
        %10152 = vdwg.mxu0
        %10153 = vmatpush.xpose.msra.mxu0 %v10049
        %10154 = vmatpush.xpose.msra.mxu0 %v10047
        %10155 = vmatpush.xpose.msra.mxu0 %v10045
        %10156 = vmatpush.xpose.msra.mxu0 %v10043
        %10157 = vmatpush.xpose.msra.mxu0 %v10041
        %10158 = vmatpush.xpose.msra.mxu0 %v10039
        %10159 = vmatpush.xpose.msra.mxu0 %v10037
        %10160 = vmatpush.xpose.msra.mxu0 %v10035
        %10161 = vmatpush.xpose.msra.mxu0 %v10033
        %10162 = vmatpush.xpose.msra.mxu0 %v10031
        %10163 = vmatpush.xpose.msra.mxu0 %v10029
        %10164 = vmatpush.xpose.msra.mxu0 %v10027
        %10165 = vmatpush.xpose.msra.mxu0 %v10025
        %10166 = vmatpush.xpose.msra.mxu0 %v10023
        %10167 = vmatpush.xpose.msra.mxu0 %v10021
        %10168 = vmatpush.xpose.msra.mxu0 %v10019
        %10169 = vmatmul.f32.gmra.mxu0 %v9987
        %v10170 = vpop.f32.mrf.mxu0
        %v10171 = vadd.f32 %v10106, %v10170
        %10172 = vmatmul.f32.gmra.mxu0 %v9989
        %v10173 = vpop.f32.mrf.mxu0
        %v10174 = vadd.f32 %v10109, %v10173
        %10175 = vmatmul.f32.gmra.mxu0 %v9991
        %v10176 = vpop.f32.mrf.mxu0
        %v10177 = vadd.f32 %v10112, %v10176
        %10178 = vmatmul.f32.gmra.mxu0 %v9993
        %v10179 = vpop.f32.mrf.mxu0
        %v10180 = vadd.f32 %v10115, %v10179
        %10181 = vmatmul.f32.gmra.mxu0 %v9995
        %v10182 = vpop.f32.mrf.mxu0
        %v10183 = vadd.f32 %v10118, %v10182
        %10184 = vmatmul.f32.gmra.mxu0 %v9997
        %v10185 = vpop.f32.mrf.mxu0
        %v10186 = vadd.f32 %v10121, %v10185
        %10187 = vmatmul.f32.gmra.mxu0 %v9999
        %v10188 = vpop.f32.mrf.mxu0
        %v10189 = vadd.f32 %v10124, %v10188
        %10190 = vmatmul.f32.gmra.mxu0 %v10001
        %v10191 = vpop.f32.mrf.mxu0
        %v10192 = vadd.f32 %v10127, %v10191
        %10193 = vmatmul.f32.gmra.mxu0 %v10003
        %v10194 = vpop.f32.mrf.mxu0
        %v10195 = vadd.f32 %v10130, %v10194
        %10196 = vmatmul.f32.gmra.mxu0 %v10005
        %v10197 = vpop.f32.mrf.mxu0
        %v10198 = vadd.f32 %v10133, %v10197
        %10199 = vmatmul.f32.gmra.mxu0 %v10007
        %v10200 = vpop.f32.mrf.mxu0
        %v10201 = vadd.f32 %v10136, %v10200
        %10202 = vmatmul.f32.gmra.mxu0 %v10009
        %v10203 = vpop.f32.mrf.mxu0
        %v10204 = vadd.f32 %v10139, %v10203
        %10205 = vmatmul.f32.gmra.mxu0 %v10011
        %v10206 = vpop.f32.mrf.mxu0
        %v10207 = vadd.f32 %v10142, %v10206
        %10208 = vmatmul.f32.gmra.mxu0 %v10013
        %v10209 = vpop.f32.mrf.mxu0
        %v10210 = vadd.f32 %v10145, %v10209
        %10211 = vmatmul.f32.gmra.mxu0 %v10015
        %v10212 = vpop.f32.mrf.mxu0
        %v10213 = vadd.f32 %v10148, %v10212
        %10214 = vmatmul.f32.gmra.mxu0 %v10017
        %v10215 = vpop.f32.mrf.mxu0
        %v10216 = vadd.f32 %v10151, %v10215
        %10217 = vdwg.mxu0
        %10218 = vmatpush.xpose.msra.mxu0 %v10080
        %10219 = vmatpush.xpose.msra.mxu0 %v10078
        %10220 = vmatpush.xpose.msra.mxu0 %v10076
        %10221 = vmatpush.xpose.msra.mxu0 %v10074
        %10222 = vmatpush.xpose.msra.mxu0 %v10072
        %10223 = vmatpush.xpose.msra.mxu0 %v10070
        %10224 = vmatpush.xpose.msra.mxu0 %v10068
        %10225 = vmatpush.xpose.msra.mxu0 %v10066
        %10226 = vmatpush.xpose.msra.mxu0 %v10064
        %10227 = vmatpush.xpose.msra.mxu0 %v10062
        %10228 = vmatpush.xpose.msra.mxu0 %v10060
        %10229 = vmatpush.xpose.msra.mxu0 %v10058
        %10230 = vmatpush.xpose.msra.mxu0 %v10056
        %10231 = vmatpush.xpose.msra.mxu0 %v10054
        %10232 = vmatpush.xpose.msra.mxu0 %v10052
        %10233 = vmatpush.xpose.msra.mxu0 %v10050
        %10234 = vmatmul.f32.gmra.mxu0 %v9986
        %v10235 = vpop.f32.mrf.mxu0
        %v10236 = vadd.f32 %v10085, %v10235
        %10237 = vmatmul.f32.gmra.mxu0 %v9988
        %v10238 = vpop.f32.mrf.mxu0
        %v10239 = vadd.f32 %v10085, %v10238
        %10240 = vmatmul.f32.gmra.mxu0 %v9990
        %v10241 = vpop.f32.mrf.mxu0
        %v10242 = vadd.f32 %v10085, %v10241
        %10243 = vmatmul.f32.gmra.mxu0 %v9992
        %v10244 = vpop.f32.mrf.mxu0
        %v10245 = vadd.f32 %v10085, %v10244
        %10246 = vmatmul.f32.gmra.mxu0 %v9994
        %v10247 = vpop.f32.mrf.mxu0
        %v10248 = vadd.f32 %v10085, %v10247
        %10249 = vmatmul.f32.gmra.mxu0 %v9996
        %v10250 = vpop.f32.mrf.mxu0
        %v10251 = vadd.f32 %v10085, %v10250
        %10252 = vmatmul.f32.gmra.mxu0 %v9998
        %v10253 = vpop.f32.mrf.mxu0
        %v10254 = vadd.f32 %v10085, %v10253
        %10255 = vmatmul.f32.gmra.mxu0 %v10000
        %v10256 = vpop.f32.mrf.mxu0
        %v10257 = vadd.f32 %v10085, %v10256
        %10258 = vmatmul.f32.gmra.mxu0 %v10002
        %v10259 = vpop.f32.mrf.mxu0
        %v10260 = vadd.f32 %v10085, %v10259
        %10261 = vmatmul.f32.gmra.mxu0 %v10004
        %v10262 = vpop.f32.mrf.mxu0
        %v10263 = vadd.f32 %v10085, %v10262
        %10264 = vmatmul.f32.gmra.mxu0 %v10006
        %v10265 = vpop.f32.mrf.mxu0
        %v10266 = vadd.f32 %v10085, %v10265
        %10267 = vmatmul.f32.gmra.mxu0 %v10008
        %v10268 = vpop.f32.mrf.mxu0
        %v10269 = vadd.f32 %v10085, %v10268
        %10270 = vmatmul.f32.gmra.mxu0 %v10010
        %v10271 = vpop.f32.mrf.mxu0
        %v10272 = vadd.f32 %v10085, %v10271
        %10273 = vmatmul.f32.gmra.mxu0 %v10012
        %v10274 = vpop.f32.mrf.mxu0
        %v10275 = vadd.f32 %v10085, %v10274
        %10276 = vmatmul.f32.gmra.mxu0 %v10014
        %v10277 = vpop.f32.mrf.mxu0
        %v10278 = vadd.f32 %v10085, %v10277
        %10279 = vmatmul.f32.gmra.mxu0 %v10016
        %v10280 = vpop.f32.mrf.mxu0
        %v10281 = vadd.f32 %v10085, %v10280
        %10282 = vdwg.mxu0
        %10283 = vmatpush.xpose.msra.mxu0 %v10081
        %10284 = vmatpush.xpose.msra.mxu0 %v10079
        %10285 = vmatpush.xpose.msra.mxu0 %v10077
        %10286 = vmatpush.xpose.msra.mxu0 %v10075
        %10287 = vmatpush.xpose.msra.mxu0 %v10073
        %10288 = vmatpush.xpose.msra.mxu0 %v10071
        %10289 = vmatpush.xpose.msra.mxu0 %v10069
        %10290 = vmatpush.xpose.msra.mxu0 %v10067
        %10291 = vmatpush.xpose.msra.mxu0 %v10065
        %10292 = vmatpush.xpose.msra.mxu0 %v10063
        %10293 = vmatpush.xpose.msra.mxu0 %v10061
        %10294 = vmatpush.xpose.msra.mxu0 %v10059
        %10295 = vmatpush.xpose.msra.mxu0 %v10057
        %10296 = vmatpush.xpose.msra.mxu0 %v10055
        %10297 = vmatpush.xpose.msra.mxu0 %v10053
        %10298 = vmatpush.xpose.msra.mxu0 %v10051
        %10299 = vmatmul.f32.gmra.mxu0 %v9987
        %v10300 = vpop.f32.mrf.mxu0
        %v10301 = vadd.f32 %v10236, %v10300
        %10302 = vmatmul.f32.gmra.mxu0 %v9989
        %v10303 = vpop.f32.mrf.mxu0
        %v10304 = vadd.f32 %v10239, %v10303
        %10305 = vmatmul.f32.gmra.mxu0 %v9991
        %v10306 = vpop.f32.mrf.mxu0
        %v10307 = vadd.f32 %v10242, %v10306
        %10308 = vmatmul.f32.gmra.mxu0 %v9993
        %v10309 = vpop.f32.mrf.mxu0
        %v10310 = vadd.f32 %v10245, %v10309
        %10311 = vmatmul.f32.gmra.mxu0 %v9995
        %v10312 = vpop.f32.mrf.mxu0
        %v10313 = vadd.f32 %v10248, %v10312
        %10314 = vmatmul.f32.gmra.mxu0 %v9997
        %v10315 = vpop.f32.mrf.mxu0
        %v10316 = vadd.f32 %v10251, %v10315
        %10317 = vmatmul.f32.gmra.mxu0 %v9999
        %v10318 = vpop.f32.mrf.mxu0
        %v10319 = vadd.f32 %v10254, %v10318
        %10320 = vmatmul.f32.gmra.mxu0 %v10001
        %v10321 = vpop.f32.mrf.mxu0
        %v10322 = vadd.f32 %v10257, %v10321
        %10323 = vmatmul.f32.gmra.mxu0 %v10003
        %v10324 = vpop.f32.mrf.mxu0
        %v10325 = vadd.f32 %v10260, %v10324
        %10326 = vmatmul.f32.gmra.mxu0 %v10005
        %v10327 = vpop.f32.mrf.mxu0
        %v10328 = vadd.f32 %v10263, %v10327
        %10329 = vmatmul.f32.gmra.mxu0 %v10007
        %v10330 = vpop.f32.mrf.mxu0
        %v10331 = vadd.f32 %v10266, %v10330
        %10332 = vmatmul.f32.gmra.mxu0 %v10009
        %v10333 = vpop.f32.mrf.mxu0
        %v10334 = vadd.f32 %v10269, %v10333
        %10335 = vmatmul.f32.gmra.mxu0 %v10011
        %v10336 = vpop.f32.mrf.mxu0
        %v10337 = vadd.f32 %v10272, %v10336
        %10338 = vmatmul.f32.gmra.mxu0 %v10013
        %v10339 = vpop.f32.mrf.mxu0
        %v10340 = vadd.f32 %v10275, %v10339
        %10341 = vmatmul.f32.gmra.mxu0 %v10015
        %v10342 = vpop.f32.mrf.mxu0
        %v10343 = vadd.f32 %v10278, %v10342
        %10344 = vmatmul.f32.gmra.mxu0 %v10017
        %v10345 = vpop.f32.mrf.mxu0
        %v10346 = vadd.f32 %v10281, %v10345
        %10347 = vdwg.mxu0
        %10348 = vst [vmem:[%s447] sm:$0xff] %v10171
        %10349 = vst [vmem:[%s447 + $0x8] sm:$0xff] %v10301
        %10350 = vst [vmem:[%s447 + $0x10] sm:$0xff] %v10174
        %10351 = vst [vmem:[%s447 + $0x18] sm:$0xff] %v10304
        %10352 = vst [vmem:[%s447 + $0x20] sm:$0xff] %v10177
        %10353 = vst [vmem:[%s447 + $0x28] sm:$0xff] %v10307
        %10354 = vst [vmem:[%s447 + $0x30] sm:$0xff] %v10180
        %10355 = vst [vmem:[%s447 + $0x38] sm:$0xff] %v10310
        %10356 = vst [vmem:[%s447 + $0x40] sm:$0xff] %v10183
        %10357 = vst [vmem:[%s447 + $0x48] sm:$0xff] %v10313
        %10358 = vst [vmem:[%s447 + $0x50] sm:$0xff] %v10186
        %10359 = vst [vmem:[%s447 + $0x58] sm:$0xff] %v10316
        %10360 = vst [vmem:[%s447 + $0x60] sm:$0xff] %v10189
        %10361 = vst [vmem:[%s447 + $0x68] sm:$0xff] %v10319
        %10362 = vst [vmem:[%s447 + $0x70] sm:$0xff] %v10192
        %10363 = vst [vmem:[%s447 + $0x78] sm:$0xff] %v10322
        %10364 = vst [vmem:[%s447 + $0x80] sm:$0xff] %v10195
        %10365 = vst [vmem:[%s447 + $0x88] sm:$0xff] %v10325
        %10366 = vst [vmem:[%s447 + $0x90] sm:$0xff] %v10198
        %10367 = vst [vmem:[%s447 + $0x98] sm:$0xff] %v10328
        %10368 = vst [vmem:[%s447 + $0xa0] sm:$0xff] %v10201
        %10369 = vst [vmem:[%s447 + $0xa8] sm:$0xff] %v10331
        %10370 = vst [vmem:[%s447 + $0xb0] sm:$0xff] %v10204
        %10371 = vst [vmem:[%s447 + $0xb8] sm:$0xff] %v10334
        %10372 = vst [vmem:[%s447 + $0xc0] sm:$0xff] %v10207
        %10373 = vst [vmem:[%s447 + $0xc8] sm:$0xff] %v10337
        %10374 = vst [vmem:[%s447 + $0xd0] sm:$0xff] %v10210
        %10375 = vst [vmem:[%s447 + $0xd8] sm:$0xff] %v10340
        %10376 = vst [vmem:[%s447 + $0xe0] sm:$0xff] %v10213
        %10377 = vst [vmem:[%s447 + $0xe8] sm:$0xff] %v10343
        %10378 = vst [vmem:[%s447 + $0xf0] sm:$0xff] %v10216
        %10379 = vst [vmem:[%s447 + $0xf8] sm:$0xff] %v10346
        %s10380 = sand.u32 %s245, 1
        %s10381 = scalar_lea.sflag [#allocation7], %s10380
        %s10382 = sand.u32 %s245, 1
        %s10383 = smul.addr %s10382, 256
        %s10384 = scalar_lea.vmem [#allocation16], %s10383
        // Predicated region
        $region141: #{tpu_custom_call.1} parent=55 // pred_check
          %p10385 = pneg %p255
        $region142: #{tpu_custom_call.1} parent=55 // pred_check_branch
          %10387 = sbr.rel (%p10385) target = $region144
        $region143: #{tpu_custom_call.1} parent=55 // pred_region
          %s10388 = smul.u32 16, %s34
          %10390 = vsyncadd %s10381, 0
          %s10391 = smul.addr %s10388, 2
          %s10392 = smul.addr %s33, 64
          %s10393 = sadd.s32 %s10391, %s10392
          %s10394 = smul.addr %s10393, 8
          %s10395 = scalar_lea.hbm %s9, %s10394
          %s10396 = sshll.u32 %s10384, 4
          %s10397 = int_to_ptr.vmem [resolvable:$true] %s10396
          %s10398 = sshll.u32 %s10395, 4
          %s10399 = int_to_ptr.hbm [resolvable:$true] %s10398
          %10404 = dma.vmem_to_hbm [thread:$0]  %s10397, 4096, %s10399, %s10381, 256, 256, 16
        $region144: #{tpu_custom_call.1} parent=55 // pred_fallthru
          _
      $region56: #{tpu_custom_call.1} parent=5 // pred_fallthru
        _
      %p10405 = scmp.le.s32.totalorder 2, %s24
      // Predicated region
      $region145: #{tpu_custom_call.1} parent=5 // pred_check
        %p10406 = pneg %p10405
      $region146: #{tpu_custom_call.1} parent=5 // pred_check_branch
        %10408 = sbr.rel (%p10406) target = $region148
      $region147: #{tpu_custom_call.1} parent=5 // pred_region
        %s10409 = ssub.s32 %s24, 2
        // Predicated region
        $region149: #{tpu_custom_call.1} parent=147 // pred_check
          %p10410 = pneg %p261
        $region150: #{tpu_custom_call.1} parent=147 // pred_check_branch
          %10412 = sbr.rel (%p10410) target = $region152
        $region151: #{tpu_custom_call.1} parent=147 // pred_region
          %s10413 = sand.u32 %s246, 1
          %s10414 = scalar_lea.sflag [#allocation7], %s10413
          %s10415 = sand.u32 %s246, 1
          %s10416 = smul.addr %s10415, 256
          %s10417 = scalar_lea.vmem [#allocation16], %s10416
          %10419 = dma.done %s10414, 4096
        $region152: #{tpu_custom_call.1} parent=147 // pred_fallthru
          _
      $region148: #{tpu_custom_call.1} parent=5 // pred_fallthru
        _
    $region6: #{tpu_custom_call.1} parent=1 // loop_footer
      %s28 = sadd.s32 1, %s24
    $region7: #{tpu_custom_call.1} parent=1 // loop_footer_branch
      %23 = sbr.rel target = $region3
    $region8: #{tpu_custom_call.1} parent=1 // loop_exit
      _
    %10420 = vsyncpa [#allocation6], 1
    %s10421 = scalar_lea.sflag [#allocation6], 1
    %10422 = vsyncpa %s10421, 1
    %10423 = vsyncpa [#allocation9], 1
    %10424 = vsyncpa [#allocation12], 1
    %10425 = vsyncpa [#allocation15], 1
    %10426 = vsyncpa [#allocation7], 1
    %s10427 = scalar_lea.sflag [#allocation7], 1
    %10428 = vsyncpa %s10427, 1

</llo_original>
